<compile_context>
chip_gen: v5e
topology: v5e:2x2
jax: 0.10.0
libtpu: 0.0.40
codegen_flags: <defaults>
</compile_context>

<pallas_src>
import functools
import math

import jax
import jax.numpy as jnp
from jax.experimental import pallas as pl
from jax.experimental.pallas import tpu as pltpu

_VMEM_LIMIT = 48 * 1024 * 1024   # <= 64 MiB physical VMEM on v7x, > v5e/v6e defaults


def _cp(sem):
    return pltpu.CompilerParams(dimension_semantics=sem, vmem_limit_bytes=_VMEM_LIMIT)


def _ceil_to(x, m):
    return (x + m - 1) // m * m


# ---------------------------------------------------------------------------
# Tiled fused matmul: out = act(x @ w + bias [+ residual]), K-accumulating grid
# ---------------------------------------------------------------------------
def _gelu(y):
    c = math.sqrt(2.0 / math.pi)
    return 0.5 * y * (1.0 + jnp.tanh(c * (y + 0.044715 * y * y * y)))


def _mm_kernel(x_ref, w_ref, b_ref, o_ref, acc_ref, *, act):
    @pl.when(pl.program_id(2) == 0)
    def _():
        acc_ref[...] = jnp.zeros_like(acc_ref)

    acc_ref[...] += jnp.dot(x_ref[...], w_ref[...], preferred_element_type=jnp.float32)

    @pl.when(pl.program_id(2) == pl.num_programs(2) - 1)
    def _():
        y = acc_ref[...] + b_ref[...]
        if act == "relu":
            y = jnp.maximum(y, 0.0)
        elif act == "gelu":
            y = _gelu(y)
        o_ref[...] = y.astype(o_ref.dtype)


def _mm_res_kernel(x_ref, w_ref, b_ref, r_ref, o_ref, acc_ref, *, act):
    @pl.when(pl.program_id(2) == 0)
    def _():
        acc_ref[...] = jnp.zeros_like(acc_ref)

    acc_ref[...] += jnp.dot(x_ref[...], w_ref[...], preferred_element_type=jnp.float32)

    @pl.when(pl.program_id(2) == pl.num_programs(2) - 1)
    def _():
        y = acc_ref[...] + b_ref[...] + r_ref[...].astype(jnp.float32)
        if act == "relu":
            y = jnp.maximum(y, 0.0)
        elif act == "gelu":
            y = _gelu(y)
        o_ref[...] = y.astype(o_ref.dtype)


def matmul_fused(x, w, b, residual=None, act=None, out_dtype=jnp.bfloat16,
                 tm=256, tn=256, tk=512):
    """act(x @ w + b [+ residual]), tiled on the MXU, bf16 in / f32 accumulate."""
    M, K = x.shape
    K2, N = w.shape
    assert K == K2 and b.shape == (1, N)
    # Full dim when it fits in one tile (always layout-legal), else aligned tile + pad.
    tm_e = M if M <= tm else tm
    tk_e = K if K <= tk else tk
    tn_e = N if N <= tn else tn
    Mp, Kp, Np = _ceil_to(M, tm_e), _ceil_to(K, tk_e), _ceil_to(N, tn_e)
    if (Mp, Kp) != (M, K):
        x = jnp.pad(x, ((0, Mp - M), (0, Kp - K)))
    if (Kp, Np) != (K, N):
        w = jnp.pad(w, ((0, Kp - K), (0, Np - N)))
    if Np != N:
        b = jnp.pad(b, ((0, 0), (0, Np - N)))

    grid = (Mp // tm_e, Np // tn_e, Kp // tk_e)
    in_specs = [
        pl.BlockSpec((tm_e, tk_e), lambda i, j, k: (i, k)),
        pl.BlockSpec((tk_e, tn_e), lambda i, j, k: (k, j)),
        pl.BlockSpec((1, tn_e), lambda i, j, k: (0, j)),
    ]
    operands = [x, w, b]
    if residual is not None:
        assert residual.shape == (M, N)
        if (Mp, Np) != (M, N):
            residual = jnp.pad(residual, ((0, Mp - M), (0, Np - N)))
        in_specs.append(pl.BlockSpec((tm_e, tn_e), lambda i, j, k: (i, j)))
        operands.append(residual)
        kern = functools.partial(_mm_res_kernel, act=act)
    else:
        kern = functools.partial(_mm_kernel, act=act)

    out = pl.pallas_call(
        kern,
        out_shape=jax.ShapeDtypeStruct((Mp, Np), out_dtype),
        grid=grid,
        in_specs=in_specs,
        out_specs=pl.BlockSpec((tm_e, tn_e), lambda i, j, k: (i, j)),
        scratch_shapes=[pltpu.VMEM((tm_e, tn_e), jnp.float32)],
        compiler_params=_cp(("parallel", "parallel", "arbitrary")),
    )(*operands)
    if (Mp, Np) != (M, N):
        out = out[:M, :N]
    return out


# ---------------------------------------------------------------------------
# LayerNorm (row-tiled, f32 statistics)
# ---------------------------------------------------------------------------
def _ln_kernel(x_ref, g_ref, b_ref, o_ref, *, eps):
    x = x_ref[...].astype(jnp.float32)
    mu = jnp.mean(x, axis=-1, keepdims=True)
    xc = x - mu
    var = jnp.mean(xc * xc, axis=-1, keepdims=True)
    y = xc * jax.lax.rsqrt(var + eps) * g_ref[...] + b_ref[...]
    o_ref[...] = y.astype(o_ref.dtype)


def layernorm(x, g, b, eps=1e-6, out_dtype=jnp.bfloat16, tm=256):
    M, D = x.shape
    tm_e = M if M <= tm else tm
    Mp = _ceil_to(M, tm_e)
    xp = jnp.pad(x, ((0, Mp - M), (0, 0))) if Mp != M else x
    y = pl.pallas_call(
        functools.partial(_ln_kernel, eps=eps),
        out_shape=jax.ShapeDtypeStruct((Mp, D), out_dtype),
        grid=(Mp // tm_e,),
        in_specs=[pl.BlockSpec((tm_e, D), lambda i: (i, 0)),
                  pl.BlockSpec((1, D), lambda i: (0, 0)),
                  pl.BlockSpec((1, D), lambda i: (0, 0))],
        out_specs=pl.BlockSpec((tm_e, D), lambda i: (i, 0)),
        compiler_params=_cp(("parallel",)),
    )(xp, g, b)
    return y[:M] if Mp != M else y


# ---------------------------------------------------------------------------
# Multi-head self-attention: one grid step per (batch, head)
# ---------------------------------------------------------------------------
def _attn_kernel(q_ref, k_ref, v_ref, o_ref, *, scale):
    q = q_ref[...]                                          # (S, dh) bf16
    k = k_ref[...]
    s = jax.lax.dot_general(q, k, (((1,), (1,)), ((), ())),
                            preferred_element_type=jnp.float32) * scale
    s = s - jnp.max(s, axis=-1, keepdims=True)
    p = jnp.exp(s)
    p = p / jnp.sum(p, axis=-1, keepdims=True)
    o = jnp.dot(p.astype(v_ref.dtype), v_ref[...], preferred_element_type=jnp.float32)
    o_ref[...] = o.astype(o_ref.dtype)


def attention(q, k, v, num_heads):
    B, S, D = q.shape
    dh = D // num_heads

    def split_heads(t):
        return t.reshape(B, S, num_heads, dh).transpose(0, 2, 1, 3).reshape(
            B * num_heads, S, dh)

    qh, kh, vh = split_heads(q), split_heads(k), split_heads(v)
    spec = pl.BlockSpec((None, S, dh), lambda i: (i, 0, 0))
    o = pl.pallas_call(
        functools.partial(_attn_kernel, scale=1.0 / math.sqrt(dh)),
        out_shape=jax.ShapeDtypeStruct((B * num_heads, S, dh), q.dtype),
        grid=(B * num_heads,),
        in_specs=[spec, spec, spec],
        out_specs=spec,
        compiler_params=_cp(("parallel",)),
    )(qh, kh, vh)
    return o.reshape(B, num_heads, S, dh).transpose(0, 2, 1, 3).reshape(B, S, D)


# ---------------------------------------------------------------------------
# Fused final Linear(feat_dim) + L2 normalize (lane-dense 128-wide output)
# ---------------------------------------------------------------------------
def _head_norm_kernel(x_ref, w_ref, b_ref, o_ref):
    y = jnp.dot(x_ref[...], w_ref[...], preferred_element_type=jnp.float32) + b_ref[...]
    nrm = jnp.sqrt(jnp.sum(y * y, axis=-1, keepdims=True))
    o_ref[...] = (y / jnp.maximum(nrm, 1e-12)).astype(o_ref.dtype)


def linear_l2_normalize(x, w, b, tm=256):
    M, D = x.shape
    _, F = w.shape
    tm_e = M if M <= tm else tm
    Mp = _ceil_to(M, tm_e)
    xp = jnp.pad(x, ((0, Mp - M), (0, 0))) if Mp != M else x
    out = pl.pallas_call(
        _head_norm_kernel,
        out_shape=jax.ShapeDtypeStruct((Mp, F), jnp.float32),
        grid=(Mp // tm_e,),
        in_specs=[pl.BlockSpec((tm_e, D), lambda i: (i, 0)),
                  pl.BlockSpec((D, F), lambda i: (0, 0)),
                  pl.BlockSpec((1, F), lambda i: (0, 0))],
        out_specs=pl.BlockSpec((tm_e, F), lambda i: (i, 0)),
        compiler_params=_cp(("parallel",)),
    )(xp, w, b)
    return out[:M] if Mp != M else out


# ---------------------------------------------------------------------------
# Forward pass: F.normalize(head(encoder(x)), dim=1)
# ---------------------------------------------------------------------------
def sup_vit_forward(params, cfg, x_nchw):
    B = x_nchw.shape[0]
    p, D, heads = cfg["patch"], cfg["dim"], cfg["heads"]

    # Patch embedding: non-overlapping patches == pure reshape (no im2col expansion).
    x = jnp.transpose(x_nchw, (0, 2, 3, 1)).astype(jnp.bfloat16)       # NHWC bf16
    _, H, W, C = x.shape
    gh, gw = H // p, W // p
    patches = x.reshape(B, gh, p, gw, p, C).transpose(0, 1, 3, 2, 4, 5)
    patches = patches.reshape(B * gh * gw, p * p * C)
    tok = matmul_fused(patches, params["patch_w"], params["patch_b"])   # (B*P, D)
    tok = tok.reshape(B, gh * gw, D)

    # cls token + position embedding (tiny elementwise glue).
    cls = jnp.broadcast_to(params["cls_token"], (B, 1, D)).astype(jnp.bfloat16)
    tok = jnp.concatenate([cls, tok], axis=1) + params["pos_embed"].astype(jnp.bfloat16)
    S = tok.shape[1]
    xseq = tok.reshape(B * S, D)

    # Pre-LN transformer blocks; residual adds fused into matmul epilogues.
    for blk in params["blocks"]:
        h = layernorm(xseq, blk["ln1_g"], blk["ln1_b"])
        qkv = matmul_fused(h, blk["qkv_w"], blk["qkv_b"]).reshape(B, S, 3, D)
        a = attention(qkv[:, :, 0, :], qkv[:, :, 1, :], qkv[:, :, 2, :], heads)
        xseq = matmul_fused(a.reshape(B * S, D), blk["proj_w"], blk["proj_b"],
                            residual=xseq)
        h = layernorm(xseq, blk["ln2_g"], blk["ln2_b"])
        h = matmul_fused(h, blk["fc1_w"], blk["fc1_b"], act="gelu")
        xseq = matmul_fused(h, blk["fc2_w"], blk["fc2_b"], residual=xseq)

    # Final LN, cls-token feature, projection head, fused L2 normalize.
    xseq = layernorm(xseq, params["ln_f_g"], params["ln_f_b"])
    feat = xseq.reshape(B, S, D)[:, 0, :]                               # (B, D)
    h = matmul_fused(feat, params["head1_w"], params["head1_b"], act="relu")
    return linear_l2_normalize(h, params["head2_w"], params["head2_b"])  # (B, feat_dim)


# ---------------------------------------------------------------------------
# Deterministic synthetic parameters (same structure as the module)
# ---------------------------------------------------------------------------
def _linear_params(key, fan_in, fan_out):
    kw, kb = jax.random.split(key)
    bound = 1.0 / math.sqrt(fan_in)
    w = jax.random.uniform(kw, (fan_in, fan_out), jnp.float32, -bound, bound)
    b = jax.random.uniform(kb, (1, fan_out), jnp.float32, -bound, bound)
    return w.astype(jnp.bfloat16), b


def init_sup_vit_params(key, cfg):
    p, C, D = cfg["patch"], cfg["in_chans"], cfg["dim"]
    depth, hidden, feat_dim = cfg["depth"], cfg["mlp_hidden"], cfg["feat_dim"]
    n_tok = (cfg["img"] // p) ** 2 + 1
    keys = iter(jax.random.split(key, 8 * depth + 8))

    params = {}
    params["patch_w"], params["patch_b"] = _linear_params(next(keys), p * p * C, D)
    params["cls_token"] = 0.02 * jax.random.normal(next(keys), (1, 1, D), jnp.float32)
    params["pos_embed"] = 0.02 * jax.random.normal(next(keys), (1, n_tok, D), jnp.float32)

    blocks = []
    for _ in range(depth):
        blk = {"ln1_g": jnp.ones((1, D), jnp.float32), "ln1_b": jnp.zeros((1, D), jnp.float32),
               "ln2_g": jnp.ones((1, D), jnp.float32), "ln2_b": jnp.zeros((1, D), jnp.float32)}
        blk["qkv_w"], blk["qkv_b"] = _linear_params(next(keys), D, 3 * D)
        blk["proj_w"], blk["proj_b"] = _linear_params(next(keys), D, D)
        blk["fc1_w"], blk["fc1_b"] = _linear_params(next(keys), D, hidden)
        blk["fc2_w"], blk["fc2_b"] = _linear_params(next(keys), hidden, D)
        blocks.append(blk)
    params["blocks"] = blocks
    params["ln_f_g"] = jnp.ones((1, D), jnp.float32)
    params["ln_f_b"] = jnp.zeros((1, D), jnp.float32)
    # head = 'mlp': Linear(D, D) -> ReLU -> Linear(D, feat_dim)
    params["head1_w"], params["head1_b"] = _linear_params(next(keys), D, D)
    params["head2_w"], params["head2_b"] = _linear_params(next(keys), D, feat_dim)
    return params


if __name__ == "__main__":
    cfg = dict(img=32, patch=8, in_chans=3, dim=256, depth=2, heads=4,
               mlp_hidden=1024, feat_dim=128)
    key = jax.random.PRNGKey(0)
    pkey, xkey = jax.random.split(key)
    params = init_sup_vit_params(pkey, cfg)
    x = jax.random.normal(xkey, (2, cfg["in_chans"], cfg["img"], cfg["img"]), jnp.float32)

    fwd = jax.jit(lambda inp: sup_vit_forward(params, cfg, inp))
    out = fwd(x)
    jax.block_until_ready(out)

    assert out.shape == (2, cfg["feat_dim"]) and out.dtype == jnp.float32
    norms = jnp.linalg.norm(out, axis=1)
    assert bool(jnp.all(jnp.isfinite(out)))
    assert bool(jnp.allclose(norms, 1.0, atol=1e-3))   # output rows are L2-normalized
    print("KERNEL_OK")
</pallas_src>

<mosaic_0001>
module attributes {stable_mosaic.version = 11 : i64} {
  func.func @_mm_kernel(%arg0: i32, %arg1: i32, %arg2: i32, %arg3: memref<32x192xbf16, #tpu.memory_space<vmem>>, %arg4: memref<192x256xbf16, #tpu.memory_space<vmem>>, %arg5: memref<1x256xf32, #tpu.memory_space<vmem>>, %arg6: memref<32x256xbf16, #tpu.memory_space<vmem>>, %arg7: memref<32x256xf32, #tpu.memory_space<vmem>>) attributes {dimension_semantics = [#tpu.dimension_semantics<parallel>, #tpu.dimension_semantics<parallel>, #tpu.dimension_semantics<arbitrary>], iteration_bounds = array<i64: 1, 1, 1>, scalar_prefetch = 0 : i64, scratch_operands = 1 : i64, tpu.core_type = #tpu.core_type<tc>, window_params = [{transform_indices = @transform_0, window_bounds = array<i64: 32, 192>}, {transform_indices = @transform_1, window_bounds = array<i64: 192, 256>}, {transform_indices = @transform_2, window_bounds = array<i64: 1, 256>}, {transform_indices = @transform_3, window_bounds = array<i64: 32, 256>}]} {
    %c0_i32 = arith.constant 0 : i32
    %0 = arith.cmpi eq, %arg2, %c0_i32 : i32
    %1 = arith.extui %0 : i1 to i32
    %c0_i32_0 = arith.constant 0 : i32
    %2 = arith.cmpi ne, %1, %c0_i32_0 : i32
    scf.if %2 {
      %cst_10 = arith.constant 0.000000e+00 : f32
      %12 = vector.broadcast %cst_10 : f32 to vector<32x256xf32>
      %c0_11 = arith.constant 0 : index
      %c0_12 = arith.constant 0 : index
      %13 = vector.load %arg7[%c0_11, %c0_12] : memref<32x256xf32, #tpu.memory_space<vmem>>, vector<32x256xf32>
      tpu.vector_store %arg7[%c0_11, %c0_12], %12 {strides = array<i32>} : memref<32x256xf32, #tpu.memory_space<vmem>>, vector<32x256xf32>,
    } else {
    }
    %c0 = arith.constant 0 : index
    %c0_1 = arith.constant 0 : index
    %3 = vector.load %arg7[%c0, %c0_1] : memref<32x256xf32, #tpu.memory_space<vmem>>, vector<32x256xf32>
    %c0_2 = arith.constant 0 : index
    %c0_3 = arith.constant 0 : index
    %4 = vector.load %arg3[%c0_2, %c0_3] : memref<32x192xbf16, #tpu.memory_space<vmem>>, vector<32x192xbf16>
    %c0_4 = arith.constant 0 : index
    %c0_5 = arith.constant 0 : index
    %5 = vector.load %arg4[%c0_4, %c0_5] : memref<192x256xbf16, #tpu.memory_space<vmem>>, vector<192x256xbf16>
    %cst = arith.constant dense<0.000000e+00> : vector<32x256xf32>
    %6 = tpu.matmul %4, %5, %cst {dimension_numbers = #tpu.dot_dimension_numbers<[1], [0], [0], [1], [0, 0, 1, 1], [], []>} : vector<32x192xbf16>, vector<192x256xbf16>, vector<32x256xf32> -> vector<32x256xf32>
    %7 = arith.addf %3, %6 : vector<32x256xf32>
    %c0_6 = arith.constant 0 : index
    %c0_7 = arith.constant 0 : index
    %8 = vector.load %arg7[%c0_6, %c0_7] : memref<32x256xf32, #tpu.memory_space<vmem>>, vector<32x256xf32>
    tpu.vector_store %arg7[%c0_6, %c0_7], %7 {strides = array<i32>} : memref<32x256xf32, #tpu.memory_space<vmem>>, vector<32x256xf32>,
    %c0_i32_8 = arith.constant 0 : i32
    %9 = arith.cmpi eq, %arg2, %c0_i32_8 : i32
    %10 = arith.extui %9 : i1 to i32
    %c0_i32_9 = arith.constant 0 : i32
    %11 = arith.cmpi ne, %10, %c0_i32_9 : i32
    scf.if %11 {
      %c0_10 = arith.constant 0 : index
      %c0_11 = arith.constant 0 : index
      %12 = vector.load %arg7[%c0_10, %c0_11] : memref<32x256xf32, #tpu.memory_space<vmem>>, vector<32x256xf32>
      %c0_12 = arith.constant 0 : index
      %c0_13 = arith.constant 0 : index
      %13 = vector.load %arg5[%c0_12, %c0_13] : memref<1x256xf32, #tpu.memory_space<vmem>>, vector<1x256xf32>
      %14 = vector.broadcast %13 : vector<1x256xf32> to vector<32x256xf32>
      %15 = arith.addf %12, %14 : vector<32x256xf32>
      %16 = arith.truncf %15 : vector<32x256xf32> to vector<32x256xbf16>
      %c0_14 = arith.constant 0 : index
      %c0_15 = arith.constant 0 : index
      %17 = vector.load %arg6[%c0_14, %c0_15] : memref<32x256xbf16, #tpu.memory_space<vmem>>, vector<32x256xbf16>
      tpu.vector_store %arg6[%c0_14, %c0_15], %16 {strides = array<i32>} : memref<32x256xbf16, #tpu.memory_space<vmem>>, vector<32x256xbf16>,
    } else {
    }
    return
  }
  func.func @transform_0(%arg0: i32, %arg1: i32, %arg2: i32) -> (i32, i32) {
    %c0_i32 = arith.constant 0 : i32
    return %arg0, %arg2 : i32, i32
  }
  func.func @transform_1(%arg0: i32, %arg1: i32, %arg2: i32) -> (i32, i32) {
    %c0_i32 = arith.constant 0 : i32
    return %arg2, %arg1 : i32, i32
  }
  func.func @transform_2(%arg0: i32, %arg1: i32, %arg2: i32) -> (i32, i32) {
    %c0_i32 = arith.constant 0 : i32
    %c0_i32_0 = arith.constant 0 : i32
    return %c0_i32, %arg1 : i32, i32
  }
  func.func @transform_3(%arg0: i32, %arg1: i32, %arg2: i32) -> (i32, i32) {
    %c0_i32 = arith.constant 0 : i32
    return %arg0, %arg1 : i32, i32
  }
}

module attributes {stable_mosaic.version = 11 : i64} {
  func.func @_ln_kernel(%arg0: i32, %arg1: memref<34x256xbf16, #tpu.memory_space<vmem>>, %arg2: memref<1x256xf32, #tpu.memory_space<vmem>>, %arg3: memref<1x256xf32, #tpu.memory_space<vmem>>, %arg4: memref<34x256xbf16, #tpu.memory_space<vmem>>) attributes {dimension_semantics = [#tpu.dimension_semantics<parallel>], iteration_bounds = array<i64: 1>, scalar_prefetch = 0 : i64, scratch_operands = 0 : i64, tpu.core_type = #tpu.core_type<tc>, window_params = [{transform_indices = @transform_0, window_bounds = array<i64: 34, 256>}, {pipeline_mode = #tpu.pipeline_mode<synchronous>, transform_indices = @transform_1, window_bounds = array<i64: 1, 256>}, {pipeline_mode = #tpu.pipeline_mode<synchronous>, transform_indices = @transform_2, window_bounds = array<i64: 1, 256>}, {transform_indices = @transform_3, window_bounds = array<i64: 34, 256>}]} {
    %c0 = arith.constant 0 : index
    %c0_0 = arith.constant 0 : index
    %0 = vector.load %arg1[%c0, %c0_0] : memref<34x256xbf16, #tpu.memory_space<vmem>>, vector<34x256xbf16>
    %1 = arith.extf %0 : vector<34x256xbf16> to vector<34x256xf32>
    %cst = arith.constant dense<0.000000e+00> : vector<34xf32>
    %2 = vector.multi_reduction <add>, %1, %cst [1] : vector<34x256xf32> to vector<34xf32>
    %3 = vector.shape_cast %2 : vector<34xf32> to vector<34x1xf32>
    %cst_1 = arith.constant 2.560000e+02 : f32
    %4 = vector.broadcast %cst_1 : f32 to vector<34x1xf32>
    %5 = arith.divf %3, %4 : vector<34x1xf32>
    %6 = vector.broadcast %5 : vector<34x1xf32> to vector<34x256xf32>
    %7 = arith.subf %1, %6 : vector<34x256xf32>
    %8 = arith.mulf %7, %7 : vector<34x256xf32>
    %cst_2 = arith.constant dense<0.000000e+00> : vector<34xf32>
    %9 = vector.multi_reduction <add>, %8, %cst_2 [1] : vector<34x256xf32> to vector<34xf32>
    %10 = vector.shape_cast %9 : vector<34xf32> to vector<34x1xf32>
    %cst_3 = arith.constant 2.560000e+02 : f32
    %11 = vector.broadcast %cst_3 : f32 to vector<34x1xf32>
    %12 = arith.divf %10, %11 : vector<34x1xf32>
    %cst_4 = arith.constant 9.99999997E-7 : f32
    %13 = vector.broadcast %cst_4 : f32 to vector<34x1xf32>
    %14 = arith.addf %12, %13 : vector<34x1xf32>
    %15 = math.rsqrt %14 : vector<34x1xf32>
    %16 = vector.broadcast %15 : vector<34x1xf32> to vector<34x256xf32>
    %17 = arith.mulf %7, %16 : vector<34x256xf32>
    %c0_5 = arith.constant 0 : index
    %c0_6 = arith.constant 0 : index
    %18 = vector.load %arg2[%c0_5, %c0_6] : memref<1x256xf32, #tpu.memory_space<vmem>>, vector<1x256xf32>
    %19 = vector.broadcast %18 : vector<1x256xf32> to vector<34x256xf32>
    %20 = arith.mulf %17, %19 : vector<34x256xf32>
    %c0_7 = arith.constant 0 : index
    %c0_8 = arith.constant 0 : index
    %21 = vector.load %arg3[%c0_7, %c0_8] : memref<1x256xf32, #tpu.memory_space<vmem>>, vector<1x256xf32>
    %22 = vector.broadcast %21 : vector<1x256xf32> to vector<34x256xf32>
    %23 = arith.addf %20, %22 : vector<34x256xf32>
    %24 = arith.truncf %23 : vector<34x256xf32> to vector<34x256xbf16>
    %c0_9 = arith.constant 0 : index
    %c0_10 = arith.constant 0 : index
    %25 = vector.load %arg4[%c0_9, %c0_10] : memref<34x256xbf16, #tpu.memory_space<vmem>>, vector<34x256xbf16>
    tpu.vector_store %arg4[%c0_9, %c0_10], %24 {strides = array<i32>} : memref<34x256xbf16, #tpu.memory_space<vmem>>, vector<34x256xbf16>,
    return
  }
  func.func @transform_0(%arg0: i32) -> (i32, i32) {
    %c0_i32 = arith.constant 0 : i32
    %c0_i32_0 = arith.constant 0 : i32
    return %arg0, %c0_i32 : i32, i32
  }
  func.func @transform_1(%arg0: i32) -> (i32, i32) {
    %c0_i32 = arith.constant 0 : i32
    %c0_i32_0 = arith.constant 0 : i32
    %c0_i32_1 = arith.constant 0 : i32
    return %c0_i32, %c0_i32_0 : i32, i32
  }
  func.func @transform_2(%arg0: i32) -> (i32, i32) {
    %c0_i32 = arith.constant 0 : i32
    %c0_i32_0 = arith.constant 0 : i32
    %c0_i32_1 = arith.constant 0 : i32
    return %c0_i32, %c0_i32_0 : i32, i32
  }
  func.func @transform_3(%arg0: i32) -> (i32, i32) {
    %c0_i32 = arith.constant 0 : i32
    %c0_i32_0 = arith.constant 0 : i32
    return %arg0, %c0_i32 : i32, i32
  }
}

module attributes {stable_mosaic.version = 11 : i64} {
  func.func @_mm_kernel(%arg0: i32, %arg1: i32, %arg2: i32, %arg3: memref<34x256xbf16, #tpu.memory_space<vmem>>, %arg4: memref<256x256xbf16, #tpu.memory_space<vmem>>, %arg5: memref<1x256xf32, #tpu.memory_space<vmem>>, %arg6: memref<34x256xbf16, #tpu.memory_space<vmem>>, %arg7: memref<34x256xf32, #tpu.memory_space<vmem>>) attributes {dimension_semantics = [#tpu.dimension_semantics<parallel>, #tpu.dimension_semantics<parallel>, #tpu.dimension_semantics<arbitrary>], iteration_bounds = array<i64: 1, 3, 1>, scalar_prefetch = 0 : i64, scratch_operands = 1 : i64, tpu.core_type = #tpu.core_type<tc>, window_params = [{transform_indices = @transform_0, window_bounds = array<i64: 34, 256>}, {transform_indices = @transform_1, window_bounds = array<i64: 256, 256>}, {transform_indices = @transform_2, window_bounds = array<i64: 1, 256>}, {transform_indices = @transform_3, window_bounds = array<i64: 34, 256>}]} {
    %c0_i32 = arith.constant 0 : i32
    %0 = arith.cmpi eq, %arg2, %c0_i32 : i32
    %1 = arith.extui %0 : i1 to i32
    %c0_i32_0 = arith.constant 0 : i32
    %2 = arith.cmpi ne, %1, %c0_i32_0 : i32
    scf.if %2 {
      %cst_10 = arith.constant 0.000000e+00 : f32
      %12 = vector.broadcast %cst_10 : f32 to vector<34x256xf32>
      %c0_11 = arith.constant 0 : index
      %c0_12 = arith.constant 0 : index
      %13 = vector.load %arg7[%c0_11, %c0_12] : memref<34x256xf32, #tpu.memory_space<vmem>>, vector<34x256xf32>
      tpu.vector_store %arg7[%c0_11, %c0_12], %12 {strides = array<i32>} : memref<34x256xf32, #tpu.memory_space<vmem>>, vector<34x256xf32>,
    } else {
    }
    %c0 = arith.constant 0 : index
    %c0_1 = arith.constant 0 : index
    %3 = vector.load %arg7[%c0, %c0_1] : memref<34x256xf32, #tpu.memory_space<vmem>>, vector<34x256xf32>
    %c0_2 = arith.constant 0 : index
    %c0_3 = arith.constant 0 : index
    %4 = vector.load %arg3[%c0_2, %c0_3] : memref<34x256xbf16, #tpu.memory_space<vmem>>, vector<34x256xbf16>
    %c0_4 = arith.constant 0 : index
    %c0_5 = arith.constant 0 : index
    %5 = vector.load %arg4[%c0_4, %c0_5] : memref<256x256xbf16, #tpu.memory_space<vmem>>, vector<256x256xbf16>
    %cst = arith.constant dense<0.000000e+00> : vector<34x256xf32>
    %6 = tpu.matmul %4, %5, %cst {dimension_numbers = #tpu.dot_dimension_numbers<[1], [0], [0], [1], [0, 0, 1, 1], [], []>} : vector<34x256xbf16>, vector<256x256xbf16>, vector<34x256xf32> -> vector<34x256xf32>
    %7 = arith.addf %3, %6 : vector<34x256xf32>
    %c0_6 = arith.constant 0 : index
    %c0_7 = arith.constant 0 : index
    %8 = vector.load %arg7[%c0_6, %c0_7] : memref<34x256xf32, #tpu.memory_space<vmem>>, vector<34x256xf32>
    tpu.vector_store %arg7[%c0_6, %c0_7], %7 {strides = array<i32>} : memref<34x256xf32, #tpu.memory_space<vmem>>, vector<34x256xf32>,
    %c0_i32_8 = arith.constant 0 : i32
    %9 = arith.cmpi eq, %arg2, %c0_i32_8 : i32
    %10 = arith.extui %9 : i1 to i32
    %c0_i32_9 = arith.constant 0 : i32
    %11 = arith.cmpi ne, %10, %c0_i32_9 : i32
    scf.if %11 {
      %c0_10 = arith.constant 0 : index
      %c0_11 = arith.constant 0 : index
      %12 = vector.load %arg7[%c0_10, %c0_11] : memref<34x256xf32, #tpu.memory_space<vmem>>, vector<34x256xf32>
      %c0_12 = arith.constant 0 : index
      %c0_13 = arith.constant 0 : index
      %13 = vector.load %arg5[%c0_12, %c0_13] : memref<1x256xf32, #tpu.memory_space<vmem>>, vector<1x256xf32>
      %14 = vector.broadcast %13 : vector<1x256xf32> to vector<34x256xf32>
      %15 = arith.addf %12, %14 : vector<34x256xf32>
      %16 = arith.truncf %15 : vector<34x256xf32> to vector<34x256xbf16>
      %c0_14 = arith.constant 0 : index
      %c0_15 = arith.constant 0 : index
      %17 = vector.load %arg6[%c0_14, %c0_15] : memref<34x256xbf16, #tpu.memory_space<vmem>>, vector<34x256xbf16>
      tpu.vector_store %arg6[%c0_14, %c0_15], %16 {strides = array<i32>} : memref<34x256xbf16, #tpu.memory_space<vmem>>, vector<34x256xbf16>,
    } else {
    }
    return
  }
  func.func @transform_0(%arg0: i32, %arg1: i32, %arg2: i32) -> (i32, i32) {
    %c0_i32 = arith.constant 0 : i32
    return %arg0, %arg2 : i32, i32
  }
  func.func @transform_1(%arg0: i32, %arg1: i32, %arg2: i32) -> (i32, i32) {
    %c0_i32 = arith.constant 0 : i32
    return %arg2, %arg1 : i32, i32
  }
  func.func @transform_2(%arg0: i32, %arg1: i32, %arg2: i32) -> (i32, i32) {
    %c0_i32 = arith.constant 0 : i32
    %c0_i32_0 = arith.constant 0 : i32
    return %c0_i32, %arg1 : i32, i32
  }
  func.func @transform_3(%arg0: i32, %arg1: i32, %arg2: i32) -> (i32, i32) {
    %c0_i32 = arith.constant 0 : i32
    return %arg0, %arg1 : i32, i32
  }
}

module attributes {stable_mosaic.version = 11 : i64} {
  func.func @_mm_res_kernel(%arg0: i32, %arg1: i32, %arg2: i32, %arg3: memref<34x256xbf16, #tpu.memory_space<vmem>>, %arg4: memref<256x256xbf16, #tpu.memory_space<vmem>>, %arg5: memref<1x256xf32, #tpu.memory_space<vmem>>, %arg6: memref<34x256xbf16, #tpu.memory_space<vmem>>, %arg7: memref<34x256xbf16, #tpu.memory_space<vmem>>, %arg8: memref<34x256xf32, #tpu.memory_space<vmem>>) attributes {dimension_semantics = [#tpu.dimension_semantics<parallel>, #tpu.dimension_semantics<parallel>, #tpu.dimension_semantics<arbitrary>], iteration_bounds = array<i64: 1, 1, 1>, scalar_prefetch = 0 : i64, scratch_operands = 1 : i64, tpu.core_type = #tpu.core_type<tc>, window_params = [{transform_indices = @transform_0, window_bounds = array<i64: 34, 256>}, {transform_indices = @transform_1, window_bounds = array<i64: 256, 256>}, {transform_indices = @transform_2, window_bounds = array<i64: 1, 256>}, {transform_indices = @transform_3, window_bounds = array<i64: 34, 256>}, {transform_indices = @transform_4, window_bounds = array<i64: 34, 256>}]} {
    %c0_i32 = arith.constant 0 : i32
    %0 = arith.cmpi eq, %arg2, %c0_i32 : i32
    %1 = arith.extui %0 : i1 to i32
    %c0_i32_0 = arith.constant 0 : i32
    %2 = arith.cmpi ne, %1, %c0_i32_0 : i32
    scf.if %2 {
      %cst_10 = arith.constant 0.000000e+00 : f32
      %12 = vector.broadcast %cst_10 : f32 to vector<34x256xf32>
      %c0_11 = arith.constant 0 : index
      %c0_12 = arith.constant 0 : index
      %13 = vector.load %arg8[%c0_11, %c0_12] : memref<34x256xf32, #tpu.memory_space<vmem>>, vector<34x256xf32>
      tpu.vector_store %arg8[%c0_11, %c0_12], %12 {strides = array<i32>} : memref<34x256xf32, #tpu.memory_space<vmem>>, vector<34x256xf32>,
    } else {
    }
    %c0 = arith.constant 0 : index
    %c0_1 = arith.constant 0 : index
    %3 = vector.load %arg8[%c0, %c0_1] : memref<34x256xf32, #tpu.memory_space<vmem>>, vector<34x256xf32>
    %c0_2 = arith.constant 0 : index
    %c0_3 = arith.constant 0 : index
    %4 = vector.load %arg3[%c0_2, %c0_3] : memref<34x256xbf16, #tpu.memory_space<vmem>>, vector<34x256xbf16>
    %c0_4 = arith.constant 0 : index
    %c0_5 = arith.constant 0 : index
    %5 = vector.load %arg4[%c0_4, %c0_5] : memref<256x256xbf16, #tpu.memory_space<vmem>>, vector<256x256xbf16>
    %cst = arith.constant dense<0.000000e+00> : vector<34x256xf32>
    %6 = tpu.matmul %4, %5, %cst {dimension_numbers = #tpu.dot_dimension_numbers<[1], [0], [0], [1], [0, 0, 1, 1], [], []>} : vector<34x256xbf16>, vector<256x256xbf16>, vector<34x256xf32> -> vector<34x256xf32>
    %7 = arith.addf %3, %6 : vector<34x256xf32>
    %c0_6 = arith.constant 0 : index
    %c0_7 = arith.constant 0 : index
    %8 = vector.load %arg8[%c0_6, %c0_7] : memref<34x256xf32, #tpu.memory_space<vmem>>, vector<34x256xf32>
    tpu.vector_store %arg8[%c0_6, %c0_7], %7 {strides = array<i32>} : memref<34x256xf32, #tpu.memory_space<vmem>>, vector<34x256xf32>,
    %c0_i32_8 = arith.constant 0 : i32
    %9 = arith.cmpi eq, %arg2, %c0_i32_8 : i32
    %10 = arith.extui %9 : i1 to i32
    %c0_i32_9 = arith.constant 0 : i32
    %11 = arith.cmpi ne, %10, %c0_i32_9 : i32
    scf.if %11 {
      %c0_10 = arith.constant 0 : index
      %c0_11 = arith.constant 0 : index
      %12 = vector.load %arg8[%c0_10, %c0_11] : memref<34x256xf32, #tpu.memory_space<vmem>>, vector<34x256xf32>
      %c0_12 = arith.constant 0 : index
      %c0_13 = arith.constant 0 : index
      %13 = vector.load %arg5[%c0_12, %c0_13] : memref<1x256xf32, #tpu.memory_space<vmem>>, vector<1x256xf32>
      %14 = vector.broadcast %13 : vector<1x256xf32> to vector<34x256xf32>
      %15 = arith.addf %12, %14 : vector<34x256xf32>
      %c0_14 = arith.constant 0 : index
      %c0_15 = arith.constant 0 : index
      %16 = vector.load %arg6[%c0_14, %c0_15] : memref<34x256xbf16, #tpu.memory_space<vmem>>, vector<34x256xbf16>
      %17 = arith.extf %16 : vector<34x256xbf16> to vector<34x256xf32>
      %18 = arith.addf %15, %17 : vector<34x256xf32>
      %19 = arith.truncf %18 : vector<34x256xf32> to vector<34x256xbf16>
      %c0_16 = arith.constant 0 : index
      %c0_17 = arith.constant 0 : index
      %20 = vector.load %arg7[%c0_16, %c0_17] : memref<34x256xbf16, #tpu.memory_space<vmem>>, vector<34x256xbf16>
      tpu.vector_store %arg7[%c0_16, %c0_17], %19 {strides = array<i32>} : memref<34x256xbf16, #tpu.memory_space<vmem>>, vector<34x256xbf16>,
    } else {
    }
    return
  }
  func.func @transform_0(%arg0: i32, %arg1: i32, %arg2: i32) -> (i32, i32) {
    %c0_i32 = arith.constant 0 : i32
    return %arg0, %arg2 : i32, i32
  }
  func.func @transform_1(%arg0: i32, %arg1: i32, %arg2: i32) -> (i32, i32) {
    %c0_i32 = arith.constant 0 : i32
    return %arg2, %arg1 : i32, i32
  }
  func.func @transform_2(%arg0: i32, %arg1: i32, %arg2: i32) -> (i32, i32) {
    %c0_i32 = arith.constant 0 : i32
    %c0_i32_0 = arith.constant 0 : i32
    return %c0_i32, %arg1 : i32, i32
  }
  func.func @transform_3(%arg0: i32, %arg1: i32, %arg2: i32) -> (i32, i32) {
    %c0_i32 = arith.constant 0 : i32
    return %arg0, %arg1 : i32, i32
  }
  func.func @transform_4(%arg0: i32, %arg1: i32, %arg2: i32) -> (i32, i32) {
    %c0_i32 = arith.constant 0 : i32
    return %arg0, %arg1 : i32, i32
  }
}

module attributes {stable_mosaic.version = 11 : i64} {
  func.func @_mm_kernel(%arg0: i32, %arg1: i32, %arg2: i32, %arg3: memref<34x256xbf16, #tpu.memory_space<vmem>>, %arg4: memref<256x256xbf16, #tpu.memory_space<vmem>>, %arg5: memref<1x256xf32, #tpu.memory_space<vmem>>, %arg6: memref<34x256xbf16, #tpu.memory_space<vmem>>, %arg7: memref<34x256xf32, #tpu.memory_space<vmem>>) attributes {dimension_semantics = [#tpu.dimension_semantics<parallel>, #tpu.dimension_semantics<parallel>, #tpu.dimension_semantics<arbitrary>], iteration_bounds = array<i64: 1, 4, 1>, scalar_prefetch = 0 : i64, scratch_operands = 1 : i64, tpu.core_type = #tpu.core_type<tc>, window_params = [{transform_indices = @transform_0, window_bounds = array<i64: 34, 256>}, {transform_indices = @transform_1, window_bounds = array<i64: 256, 256>}, {transform_indices = @transform_2, window_bounds = array<i64: 1, 256>}, {transform_indices = @transform_3, window_bounds = array<i64: 34, 256>}]} {
    %c0_i32 = arith.constant 0 : i32
    %0 = arith.cmpi eq, %arg2, %c0_i32 : i32
    %1 = arith.extui %0 : i1 to i32
    %c0_i32_0 = arith.constant 0 : i32
    %2 = arith.cmpi ne, %1, %c0_i32_0 : i32
    scf.if %2 {
      %cst_10 = arith.constant 0.000000e+00 : f32
      %12 = vector.broadcast %cst_10 : f32 to vector<34x256xf32>
      %c0_11 = arith.constant 0 : index
      %c0_12 = arith.constant 0 : index
      %13 = vector.load %arg7[%c0_11, %c0_12] : memref<34x256xf32, #tpu.memory_space<vmem>>, vector<34x256xf32>
      tpu.vector_store %arg7[%c0_11, %c0_12], %12 {strides = array<i32>} : memref<34x256xf32, #tpu.memory_space<vmem>>, vector<34x256xf32>,
    } else {
    }
    %c0 = arith.constant 0 : index
    %c0_1 = arith.constant 0 : index
    %3 = vector.load %arg7[%c0, %c0_1] : memref<34x256xf32, #tpu.memory_space<vmem>>, vector<34x256xf32>
    %c0_2 = arith.constant 0 : index
    %c0_3 = arith.constant 0 : index
    %4 = vector.load %arg3[%c0_2, %c0_3] : memref<34x256xbf16, #tpu.memory_space<vmem>>, vector<34x256xbf16>
    %c0_4 = arith.constant 0 : index
    %c0_5 = arith.constant 0 : index
    %5 = vector.load %arg4[%c0_4, %c0_5] : memref<256x256xbf16, #tpu.memory_space<vmem>>, vector<256x256xbf16>
    %cst = arith.constant dense<0.000000e+00> : vector<34x256xf32>
    %6 = tpu.matmul %4, %5, %cst {dimension_numbers = #tpu.dot_dimension_numbers<[1], [0], [0], [1], [0, 0, 1, 1], [], []>} : vector<34x256xbf16>, vector<256x256xbf16>, vector<34x256xf32> -> vector<34x256xf32>
    %7 = arith.addf %3, %6 : vector<34x256xf32>
    %c0_6 = arith.constant 0 : index
    %c0_7 = arith.constant 0 : index
    %8 = vector.load %arg7[%c0_6, %c0_7] : memref<34x256xf32, #tpu.memory_space<vmem>>, vector<34x256xf32>
    tpu.vector_store %arg7[%c0_6, %c0_7], %7 {strides = array<i32>} : memref<34x256xf32, #tpu.memory_space<vmem>>, vector<34x256xf32>,
    %c0_i32_8 = arith.constant 0 : i32
    %9 = arith.cmpi eq, %arg2, %c0_i32_8 : i32
    %10 = arith.extui %9 : i1 to i32
    %c0_i32_9 = arith.constant 0 : i32
    %11 = arith.cmpi ne, %10, %c0_i32_9 : i32
    scf.if %11 {
      %c0_10 = arith.constant 0 : index
      %c0_11 = arith.constant 0 : index
      %12 = vector.load %arg7[%c0_10, %c0_11] : memref<34x256xf32, #tpu.memory_space<vmem>>, vector<34x256xf32>
      %c0_12 = arith.constant 0 : index
      %c0_13 = arith.constant 0 : index
      %13 = vector.load %arg5[%c0_12, %c0_13] : memref<1x256xf32, #tpu.memory_space<vmem>>, vector<1x256xf32>
      %14 = vector.broadcast %13 : vector<1x256xf32> to vector<34x256xf32>
      %15 = arith.addf %12, %14 : vector<34x256xf32>
      %cst_14 = arith.constant 5.000000e-01 : f32
      %16 = vector.broadcast %cst_14 : f32 to vector<34x256xf32>
      %17 = arith.mulf %16, %15 : vector<34x256xf32>
      %cst_15 = arith.constant 4.471500e-02 : f32
      %18 = vector.broadcast %cst_15 : f32 to vector<34x256xf32>
      %19 = arith.mulf %18, %15 : vector<34x256xf32>
      %20 = arith.mulf %19, %15 : vector<34x256xf32>
      %21 = arith.mulf %20, %15 : vector<34x256xf32>
      %22 = arith.addf %15, %21 : vector<34x256xf32>
      %cst_16 = arith.constant 0.797884583 : f32
      %23 = vector.broadcast %cst_16 : f32 to vector<34x256xf32>
      %24 = arith.mulf %23, %22 : vector<34x256xf32>
      %25 = math.tanh %24 : vector<34x256xf32>
      %cst_17 = arith.constant 1.000000e+00 : f32
      %26 = vector.broadcast %cst_17 : f32 to vector<34x256xf32>
      %27 = arith.addf %26, %25 : vector<34x256xf32>
      %28 = arith.mulf %17, %27 : vector<34x256xf32>
      %29 = arith.truncf %28 : vector<34x256xf32> to vector<34x256xbf16>
      %c0_18 = arith.constant 0 : index
      %c0_19 = arith.constant 0 : index
      %30 = vector.load %arg6[%c0_18, %c0_19] : memref<34x256xbf16, #tpu.memory_space<vmem>>, vector<34x256xbf16>
      tpu.vector_store %arg6[%c0_18, %c0_19], %29 {strides = array<i32>} : memref<34x256xbf16, #tpu.memory_space<vmem>>, vector<34x256xbf16>,
    } else {
    }
    return
  }
  func.func @transform_0(%arg0: i32, %arg1: i32, %arg2: i32) -> (i32, i32) {
    %c0_i32 = arith.constant 0 : i32
    return %arg0, %arg2 : i32, i32
  }
  func.func @transform_1(%arg0: i32, %arg1: i32, %arg2: i32) -> (i32, i32) {
    %c0_i32 = arith.constant 0 : i32
    return %arg2, %arg1 : i32, i32
  }
  func.func @transform_2(%arg0: i32, %arg1: i32, %arg2: i32) -> (i32, i32) {
    %c0_i32 = arith.constant 0 : i32
    %c0_i32_0 = arith.constant 0 : i32
    return %c0_i32, %arg1 : i32, i32
  }
  func.func @transform_3(%arg0: i32, %arg1: i32, %arg2: i32) -> (i32, i32) {
    %c0_i32 = arith.constant 0 : i32
    return %arg0, %arg1 : i32, i32
  }
}

module attributes {stable_mosaic.version = 11 : i64} {
  func.func @_attn_kernel(%arg0: i32, %arg1: memref<1x17x64xbf16, #tpu.memory_space<vmem>>, %arg2: memref<1x17x64xbf16, #tpu.memory_space<vmem>>, %arg3: memref<1x17x64xbf16, #tpu.memory_space<vmem>>, %arg4: memref<1x17x64xbf16, #tpu.memory_space<vmem>>) attributes {dimension_semantics = [#tpu.dimension_semantics<parallel>], iteration_bounds = array<i64: 8>, scalar_prefetch = 0 : i64, scratch_operands = 0 : i64, tpu.core_type = #tpu.core_type<tc>, window_params = [{transform_indices = @transform_0, window_bounds = array<i64: 1, 17, 64>}, {transform_indices = @transform_1, window_bounds = array<i64: 1, 17, 64>}, {transform_indices = @transform_2, window_bounds = array<i64: 1, 17, 64>}, {transform_indices = @transform_3, window_bounds = array<i64: 1, 17, 64>}]} {
    %c0 = arith.constant 0 : index
    %c0_0 = arith.constant 0 : index
    %c0_1 = arith.constant 0 : index
    %0 = vector.load %arg1[%c0, %c0_0, %c0_1] : memref<1x17x64xbf16, #tpu.memory_space<vmem>>, vector<1x17x64xbf16>
    %1 = vector.shape_cast %0 : vector<1x17x64xbf16> to vector<17x64xbf16>
    %c0_2 = arith.constant 0 : index
    %c0_3 = arith.constant 0 : index
    %c0_4 = arith.constant 0 : index
    %2 = vector.load %arg2[%c0_2, %c0_3, %c0_4] : memref<1x17x64xbf16, #tpu.memory_space<vmem>>, vector<1x17x64xbf16>
    %3 = vector.shape_cast %2 : vector<1x17x64xbf16> to vector<17x64xbf16>
    %cst = arith.constant dense<0.000000e+00> : vector<17x17xf32>
    %4 = tpu.matmul %1, %3, %cst {dimension_numbers = #tpu.dot_dimension_numbers<[1], [1], [0], [0], [0, 0, 1, 0], [], []>} : vector<17x64xbf16>, vector<17x64xbf16>, vector<17x17xf32> -> vector<17x17xf32>
    %cst_5 = arith.constant 1.250000e-01 : f32
    %5 = vector.broadcast %cst_5 : f32 to vector<17x17xf32>
    %6 = arith.mulf %4, %5 : vector<17x17xf32>
    %cst_6 = arith.constant dense<0xFF800000> : vector<17xf32>
    %7 = vector.multi_reduction <maximumf>, %6, %cst_6 [1] : vector<17x17xf32> to vector<17xf32>
    %8 = vector.shape_cast %7 : vector<17xf32> to vector<17x1xf32>
    %9 = vector.broadcast %8 : vector<17x1xf32> to vector<17x17xf32>
    %10 = arith.subf %6, %9 : vector<17x17xf32>
    %11 = math.exp %10 : vector<17x17xf32>
    %cst_7 = arith.constant dense<0.000000e+00> : vector<17xf32>
    %12 = vector.multi_reduction <add>, %11, %cst_7 [1] : vector<17x17xf32> to vector<17xf32>
    %13 = vector.shape_cast %12 : vector<17xf32> to vector<17x1xf32>
    %14 = vector.broadcast %13 : vector<17x1xf32> to vector<17x17xf32>
    %15 = arith.divf %11, %14 : vector<17x17xf32>
    %16 = arith.truncf %15 : vector<17x17xf32> to vector<17x17xbf16>
    %c0_8 = arith.constant 0 : index
    %c0_9 = arith.constant 0 : index
    %c0_10 = arith.constant 0 : index
    %17 = vector.load %arg3[%c0_8, %c0_9, %c0_10] : memref<1x17x64xbf16, #tpu.memory_space<vmem>>, vector<1x17x64xbf16>
    %18 = vector.shape_cast %17 : vector<1x17x64xbf16> to vector<17x64xbf16>
    %cst_11 = arith.constant dense<0.000000e+00> : vector<17x64xf32>
    %19 = tpu.matmul %16, %18, %cst_11 {dimension_numbers = #tpu.dot_dimension_numbers<[1], [0], [0], [1], [0, 0, 1, 1], [], []>} : vector<17x17xbf16>, vector<17x64xbf16>, vector<17x64xf32> -> vector<17x64xf32>
    %20 = arith.truncf %19 : vector<17x64xf32> to vector<17x64xbf16>
    %c0_12 = arith.constant 0 : index
    %c0_13 = arith.constant 0 : index
    %c0_14 = arith.constant 0 : index
    %21 = vector.load %arg4[%c0_12, %c0_13, %c0_14] : memref<1x17x64xbf16, #tpu.memory_space<vmem>>, vector<1x17x64xbf16>
    %22 = vector.shape_cast %21 : vector<1x17x64xbf16> to vector<17x64xbf16>
    %23 = vector.shape_cast %20 : vector<17x64xbf16> to vector<1x17x64xbf16>
    tpu.vector_store %arg4[%c0_12, %c0_13, %c0_14], %23 {strides = array<i32>} : memref<1x17x64xbf16, #tpu.memory_space<vmem>>, vector<1x17x64xbf16>,
    return
  }
  func.func @transform_0(%arg0: i32) -> (i32, i32, i32) {
    %c0_i32 = arith.constant 0 : i32
    %c0_i32_0 = arith.constant 0 : i32
    %c0_i32_1 = arith.constant 0 : i32
    return %arg0, %c0_i32, %c0_i32_0 : i32, i32, i32
  }
  func.func @transform_1(%arg0: i32) -> (i32, i32, i32) {
    %c0_i32 = arith.constant 0 : i32
    %c0_i32_0 = arith.constant 0 : i32
    %c0_i32_1 = arith.constant 0 : i32
    return %arg0, %c0_i32, %c0_i32_0 : i32, i32, i32
  }
  func.func @transform_2(%arg0: i32) -> (i32, i32, i32) {
    %c0_i32 = arith.constant 0 : i32
    %c0_i32_0 = arith.constant 0 : i32
    %c0_i32_1 = arith.constant 0 : i32
    return %arg0, %c0_i32, %c0_i32_0 : i32, i32, i32
  }
  func.func @transform_3(%arg0: i32) -> (i32, i32, i32) {
    %c0_i32 = arith.constant 0 : i32
    %c0_i32_0 = arith.constant 0 : i32
    %c0_i32_1 = arith.constant 0 : i32
    return %arg0, %c0_i32, %c0_i32_0 : i32, i32, i32
  }
}

module attributes {stable_mosaic.version = 11 : i64} {
  func.func @_mm_res_kernel(%arg0: i32, %arg1: i32, %arg2: i32, %arg3: memref<34x512xbf16, #tpu.memory_space<vmem>>, %arg4: memref<512x256xbf16, #tpu.memory_space<vmem>>, %arg5: memref<1x256xf32, #tpu.memory_space<vmem>>, %arg6: memref<34x256xbf16, #tpu.memory_space<vmem>>, %arg7: memref<34x256xbf16, #tpu.memory_space<vmem>>, %arg8: memref<34x256xf32, #tpu.memory_space<vmem>>) attributes {dimension_semantics = [#tpu.dimension_semantics<parallel>, #tpu.dimension_semantics<parallel>, #tpu.dimension_semantics<arbitrary>], iteration_bounds = array<i64: 1, 1, 2>, scalar_prefetch = 0 : i64, scratch_operands = 1 : i64, tpu.core_type = #tpu.core_type<tc>, window_params = [{transform_indices = @transform_0, window_bounds = array<i64: 34, 512>}, {transform_indices = @transform_1, window_bounds = array<i64: 512, 256>}, {transform_indices = @transform_2, window_bounds = array<i64: 1, 256>}, {transform_indices = @transform_3, window_bounds = array<i64: 34, 256>}, {transform_indices = @transform_4, window_bounds = array<i64: 34, 256>}]} {
    %c0_i32 = arith.constant 0 : i32
    %0 = arith.cmpi eq, %arg2, %c0_i32 : i32
    %1 = arith.extui %0 : i1 to i32
    %c0_i32_0 = arith.constant 0 : i32
    %2 = arith.cmpi ne, %1, %c0_i32_0 : i32
    scf.if %2 {
      %cst_9 = arith.constant 0.000000e+00 : f32
      %12 = vector.broadcast %cst_9 : f32 to vector<34x256xf32>
      %c0_10 = arith.constant 0 : index
      %c0_11 = arith.constant 0 : index
      %13 = vector.load %arg8[%c0_10, %c0_11] : memref<34x256xf32, #tpu.memory_space<vmem>>, vector<34x256xf32>
      tpu.vector_store %arg8[%c0_10, %c0_11], %12 {strides = array<i32>} : memref<34x256xf32, #tpu.memory_space<vmem>>, vector<34x256xf32>,
    } else {
    }
    %c0 = arith.constant 0 : index
    %c0_1 = arith.constant 0 : index
    %3 = vector.load %arg8[%c0, %c0_1] : memref<34x256xf32, #tpu.memory_space<vmem>>, vector<34x256xf32>
    %c0_2 = arith.constant 0 : index
    %c0_3 = arith.constant 0 : index
    %4 = vector.load %arg3[%c0_2, %c0_3] : memref<34x512xbf16, #tpu.memory_space<vmem>>, vector<34x512xbf16>
    %c0_4 = arith.constant 0 : index
    %c0_5 = arith.constant 0 : index
    %5 = vector.load %arg4[%c0_4, %c0_5] : memref<512x256xbf16, #tpu.memory_space<vmem>>, vector<512x256xbf16>
    %cst = arith.constant dense<0.000000e+00> : vector<34x256xf32>
    %6 = tpu.matmul %4, %5, %cst {dimension_numbers = #tpu.dot_dimension_numbers<[1], [0], [0], [1], [0, 0, 1, 1], [], []>} : vector<34x512xbf16>, vector<512x256xbf16>, vector<34x256xf32> -> vector<34x256xf32>
    %7 = arith.addf %3, %6 : vector<34x256xf32>
    %c0_6 = arith.constant 0 : index
    %c0_7 = arith.constant 0 : index
    %8 = vector.load %arg8[%c0_6, %c0_7] : memref<34x256xf32, #tpu.memory_space<vmem>>, vector<34x256xf32>
    tpu.vector_store %arg8[%c0_6, %c0_7], %7 {strides = array<i32>} : memref<34x256xf32, #tpu.memory_space<vmem>>, vector<34x256xf32>,
    %c1_i32 = arith.constant 1 : i32
    %9 = arith.cmpi eq, %arg2, %c1_i32 : i32
    %10 = arith.extui %9 : i1 to i32
    %c0_i32_8 = arith.constant 0 : i32
    %11 = arith.cmpi ne, %10, %c0_i32_8 : i32
    scf.if %11 {
      %c0_9 = arith.constant 0 : index
      %c0_10 = arith.constant 0 : index
      %12 = vector.load %arg8[%c0_9, %c0_10] : memref<34x256xf32, #tpu.memory_space<vmem>>, vector<34x256xf32>
      %c0_11 = arith.constant 0 : index
      %c0_12 = arith.constant 0 : index
      %13 = vector.load %arg5[%c0_11, %c0_12] : memref<1x256xf32, #tpu.memory_space<vmem>>, vector<1x256xf32>
      %14 = vector.broadcast %13 : vector<1x256xf32> to vector<34x256xf32>
      %15 = arith.addf %12, %14 : vector<34x256xf32>
      %c0_13 = arith.constant 0 : index
      %c0_14 = arith.constant 0 : index
      %16 = vector.load %arg6[%c0_13, %c0_14] : memref<34x256xbf16, #tpu.memory_space<vmem>>, vector<34x256xbf16>
      %17 = arith.extf %16 : vector<34x256xbf16> to vector<34x256xf32>
      %18 = arith.addf %15, %17 : vector<34x256xf32>
      %19 = arith.truncf %18 : vector<34x256xf32> to vector<34x256xbf16>
      %c0_15 = arith.constant 0 : index
      %c0_16 = arith.constant 0 : index
      %20 = vector.load %arg7[%c0_15, %c0_16] : memref<34x256xbf16, #tpu.memory_space<vmem>>, vector<34x256xbf16>
      tpu.vector_store %arg7[%c0_15, %c0_16], %19 {strides = array<i32>} : memref<34x256xbf16, #tpu.memory_space<vmem>>, vector<34x256xbf16>,
    } else {
    }
    return
  }
  func.func @transform_0(%arg0: i32, %arg1: i32, %arg2: i32) -> (i32, i32) {
    %c0_i32 = arith.constant 0 : i32
    return %arg0, %arg2 : i32, i32
  }
  func.func @transform_1(%arg0: i32, %arg1: i32, %arg2: i32) -> (i32, i32) {
    %c0_i32 = arith.constant 0 : i32
    return %arg2, %arg1 : i32, i32
  }
  func.func @transform_2(%arg0: i32, %arg1: i32, %arg2: i32) -> (i32, i32) {
    %c0_i32 = arith.constant 0 : i32
    %c0_i32_0 = arith.constant 0 : i32
    return %c0_i32, %arg1 : i32, i32
  }
  func.func @transform_3(%arg0: i32, %arg1: i32, %arg2: i32) -> (i32, i32) {
    %c0_i32 = arith.constant 0 : i32
    return %arg0, %arg1 : i32, i32
  }
  func.func @transform_4(%arg0: i32, %arg1: i32, %arg2: i32) -> (i32, i32) {
    %c0_i32 = arith.constant 0 : i32
    return %arg0, %arg1 : i32, i32
  }
}

module attributes {stable_mosaic.version = 11 : i64} {
  func.func @_mm_kernel(%arg0: i32, %arg1: i32, %arg2: i32, %arg3: memref<2x256xbf16, #tpu.memory_space<vmem>>, %arg4: memref<256x256xbf16, #tpu.memory_space<vmem>>, %arg5: memref<1x256xf32, #tpu.memory_space<vmem>>, %arg6: memref<2x256xbf16, #tpu.memory_space<vmem>>, %arg7: memref<2x256xf32, #tpu.memory_space<vmem>>) attributes {dimension_semantics = [#tpu.dimension_semantics<parallel>, #tpu.dimension_semantics<parallel>, #tpu.dimension_semantics<arbitrary>], iteration_bounds = array<i64: 1, 1, 1>, scalar_prefetch = 0 : i64, scratch_operands = 1 : i64, tpu.core_type = #tpu.core_type<tc>, window_params = [{transform_indices = @transform_0, window_bounds = array<i64: 2, 256>}, {transform_indices = @transform_1, window_bounds = array<i64: 256, 256>}, {transform_indices = @transform_2, window_bounds = array<i64: 1, 256>}, {transform_indices = @transform_3, window_bounds = array<i64: 2, 256>}]} {
    %c0_i32 = arith.constant 0 : i32
    %0 = arith.cmpi eq, %arg2, %c0_i32 : i32
    %1 = arith.extui %0 : i1 to i32
    %c0_i32_0 = arith.constant 0 : i32
    %2 = arith.cmpi ne, %1, %c0_i32_0 : i32
    scf.if %2 {
      %cst_10 = arith.constant 0.000000e+00 : f32
      %12 = vector.broadcast %cst_10 : f32 to vector<2x256xf32>
      %c0_11 = arith.constant 0 : index
      %c0_12 = arith.constant 0 : index
      %13 = vector.load %arg7[%c0_11, %c0_12] : memref<2x256xf32, #tpu.memory_space<vmem>>, vector<2x256xf32>
      tpu.vector_store %arg7[%c0_11, %c0_12], %12 {strides = array<i32>} : memref<2x256xf32, #tpu.memory_space<vmem>>, vector<2x256xf32>,
    } else {
    }
    %c0 = arith.constant 0 : index
    %c0_1 = arith.constant 0 : index
    %3 = vector.load %arg7[%c0, %c0_1] : memref<2x256xf32, #tpu.memory_space<vmem>>, vector<2x256xf32>
    %c0_2 = arith.constant 0 : index
    %c0_3 = arith.constant 0 : index
    %4 = vector.load %arg3[%c0_2, %c0_3] : memref<2x256xbf16, #tpu.memory_space<vmem>>, vector<2x256xbf16>
    %c0_4 = arith.constant 0 : index
    %c0_5 = arith.constant 0 : index
    %5 = vector.load %arg4[%c0_4, %c0_5] : memref<256x256xbf16, #tpu.memory_space<vmem>>, vector<256x256xbf16>
    %cst = arith.constant dense<0.000000e+00> : vector<2x256xf32>
    %6 = tpu.matmul %4, %5, %cst {dimension_numbers = #tpu.dot_dimension_numbers<[1], [0], [0], [1], [0, 0, 1, 1], [], []>} : vector<2x256xbf16>, vector<256x256xbf16>, vector<2x256xf32> -> vector<2x256xf32>
    %7 = arith.addf %3, %6 : vector<2x256xf32>
    %c0_6 = arith.constant 0 : index
    %c0_7 = arith.constant 0 : index
    %8 = vector.load %arg7[%c0_6, %c0_7] : memref<2x256xf32, #tpu.memory_space<vmem>>, vector<2x256xf32>
    tpu.vector_store %arg7[%c0_6, %c0_7], %7 {strides = array<i32>} : memref<2x256xf32, #tpu.memory_space<vmem>>, vector<2x256xf32>,
    %c0_i32_8 = arith.constant 0 : i32
    %9 = arith.cmpi eq, %arg2, %c0_i32_8 : i32
    %10 = arith.extui %9 : i1 to i32
    %c0_i32_9 = arith.constant 0 : i32
    %11 = arith.cmpi ne, %10, %c0_i32_9 : i32
    scf.if %11 {
      %c0_10 = arith.constant 0 : index
      %c0_11 = arith.constant 0 : index
      %12 = vector.load %arg7[%c0_10, %c0_11] : memref<2x256xf32, #tpu.memory_space<vmem>>, vector<2x256xf32>
      %c0_12 = arith.constant 0 : index
      %c0_13 = arith.constant 0 : index
      %13 = vector.load %arg5[%c0_12, %c0_13] : memref<1x256xf32, #tpu.memory_space<vmem>>, vector<1x256xf32>
      %14 = vector.broadcast %13 : vector<1x256xf32> to vector<2x256xf32>
      %15 = arith.addf %12, %14 : vector<2x256xf32>
      %cst_14 = arith.constant 0.000000e+00 : f32
      %16 = vector.broadcast %cst_14 : f32 to vector<2x256xf32>
      %17 = arith.maximumf %15, %16 : vector<2x256xf32>
      %18 = arith.truncf %17 : vector<2x256xf32> to vector<2x256xbf16>
      %c0_15 = arith.constant 0 : index
      %c0_16 = arith.constant 0 : index
      %19 = vector.load %arg6[%c0_15, %c0_16] : memref<2x256xbf16, #tpu.memory_space<vmem>>, vector<2x256xbf16>
      tpu.vector_store %arg6[%c0_15, %c0_16], %18 {strides = array<i32>} : memref<2x256xbf16, #tpu.memory_space<vmem>>, vector<2x256xbf16>,
    } else {
    }
    return
  }
  func.func @transform_0(%arg0: i32, %arg1: i32, %arg2: i32) -> (i32, i32) {
    %c0_i32 = arith.constant 0 : i32
    return %arg0, %arg2 : i32, i32
  }
  func.func @transform_1(%arg0: i32, %arg1: i32, %arg2: i32) -> (i32, i32) {
    %c0_i32 = arith.constant 0 : i32
    return %arg2, %arg1 : i32, i32
  }
  func.func @transform_2(%arg0: i32, %arg1: i32, %arg2: i32) -> (i32, i32) {
    %c0_i32 = arith.constant 0 : i32
    %c0_i32_0 = arith.constant 0 : i32
    return %c0_i32, %arg1 : i32, i32
  }
  func.func @transform_3(%arg0: i32, %arg1: i32, %arg2: i32) -> (i32, i32) {
    %c0_i32 = arith.constant 0 : i32
    return %arg0, %arg1 : i32, i32
  }
}

module attributes {stable_mosaic.version = 11 : i64} {
  func.func @_head_norm_kernel(%arg0: i32, %arg1: memref<2x256xbf16, #tpu.memory_space<vmem>>, %arg2: memref<256x128xbf16, #tpu.memory_space<vmem>>, %arg3: memref<1x128xf32, #tpu.memory_space<vmem>>, %arg4: memref<2x128xf32, #tpu.memory_space<vmem>>) attributes {dimension_semantics = [#tpu.dimension_semantics<parallel>], iteration_bounds = array<i64: 1>, scalar_prefetch = 0 : i64, scratch_operands = 0 : i64, tpu.core_type = #tpu.core_type<tc>, window_params = [{transform_indices = @transform_0, window_bounds = array<i64: 2, 256>}, {pipeline_mode = #tpu.pipeline_mode<synchronous>, transform_indices = @transform_1, window_bounds = array<i64: 256, 128>}, {pipeline_mode = #tpu.pipeline_mode<synchronous>, transform_indices = @transform_2, window_bounds = array<i64: 1, 128>}, {transform_indices = @transform_3, window_bounds = array<i64: 2, 128>}]} {
    %c0 = arith.constant 0 : index
    %c0_0 = arith.constant 0 : index
    %0 = vector.load %arg1[%c0, %c0_0] : memref<2x256xbf16, #tpu.memory_space<vmem>>, vector<2x256xbf16>
    %c0_1 = arith.constant 0 : index
    %c0_2 = arith.constant 0 : index
    %1 = vector.load %arg2[%c0_1, %c0_2] : memref<256x128xbf16, #tpu.memory_space<vmem>>, vector<256x128xbf16>
    %cst = arith.constant dense<0.000000e+00> : vector<2x128xf32>
    %2 = tpu.matmul %0, %1, %cst {dimension_numbers = #tpu.dot_dimension_numbers<[1], [0], [0], [1], [0, 0, 1, 1], [], []>} : vector<2x256xbf16>, vector<256x128xbf16>, vector<2x128xf32> -> vector<2x128xf32>
    %c0_3 = arith.constant 0 : index
    %c0_4 = arith.constant 0 : index
    %3 = vector.load %arg3[%c0_3, %c0_4] : memref<1x128xf32, #tpu.memory_space<vmem>>, vector<1x128xf32>
    %4 = vector.broadcast %3 : vector<1x128xf32> to vector<2x128xf32>
    %5 = arith.addf %2, %4 : vector<2x128xf32>
    %6 = arith.mulf %5, %5 : vector<2x128xf32>
    %cst_5 = arith.constant dense<0.000000e+00> : vector<2xf32>
    %7 = vector.multi_reduction <add>, %6, %cst_5 [1] : vector<2x128xf32> to vector<2xf32>
    %8 = vector.shape_cast %7 : vector<2xf32> to vector<2x1xf32>
    %9 = math.sqrt %8 : vector<2x1xf32>
    %cst_6 = arith.constant 9.99999996E-13 : f32
    %10 = vector.broadcast %cst_6 : f32 to vector<2x1xf32>
    %11 = arith.maximumf %9, %10 : vector<2x1xf32>
    %12 = vector.broadcast %11 : vector<2x1xf32> to vector<2x128xf32>
    %13 = arith.divf %5, %12 : vector<2x128xf32>
    %c0_7 = arith.constant 0 : index
    %c0_8 = arith.constant 0 : index
    %14 = vector.load %arg4[%c0_7, %c0_8] : memref<2x128xf32, #tpu.memory_space<vmem>>, vector<2x128xf32>
    tpu.vector_store %arg4[%c0_7, %c0_8], %13 {strides = array<i32>} : memref<2x128xf32, #tpu.memory_space<vmem>>, vector<2x128xf32>,
    return
  }
  func.func @transform_0(%arg0: i32) -> (i32, i32) {
    %c0_i32 = arith.constant 0 : i32
    %c0_i32_0 = arith.constant 0 : i32
    return %arg0, %c0_i32 : i32, i32
  }
  func.func @transform_1(%arg0: i32) -> (i32, i32) {
    %c0_i32 = arith.constant 0 : i32
    %c0_i32_0 = arith.constant 0 : i32
    %c0_i32_1 = arith.constant 0 : i32
    return %c0_i32, %c0_i32_0 : i32, i32
  }
  func.func @transform_2(%arg0: i32) -> (i32, i32) {
    %c0_i32 = arith.constant 0 : i32
    %c0_i32_0 = arith.constant 0 : i32
    %c0_i32_1 = arith.constant 0 : i32
    return %c0_i32, %c0_i32_0 : i32, i32
  }
  func.func @transform_3(%arg0: i32) -> (i32, i32) {
    %c0_i32 = arith.constant 0 : i32
    %c0_i32_0 = arith.constant 0 : i32
    return %arg0, %c0_i32 : i32, i32
  }
}

</mosaic_0001>

<llo_original>
// kernel: _lambda_.18
$region0: #{_lambda_.18}
  #allocation0 [shape = 'u32[]', space=smem, size = 0x4, offset = 0x4, fixed_abs, tag = 'smem constant byte address 0x4 - core index']
  #allocation1 [shape = 'u32[72,128]{1,0:T(1,128)}', space=vmem, size = 0x9000, scoped, tag = 'internal scratch']
  #allocation2 [shape = 'f32[32,256]{1,0:T(8,128)}', space=vmem, size = 0x8000, scoped, tag = 'scratch operand']
  %s0 = inlined_call_operand.vmem [shape: bf16[32,192], index: 0, kind: input, shape index: {}]
  %s1 = inlined_call_operand.vmem [shape: bf16[192,256], index: 1, kind: input, shape index: {}]
  %s2 = inlined_call_operand.vmem [shape: f32[1,256], index: 2, kind: input, shape index: {}]
  %s3 = inlined_call_operand.vmem [shape: bf16[32,256], index: 3, kind: output, shape index: {}]
  %s4 = sld [smem:[#allocation0]]
  $region30: #{_lambda_.18} parent=0
    _
  %s6 = ssub.s32 1, %s4
  %s7 = scalar_select 0, %s6, %s4
  // Predicated region
  $region2: #{_lambda_.18} parent=0 // pred_check
    _
  $region3: #{_lambda_.18} parent=0 // pred_check_branch
    %9 = sbr.rel (0) target = $region5
  $region4: #{_lambda_.18} parent=0 // pred_region
    _
  $region5: #{_lambda_.18} parent=0 // pred_fallthru
    _
  // Predicated region
  $region6: #{_lambda_.18} parent=0 // pred_check
    _
  $region7: #{_lambda_.18} parent=0 // pred_check_branch
    %11 = sbr.rel (0) target = $region9
  $region8: #{_lambda_.18} parent=0 // pred_region
    _
  $region9: #{_lambda_.18} parent=0 // pred_fallthru
    _
  // Predicated region
  $region10: #{_lambda_.18} parent=0 // pred_check
    _
  $region11: #{_lambda_.18} parent=0 // pred_check_branch
    %13 = sbr.rel (0) target = $region13
  $region12: #{_lambda_.18} parent=0 // pred_region
    _
  $region13: #{_lambda_.18} parent=0 // pred_fallthru
    _
  %p15 = scmp.eq.s32.totalorder 0, 0
  // Predicated region
  $region14: #{_lambda_.18} parent=0 // pred_check
    %p16 = pneg %p15
  $region15: #{_lambda_.18} parent=0 // pred_check_branch
    %18 = sbr.rel (%p16) target = $region17
  $region16: #{_lambda_.18} parent=0 // pred_region
    %19 = vst [vmem:[#allocation2] sm:$0xff] 0.0
    %20 = vst [vmem:[#allocation2 + $0x8] sm:$0xff] 0.0
    %21 = vst [vmem:[#allocation2 + $0x10] sm:$0xff] 0.0
    %22 = vst [vmem:[#allocation2 + $0x18] sm:$0xff] 0.0
    %23 = vst [vmem:[#allocation2 + $0x20] sm:$0xff] 0.0
    %24 = vst [vmem:[#allocation2 + $0x28] sm:$0xff] 0.0
    %25 = vst [vmem:[#allocation2 + $0x30] sm:$0xff] 0.0
    %26 = vst [vmem:[#allocation2 + $0x38] sm:$0xff] 0.0
  $region17: #{_lambda_.18} parent=0 // pred_fallthru
    _
  %v27 = vld [vmem:[#allocation2] sm:$0xff]
  %v28 = vld [vmem:[#allocation2 + $0x8] sm:$0xff]
  %v29 = vld [vmem:[#allocation2 + $0x10] sm:$0xff]
  %v30 = vld [vmem:[#allocation2 + $0x18] sm:$0xff]
  %v31 = vld [vmem:[#allocation2 + $0x20] sm:$0xff]
  %v32 = vld [vmem:[#allocation2 + $0x28] sm:$0xff]
  %v33 = vld [vmem:[#allocation2 + $0x30] sm:$0xff]
  %v34 = vld [vmem:[#allocation2 + $0x38] sm:$0xff]
  %v35 = vld [vmem:[%s0] sm:$0xff]
  %v36 = vld [vmem:[%s0 + $0x8] sm:$0xff]
  %v37 = vld [vmem:[%s0 + $0x10] sm:$0xff]
  %v38 = vld [vmem:[%s0 + $0x18] sm:$0xff]
  %v39 = vld [vmem:[%s1] sm:$0xff]
  %v40 = vld [vmem:[%s1 + $0x8] sm:$0xff]
  %v41 = vld [vmem:[%s1 + $0x10] sm:$0xff]
  %v42 = vld [vmem:[%s1 + $0x18] sm:$0xff]
  %v43 = vld [vmem:[%s1 + $0x20] sm:$0xff]
  %v44 = vld [vmem:[%s1 + $0x28] sm:$0xff]
  %v45 = vld [vmem:[%s1 + $0x30] sm:$0xff]
  %v46 = vld [vmem:[%s1 + $0x38] sm:$0xff]
  %v47 = vld [vmem:[%s1 + $0x40] sm:$0xff]
  %v48 = vld [vmem:[%s1 + $0x48] sm:$0xff]
  %v49 = vld [vmem:[%s1 + $0x50] sm:$0xff]
  %v50 = vld [vmem:[%s1 + $0x58] sm:$0xff]
  %v51 = vld [vmem:[%s1 + $0x60] sm:$0xff]
  %v52 = vld [vmem:[%s1 + $0x68] sm:$0xff]
  %v53 = vld [vmem:[%s1 + $0x70] sm:$0xff]
  %v54 = vld [vmem:[%s1 + $0x78] sm:$0xff]
  %v55 = vld [vmem:[%s1 + $0x80] sm:$0xff]
  %v56 = vld [vmem:[%s1 + $0x88] sm:$0xff]
  %v57 = vld [vmem:[%s1 + $0x90] sm:$0xff]
  %v58 = vld [vmem:[%s1 + $0x98] sm:$0xff]
  %v59 = vld [vmem:[%s1 + $0xa0] sm:$0xff]
  %v60 = vld [vmem:[%s1 + $0xa8] sm:$0xff]
  %v61 = vld [vmem:[%s1 + $0xb0] sm:$0xff]
  %v62 = vld [vmem:[%s1 + $0xb8] sm:$0xff]
  %v67 = vunpack.c.l.b16 %v35
  %v68 = vunpack.c.h.b16 %v35
  %v69 = vunpack.c.l.b16 %v36
  %v70 = vunpack.c.h.b16 %v36
  %v71 = vunpack.c.l.b16 %v37
  %v72 = vunpack.c.h.b16 %v37
  %v73 = vunpack.c.l.b16 %v38
  %v74 = vunpack.c.h.b16 %v38
  %v75 = vpack.c.b16 %v69, %v67
  %v76 = vpack.c.b16 %v70, %v68
  %v77 = vpack.c.b16 %v73, %v71
  %v78 = vpack.c.b16 %v74, %v72
  %v105 = vunpack.c.l.b16 %v39
  %v106 = vunpack.c.h.b16 %v39
  %v107 = vunpack.c.l.b16 %v40
  %v108 = vunpack.c.h.b16 %v40
  %v109 = vunpack.c.l.b16 %v41
  %v110 = vunpack.c.h.b16 %v41
  %v111 = vunpack.c.l.b16 %v42
  %v112 = vunpack.c.h.b16 %v42
  %v113 = vunpack.c.l.b16 %v43
  %v114 = vunpack.c.h.b16 %v43
  %v115 = vunpack.c.l.b16 %v44
  %v116 = vunpack.c.h.b16 %v44
  %v117 = vunpack.c.l.b16 %v45
  %v118 = vunpack.c.h.b16 %v45
  %v119 = vunpack.c.l.b16 %v46
  %v120 = vunpack.c.h.b16 %v46
  %v121 = vunpack.c.l.b16 %v47
  %v122 = vunpack.c.h.b16 %v47
  %v123 = vunpack.c.l.b16 %v48
  %v124 = vunpack.c.h.b16 %v48
  %v125 = vunpack.c.l.b16 %v49
  %v126 = vunpack.c.h.b16 %v49
  %v127 = vunpack.c.l.b16 %v50
  %v128 = vunpack.c.h.b16 %v50
  %v129 = vunpack.c.l.b16 %v51
  %v130 = vunpack.c.h.b16 %v51
  %v131 = vunpack.c.l.b16 %v52
  %v132 = vunpack.c.h.b16 %v52
  %v133 = vunpack.c.l.b16 %v53
  %v134 = vunpack.c.h.b16 %v53
  %v135 = vunpack.c.l.b16 %v54
  %v136 = vunpack.c.h.b16 %v54
  %v137 = vunpack.c.l.b16 %v55
  %v138 = vunpack.c.h.b16 %v55
  %v139 = vunpack.c.l.b16 %v56
  %v140 = vunpack.c.h.b16 %v56
  %v141 = vunpack.c.l.b16 %v57
  %v142 = vunpack.c.h.b16 %v57
  %v143 = vunpack.c.l.b16 %v58
  %v144 = vunpack.c.h.b16 %v58
  %v145 = vunpack.c.l.b16 %v59
  %v146 = vunpack.c.h.b16 %v59
  %v147 = vunpack.c.l.b16 %v60
  %v148 = vunpack.c.h.b16 %v60
  %v149 = vunpack.c.l.b16 %v61
  %v150 = vunpack.c.h.b16 %v61
  %v151 = vunpack.c.l.b16 %v62
  %v152 = vunpack.c.h.b16 %v62
  %v153 = vpack.c.b16 %v107, %v105
  %v154 = vpack.c.b16 %v108, %v106
  %v155 = vpack.c.b16 %v111, %v109
  %v156 = vpack.c.b16 %v112, %v110
  %v157 = vpack.c.b16 %v115, %v113
  %v158 = vpack.c.b16 %v116, %v114
  %v159 = vpack.c.b16 %v119, %v117
  %v160 = vpack.c.b16 %v120, %v118
  %v161 = vpack.c.b16 %v123, %v121
  %v162 = vpack.c.b16 %v124, %v122
  %v163 = vpack.c.b16 %v127, %v125
  %v164 = vpack.c.b16 %v128, %v126
  %v165 = vpack.c.b16 %v131, %v129
  %v166 = vpack.c.b16 %v132, %v130
  %v167 = vpack.c.b16 %v135, %v133
  %v168 = vpack.c.b16 %v136, %v134
  %v169 = vpack.c.b16 %v139, %v137
  %v170 = vpack.c.b16 %v140, %v138
  %v171 = vpack.c.b16 %v143, %v141
  %v172 = vpack.c.b16 %v144, %v142
  %v173 = vpack.c.b16 %v147, %v145
  %v174 = vpack.c.b16 %v148, %v146
  %v175 = vpack.c.b16 %v151, %v149
  %v176 = vpack.c.b16 %v152, %v150
  %vm201 = vcmask 523264
  %v203 = vsel %vm201, %v76, 0
  %v206 = vsel %vm201, %v78, 0
  %208 = vmatpush.bf16.msra.mxu0 %v167
  %209 = vmatpush.bf16.msra.mxu0 %v165
  %210 = vmatpush.bf16.msra.mxu0 %v163
  %211 = vmatpush.bf16.msra.mxu0 %v161
  %212 = vmatpush.bf16.msra.mxu0 %v159
  %213 = vmatpush.bf16.msra.mxu0 %v157
  %214 = vmatpush.bf16.msra.mxu0 %v155
  %215 = vmatpush.bf16.msra.mxu0 %v153
  %216 = vmatmul.bf16.gmra.mxu0 %v75
  %v217 = vpop.f32.mrf.mxu0
  %v218 = vadd.f32 0.0, %v217
  %v219 = vpop.f32.mrf.mxu0
  %v220 = vadd.f32 0.0, %v219
  %221 = vmatmul.bf16.gmra.mxu0 %v77
  %v222 = vpop.f32.mrf.mxu0
  %v223 = vadd.f32 0.0, %v222
  %v224 = vpop.f32.mrf.mxu0
  %v225 = vadd.f32 0.0, %v224
  %226 = vdwg.mxu0
  %227 = vmatpush.bf16.msra.mxu0 0
  %228 = vmatpush.bf16.msra.mxu0 0
  %229 = vmatpush.bf16.msra.mxu0 0
  %230 = vmatpush.bf16.msra.mxu0 0
  %231 = vmatpush.bf16.msra.mxu0 %v175
  %232 = vmatpush.bf16.msra.mxu0 %v173
  %233 = vmatpush.bf16.msra.mxu0 %v171
  %234 = vmatpush.bf16.msra.mxu0 %v169
  %235 = vmatmul.bf16.gmra.mxu0 %v203
  %v236 = vpop.f32.mrf.mxu0
  %v237 = vadd.f32 %v218, %v236
  %v238 = vpop.f32.mrf.mxu0
  %v239 = vadd.f32 %v220, %v238
  %240 = vmatmul.bf16.gmra.mxu0 %v206
  %v241 = vpop.f32.mrf.mxu0
  %v242 = vadd.f32 %v223, %v241
  %v243 = vpop.f32.mrf.mxu0
  %v244 = vadd.f32 %v225, %v243
  %245 = vdwg.mxu0
  %246 = vmatpush.bf16.msra.mxu0 %v168
  %247 = vmatpush.bf16.msra.mxu0 %v166
  %248 = vmatpush.bf16.msra.mxu0 %v164
  %249 = vmatpush.bf16.msra.mxu0 %v162
  %250 = vmatpush.bf16.msra.mxu0 %v160
  %251 = vmatpush.bf16.msra.mxu0 %v158
  %252 = vmatpush.bf16.msra.mxu0 %v156
  %253 = vmatpush.bf16.msra.mxu0 %v154
  %254 = vmatmul.bf16.gmra.mxu0 %v75
  %v255 = vpop.f32.mrf.mxu0
  %v256 = vadd.f32 0.0, %v255
  %v257 = vpop.f32.mrf.mxu0
  %v258 = vadd.f32 0.0, %v257
  %259 = vmatmul.bf16.gmra.mxu0 %v77
  %v260 = vpop.f32.mrf.mxu0
  %v261 = vadd.f32 0.0, %v260
  %v262 = vpop.f32.mrf.mxu0
  %v263 = vadd.f32 0.0, %v262
  %264 = vdwg.mxu0
  %265 = vmatpush.bf16.msra.mxu0 0
  %266 = vmatpush.bf16.msra.mxu0 0
  %267 = vmatpush.bf16.msra.mxu0 0
  %268 = vmatpush.bf16.msra.mxu0 0
  %269 = vmatpush.bf16.msra.mxu0 %v176
  %270 = vmatpush.bf16.msra.mxu0 %v174
  %271 = vmatpush.bf16.msra.mxu0 %v172
  %272 = vmatpush.bf16.msra.mxu0 %v170
  %273 = vmatmul.bf16.gmra.mxu0 %v203
  %v274 = vpop.f32.mrf.mxu0
  %v275 = vadd.f32 %v256, %v274
  %v276 = vpop.f32.mrf.mxu0
  %v277 = vadd.f32 %v258, %v276
  %278 = vmatmul.bf16.gmra.mxu0 %v206
  %v279 = vpop.f32.mrf.mxu0
  %v280 = vadd.f32 %v261, %v279
  %v281 = vpop.f32.mrf.mxu0
  %v282 = vadd.f32 %v263, %v281
  %283 = vdwg.mxu0
  %v284 = vadd.f32 %v27, %v237
  %v285 = vadd.f32 %v28, %v275
  %v286 = vadd.f32 %v29, %v239
  %v287 = vadd.f32 %v30, %v277
  %v288 = vadd.f32 %v31, %v242
  %v289 = vadd.f32 %v32, %v280
  %v290 = vadd.f32 %v33, %v244
  %v291 = vadd.f32 %v34, %v282
  %292 = vst [vmem:[#allocation2] sm:$0xff] %v284
  %293 = vst [vmem:[#allocation2 + $0x8] sm:$0xff] %v285
  %294 = vst [vmem:[#allocation2 + $0x10] sm:$0xff] %v286
  %295 = vst [vmem:[#allocation2 + $0x18] sm:$0xff] %v287
  %296 = vst [vmem:[#allocation2 + $0x20] sm:$0xff] %v288
  %297 = vst [vmem:[#allocation2 + $0x28] sm:$0xff] %v289
  %298 = vst [vmem:[#allocation2 + $0x30] sm:$0xff] %v290
  %299 = vst [vmem:[#allocation2 + $0x38] sm:$0xff] %v291
  // Predicated region
  $region18: #{_lambda_.18} parent=0 // pred_check
    %p300 = pneg %p15
  $region19: #{_lambda_.18} parent=0 // pred_check_branch
    %302 = sbr.rel (%p300) target = $region21
  $region20: #{_lambda_.18} parent=0 // pred_region
    %v303 = vld [vmem:[#allocation2] sm:$0xff]
    %v304 = vld [vmem:[#allocation2 + $0x8] sm:$0xff]
    %v305 = vld [vmem:[#allocation2 + $0x10] sm:$0xff]
    %v306 = vld [vmem:[#allocation2 + $0x18] sm:$0xff]
    %v307 = vld [vmem:[#allocation2 + $0x20] sm:$0xff]
    %v308 = vld [vmem:[#allocation2 + $0x28] sm:$0xff]
    %v309 = vld [vmem:[#allocation2 + $0x30] sm:$0xff]
    %v310 = vld [vmem:[#allocation2 + $0x38] sm:$0xff]
    %v311 = vld [vmem:[%s2] sm:$0x3]
    %v313 = vperm.slane %v311, 0
    %v314 = vperm.slane %v311, 1
    %v317 = vadd.f32 %v303, %v313
    %v318 = vadd.f32 %v304, %v314
    %v319 = vadd.f32 %v305, %v313
    %v320 = vadd.f32 %v306, %v314
    %v321 = vadd.f32 %v307, %v313
    %v322 = vadd.f32 %v308, %v314
    %v323 = vadd.f32 %v309, %v313
    %v324 = vadd.f32 %v310, %v314
    %v325 = vpack.c.bf16 %v318, %v317
    %v326 = vpack.c.bf16 %v320, %v319
    %v327 = vpack.c.bf16 %v322, %v321
    %v328 = vpack.c.bf16 %v324, %v323
    %329 = vst [vmem:[%s3] sm:$0xff] %v325
    %330 = vst [vmem:[%s3 + $0x8] sm:$0xff] %v326
    %331 = vst [vmem:[%s3 + $0x10] sm:$0xff] %v327
    %332 = vst [vmem:[%s3 + $0x18] sm:$0xff] %v328
  $region21: #{_lambda_.18} parent=0 // pred_fallthru
    _
  // Predicated region
  $region22: #{_lambda_.18} parent=0 // pred_check
    _
  $region23: #{_lambda_.18} parent=0 // pred_check_branch
    %334 = sbr.rel (0) target = $region25
  $region24: #{_lambda_.18} parent=0 // pred_region
    _
  $region25: #{_lambda_.18} parent=0 // pred_fallthru
    _
  // Predicated region
  $region26: #{_lambda_.18} parent=0 // pred_check
    _
  $region27: #{_lambda_.18} parent=0 // pred_check_branch
    %336 = sbr.rel (0) target = $region29
  $region28: #{_lambda_.18} parent=0 // pred_region
    _
  $region29: #{_lambda_.18} parent=0 // pred_fallthru
    _

// kernel: _lambda_.19
$region0: #{_lambda_.19}
  #allocation0 [shape = 'u32[]', space=smem, size = 0x4, offset = 0x4, fixed_abs, tag = 'smem constant byte address 0x4 - core index']
  #allocation1 [shape = 'u32[72,128]{1,0:T(1,128)}', space=vmem, size = 0x9000, scoped, tag = 'internal scratch']
  %s0 = inlined_call_operand.vmem [shape: bf16[34,256], index: 0, kind: input, shape index: {}]
  %s1 = inlined_call_operand.vmem [shape: f32[1,256], index: 1, kind: input, shape index: {}]
  %s2 = inlined_call_operand.vmem [shape: f32[1,256], index: 2, kind: input, shape index: {}]
  %s3 = inlined_call_operand.vmem [shape: bf16[34,256], index: 3, kind: output, shape index: {}]
  %s4 = sld [smem:[#allocation0]]
  $region22: #{_lambda_.19} parent=0
    _
  %s6 = ssub.s32 1, %s4
  %s7 = scalar_select 0, %s6, %s4
  // Predicated region
  $region2: #{_lambda_.19} parent=0 // pred_check
    _
  $region3: #{_lambda_.19} parent=0 // pred_check_branch
    %9 = sbr.rel (0) target = $region5
  $region4: #{_lambda_.19} parent=0 // pred_region
    _
  $region5: #{_lambda_.19} parent=0 // pred_fallthru
    _
  // Predicated region
  $region6: #{_lambda_.19} parent=0 // pred_check
    _
  $region7: #{_lambda_.19} parent=0 // pred_check_branch
    %11 = sbr.rel (0) target = $region9
  $region8: #{_lambda_.19} parent=0 // pred_region
    _
  $region9: #{_lambda_.19} parent=0 // pred_fallthru
    _
  // Predicated region
  $region10: #{_lambda_.19} parent=0 // pred_check
    _
  $region11: #{_lambda_.19} parent=0 // pred_check_branch
    %13 = sbr.rel (0) target = $region13
  $region12: #{_lambda_.19} parent=0 // pred_region
    _
  $region13: #{_lambda_.19} parent=0 // pred_fallthru
    _
  %v14 = vld [vmem:[%s0] sm:$0xff]
  %v15 = vld [vmem:[%s0 + $0x8] sm:$0xff]
  %v16 = vld [vmem:[%s0 + $0x10] sm:$0xff]
  %v17 = vld [vmem:[%s0 + $0x18] sm:$0xff]
  %v18 = vld [vmem:[%s0 + $0x20] sm:$0x11]
  %v19 = vunpack.c.l.bf16 %v14
  %v20 = vunpack.c.h.bf16 %v14
  %v21 = vunpack.c.l.bf16 %v15
  %v22 = vunpack.c.h.bf16 %v15
  %v23 = vunpack.c.l.bf16 %v16
  %v24 = vunpack.c.h.bf16 %v16
  %v25 = vunpack.c.l.bf16 %v17
  %v26 = vunpack.c.h.bf16 %v17
  %v27 = vunpack.c.l.bf16 %v18
  %v28 = vunpack.c.h.bf16 %v18
  %v29 = vadd.f32 %v19, %v20
  %30 = vadd.xlane.f32.xlu0 %v29
  %v31 = vpop.xlane.xlu0 %30
  %v32 = vadd.f32 %v21, %v22
  %33 = vadd.xlane.f32.xlu0 %v32
  %v34 = vpop.xlane.xlu0 %33
  %v35 = vadd.f32 %v23, %v24
  %36 = vadd.xlane.f32.xlu0 %v35
  %v37 = vpop.xlane.xlu0 %36
  %v38 = vadd.f32 %v25, %v26
  %39 = vadd.xlane.f32.xlu0 %v38
  %v40 = vpop.xlane.xlu0 %39
  %vm41 = vcmask 1041408
  %v42 = vsel %vm41, %v27, 0.0
  %v43 = vsel %vm41, %v28, 0.0
  %v44 = vadd.f32 %v42, %v43
  %45 = vadd.xlane.f32.xlu0 %v44
  %v46 = vpop.xlane.xlu0 %45
  %v47 = vrcp.pop 256.0
  %v48 = vmul.f32 256.0, %v47
  %v49 = vsub.f32 1.0, %v48
  %v50 = vmul.f32 %v47, %v49
  %v51 = vadd.f32 %v47, %v50
  %vm52 = vweird.f32 %v47
  %v53 = vsel %vm52, %v47, %v51
  %v54 = vmul.f32 %v31, %v53
  %v55 = vmul.f32 %v34, %v53
  %v56 = vmul.f32 %v37, %v53
  %v57 = vmul.f32 %v40, %v53
  %v58 = vmul.f32 %v46, %v53
  %v59 = vsub.f32 %v19, %v54
  %v60 = vsub.f32 %v20, %v54
  %v61 = vsub.f32 %v21, %v55
  %v62 = vsub.f32 %v22, %v55
  %v63 = vsub.f32 %v23, %v56
  %v64 = vsub.f32 %v24, %v56
  %v65 = vsub.f32 %v25, %v57
  %v66 = vsub.f32 %v26, %v57
  %v67 = vsub.f32 %v27, %v58
  %v68 = vsub.f32 %v28, %v58
  %v69 = vmul.f32 %v59, %v59
  %v70 = vmul.f32 %v60, %v60
  %v71 = vmul.f32 %v61, %v61
  %v72 = vmul.f32 %v62, %v62
  %v73 = vmul.f32 %v63, %v63
  %v74 = vmul.f32 %v64, %v64
  %v75 = vmul.f32 %v65, %v65
  %v76 = vmul.f32 %v66, %v66
  %v77 = vmul.f32 %v67, %v67
  %v78 = vmul.f32 %v68, %v68
  %v79 = vadd.f32 %v69, %v70
  %80 = vadd.xlane.f32.xlu0 %v79
  %v81 = vpop.xlane.xlu0 %80
  %v82 = vadd.f32 %v71, %v72
  %83 = vadd.xlane.f32.xlu0 %v82
  %v84 = vpop.xlane.xlu0 %83
  %v85 = vadd.f32 %v73, %v74
  %86 = vadd.xlane.f32.xlu0 %v85
  %v87 = vpop.xlane.xlu0 %86
  %v88 = vadd.f32 %v75, %v76
  %89 = vadd.xlane.f32.xlu0 %v88
  %v90 = vpop.xlane.xlu0 %89
  %v91 = vsel %vm41, %v77, 0.0
  %v92 = vsel %vm41, %v78, 0.0
  %v93 = vadd.f32 %v91, %v92
  %94 = vadd.xlane.f32.xlu0 %v93
  %v95 = vpop.xlane.xlu0 %94
  %v96 = vmul.f32 %v81, %v53
  %v97 = vmul.f32 %v84, %v53
  %v98 = vmul.f32 %v87, %v53
  %v99 = vmul.f32 %v90, %v53
  %v100 = vmul.f32 %v95, %v53
  %v101 = vadd.f32 %v96, 1e-06
  %v102 = vadd.f32 %v97, 1e-06
  %v103 = vadd.f32 %v98, 1e-06
  %v104 = vadd.f32 %v99, 1e-06
  %v105 = vadd.f32 %v100, 1e-06
  %v106 = vrsqrt.pop %v101
  %v107 = vmul.f32 %v106, %v101
  %v108 = vmul.f32 %v107, %v106
  %v109 = vmul.f32 0.5, %v108
  %v110 = vsub.f32 1.5, %v109
  %v111 = vmul.f32 %v106, %v110
  %vm112 = vweird.f32 %v101
  %vm113 = vweird.f32 %v106
  %vm114 = vmor %vm112, %vm113
  %v115 = vsel %vm114, %v106, %v111
  %v116 = vrsqrt.pop %v102
  %v117 = vmul.f32 %v116, %v102
  %v118 = vmul.f32 %v117, %v116
  %v119 = vmul.f32 0.5, %v118
  %v120 = vsub.f32 1.5, %v119
  %v121 = vmul.f32 %v116, %v120
  %vm122 = vweird.f32 %v102
  %vm123 = vweird.f32 %v116
  %vm124 = vmor %vm122, %vm123
  %v125 = vsel %vm124, %v116, %v121
  %v126 = vrsqrt.pop %v103
  %v127 = vmul.f32 %v126, %v103
  %v128 = vmul.f32 %v127, %v126
  %v129 = vmul.f32 0.5, %v128
  %v130 = vsub.f32 1.5, %v129
  %v131 = vmul.f32 %v126, %v130
  %vm132 = vweird.f32 %v103
  %vm133 = vweird.f32 %v126
  %vm134 = vmor %vm132, %vm133
  %v135 = vsel %vm134, %v126, %v131
  %v136 = vrsqrt.pop %v104
  %v137 = vmul.f32 %v136, %v104
  %v138 = vmul.f32 %v137, %v136
  %v139 = vmul.f32 0.5, %v138
  %v140 = vsub.f32 1.5, %v139
  %v141 = vmul.f32 %v136, %v140
  %vm142 = vweird.f32 %v104
  %vm143 = vweird.f32 %v136
  %vm144 = vmor %vm142, %vm143
  %v145 = vsel %vm144, %v136, %v141
  %v146 = vrsqrt.pop %v105
  %v147 = vmul.f32 %v146, %v105
  %v148 = vmul.f32 %v147, %v146
  %v149 = vmul.f32 0.5, %v148
  %v150 = vsub.f32 1.5, %v149
  %v151 = vmul.f32 %v146, %v150
  %vm152 = vweird.f32 %v105
  %vm153 = vweird.f32 %v146
  %vm154 = vmor %vm152, %vm153
  %v155 = vsel %vm154, %v146, %v151
  %v156 = vmul.f32 %v59, %v115
  %v157 = vmul.f32 %v60, %v115
  %v158 = vmul.f32 %v61, %v125
  %v159 = vmul.f32 %v62, %v125
  %v160 = vmul.f32 %v63, %v135
  %v161 = vmul.f32 %v64, %v135
  %v162 = vmul.f32 %v65, %v145
  %v163 = vmul.f32 %v66, %v145
  %v164 = vmul.f32 %v67, %v155
  %v165 = vmul.f32 %v68, %v155
  %v166 = vld [vmem:[%s1] sm:$0x3]
  %v168 = vperm.slane %v166, 0
  %v169 = vperm.slane %v166, 1
  %v172 = vmul.f32 %v156, %v168
  %v173 = vmul.f32 %v157, %v169
  %v174 = vmul.f32 %v158, %v168
  %v175 = vmul.f32 %v159, %v169
  %v176 = vmul.f32 %v160, %v168
  %v177 = vmul.f32 %v161, %v169
  %v178 = vmul.f32 %v162, %v168
  %v179 = vmul.f32 %v163, %v169
  %v180 = vmul.f32 %v164, %v168
  %v181 = vmul.f32 %v165, %v169
  %v182 = vld [vmem:[%s2] sm:$0x3]
  %v184 = vperm.slane %v182, 0
  %v185 = vperm.slane %v182, 1
  %v188 = vadd.f32 %v172, %v184
  %v189 = vadd.f32 %v173, %v185
  %v190 = vadd.f32 %v174, %v184
  %v191 = vadd.f32 %v175, %v185
  %v192 = vadd.f32 %v176, %v184
  %v193 = vadd.f32 %v177, %v185
  %v194 = vadd.f32 %v178, %v184
  %v195 = vadd.f32 %v179, %v185
  %v196 = vadd.f32 %v180, %v184
  %v197 = vadd.f32 %v181, %v185
  %v198 = vpack.c.bf16 %v189, %v188
  %v199 = vpack.c.bf16 %v191, %v190
  %v200 = vpack.c.bf16 %v193, %v192
  %v201 = vpack.c.bf16 %v195, %v194
  %v202 = vpack.c.bf16 %v197, %v196
  %203 = vst [vmem:[%s3] sm:$0xff] %v198
  %204 = vst [vmem:[%s3 + $0x8] sm:$0xff] %v199
  %205 = vst [vmem:[%s3 + $0x10] sm:$0xff] %v200
  %206 = vst [vmem:[%s3 + $0x18] sm:$0xff] %v201
  %207 = vst [vmem:[%s3 + $0x20] sm:$0x11] %v202
  // Predicated region
  $region14: #{_lambda_.19} parent=0 // pred_check
    _
  $region15: #{_lambda_.19} parent=0 // pred_check_branch
    %209 = sbr.rel (0) target = $region17
  $region16: #{_lambda_.19} parent=0 // pred_region
    _
  $region17: #{_lambda_.19} parent=0 // pred_fallthru
    _
  // Predicated region
  $region18: #{_lambda_.19} parent=0 // pred_check
    _
  $region19: #{_lambda_.19} parent=0 // pred_check_branch
    %211 = sbr.rel (0) target = $region21
  $region20: #{_lambda_.19} parent=0 // pred_region
    _
  $region21: #{_lambda_.19} parent=0 // pred_fallthru
    _

// kernel: _lambda_.20
$region0: #{_lambda_.20}
  #allocation0 [shape = 'u32[]', space=smem, size = 0x4, offset = 0x4, fixed_abs, tag = 'smem constant byte address 0x4 - core index']
  #allocation1 [shape = 'u32[72,128]{1,0:T(1,128)}', space=vmem, size = 0x9000, scoped, tag = 'internal scratch']
  #allocation2 [shape = 'f32[34,256]{1,0:T(8,128)}', space=vmem, size = 0xa000, scoped, tag = 'scratch operand']
  %s0 = inlined_call_operand.vmem [shape: bf16[34,256], index: 0, kind: input, shape index: {}]
  %s1 = inlined_call_operand.vmem [shape: bf16[256,768], index: 1, kind: input, shape index: {}]
  %s2 = inlined_call_operand.vmem [shape: f32[1,768], index: 2, kind: input, shape index: {}]
  %s3 = inlined_call_operand.vmem [shape: bf16[34,768], index: 3, kind: output, shape index: {}]
  %s4 = sld [smem:[#allocation0]]
  $region125: #{_lambda_.20} parent=0
    _
  %s6 = ssub.s32 1, %s4
  %s7 = scalar_select 0, %s6, %s4
  $region1: #{_lambda_.20} parent=0
    #allocation3 [shape = 'u8[262144]{0}', space=vmem, size = 0x40000, scoped, tag = 'input window, operand 1']
    #allocation4 [shape = 'u8[40960]{0}', space=vmem, size = 0xa000, scoped, tag = 'output window, operand 0']
    loop: start=0, step=1, limit=5
    $region2: #{_lambda_.20} parent=1 // loop_pre_header
      _
    $region3: #{_lambda_.20} parent=1 // loop_header
      %s9 = sphi 0, %s13
      %p10 = scmp.ge.s32.totalorder %s9, 5
      %s16 = sphi 0, %s35
      %s17 = sphi 0, %s31
      %s18 = sphi 0, %s27
      %s19 = sphi 0, %s16
      %s20 = sphi 0, %s17
      %s21 = sphi 0, %s18
      %s22 = sphi 0, %s19
      %s23 = sphi 0, %s20
      %s24 = sphi 0, %s21
      %s40 = sphi 0, %s42
      %s43 = sphi 0, %s40
      %s44 = sphi 0, %s43
      %s60 = sphi 0, %s44
      %s68 = sphi 0, %s70
      %s71 = sphi 0, %s68
      %s72 = sphi 0, %s71
      %s88 = sphi 0, %s72
      %s94 = sphi 0, %s96
      %s97 = sphi 0, %s94
      %s98 = sphi 0, %s97
      %s114 = sphi 0, %s98
      %s122 = sphi 0, %s124
      %s125 = sphi 0, %s122
      %s126 = sphi 0, %s125
      %s142 = sphi 0, %s126
    $region4: #{_lambda_.20} parent=1 // loop_header_branch
      %12 = sbr.rel (%p10) target = $region8
    $region5: #{_lambda_.20} parent=1 // loop_body
      %s14 = ssub.s32 %s9, 1
      %s15 = ssub.s32 %s9, 2
      %s25 = sadd.s32 1, %s18
      %p26 = scmp.ge.s32.totalorder %s25, 1
      %s27 = scalar_select %p26, 0, %s25
      %s28 = sadd.s32 1, %s17
      %s29 = scalar_select %p26, %s28, %s17
      %p30 = scmp.ge.s32.totalorder %s29, 3
      %s31 = scalar_select %p30, 0, %s29
      %s32 = sadd.s32 1, %s16
      %s33 = scalar_select %p30, %s32, %s16
      %p34 = scmp.ge.s32.totalorder %s33, 1
      %s35 = scalar_select %p34, 0, %s33
      %s36 = ssub.s32 %s16, %s35
      %s37 = ssub.s32 %s18, %s27
      %s38 = sor.u32 %s36, %s37
      %p39 = scmp.eq.s32.totalorder %s38, 0
      %s41 = sadd.s32 %s40, 1
      %s42 = scalar_select %p39, %s40, %s41
      %p45 = pneg %p39
      %p46 = scmp.eq.s32.totalorder %s9, 2
      %p47 = por %p45, %p46
      %p48 = scmp.ne.s32.totalorder %s40, %s43
      %p49 = scmp.eq.s32.totalorder %s9, 0
      %p50 = por %p48, %p49
      %p51 = scmp.ne.s32.totalorder %s40, %s43
      %p52 = scmp.eq.s32.totalorder %s14, 2
      %p53 = por %p51, %p52
      %p54 = scmp.ne.s32.totalorder %s43, %s44
      %p55 = scmp.eq.s32.totalorder %s14, 0
      %p56 = por %p54, %p55
      %p57 = scmp.ne.s32.totalorder %s43, %s44
      %p58 = scmp.eq.s32.totalorder %s15, 2
      %p59 = por %p57, %p58
      %p61 = scmp.ne.s32.totalorder %s44, %s60
      %p62 = scmp.eq.s32.totalorder %s15, 0
      %p63 = por %p61, %p62
      %s64 = ssub.s32 %s18, %s27
      %s65 = ssub.s32 %s17, %s31
      %s66 = sor.u32 %s64, %s65
      %p67 = scmp.eq.s32.totalorder %s66, 0
      %s69 = sadd.s32 %s68, 1
      %s70 = scalar_select %p67, %s68, %s69
      %p73 = pneg %p67
      %p74 = scmp.eq.s32.totalorder %s9, 2
      %p75 = por %p73, %p74
      %p76 = scmp.ne.s32.totalorder %s68, %s71
      %p77 = scmp.eq.s32.totalorder %s9, 0
      %p78 = por %p76, %p77
      %p79 = scmp.ne.s32.totalorder %s68, %s71
      %p80 = scmp.eq.s32.totalorder %s14, 2
      %p81 = por %p79, %p80
      %p82 = scmp.ne.s32.totalorder %s71, %s72
      %p83 = scmp.eq.s32.totalorder %s14, 0
      %p84 = por %p82, %p83
      %p85 = scmp.ne.s32.totalorder %s71, %s72
      %p86 = scmp.eq.s32.totalorder %s15, 2
      %p87 = por %p85, %p86
      %p89 = scmp.ne.s32.totalorder %s72, %s88
      %p90 = scmp.eq.s32.totalorder %s15, 0
      %p91 = por %p89, %p90
      %s92 = ssub.s32 %s17, %s31
      %p93 = scmp.eq.s32.totalorder %s92, 0
      %s95 = sadd.s32 %s94, 1
      %s96 = scalar_select %p93, %s94, %s95
      %p99 = pneg %p93
      %p100 = scmp.eq.s32.totalorder %s9, 2
      %p101 = por %p99, %p100
      %p102 = scmp.ne.s32.totalorder %s94, %s97
      %p103 = scmp.eq.s32.totalorder %s9, 0
      %p104 = por %p102, %p103
      %p105 = scmp.ne.s32.totalorder %s94, %s97
      %p106 = scmp.eq.s32.totalorder %s14, 2
      %p107 = por %p105, %p106
      %p108 = scmp.ne.s32.totalorder %s97, %s98
      %p109 = scmp.eq.s32.totalorder %s14, 0
      %p110 = por %p108, %p109
      %p111 = scmp.ne.s32.totalorder %s97, %s98
      %p112 = scmp.eq.s32.totalorder %s15, 2
      %p113 = por %p111, %p112
      %p115 = scmp.ne.s32.totalorder %s98, %s114
      %p116 = scmp.eq.s32.totalorder %s15, 0
      %p117 = por %p115, %p116
      %s118 = ssub.s32 %s16, %s35
      %s119 = ssub.s32 %s17, %s31
      %s120 = sor.u32 %s118, %s119
      %p121 = scmp.eq.s32.totalorder %s120, 0
      %s123 = sadd.s32 %s122, 1
      %s124 = scalar_select %p121, %s122, %s123
      %p127 = pneg %p121
      %p128 = scmp.eq.s32.totalorder %s9, 2
      %p129 = por %p127, %p128
      %p130 = scmp.ne.s32.totalorder %s122, %s125
      %p131 = scmp.eq.s32.totalorder %s9, 0
      %p132 = por %p130, %p131
      %p133 = scmp.ne.s32.totalorder %s122, %s125
      %p134 = scmp.eq.s32.totalorder %s14, 2
      %p135 = por %p133, %p134
      %p136 = scmp.ne.s32.totalorder %s125, %s126
      %p137 = scmp.eq.s32.totalorder %s14, 0
      %p138 = por %p136, %p137
      %p139 = scmp.ne.s32.totalorder %s125, %s126
      %p140 = scmp.eq.s32.totalorder %s15, 2
      %p141 = por %p139, %p140
      %p143 = scmp.ne.s32.totalorder %s126, %s142
      %p144 = scmp.eq.s32.totalorder %s15, 0
      %p145 = por %p143, %p144
      %p146 = scmp.le.s32.totalorder 1, %s9
      %p147 = scmp.lt.s32.totalorder %s9, 4
      %p148 = pnand %p146, %p147
      %p149 = pneg %p148
      // Predicated region
      $region9: #{_lambda_.20} parent=5 // pred_check
        _
      $region10: #{_lambda_.20} parent=5 // pred_check_branch
        %151 = sbr.rel (%p148) target = $region12
      $region11: #{_lambda_.20} parent=5 // pred_region
        %s152 = ssub.s32 %s9, 1
        // Predicated region
        $region13: #{_lambda_.20} parent=11 // pred_check
          %p153 = pneg %p56
        $region14: #{_lambda_.20} parent=11 // pred_check_branch
          %155 = sbr.rel (%p153) target = $region16
        $region15: #{_lambda_.20} parent=11 // pred_region
          %s156 = smul.u32 5, %s19
          %s157 = smul.u32 2, %s21
          %p158 = scmp.lt.s32.totalorder %s156, 4
          %s159 = scalar_select %p158, %s156, 4
          %p160 = scmp.lt.s32.totalorder %s157, 1
          %s161 = scalar_select %p160, %s157, 1
          %s162 = smul.addr %s159, 2
          %s163 = sadd.s32 %s161, %s162
          %s164 = smul.addr %s163, 4
          %s165 = scalar_lea.vmem %s0, %s164
          %s166 = smul.u32 5, %s19
          %s167 = smul.u32 2, %s21
        $region16: #{_lambda_.20} parent=11 // pred_fallthru
          _
      $region12: #{_lambda_.20} parent=5 // pred_fallthru
        _
      %p168 = scmp.lt.s32.totalorder %s9, 3
      // Predicated region
      $region17: #{_lambda_.20} parent=5 // pred_check
        %p169 = pneg %p168
      $region18: #{_lambda_.20} parent=5 // pred_check_branch
        %171 = sbr.rel (%p169) target = $region20
      $region19: #{_lambda_.20} parent=5 // pred_region
        // Predicated region
        $region21: #{_lambda_.20} parent=19 // pred_check
          %p172 = pneg %p78
        $region22: #{_lambda_.20} parent=19 // pred_check_branch
          %174 = sbr.rel (%p172) target = $region24
        $region23: #{_lambda_.20} parent=19 // pred_region
          %s175 = sand.u32 %s68, 1
          %s176 = sand.u32 %s68, 1
          %s177 = smul.addr %s176, 256
          %s178 = scalar_lea.vmem [#allocation3], %s177
          %s179 = smul.u32 32, %s18
          %s180 = smul.u32 2, %s17
          %s181 = smul.addr %s179, 6
          %s182 = sadd.s32 %s180, %s181
          %s183 = smul.addr %s182, 4
          %s184 = scalar_lea.vmem %s1, %s183
          // Predicated region
          $region25: #{_lambda_.20} parent=23 // pred_check
            _
          $region26: #{_lambda_.20} parent=23 // pred_check_branch
            %186 = sbr.rel (0) target = $region28
          $region27: #{_lambda_.20} parent=23 // pred_region
            // Predicated region
            $region29: #{_lambda_.20} parent=27 // pred_check
              _
            $region30: #{_lambda_.20} parent=27 // pred_check_branch
              %188 = sbr.rel (0) target = $region32
            $region31: #{_lambda_.20} parent=27 // pred_region
              // Predicated region
              $region44: #{_lambda_.20} parent=31 // pred_check
                _
              $region45: #{_lambda_.20} parent=31 // pred_check_branch
                %266 = sbr.rel (0) target = $region47
              $region46: #{_lambda_.20} parent=31 // pred_region
                loop: start=0, step=1, limit=1
                $region48: #{_lambda_.20} parent=46 // loop_pre_header
                  _
                $region49: #{_lambda_.20} parent=46 // loop_header
                  %s268 = sphi 0, %s272
                  %p269 = scmp.ge.s32.totalorder %s268, 1
                  %s273 = sphi %s184, %s184
                  %s274 = sphi %s178, %s178
                $region50: #{_lambda_.20} parent=46 // loop_header_branch
                  %271 = sbr.rel (%p269) target = $region54
                $region51: #{_lambda_.20} parent=46 // loop_body
                  %v275 = vld [vmem:[%s273] sm:$0xff]
                  %276 = vst [vmem:[%s274] sm:$0xff] %v275
                  %v277 = vld [vmem:[%s273 + $0x18] sm:$0xff]
                  %278 = vst [vmem:[%s274 + $0x8] sm:$0xff] %v277
                  %v279 = vld [vmem:[%s273 + $0x30] sm:$0xff]
                  %280 = vst [vmem:[%s274 + $0x10] sm:$0xff] %v279
                  %v281 = vld [vmem:[%s273 + $0x48] sm:$0xff]
                  %282 = vst [vmem:[%s274 + $0x18] sm:$0xff] %v281
                  %v283 = vld [vmem:[%s273 + $0x60] sm:$0xff]
                  %284 = vst [vmem:[%s274 + $0x20] sm:$0xff] %v283
                  %v285 = vld [vmem:[%s273 + $0x78] sm:$0xff]
                  %286 = vst [vmem:[%s274 + $0x28] sm:$0xff] %v285
                  %v287 = vld [vmem:[%s273 + $0x90] sm:$0xff]
                  %288 = vst [vmem:[%s274 + $0x30] sm:$0xff] %v287
                  %v289 = vld [vmem:[%s273 + $0xa8] sm:$0xff]
                  %290 = vst [vmem:[%s274 + $0x38] sm:$0xff] %v289
                  %v291 = vld [vmem:[%s273 + $0xc0] sm:$0xff]
                  %292 = vst [vmem:[%s274 + $0x40] sm:$0xff] %v291
                  %v293 = vld [vmem:[%s273 + $0xd8] sm:$0xff]
                  %294 = vst [vmem:[%s274 + $0x48] sm:$0xff] %v293
                  %v295 = vld [vmem:[%s273 + $0xf0] sm:$0xff]
                  %296 = vst [vmem:[%s274 + $0x50] sm:$0xff] %v295
                  %v297 = vld [vmem:[%s273 + $0x108] sm:$0xff]
                  %298 = vst [vmem:[%s274 + $0x58] sm:$0xff] %v297
                  %v299 = vld [vmem:[%s273 + $0x120] sm:$0xff]
                  %300 = vst [vmem:[%s274 + $0x60] sm:$0xff] %v299
                  %v301 = vld [vmem:[%s273 + $0x138] sm:$0xff]
                  %302 = vst [vmem:[%s274 + $0x68] sm:$0xff] %v301
                  %v303 = vld [vmem:[%s273 + $0x150] sm:$0xff]
                  %304 = vst [vmem:[%s274 + $0x70] sm:$0xff] %v303
                  %v305 = vld [vmem:[%s273 + $0x168] sm:$0xff]
                  %306 = vst [vmem:[%s274 + $0x78] sm:$0xff] %v305
                  %v307 = vld [vmem:[%s273 + $0x180] sm:$0xff]
                  %308 = vst [vmem:[%s274 + $0x80] sm:$0xff] %v307
                  %v309 = vld [vmem:[%s273 + $0x198] sm:$0xff]
                  %310 = vst [vmem:[%s274 + $0x88] sm:$0xff] %v309
                  %v311 = vld [vmem:[%s273 + $0x1b0] sm:$0xff]
                  %312 = vst [vmem:[%s274 + $0x90] sm:$0xff] %v311
                  %v313 = vld [vmem:[%s273 + $0x1c8] sm:$0xff]
                  %314 = vst [vmem:[%s274 + $0x98] sm:$0xff] %v313
                  %v315 = vld [vmem:[%s273 + $0x1e0] sm:$0xff]
                  %316 = vst [vmem:[%s274 + $0xa0] sm:$0xff] %v315
                  %v317 = vld [vmem:[%s273 + $0x1f8] sm:$0xff]
                  %318 = vst [vmem:[%s274 + $0xa8] sm:$0xff] %v317
                  %v319 = vld [vmem:[%s273 + $0x210] sm:$0xff]
                  %320 = vst [vmem:[%s274 + $0xb0] sm:$0xff] %v319
                  %v321 = vld [vmem:[%s273 + $0x228] sm:$0xff]
                  %322 = vst [vmem:[%s274 + $0xb8] sm:$0xff] %v321
                  %v323 = vld [vmem:[%s273 + $0x240] sm:$0xff]
                  %324 = vst [vmem:[%s274 + $0xc0] sm:$0xff] %v323
                  %v325 = vld [vmem:[%s273 + $0x258] sm:$0xff]
                  %326 = vst [vmem:[%s274 + $0xc8] sm:$0xff] %v325
                  %v327 = vld [vmem:[%s273 + $0x270] sm:$0xff]
                  %328 = vst [vmem:[%s274 + $0xd0] sm:$0xff] %v327
                  %v329 = vld [vmem:[%s273 + $0x288] sm:$0xff]
                  %330 = vst [vmem:[%s274 + $0xd8] sm:$0xff] %v329
                  %v331 = vld [vmem:[%s273 + $0x2a0] sm:$0xff]
                  %332 = vst [vmem:[%s274 + $0xe0] sm:$0xff] %v331
                  %v333 = vld [vmem:[%s273 + $0x2b8] sm:$0xff]
                  %334 = vst [vmem:[%s274 + $0xe8] sm:$0xff] %v333
                  %v335 = vld [vmem:[%s273 + $0x2d0] sm:$0xff]
                  %336 = vst [vmem:[%s274 + $0xf0] sm:$0xff] %v335
                  %v337 = vld [vmem:[%s273 + $0x2e8] sm:$0xff]
                  %338 = vst [vmem:[%s274 + $0xf8] sm:$0xff] %v337
                $region52: #{_lambda_.20} parent=46 // loop_footer
                  %s272 = sadd.s32 1, %s268
                $region53: #{_lambda_.20} parent=46 // loop_footer_branch
                  %267 = sbr.rel target = $region49
                $region54: #{_lambda_.20} parent=46 // loop_exit
                  _
              $region47: #{_lambda_.20} parent=31 // pred_fallthru
                _
              // Predicated region
              $region55: #{_lambda_.20} parent=31 // pred_check
                _
              $region56: #{_lambda_.20} parent=31 // pred_check_branch
                %340 = sbr.rel target = $region58
              $region57: #{_lambda_.20} parent=31 // pred_region
                _
              $region58: #{_lambda_.20} parent=31 // pred_fallthru
                _
            $region32: #{_lambda_.20} parent=27 // pred_fallthru
              _
            // Predicated region
            $region33: #{_lambda_.20} parent=27 // pred_check
              _
            $region34: #{_lambda_.20} parent=27 // pred_check_branch
              %190 = sbr.rel target = $region36
            $region35: #{_lambda_.20} parent=27 // pred_region
              %s192 = ssub.s32 256, 1
              loop: start=0, step=1, limit=1
              $region37: #{_lambda_.20} parent=35 // loop_pre_header
                _
              $region38: #{_lambda_.20} parent=35 // loop_header
                %s194 = sphi 0, %s198
                %p195 = scmp.ge.s32.totalorder %s194, 1
                %s199 = sphi %s184, %s184
                %s200 = sphi %s178, %s178
              $region39: #{_lambda_.20} parent=35 // loop_header_branch
                %197 = sbr.rel (%p195) target = $region43
              $region40: #{_lambda_.20} parent=35 // loop_body
                %v201 = vld [vmem:[%s199] sm:%s192]
                %202 = vst [vmem:[%s200] sm:%s192] %v201
                %v203 = vld [vmem:[%s199 + $0x18] sm:%s192]
                %204 = vst [vmem:[%s200 + $0x8] sm:%s192] %v203
                %v205 = vld [vmem:[%s199 + $0x30] sm:%s192]
                %206 = vst [vmem:[%s200 + $0x10] sm:%s192] %v205
                %v207 = vld [vmem:[%s199 + $0x48] sm:%s192]
                %208 = vst [vmem:[%s200 + $0x18] sm:%s192] %v207
                %v209 = vld [vmem:[%s199 + $0x60] sm:%s192]
                %210 = vst [vmem:[%s200 + $0x20] sm:%s192] %v209
                %v211 = vld [vmem:[%s199 + $0x78] sm:%s192]
                %212 = vst [vmem:[%s200 + $0x28] sm:%s192] %v211
                %v213 = vld [vmem:[%s199 + $0x90] sm:%s192]
                %214 = vst [vmem:[%s200 + $0x30] sm:%s192] %v213
                %v215 = vld [vmem:[%s199 + $0xa8] sm:%s192]
                %216 = vst [vmem:[%s200 + $0x38] sm:%s192] %v215
                %v217 = vld [vmem:[%s199 + $0xc0] sm:%s192]
                %218 = vst [vmem:[%s200 + $0x40] sm:%s192] %v217
                %v219 = vld [vmem:[%s199 + $0xd8] sm:%s192]
                %220 = vst [vmem:[%s200 + $0x48] sm:%s192] %v219
                %v221 = vld [vmem:[%s199 + $0xf0] sm:%s192]
                %222 = vst [vmem:[%s200 + $0x50] sm:%s192] %v221
                %v223 = vld [vmem:[%s199 + $0x108] sm:%s192]
                %224 = vst [vmem:[%s200 + $0x58] sm:%s192] %v223
                %v225 = vld [vmem:[%s199 + $0x120] sm:%s192]
                %226 = vst [vmem:[%s200 + $0x60] sm:%s192] %v225
                %v227 = vld [vmem:[%s199 + $0x138] sm:%s192]
                %228 = vst [vmem:[%s200 + $0x68] sm:%s192] %v227
                %v229 = vld [vmem:[%s199 + $0x150] sm:%s192]
                %230 = vst [vmem:[%s200 + $0x70] sm:%s192] %v229
                %v231 = vld [vmem:[%s199 + $0x168] sm:%s192]
                %232 = vst [vmem:[%s200 + $0x78] sm:%s192] %v231
                %v233 = vld [vmem:[%s199 + $0x180] sm:%s192]
                %234 = vst [vmem:[%s200 + $0x80] sm:%s192] %v233
                %v235 = vld [vmem:[%s199 + $0x198] sm:%s192]
                %236 = vst [vmem:[%s200 + $0x88] sm:%s192] %v235
                %v237 = vld [vmem:[%s199 + $0x1b0] sm:%s192]
                %238 = vst [vmem:[%s200 + $0x90] sm:%s192] %v237
                %v239 = vld [vmem:[%s199 + $0x1c8] sm:%s192]
                %240 = vst [vmem:[%s200 + $0x98] sm:%s192] %v239
                %v241 = vld [vmem:[%s199 + $0x1e0] sm:%s192]
                %242 = vst [vmem:[%s200 + $0xa0] sm:%s192] %v241
                %v243 = vld [vmem:[%s199 + $0x1f8] sm:%s192]
                %244 = vst [vmem:[%s200 + $0xa8] sm:%s192] %v243
                %v245 = vld [vmem:[%s199 + $0x210] sm:%s192]
                %246 = vst [vmem:[%s200 + $0xb0] sm:%s192] %v245
                %v247 = vld [vmem:[%s199 + $0x228] sm:%s192]
                %248 = vst [vmem:[%s200 + $0xb8] sm:%s192] %v247
                %v249 = vld [vmem:[%s199 + $0x240] sm:%s192]
                %250 = vst [vmem:[%s200 + $0xc0] sm:%s192] %v249
                %v251 = vld [vmem:[%s199 + $0x258] sm:%s192]
                %252 = vst [vmem:[%s200 + $0xc8] sm:%s192] %v251
                %v253 = vld [vmem:[%s199 + $0x270] sm:%s192]
                %254 = vst [vmem:[%s200 + $0xd0] sm:%s192] %v253
                %v255 = vld [vmem:[%s199 + $0x288] sm:%s192]
                %256 = vst [vmem:[%s200 + $0xd8] sm:%s192] %v255
                %v257 = vld [vmem:[%s199 + $0x2a0] sm:%s192]
                %258 = vst [vmem:[%s200 + $0xe0] sm:%s192] %v257
                %v259 = vld [vmem:[%s199 + $0x2b8] sm:%s192]
                %260 = vst [vmem:[%s200 + $0xe8] sm:%s192] %v259
                %v261 = vld [vmem:[%s199 + $0x2d0] sm:%s192]
                %262 = vst [vmem:[%s200 + $0xf0] sm:%s192] %v261
                %v263 = vld [vmem:[%s199 + $0x2e8] sm:%s192]
                %264 = vst [vmem:[%s200 + $0xf8] sm:%s192] %v263
              $region41: #{_lambda_.20} parent=35 // loop_footer
                %s198 = sadd.s32 1, %s194
              $region42: #{_lambda_.20} parent=35 // loop_footer_branch
                %193 = sbr.rel target = $region38
              $region43: #{_lambda_.20} parent=35 // loop_exit
                _
            $region36: #{_lambda_.20} parent=27 // pred_fallthru
              _
          $region28: #{_lambda_.20} parent=23 // pred_fallthru
            _
          %341 = vnop
        $region24: #{_lambda_.20} parent=19 // pred_fallthru
          _
        // Predicated region
        $region59: #{_lambda_.20} parent=19 // pred_check
          %p342 = pneg %p104
        $region60: #{_lambda_.20} parent=19 // pred_check_branch
          %344 = sbr.rel (%p342) target = $region62
        $region61: #{_lambda_.20} parent=19 // pred_region
          %s345 = smul.u32 2, %s17
          %p346 = scmp.lt.s32.totalorder %s345, 5
          %s347 = scalar_select %p346, %s345, 5
          %s348 = scalar_lea.vmem %s2, %s347
          %s349 = smul.u32 2, %s17
        $region62: #{_lambda_.20} parent=19 // pred_fallthru
          _
      $region20: #{_lambda_.20} parent=5 // pred_fallthru
        _
      %p350 = scmp.le.s32.totalorder 1, %s9
      %p351 = scmp.lt.s32.totalorder %s9, 4
      %p352 = pnand %p350, %p351
      %p353 = pneg %p352
      // Predicated region
      $region63: #{_lambda_.20} parent=5 // pred_check
        _
      $region64: #{_lambda_.20} parent=5 // pred_check_branch
        %355 = sbr.rel (%p352) target = $region66
      $region65: #{_lambda_.20} parent=5 // pred_region
        %s356 = ssub.s32 %s9, 1
        %s357 = sand.u32 %s71, 1
        %s358 = sand.u32 %s71, 1
        %s359 = smul.addr %s358, 256
        %s360 = scalar_lea.vmem [#allocation3], %s359
        // Predicated region
        $region67: #{_lambda_.20} parent=65 // pred_check
          %p361 = pneg %p84
        $region68: #{_lambda_.20} parent=65 // pred_check_branch
          %363 = sbr.rel (%p361) target = $region70
        $region69: #{_lambda_.20} parent=65 // pred_region
          _
        $region70: #{_lambda_.20} parent=65 // pred_fallthru
          _
        %s364 = smul.u32 5, %s19
        %s365 = smul.u32 2, %s21
        %p366 = scmp.lt.s32.totalorder %s364, 4
        %s367 = scalar_select %p366, %s364, 4
        %p368 = scmp.lt.s32.totalorder %s365, 1
        %s369 = scalar_select %p368, %s365, 1
        %s370 = smul.addr %s367, 2
        %s371 = sadd.s32 %s369, %s370
        %s372 = smul.addr %s371, 4
        %s373 = scalar_lea.vmem %s0, %s372
        %p374 = pneg %p56
        %p375 = pneg %p53
        %s376 = sand.u32 %s71, 1
        %s377 = sand.u32 %s71, 1
        %s378 = smul.addr %s377, 256
        %s379 = scalar_lea.vmem [#allocation3], %s378
        %p380 = pneg %p84
        %p381 = pneg %p81
        %s382 = smul.u32 2, %s20
        %p383 = scmp.lt.s32.totalorder %s382, 5
        %s384 = scalar_select %p383, %s382, 5
        %s385 = scalar_lea.vmem %s2, %s384
        %p386 = pneg %p110
        %p387 = pneg %p107
        %p388 = pneg %p138
        %p389 = pneg %p135
        %s390 = sand.u32 %s125, 1
        %s391 = sand.u32 %s125, 1
        %s392 = smul.addr %s391, 40
        %s393 = scalar_lea.vmem [#allocation4], %s392
        %s394 = smul.u32 5, %s19
        %s395 = smul.u32 2, %s21
        %p396 = scmp.lt.s32.totalorder %s394, 4
        %s397 = scalar_select %p396, %s394, 4
        %p398 = scmp.lt.s32.totalorder %s395, 1
        %s399 = scalar_select %p398, %s395, 1
        %s400 = smul.addr %s397, 2
        %s401 = sadd.s32 %s399, %s400
        %s402 = smul.addr %s401, 4
        %s403 = scalar_lea.vmem %s0, %s402
        %s404 = smul.u32 5, %s19
        %s405 = smul.u32 2, %s21
        %s406 = smul.u32 32, %s21
        %s407 = smul.u32 2, %s20
        %s408 = smul.u32 2, %s20
        %p409 = scmp.lt.s32.totalorder %s408, 5
        %s410 = scalar_select %p409, %s408, 5
        %s411 = scalar_lea.vmem %s2, %s410
        %s412 = smul.u32 2, %s20
        %s413 = smul.u32 5, %s19
        %s414 = smul.u32 2, %s20
        %p415 = scmp.eq.s32.totalorder %s21, 0
        // Predicated region
        $region71: #{_lambda_.20} parent=65 // pred_check
          %p416 = pneg %p415
        $region72: #{_lambda_.20} parent=65 // pred_check_branch
          %418 = sbr.rel (%p416) target = $region74
        $region73: #{_lambda_.20} parent=65 // pred_region
          %419 = vst [vmem:[#allocation2] sm:$0xff] 0.0
          %420 = vst [vmem:[#allocation2 + $0x8] sm:$0xff] 0.0
          %421 = vst [vmem:[#allocation2 + $0x10] sm:$0xff] 0.0
          %422 = vst [vmem:[#allocation2 + $0x18] sm:$0xff] 0.0
          %423 = vst [vmem:[#allocation2 + $0x20] sm:$0xff] 0.0
          %424 = vst [vmem:[#allocation2 + $0x28] sm:$0xff] 0.0
          %425 = vst [vmem:[#allocation2 + $0x30] sm:$0xff] 0.0
          %426 = vst [vmem:[#allocation2 + $0x38] sm:$0xff] 0.0
          %427 = vst [vmem:[#allocation2 + $0x40] sm:$0x3] 0.0
          %428 = vst [vmem:[#allocation2 + $0x48] sm:$0x3] 0.0
        $region74: #{_lambda_.20} parent=65 // pred_fallthru
          _
        %v429 = vld [vmem:[#allocation2] sm:$0xff]
        %v430 = vld [vmem:[#allocation2 + $0x8] sm:$0xff]
        %v431 = vld [vmem:[#allocation2 + $0x10] sm:$0xff]
        %v432 = vld [vmem:[#allocation2 + $0x18] sm:$0xff]
        %v433 = vld [vmem:[#allocation2 + $0x20] sm:$0xff]
        %v434 = vld [vmem:[#allocation2 + $0x28] sm:$0xff]
        %v435 = vld [vmem:[#allocation2 + $0x30] sm:$0xff]
        %v436 = vld [vmem:[#allocation2 + $0x38] sm:$0xff]
        %v437 = vld [vmem:[#allocation2 + $0x40] sm:$0x3]
        %v438 = vld [vmem:[#allocation2 + $0x48] sm:$0x3]
        %v439 = vld [vmem:[%s403] sm:$0xff]
        %v440 = vld [vmem:[%s403 + $0x8] sm:$0xff]
        %v441 = vld [vmem:[%s403 + $0x10] sm:$0xff]
        %v442 = vld [vmem:[%s403 + $0x18] sm:$0xff]
        %v443 = vld [vmem:[%s403 + $0x20] sm:$0x11]
        %v444 = vld [vmem:[%s360] sm:$0xff]
        %v445 = vld [vmem:[%s360 + $0x8] sm:$0xff]
        %v446 = vld [vmem:[%s360 + $0x10] sm:$0xff]
        %v447 = vld [vmem:[%s360 + $0x18] sm:$0xff]
        %v448 = vld [vmem:[%s360 + $0x20] sm:$0xff]
        %v449 = vld [vmem:[%s360 + $0x28] sm:$0xff]
        %v450 = vld [vmem:[%s360 + $0x30] sm:$0xff]
        %v451 = vld [vmem:[%s360 + $0x38] sm:$0xff]
        %v452 = vld [vmem:[%s360 + $0x40] sm:$0xff]
        %v453 = vld [vmem:[%s360 + $0x48] sm:$0xff]
        %v454 = vld [vmem:[%s360 + $0x50] sm:$0xff]
        %v455 = vld [vmem:[%s360 + $0x58] sm:$0xff]
        %v456 = vld [vmem:[%s360 + $0x60] sm:$0xff]
        %v457 = vld [vmem:[%s360 + $0x68] sm:$0xff]
        %v458 = vld [vmem:[%s360 + $0x70] sm:$0xff]
        %v459 = vld [vmem:[%s360 + $0x78] sm:$0xff]
        %v460 = vld [vmem:[%s360 + $0x80] sm:$0xff]
        %v461 = vld [vmem:[%s360 + $0x88] sm:$0xff]
        %v462 = vld [vmem:[%s360 + $0x90] sm:$0xff]
        %v463 = vld [vmem:[%s360 + $0x98] sm:$0xff]
        %v464 = vld [vmem:[%s360 + $0xa0] sm:$0xff]
        %v465 = vld [vmem:[%s360 + $0xa8] sm:$0xff]
        %v466 = vld [vmem:[%s360 + $0xb0] sm:$0xff]
        %v467 = vld [vmem:[%s360 + $0xb8] sm:$0xff]
        %v468 = vld [vmem:[%s360 + $0xc0] sm:$0xff]
        %v469 = vld [vmem:[%s360 + $0xc8] sm:$0xff]
        %v470 = vld [vmem:[%s360 + $0xd0] sm:$0xff]
        %v471 = vld [vmem:[%s360 + $0xd8] sm:$0xff]
        %v472 = vld [vmem:[%s360 + $0xe0] sm:$0xff]
        %v473 = vld [vmem:[%s360 + $0xe8] sm:$0xff]
        %v474 = vld [vmem:[%s360 + $0xf0] sm:$0xff]
        %v475 = vld [vmem:[%s360 + $0xf8] sm:$0xff]
        %v481 = vunpack.c.l.b16 %v439
        %v482 = vunpack.c.h.b16 %v439
        %v483 = vunpack.c.l.b16 %v440
        %v484 = vunpack.c.h.b16 %v440
        %v485 = vunpack.c.l.b16 %v441
        %v486 = vunpack.c.h.b16 %v441
        %v487 = vunpack.c.l.b16 %v442
        %v488 = vunpack.c.h.b16 %v442
        %v489 = vunpack.c.l.b16 %v443
        %v490 = vunpack.c.h.b16 %v443
        %v491 = vpack.c.b16 %v483, %v481
        %v492 = vpack.c.b16 %v484, %v482
        %v493 = vpack.c.b16 %v487, %v485
        %v494 = vpack.c.b16 %v488, %v486
        %v495 = vpack.c.b16 %v489, %v489
        %v496 = vpack.c.b16 %v490, %v490
        %v535 = vunpack.c.l.b16 %v444
        %v536 = vunpack.c.h.b16 %v444
        %v537 = vunpack.c.l.b16 %v445
        %v538 = vunpack.c.h.b16 %v445
        %v539 = vunpack.c.l.b16 %v446
        %v540 = vunpack.c.h.b16 %v446
        %v541 = vunpack.c.l.b16 %v447
        %v542 = vunpack.c.h.b16 %v447
        %v543 = vunpack.c.l.b16 %v448
        %v544 = vunpack.c.h.b16 %v448
        %v545 = vunpack.c.l.b16 %v449
        %v546 = vunpack.c.h.b16 %v449
        %v547 = vunpack.c.l.b16 %v450
        %v548 = vunpack.c.h.b16 %v450
        %v549 = vunpack.c.l.b16 %v451
        %v550 = vunpack.c.h.b16 %v451
        %v551 = vunpack.c.l.b16 %v452
        %v552 = vunpack.c.h.b16 %v452
        %v553 = vunpack.c.l.b16 %v453
        %v554 = vunpack.c.h.b16 %v453
        %v555 = vunpack.c.l.b16 %v454
        %v556 = vunpack.c.h.b16 %v454
        %v557 = vunpack.c.l.b16 %v455
        %v558 = vunpack.c.h.b16 %v455
        %v559 = vunpack.c.l.b16 %v456
        %v560 = vunpack.c.h.b16 %v456
        %v561 = vunpack.c.l.b16 %v457
        %v562 = vunpack.c.h.b16 %v457
        %v563 = vunpack.c.l.b16 %v458
        %v564 = vunpack.c.h.b16 %v458
        %v565 = vunpack.c.l.b16 %v459
        %v566 = vunpack.c.h.b16 %v459
        %v567 = vunpack.c.l.b16 %v460
        %v568 = vunpack.c.h.b16 %v460
        %v569 = vunpack.c.l.b16 %v461
        %v570 = vunpack.c.h.b16 %v461
        %v571 = vunpack.c.l.b16 %v462
        %v572 = vunpack.c.h.b16 %v462
        %v573 = vunpack.c.l.b16 %v463
        %v574 = vunpack.c.h.b16 %v463
        %v575 = vunpack.c.l.b16 %v464
        %v576 = vunpack.c.h.b16 %v464
        %v577 = vunpack.c.l.b16 %v465
        %v578 = vunpack.c.h.b16 %v465
        %v579 = vunpack.c.l.b16 %v466
        %v580 = vunpack.c.h.b16 %v466
        %v581 = vunpack.c.l.b16 %v467
        %v582 = vunpack.c.h.b16 %v467
        %v583 = vunpack.c.l.b16 %v468
        %v584 = vunpack.c.h.b16 %v468
        %v585 = vunpack.c.l.b16 %v469
        %v586 = vunpack.c.h.b16 %v469
        %v587 = vunpack.c.l.b16 %v470
        %v588 = vunpack.c.h.b16 %v470
        %v589 = vunpack.c.l.b16 %v471
        %v590 = vunpack.c.h.b16 %v471
        %v591 = vunpack.c.l.b16 %v472
        %v592 = vunpack.c.h.b16 %v472
        %v593 = vunpack.c.l.b16 %v473
        %v594 = vunpack.c.h.b16 %v473
        %v595 = vunpack.c.l.b16 %v474
        %v596 = vunpack.c.h.b16 %v474
        %v597 = vunpack.c.l.b16 %v475
        %v598 = vunpack.c.h.b16 %v475
        %v599 = vpack.c.b16 %v537, %v535
        %v600 = vpack.c.b16 %v538, %v536
        %v601 = vpack.c.b16 %v541, %v539
        %v602 = vpack.c.b16 %v542, %v540
        %v603 = vpack.c.b16 %v545, %v543
        %v604 = vpack.c.b16 %v546, %v544
        %v605 = vpack.c.b16 %v549, %v547
        %v606 = vpack.c.b16 %v550, %v548
        %v607 = vpack.c.b16 %v553, %v551
        %v608 = vpack.c.b16 %v554, %v552
        %v609 = vpack.c.b16 %v557, %v555
        %v610 = vpack.c.b16 %v558, %v556
        %v611 = vpack.c.b16 %v561, %v559
        %v612 = vpack.c.b16 %v562, %v560
        %v613 = vpack.c.b16 %v565, %v563
        %v614 = vpack.c.b16 %v566, %v564
        %v615 = vpack.c.b16 %v569, %v567
        %v616 = vpack.c.b16 %v570, %v568
        %v617 = vpack.c.b16 %v573, %v571
        %v618 = vpack.c.b16 %v574, %v572
        %v619 = vpack.c.b16 %v577, %v575
        %v620 = vpack.c.b16 %v578, %v576
        %v621 = vpack.c.b16 %v581, %v579
        %v622 = vpack.c.b16 %v582, %v580
        %v623 = vpack.c.b16 %v585, %v583
        %v624 = vpack.c.b16 %v586, %v584
        %v625 = vpack.c.b16 %v589, %v587
        %v626 = vpack.c.b16 %v590, %v588
        %v627 = vpack.c.b16 %v593, %v591
        %v628 = vpack.c.b16 %v594, %v592
        %v629 = vpack.c.b16 %v597, %v595
        %v630 = vpack.c.b16 %v598, %v596
        %663 = vmatpush.bf16.msra.mxu0 %v613
        %664 = vmatpush.bf16.msra.mxu0 %v611
        %665 = vmatpush.bf16.msra.mxu0 %v609
        %666 = vmatpush.bf16.msra.mxu0 %v607
        %667 = vmatpush.bf16.msra.mxu0 %v605
        %668 = vmatpush.bf16.msra.mxu0 %v603
        %669 = vmatpush.bf16.msra.mxu0 %v601
        %670 = vmatpush.bf16.msra.mxu0 %v599
        %671 = vmatmul.bf16.gmra.mxu0 %v491
        %v672 = vpop.f32.mrf.mxu0
        %v673 = vadd.f32 0.0, %v672
        %v674 = vpop.f32.mrf.mxu0
        %v675 = vadd.f32 0.0, %v674
        %676 = vmatmul.bf16.gmra.mxu0 %v493
        %v677 = vpop.f32.mrf.mxu0
        %v678 = vadd.f32 0.0, %v677
        %v679 = vpop.f32.mrf.mxu0
        %v680 = vadd.f32 0.0, %v679
        %681 = vmatmul.bf16.gmra.mxu0 %v495
        %v682 = vpop.f32.mrf.mxu0
        %v683 = vadd.f32 0.0, %v682
        %v684 = vpop.f32.mrf.mxu0
        %685 = vdwg.mxu0
        %686 = vmatpush.bf16.msra.mxu0 %v629
        %687 = vmatpush.bf16.msra.mxu0 %v627
        %688 = vmatpush.bf16.msra.mxu0 %v625
        %689 = vmatpush.bf16.msra.mxu0 %v623
        %690 = vmatpush.bf16.msra.mxu0 %v621
        %691 = vmatpush.bf16.msra.mxu0 %v619
        %692 = vmatpush.bf16.msra.mxu0 %v617
        %693 = vmatpush.bf16.msra.mxu0 %v615
        %694 = vmatmul.bf16.gmra.mxu0 %v492
        %v695 = vpop.f32.mrf.mxu0
        %v696 = vadd.f32 %v673, %v695
        %v697 = vpop.f32.mrf.mxu0
        %v698 = vadd.f32 %v675, %v697
        %699 = vmatmul.bf16.gmra.mxu0 %v494
        %v700 = vpop.f32.mrf.mxu0
        %v701 = vadd.f32 %v678, %v700
        %v702 = vpop.f32.mrf.mxu0
        %v703 = vadd.f32 %v680, %v702
        %704 = vmatmul.bf16.gmra.mxu0 %v496
        %v705 = vpop.f32.mrf.mxu0
        %v706 = vadd.f32 %v683, %v705
        %v707 = vpop.f32.mrf.mxu0
        %708 = vdwg.mxu0
        %709 = vmatpush.bf16.msra.mxu0 %v614
        %710 = vmatpush.bf16.msra.mxu0 %v612
        %711 = vmatpush.bf16.msra.mxu0 %v610
        %712 = vmatpush.bf16.msra.mxu0 %v608
        %713 = vmatpush.bf16.msra.mxu0 %v606
        %714 = vmatpush.bf16.msra.mxu0 %v604
        %715 = vmatpush.bf16.msra.mxu0 %v602
        %716 = vmatpush.bf16.msra.mxu0 %v600
        %717 = vmatmul.bf16.gmra.mxu0 %v491
        %v718 = vpop.f32.mrf.mxu0
        %v719 = vadd.f32 0.0, %v718
        %v720 = vpop.f32.mrf.mxu0
        %v721 = vadd.f32 0.0, %v720
        %722 = vmatmul.bf16.gmra.mxu0 %v493
        %v723 = vpop.f32.mrf.mxu0
        %v724 = vadd.f32 0.0, %v723
        %v725 = vpop.f32.mrf.mxu0
        %v726 = vadd.f32 0.0, %v725
        %727 = vmatmul.bf16.gmra.mxu0 %v495
        %v728 = vpop.f32.mrf.mxu0
        %v729 = vadd.f32 0.0, %v728
        %v730 = vpop.f32.mrf.mxu0
        %731 = vdwg.mxu0
        %732 = vmatpush.bf16.msra.mxu0 %v630
        %733 = vmatpush.bf16.msra.mxu0 %v628
        %734 = vmatpush.bf16.msra.mxu0 %v626
        %735 = vmatpush.bf16.msra.mxu0 %v624
        %736 = vmatpush.bf16.msra.mxu0 %v622
        %737 = vmatpush.bf16.msra.mxu0 %v620
        %738 = vmatpush.bf16.msra.mxu0 %v618
        %739 = vmatpush.bf16.msra.mxu0 %v616
        %740 = vmatmul.bf16.gmra.mxu0 %v492
        %v741 = vpop.f32.mrf.mxu0
        %v742 = vadd.f32 %v719, %v741
        %v743 = vpop.f32.mrf.mxu0
        %v744 = vadd.f32 %v721, %v743
        %745 = vmatmul.bf16.gmra.mxu0 %v494
        %v746 = vpop.f32.mrf.mxu0
        %v747 = vadd.f32 %v724, %v746
        %v748 = vpop.f32.mrf.mxu0
        %v749 = vadd.f32 %v726, %v748
        %750 = vmatmul.bf16.gmra.mxu0 %v496
        %v751 = vpop.f32.mrf.mxu0
        %v752 = vadd.f32 %v729, %v751
        %v753 = vpop.f32.mrf.mxu0
        %754 = vdwg.mxu0
        %v755 = vadd.f32 %v429, %v696
        %v756 = vadd.f32 %v430, %v742
        %v757 = vadd.f32 %v431, %v698
        %v758 = vadd.f32 %v432, %v744
        %v759 = vadd.f32 %v433, %v701
        %v760 = vadd.f32 %v434, %v747
        %v761 = vadd.f32 %v435, %v703
        %v762 = vadd.f32 %v436, %v749
        %v763 = vadd.f32 %v437, %v706
        %v764 = vadd.f32 %v438, %v752
        %765 = vst [vmem:[#allocation2] sm:$0xff] %v755
        %766 = vst [vmem:[#allocation2 + $0x8] sm:$0xff] %v756
        %767 = vst [vmem:[#allocation2 + $0x10] sm:$0xff] %v757
        %768 = vst [vmem:[#allocation2 + $0x18] sm:$0xff] %v758
        %769 = vst [vmem:[#allocation2 + $0x20] sm:$0xff] %v759
        %770 = vst [vmem:[#allocation2 + $0x28] sm:$0xff] %v760
        %771 = vst [vmem:[#allocation2 + $0x30] sm:$0xff] %v761
        %772 = vst [vmem:[#allocation2 + $0x38] sm:$0xff] %v762
        %773 = vst [vmem:[#allocation2 + $0x40] sm:$0x3] %v763
        %774 = vst [vmem:[#allocation2 + $0x48] sm:$0x3] %v764
        // Predicated region
        $region75: #{_lambda_.20} parent=65 // pred_check
          %p775 = pneg %p415
        $region76: #{_lambda_.20} parent=65 // pred_check_branch
          %777 = sbr.rel (%p775) target = $region78
        $region77: #{_lambda_.20} parent=65 // pred_region
          %v778 = vld [vmem:[#allocation2] sm:$0xff]
          %v779 = vld [vmem:[#allocation2 + $0x8] sm:$0xff]
          %v780 = vld [vmem:[#allocation2 + $0x10] sm:$0xff]
          %v781 = vld [vmem:[#allocation2 + $0x18] sm:$0xff]
          %v782 = vld [vmem:[#allocation2 + $0x20] sm:$0xff]
          %v783 = vld [vmem:[#allocation2 + $0x28] sm:$0xff]
          %v784 = vld [vmem:[#allocation2 + $0x30] sm:$0xff]
          %v785 = vld [vmem:[#allocation2 + $0x38] sm:$0xff]
          %v786 = vld [vmem:[#allocation2 + $0x40] sm:$0x3]
          %v787 = vld [vmem:[#allocation2 + $0x48] sm:$0x3]
          %v788 = vld [vmem:[%s411] sm:$0x3]
          %v790 = vperm.slane %v788, 0
          %v791 = vperm.slane %v788, 1
          %v794 = vadd.f32 %v778, %v790
          %v795 = vadd.f32 %v779, %v791
          %v796 = vadd.f32 %v780, %v790
          %v797 = vadd.f32 %v781, %v791
          %v798 = vadd.f32 %v782, %v790
          %v799 = vadd.f32 %v783, %v791
          %v800 = vadd.f32 %v784, %v790
          %v801 = vadd.f32 %v785, %v791
          %v802 = vadd.f32 %v786, %v790
          %v803 = vadd.f32 %v787, %v791
          %v804 = vpack.c.bf16 %v795, %v794
          %v805 = vpack.c.bf16 %v797, %v796
          %v806 = vpack.c.bf16 %v799, %v798
          %v807 = vpack.c.bf16 %v801, %v800
          %v808 = vpack.c.bf16 %v803, %v802
          %809 = vst [vmem:[%s393] sm:$0xff] %v804
          %810 = vst [vmem:[%s393 + $0x8] sm:$0xff] %v805
          %811 = vst [vmem:[%s393 + $0x10] sm:$0xff] %v806
          %812 = vst [vmem:[%s393 + $0x18] sm:$0xff] %v807
          %813 = vst [vmem:[%s393 + $0x20] sm:$0x11] %v808
        $region78: #{_lambda_.20} parent=65 // pred_fallthru
          _
        %s814 = sand.u32 %s125, 1
        %s815 = sand.u32 %s125, 1
        %s816 = smul.addr %s815, 40
        %s817 = scalar_lea.vmem [#allocation4], %s816
        // Predicated region
        $region79: #{_lambda_.20} parent=65 // pred_check
          %p818 = pneg %p135
        $region80: #{_lambda_.20} parent=65 // pred_check_branch
          %820 = sbr.rel (%p818) target = $region82
        $region81: #{_lambda_.20} parent=65 // pred_region
          %s821 = smul.u32 5, %s19
          %s822 = smul.u32 2, %s20
          %s823 = smul.addr %s821, 6
          %s824 = sadd.s32 %s822, %s823
          %s825 = smul.addr %s824, 4
          %s826 = scalar_lea.vmem %s3, %s825
          // Predicated region
          $region83: #{_lambda_.20} parent=81 // pred_check
            _
          $region84: #{_lambda_.20} parent=81 // pred_check_branch
            %828 = sbr.rel (0) target = $region86
          $region85: #{_lambda_.20} parent=81 // pred_region
            // Predicated region
            $region87: #{_lambda_.20} parent=85 // pred_check
              _
            $region88: #{_lambda_.20} parent=85 // pred_check_branch
              %830 = sbr.rel (0) target = $region90
            $region89: #{_lambda_.20} parent=85 // pred_region
              // Predicated region
              $region102: #{_lambda_.20} parent=89 // pred_check
                _
              $region103: #{_lambda_.20} parent=89 // pred_check_branch
                %854 = sbr.rel (0) target = $region105
              $region104: #{_lambda_.20} parent=89 // pred_region
                loop: start=0, step=1, limit=1
                $region106: #{_lambda_.20} parent=104 // loop_pre_header
                  _
                $region107: #{_lambda_.20} parent=104 // loop_header
                  %s856 = sphi 0, %s860
                  %p857 = scmp.ge.s32.totalorder %s856, 1
                  %s861 = sphi %s817, %s817
                  %s862 = sphi %s826, %s826
                $region108: #{_lambda_.20} parent=104 // loop_header_branch
                  %859 = sbr.rel (%p857) target = $region112
                $region109: #{_lambda_.20} parent=104 // loop_body
                  %v863 = vld [vmem:[%s861] sm:$0xff]
                  %864 = vst [vmem:[%s862] sm:$0xff] %v863
                  %v865 = vld [vmem:[%s861 + $0x8] sm:$0xff]
                  %866 = vst [vmem:[%s862 + $0x18] sm:$0xff] %v865
                  %v867 = vld [vmem:[%s861 + $0x10] sm:$0xff]
                  %868 = vst [vmem:[%s862 + $0x30] sm:$0xff] %v867
                  %v869 = vld [vmem:[%s861 + $0x18] sm:$0xff]
                  %870 = vst [vmem:[%s862 + $0x48] sm:$0xff] %v869
                  %v871 = vld [vmem:[%s861 + $0x20] sm:$0xff]
                  %872 = vst [vmem:[%s862 + $0x60] sm:$0xff] %v871
                $region110: #{_lambda_.20} parent=104 // loop_footer
                  %s860 = sadd.s32 1, %s856
                $region111: #{_lambda_.20} parent=104 // loop_footer_branch
                  %855 = sbr.rel target = $region107
                $region112: #{_lambda_.20} parent=104 // loop_exit
                  _
              $region105: #{_lambda_.20} parent=89 // pred_fallthru
                _
              // Predicated region
              $region113: #{_lambda_.20} parent=89 // pred_check
                _
              $region114: #{_lambda_.20} parent=89 // pred_check_branch
                %874 = sbr.rel target = $region116
              $region115: #{_lambda_.20} parent=89 // pred_region
                _
              $region116: #{_lambda_.20} parent=89 // pred_fallthru
                _
            $region90: #{_lambda_.20} parent=85 // pred_fallthru
              _
            // Predicated region
            $region91: #{_lambda_.20} parent=85 // pred_check
              _
            $region92: #{_lambda_.20} parent=85 // pred_check_branch
              %832 = sbr.rel target = $region94
            $region93: #{_lambda_.20} parent=85 // pred_region
              %s834 = ssub.s32 256, 1
              loop: start=0, step=1, limit=1
              $region95: #{_lambda_.20} parent=93 // loop_pre_header
                _
              $region96: #{_lambda_.20} parent=93 // loop_header
                %s836 = sphi 0, %s840
                %p837 = scmp.ge.s32.totalorder %s836, 1
                %s841 = sphi %s817, %s817
                %s842 = sphi %s826, %s826
              $region97: #{_lambda_.20} parent=93 // loop_header_branch
                %839 = sbr.rel (%p837) target = $region101
              $region98: #{_lambda_.20} parent=93 // loop_body
                %v843 = vld [vmem:[%s841] sm:%s834]
                %844 = vst [vmem:[%s842] sm:%s834] %v843
                %v845 = vld [vmem:[%s841 + $0x8] sm:%s834]
                %846 = vst [vmem:[%s842 + $0x18] sm:%s834] %v845
                %v847 = vld [vmem:[%s841 + $0x10] sm:%s834]
                %848 = vst [vmem:[%s842 + $0x30] sm:%s834] %v847
                %v849 = vld [vmem:[%s841 + $0x18] sm:%s834]
                %850 = vst [vmem:[%s842 + $0x48] sm:%s834] %v849
                %v851 = vld [vmem:[%s841 + $0x20] sm:%s834]
                %852 = vst [vmem:[%s842 + $0x60] sm:%s834] %v851
              $region99: #{_lambda_.20} parent=93 // loop_footer
                %s840 = sadd.s32 1, %s836
              $region100: #{_lambda_.20} parent=93 // loop_footer_branch
                %835 = sbr.rel target = $region96
              $region101: #{_lambda_.20} parent=93 // loop_exit
                _
            $region94: #{_lambda_.20} parent=85 // pred_fallthru
              _
          $region86: #{_lambda_.20} parent=81 // pred_fallthru
            _
          %875 = vnop
        $region82: #{_lambda_.20} parent=65 // pred_fallthru
          _
      $region66: #{_lambda_.20} parent=5 // pred_fallthru
        _
      %p876 = scmp.le.s32.totalorder 2, %s9
      // Predicated region
      $region117: #{_lambda_.20} parent=5 // pred_check
        %p877 = pneg %p876
      $region118: #{_lambda_.20} parent=5 // pred_check_branch
        %879 = sbr.rel (%p877) target = $region120
      $region119: #{_lambda_.20} parent=5 // pred_region
        %s880 = ssub.s32 %s9, 2
        // Predicated region
        $region121: #{_lambda_.20} parent=119 // pred_check
          %p881 = pneg %p141
        $region122: #{_lambda_.20} parent=119 // pred_check_branch
          %883 = sbr.rel (%p881) target = $region124
        $region123: #{_lambda_.20} parent=119 // pred_region
          %s884 = sand.u32 %s126, 1
          %s885 = sand.u32 %s126, 1
          %s886 = smul.addr %s885, 40
          %s887 = scalar_lea.vmem [#allocation4], %s886
        $region124: #{_lambda_.20} parent=119 // pred_fallthru
          _
      $region120: #{_lambda_.20} parent=5 // pred_fallthru
        _
    $region6: #{_lambda_.20} parent=1 // loop_footer
      %s13 = sadd.s32 1, %s9
    $region7: #{_lambda_.20} parent=1 // loop_footer_branch
      %8 = sbr.rel target = $region3
    $region8: #{_lambda_.20} parent=1 // loop_exit
      _

// kernel: squeeze.7
$region0: #{squeeze.7}
  %s0 = inlined_call_operand.vmem [shape: bf16[2,17,1,256], index: 0, kind: input, shape index: {}]
  %s1 = inlined_call_operand.vmem [shape: bf16[2,17,4,64], index: 1, kind: output, shape index: {}]
  $region1: #{squeeze.7} parent=0
    #allocation0 [shape = 'u8[139264]{0}', space=vmem, size = 0x22000, scoped, tag = 'scoped mem for output reshape']
    #allocation1 [shape = 'u8[139264]{0}', space=vmem, size = 0x22000, scoped, tag = 'scoped mem for input reshape']
    %s3 = ssub.s32 4, 1
    %s4 = scalar_lea.vmem %s0, 33
    %s5 = sshrl.u32 %s3, 1
    %s6 = sor.u32 %s3, %s5
    %s7 = sand.u32 %s6, 85
    %s8 = sshrl.u32 %s7, 1
    %s9 = sor.u32 %s7, %s8
    %s10 = sand.u32 51, %s9
    %s11 = sshrl.u32 %s10, 2
    %s12 = sor.u32 %s10, %s11
    %s13 = sand.u32 15, %s12
    %v14 = vld [vmem:[%s4] sm:%s13]
    %v15 = vunpack.c.l.bf16 %v14
    %v16 = vunpack.c.h.bf16 %v14
    %s17 = scalar_lea.vmem [#allocation1], 264
    %18 = vst [vmem:[%s17] sm:%s3] %v15
    %s19 = scalar_lea.vmem %s0, 32
    %s20 = sshrl.u32 %s3, 1
    %s21 = sor.u32 %s3, %s20
    %s22 = sand.u32 %s21, 85
    %s23 = sshrl.u32 %s22, 1
    %s24 = sor.u32 %s22, %s23
    %s25 = sand.u32 51, %s24
    %s26 = sshrl.u32 %s25, 2
    %s27 = sor.u32 %s25, %s26
    %s28 = sand.u32 15, %s27
    %v29 = vld [vmem:[%s19] sm:%s28]
    %v30 = vunpack.c.l.bf16 %v29
    %v31 = vunpack.c.h.bf16 %v29
    %s32 = scalar_lea.vmem [#allocation1], 256
    %33 = vst [vmem:[%s32] sm:%s3] %v30
    %s34 = scalar_lea.vmem %s0, 31
    %s35 = sshrl.u32 %s3, 1
    %s36 = sor.u32 %s3, %s35
    %s37 = sand.u32 %s36, 85
    %s38 = sshrl.u32 %s37, 1
    %s39 = sor.u32 %s37, %s38
    %s40 = sand.u32 51, %s39
    %s41 = sshrl.u32 %s40, 2
    %s42 = sor.u32 %s40, %s41
    %s43 = sand.u32 15, %s42
    %v44 = vld [vmem:[%s34] sm:%s43]
    %v45 = vunpack.c.l.bf16 %v44
    %v46 = vunpack.c.h.bf16 %v44
    %s47 = scalar_lea.vmem [#allocation1], 248
    %48 = vst [vmem:[%s47] sm:%s3] %v45
    %s49 = scalar_lea.vmem %s0, 30
    %s50 = sshrl.u32 %s3, 1
    %s51 = sor.u32 %s3, %s50
    %s52 = sand.u32 %s51, 85
    %s53 = sshrl.u32 %s52, 1
    %s54 = sor.u32 %s52, %s53
    %s55 = sand.u32 51, %s54
    %s56 = sshrl.u32 %s55, 2
    %s57 = sor.u32 %s55, %s56
    %s58 = sand.u32 15, %s57
    %v59 = vld [vmem:[%s49] sm:%s58]
    %v60 = vunpack.c.l.bf16 %v59
    %v61 = vunpack.c.h.bf16 %v59
    %s62 = scalar_lea.vmem [#allocation1], 240
    %63 = vst [vmem:[%s62] sm:%s3] %v60
    %s64 = scalar_lea.vmem %s0, 29
    %s65 = sshrl.u32 %s3, 1
    %s66 = sor.u32 %s3, %s65
    %s67 = sand.u32 %s66, 85
    %s68 = sshrl.u32 %s67, 1
    %s69 = sor.u32 %s67, %s68
    %s70 = sand.u32 51, %s69
    %s71 = sshrl.u32 %s70, 2
    %s72 = sor.u32 %s70, %s71
    %s73 = sand.u32 15, %s72
    %v74 = vld [vmem:[%s64] sm:%s73]
    %v75 = vunpack.c.l.bf16 %v74
    %v76 = vunpack.c.h.bf16 %v74
    %s77 = scalar_lea.vmem [#allocation1], 232
    %78 = vst [vmem:[%s77] sm:%s3] %v75
    %s79 = scalar_lea.vmem %s0, 28
    %s80 = sshrl.u32 %s3, 1
    %s81 = sor.u32 %s3, %s80
    %s82 = sand.u32 %s81, 85
    %s83 = sshrl.u32 %s82, 1
    %s84 = sor.u32 %s82, %s83
    %s85 = sand.u32 51, %s84
    %s86 = sshrl.u32 %s85, 2
    %s87 = sor.u32 %s85, %s86
    %s88 = sand.u32 15, %s87
    %v89 = vld [vmem:[%s79] sm:%s88]
    %v90 = vunpack.c.l.bf16 %v89
    %v91 = vunpack.c.h.bf16 %v89
    %s92 = scalar_lea.vmem [#allocation1], 224
    %93 = vst [vmem:[%s92] sm:%s3] %v90
    %s94 = scalar_lea.vmem %s0, 27
    %s95 = sshrl.u32 %s3, 1
    %s96 = sor.u32 %s3, %s95
    %s97 = sand.u32 %s96, 85
    %s98 = sshrl.u32 %s97, 1
    %s99 = sor.u32 %s97, %s98
    %s100 = sand.u32 51, %s99
    %s101 = sshrl.u32 %s100, 2
    %s102 = sor.u32 %s100, %s101
    %s103 = sand.u32 15, %s102
    %v104 = vld [vmem:[%s94] sm:%s103]
    %v105 = vunpack.c.l.bf16 %v104
    %v106 = vunpack.c.h.bf16 %v104
    %s107 = scalar_lea.vmem [#allocation1], 216
    %108 = vst [vmem:[%s107] sm:%s3] %v105
    %s109 = scalar_lea.vmem %s0, 26
    %s110 = sshrl.u32 %s3, 1
    %s111 = sor.u32 %s3, %s110
    %s112 = sand.u32 %s111, 85
    %s113 = sshrl.u32 %s112, 1
    %s114 = sor.u32 %s112, %s113
    %s115 = sand.u32 51, %s114
    %s116 = sshrl.u32 %s115, 2
    %s117 = sor.u32 %s115, %s116
    %s118 = sand.u32 15, %s117
    %v119 = vld [vmem:[%s109] sm:%s118]
    %v120 = vunpack.c.l.bf16 %v119
    %v121 = vunpack.c.h.bf16 %v119
    %s122 = scalar_lea.vmem [#allocation1], 208
    %123 = vst [vmem:[%s122] sm:%s3] %v120
    %s124 = scalar_lea.vmem %s0, 25
    %s125 = sshrl.u32 %s3, 1
    %s126 = sor.u32 %s3, %s125
    %s127 = sand.u32 %s126, 85
    %s128 = sshrl.u32 %s127, 1
    %s129 = sor.u32 %s127, %s128
    %s130 = sand.u32 51, %s129
    %s131 = sshrl.u32 %s130, 2
    %s132 = sor.u32 %s130, %s131
    %s133 = sand.u32 15, %s132
    %v134 = vld [vmem:[%s124] sm:%s133]
    %v135 = vunpack.c.l.bf16 %v134
    %v136 = vunpack.c.h.bf16 %v134
    %s137 = scalar_lea.vmem [#allocation1], 200
    %138 = vst [vmem:[%s137] sm:%s3] %v135
    %s139 = scalar_lea.vmem %s0, 24
    %s140 = sshrl.u32 %s3, 1
    %s141 = sor.u32 %s3, %s140
    %s142 = sand.u32 %s141, 85
    %s143 = sshrl.u32 %s142, 1
    %s144 = sor.u32 %s142, %s143
    %s145 = sand.u32 51, %s144
    %s146 = sshrl.u32 %s145, 2
    %s147 = sor.u32 %s145, %s146
    %s148 = sand.u32 15, %s147
    %v149 = vld [vmem:[%s139] sm:%s148]
    %v150 = vunpack.c.l.bf16 %v149
    %v151 = vunpack.c.h.bf16 %v149
    %s152 = scalar_lea.vmem [#allocation1], 192
    %153 = vst [vmem:[%s152] sm:%s3] %v150
    %s154 = scalar_lea.vmem %s0, 23
    %s155 = sshrl.u32 %s3, 1
    %s156 = sor.u32 %s3, %s155
    %s157 = sand.u32 %s156, 85
    %s158 = sshrl.u32 %s157, 1
    %s159 = sor.u32 %s157, %s158
    %s160 = sand.u32 51, %s159
    %s161 = sshrl.u32 %s160, 2
    %s162 = sor.u32 %s160, %s161
    %s163 = sand.u32 15, %s162
    %v164 = vld [vmem:[%s154] sm:%s163]
    %v165 = vunpack.c.l.bf16 %v164
    %v166 = vunpack.c.h.bf16 %v164
    %s167 = scalar_lea.vmem [#allocation1], 184
    %168 = vst [vmem:[%s167] sm:%s3] %v165
    %s169 = scalar_lea.vmem %s0, 22
    %s170 = sshrl.u32 %s3, 1
    %s171 = sor.u32 %s3, %s170
    %s172 = sand.u32 %s171, 85
    %s173 = sshrl.u32 %s172, 1
    %s174 = sor.u32 %s172, %s173
    %s175 = sand.u32 51, %s174
    %s176 = sshrl.u32 %s175, 2
    %s177 = sor.u32 %s175, %s176
    %s178 = sand.u32 15, %s177
    %v179 = vld [vmem:[%s169] sm:%s178]
    %v180 = vunpack.c.l.bf16 %v179
    %v181 = vunpack.c.h.bf16 %v179
    %s182 = scalar_lea.vmem [#allocation1], 176
    %183 = vst [vmem:[%s182] sm:%s3] %v180
    %s184 = scalar_lea.vmem %s0, 21
    %s185 = sshrl.u32 %s3, 1
    %s186 = sor.u32 %s3, %s185
    %s187 = sand.u32 %s186, 85
    %s188 = sshrl.u32 %s187, 1
    %s189 = sor.u32 %s187, %s188
    %s190 = sand.u32 51, %s189
    %s191 = sshrl.u32 %s190, 2
    %s192 = sor.u32 %s190, %s191
    %s193 = sand.u32 15, %s192
    %v194 = vld [vmem:[%s184] sm:%s193]
    %v195 = vunpack.c.l.bf16 %v194
    %v196 = vunpack.c.h.bf16 %v194
    %s197 = scalar_lea.vmem [#allocation1], 168
    %198 = vst [vmem:[%s197] sm:%s3] %v195
    %s199 = scalar_lea.vmem %s0, 20
    %s200 = sshrl.u32 %s3, 1
    %s201 = sor.u32 %s3, %s200
    %s202 = sand.u32 %s201, 85
    %s203 = sshrl.u32 %s202, 1
    %s204 = sor.u32 %s202, %s203
    %s205 = sand.u32 51, %s204
    %s206 = sshrl.u32 %s205, 2
    %s207 = sor.u32 %s205, %s206
    %s208 = sand.u32 15, %s207
    %v209 = vld [vmem:[%s199] sm:%s208]
    %v210 = vunpack.c.l.bf16 %v209
    %v211 = vunpack.c.h.bf16 %v209
    %s212 = scalar_lea.vmem [#allocation1], 160
    %213 = vst [vmem:[%s212] sm:%s3] %v210
    %s214 = scalar_lea.vmem %s0, 19
    %s215 = sshrl.u32 %s3, 1
    %s216 = sor.u32 %s3, %s215
    %s217 = sand.u32 %s216, 85
    %s218 = sshrl.u32 %s217, 1
    %s219 = sor.u32 %s217, %s218
    %s220 = sand.u32 51, %s219
    %s221 = sshrl.u32 %s220, 2
    %s222 = sor.u32 %s220, %s221
    %s223 = sand.u32 15, %s222
    %v224 = vld [vmem:[%s214] sm:%s223]
    %v225 = vunpack.c.l.bf16 %v224
    %v226 = vunpack.c.h.bf16 %v224
    %s227 = scalar_lea.vmem [#allocation1], 152
    %228 = vst [vmem:[%s227] sm:%s3] %v225
    %s229 = scalar_lea.vmem %s0, 18
    %s230 = sshrl.u32 %s3, 1
    %s231 = sor.u32 %s3, %s230
    %s232 = sand.u32 %s231, 85
    %s233 = sshrl.u32 %s232, 1
    %s234 = sor.u32 %s232, %s233
    %s235 = sand.u32 51, %s234
    %s236 = sshrl.u32 %s235, 2
    %s237 = sor.u32 %s235, %s236
    %s238 = sand.u32 15, %s237
    %v239 = vld [vmem:[%s229] sm:%s238]
    %v240 = vunpack.c.l.bf16 %v239
    %v241 = vunpack.c.h.bf16 %v239
    %s242 = scalar_lea.vmem [#allocation1], 144
    %243 = vst [vmem:[%s242] sm:%s3] %v240
    %s244 = scalar_lea.vmem %s0, 17
    %s245 = sshrl.u32 %s3, 1
    %s246 = sor.u32 %s3, %s245
    %s247 = sand.u32 %s246, 85
    %s248 = sshrl.u32 %s247, 1
    %s249 = sor.u32 %s247, %s248
    %s250 = sand.u32 51, %s249
    %s251 = sshrl.u32 %s250, 2
    %s252 = sor.u32 %s250, %s251
    %s253 = sand.u32 15, %s252
    %v254 = vld [vmem:[%s244] sm:%s253]
    %v255 = vunpack.c.l.bf16 %v254
    %v256 = vunpack.c.h.bf16 %v254
    %s257 = scalar_lea.vmem [#allocation1], 136
    %258 = vst [vmem:[%s257] sm:%s3] %v255
    %s259 = scalar_lea.vmem %s0, 16
    %s260 = sshrl.u32 %s3, 1
    %s261 = sor.u32 %s3, %s260
    %s262 = sand.u32 %s261, 85
    %s263 = sshrl.u32 %s262, 1
    %s264 = sor.u32 %s262, %s263
    %s265 = sand.u32 51, %s264
    %s266 = sshrl.u32 %s265, 2
    %s267 = sor.u32 %s265, %s266
    %s268 = sand.u32 15, %s267
    %v269 = vld [vmem:[%s259] sm:%s268]
    %v270 = vunpack.c.l.bf16 %v269
    %v271 = vunpack.c.h.bf16 %v269
    %s272 = scalar_lea.vmem [#allocation1], 128
    %273 = vst [vmem:[%s272] sm:%s3] %v270
    %s274 = scalar_lea.vmem %s0, 15
    %s275 = sshrl.u32 %s3, 1
    %s276 = sor.u32 %s3, %s275
    %s277 = sand.u32 %s276, 85
    %s278 = sshrl.u32 %s277, 1
    %s279 = sor.u32 %s277, %s278
    %s280 = sand.u32 51, %s279
    %s281 = sshrl.u32 %s280, 2
    %s282 = sor.u32 %s280, %s281
    %s283 = sand.u32 15, %s282
    %v284 = vld [vmem:[%s274] sm:%s283]
    %v285 = vunpack.c.l.bf16 %v284
    %v286 = vunpack.c.h.bf16 %v284
    %s287 = scalar_lea.vmem [#allocation1], 120
    %288 = vst [vmem:[%s287] sm:%s3] %v285
    %s289 = scalar_lea.vmem %s0, 14
    %s290 = sshrl.u32 %s3, 1
    %s291 = sor.u32 %s3, %s290
    %s292 = sand.u32 %s291, 85
    %s293 = sshrl.u32 %s292, 1
    %s294 = sor.u32 %s292, %s293
    %s295 = sand.u32 51, %s294
    %s296 = sshrl.u32 %s295, 2
    %s297 = sor.u32 %s295, %s296
    %s298 = sand.u32 15, %s297
    %v299 = vld [vmem:[%s289] sm:%s298]
    %v300 = vunpack.c.l.bf16 %v299
    %v301 = vunpack.c.h.bf16 %v299
    %s302 = scalar_lea.vmem [#allocation1], 112
    %303 = vst [vmem:[%s302] sm:%s3] %v300
    %s304 = scalar_lea.vmem %s0, 13
    %s305 = sshrl.u32 %s3, 1
    %s306 = sor.u32 %s3, %s305
    %s307 = sand.u32 %s306, 85
    %s308 = sshrl.u32 %s307, 1
    %s309 = sor.u32 %s307, %s308
    %s310 = sand.u32 51, %s309
    %s311 = sshrl.u32 %s310, 2
    %s312 = sor.u32 %s310, %s311
    %s313 = sand.u32 15, %s312
    %v314 = vld [vmem:[%s304] sm:%s313]
    %v315 = vunpack.c.l.bf16 %v314
    %v316 = vunpack.c.h.bf16 %v314
    %s317 = scalar_lea.vmem [#allocation1], 104
    %318 = vst [vmem:[%s317] sm:%s3] %v315
    %s319 = scalar_lea.vmem %s0, 12
    %s320 = sshrl.u32 %s3, 1
    %s321 = sor.u32 %s3, %s320
    %s322 = sand.u32 %s321, 85
    %s323 = sshrl.u32 %s322, 1
    %s324 = sor.u32 %s322, %s323
    %s325 = sand.u32 51, %s324
    %s326 = sshrl.u32 %s325, 2
    %s327 = sor.u32 %s325, %s326
    %s328 = sand.u32 15, %s327
    %v329 = vld [vmem:[%s319] sm:%s328]
    %v330 = vunpack.c.l.bf16 %v329
    %v331 = vunpack.c.h.bf16 %v329
    %s332 = scalar_lea.vmem [#allocation1], 96
    %333 = vst [vmem:[%s332] sm:%s3] %v330
    %s334 = scalar_lea.vmem %s0, 11
    %s335 = sshrl.u32 %s3, 1
    %s336 = sor.u32 %s3, %s335
    %s337 = sand.u32 %s336, 85
    %s338 = sshrl.u32 %s337, 1
    %s339 = sor.u32 %s337, %s338
    %s340 = sand.u32 51, %s339
    %s341 = sshrl.u32 %s340, 2
    %s342 = sor.u32 %s340, %s341
    %s343 = sand.u32 15, %s342
    %v344 = vld [vmem:[%s334] sm:%s343]
    %v345 = vunpack.c.l.bf16 %v344
    %v346 = vunpack.c.h.bf16 %v344
    %s347 = scalar_lea.vmem [#allocation1], 88
    %348 = vst [vmem:[%s347] sm:%s3] %v345
    %s349 = scalar_lea.vmem %s0, 10
    %s350 = sshrl.u32 %s3, 1
    %s351 = sor.u32 %s3, %s350
    %s352 = sand.u32 %s351, 85
    %s353 = sshrl.u32 %s352, 1
    %s354 = sor.u32 %s352, %s353
    %s355 = sand.u32 51, %s354
    %s356 = sshrl.u32 %s355, 2
    %s357 = sor.u32 %s355, %s356
    %s358 = sand.u32 15, %s357
    %v359 = vld [vmem:[%s349] sm:%s358]
    %v360 = vunpack.c.l.bf16 %v359
    %v361 = vunpack.c.h.bf16 %v359
    %s362 = scalar_lea.vmem [#allocation1], 80
    %363 = vst [vmem:[%s362] sm:%s3] %v360
    %s364 = scalar_lea.vmem %s0, 9
    %s365 = sshrl.u32 %s3, 1
    %s366 = sor.u32 %s3, %s365
    %s367 = sand.u32 %s366, 85
    %s368 = sshrl.u32 %s367, 1
    %s369 = sor.u32 %s367, %s368
    %s370 = sand.u32 51, %s369
    %s371 = sshrl.u32 %s370, 2
    %s372 = sor.u32 %s370, %s371
    %s373 = sand.u32 15, %s372
    %v374 = vld [vmem:[%s364] sm:%s373]
    %v375 = vunpack.c.l.bf16 %v374
    %v376 = vunpack.c.h.bf16 %v374
    %s377 = scalar_lea.vmem [#allocation1], 72
    %378 = vst [vmem:[%s377] sm:%s3] %v375
    %s379 = scalar_lea.vmem %s0, 8
    %s380 = sshrl.u32 %s3, 1
    %s381 = sor.u32 %s3, %s380
    %s382 = sand.u32 %s381, 85
    %s383 = sshrl.u32 %s382, 1
    %s384 = sor.u32 %s382, %s383
    %s385 = sand.u32 51, %s384
    %s386 = sshrl.u32 %s385, 2
    %s387 = sor.u32 %s385, %s386
    %s388 = sand.u32 15, %s387
    %v389 = vld [vmem:[%s379] sm:%s388]
    %v390 = vunpack.c.l.bf16 %v389
    %v391 = vunpack.c.h.bf16 %v389
    %s392 = scalar_lea.vmem [#allocation1], 64
    %393 = vst [vmem:[%s392] sm:%s3] %v390
    %s394 = scalar_lea.vmem %s0, 7
    %s395 = sshrl.u32 %s3, 1
    %s396 = sor.u32 %s3, %s395
    %s397 = sand.u32 %s396, 85
    %s398 = sshrl.u32 %s397, 1
    %s399 = sor.u32 %s397, %s398
    %s400 = sand.u32 51, %s399
    %s401 = sshrl.u32 %s400, 2
    %s402 = sor.u32 %s400, %s401
    %s403 = sand.u32 15, %s402
    %v404 = vld [vmem:[%s394] sm:%s403]
    %v405 = vunpack.c.l.bf16 %v404
    %v406 = vunpack.c.h.bf16 %v404
    %s407 = scalar_lea.vmem [#allocation1], 56
    %408 = vst [vmem:[%s407] sm:%s3] %v405
    %s409 = scalar_lea.vmem %s0, 6
    %s410 = sshrl.u32 %s3, 1
    %s411 = sor.u32 %s3, %s410
    %s412 = sand.u32 %s411, 85
    %s413 = sshrl.u32 %s412, 1
    %s414 = sor.u32 %s412, %s413
    %s415 = sand.u32 51, %s414
    %s416 = sshrl.u32 %s415, 2
    %s417 = sor.u32 %s415, %s416
    %s418 = sand.u32 15, %s417
    %v419 = vld [vmem:[%s409] sm:%s418]
    %v420 = vunpack.c.l.bf16 %v419
    %v421 = vunpack.c.h.bf16 %v419
    %s422 = scalar_lea.vmem [#allocation1], 48
    %423 = vst [vmem:[%s422] sm:%s3] %v420
    %s424 = scalar_lea.vmem %s0, 5
    %s425 = sshrl.u32 %s3, 1
    %s426 = sor.u32 %s3, %s425
    %s427 = sand.u32 %s426, 85
    %s428 = sshrl.u32 %s427, 1
    %s429 = sor.u32 %s427, %s428
    %s430 = sand.u32 51, %s429
    %s431 = sshrl.u32 %s430, 2
    %s432 = sor.u32 %s430, %s431
    %s433 = sand.u32 15, %s432
    %v434 = vld [vmem:[%s424] sm:%s433]
    %v435 = vunpack.c.l.bf16 %v434
    %v436 = vunpack.c.h.bf16 %v434
    %s437 = scalar_lea.vmem [#allocation1], 40
    %438 = vst [vmem:[%s437] sm:%s3] %v435
    %s439 = scalar_lea.vmem %s0, 4
    %s440 = sshrl.u32 %s3, 1
    %s441 = sor.u32 %s3, %s440
    %s442 = sand.u32 %s441, 85
    %s443 = sshrl.u32 %s442, 1
    %s444 = sor.u32 %s442, %s443
    %s445 = sand.u32 51, %s444
    %s446 = sshrl.u32 %s445, 2
    %s447 = sor.u32 %s445, %s446
    %s448 = sand.u32 15, %s447
    %v449 = vld [vmem:[%s439] sm:%s448]
    %v450 = vunpack.c.l.bf16 %v449
    %v451 = vunpack.c.h.bf16 %v449
    %s452 = scalar_lea.vmem [#allocation1], 32
    %453 = vst [vmem:[%s452] sm:%s3] %v450
    %s454 = scalar_lea.vmem %s0, 3
    %s455 = sshrl.u32 %s3, 1
    %s456 = sor.u32 %s3, %s455
    %s457 = sand.u32 %s456, 85
    %s458 = sshrl.u32 %s457, 1
    %s459 = sor.u32 %s457, %s458
    %s460 = sand.u32 51, %s459
    %s461 = sshrl.u32 %s460, 2
    %s462 = sor.u32 %s460, %s461
    %s463 = sand.u32 15, %s462
    %v464 = vld [vmem:[%s454] sm:%s463]
    %v465 = vunpack.c.l.bf16 %v464
    %v466 = vunpack.c.h.bf16 %v464
    %s467 = scalar_lea.vmem [#allocation1], 24
    %468 = vst [vmem:[%s467] sm:%s3] %v465
    %s469 = scalar_lea.vmem %s0, 2
    %s470 = sshrl.u32 %s3, 1
    %s471 = sor.u32 %s3, %s470
    %s472 = sand.u32 %s471, 85
    %s473 = sshrl.u32 %s472, 1
    %s474 = sor.u32 %s472, %s473
    %s475 = sand.u32 51, %s474
    %s476 = sshrl.u32 %s475, 2
    %s477 = sor.u32 %s475, %s476
    %s478 = sand.u32 15, %s477
    %v479 = vld [vmem:[%s469] sm:%s478]
    %v480 = vunpack.c.l.bf16 %v479
    %v481 = vunpack.c.h.bf16 %v479
    %s482 = scalar_lea.vmem [#allocation1], 16
    %483 = vst [vmem:[%s482] sm:%s3] %v480
    %s484 = scalar_lea.vmem %s0, 1
    %s485 = sshrl.u32 %s3, 1
    %s486 = sor.u32 %s3, %s485
    %s487 = sand.u32 %s486, 85
    %s488 = sshrl.u32 %s487, 1
    %s489 = sor.u32 %s487, %s488
    %s490 = sand.u32 51, %s489
    %s491 = sshrl.u32 %s490, 2
    %s492 = sor.u32 %s490, %s491
    %s493 = sand.u32 15, %s492
    %v494 = vld [vmem:[%s484] sm:%s493]
    %v495 = vunpack.c.l.bf16 %v494
    %v496 = vunpack.c.h.bf16 %v494
    %s497 = scalar_lea.vmem [#allocation1], 8
    %498 = vst [vmem:[%s497] sm:%s3] %v495
    %s499 = sshrl.u32 %s3, 1
    %s500 = sor.u32 %s3, %s499
    %s501 = sand.u32 %s500, 85
    %s502 = sshrl.u32 %s501, 1
    %s503 = sor.u32 %s501, %s502
    %s504 = sand.u32 51, %s503
    %s505 = sshrl.u32 %s504, 2
    %s506 = sor.u32 %s504, %s505
    %s507 = sand.u32 15, %s506
    %v508 = vld [vmem:[%s0] sm:%s507]
    %v509 = vunpack.c.l.bf16 %v508
    %v510 = vunpack.c.h.bf16 %v508
    %511 = vst [vmem:[#allocation1] sm:%s3] %v509
    %v512 = vld [vmem:[#allocation1] sm:$0x3]
    %vm513 = vcmask 523264
    %514 = vst.msk [vmem:[#allocation0] ss:$8 sm:$0x3] %vm513, %v512
    %s515 = scalar_lea.vmem [#allocation1], 8
    %v516 = vld [vmem:[%s515] sm:$0x3]
    %vm517 = vcmask 523264
    %s518 = scalar_lea.vmem [#allocation0], 2
    %519 = vst.msk [vmem:[%s518] ss:$8 sm:$0x3] %vm517, %v516
    %s520 = scalar_lea.vmem [#allocation1], 16
    %v521 = vld [vmem:[%s520] sm:$0x3]
    %vm522 = vcmask 523264
    %s523 = scalar_lea.vmem [#allocation0], 16
    %524 = vst.msk [vmem:[%s523] ss:$8 sm:$0x3] %vm522, %v521
    %s525 = scalar_lea.vmem [#allocation1], 24
    %v526 = vld [vmem:[%s525] sm:$0x3]
    %vm527 = vcmask 523264
    %s528 = scalar_lea.vmem [#allocation0], 18
    %529 = vst.msk [vmem:[%s528] ss:$8 sm:$0x3] %vm527, %v526
    %s530 = scalar_lea.vmem [#allocation1], 32
    %v531 = vld [vmem:[%s530] sm:$0x3]
    %vm532 = vcmask 523264
    %s533 = scalar_lea.vmem [#allocation0], 32
    %534 = vst.msk [vmem:[%s533] ss:$8 sm:$0x3] %vm532, %v531
    %s535 = scalar_lea.vmem [#allocation1], 40
    %v536 = vld [vmem:[%s535] sm:$0x3]
    %vm537 = vcmask 523264
    %s538 = scalar_lea.vmem [#allocation0], 34
    %539 = vst.msk [vmem:[%s538] ss:$8 sm:$0x3] %vm537, %v536
    %s540 = scalar_lea.vmem [#allocation1], 48
    %v541 = vld [vmem:[%s540] sm:$0x3]
    %vm542 = vcmask 523264
    %s543 = scalar_lea.vmem [#allocation0], 48
    %544 = vst.msk [vmem:[%s543] ss:$8 sm:$0x3] %vm542, %v541
    %s545 = scalar_lea.vmem [#allocation1], 56
    %v546 = vld [vmem:[%s545] sm:$0x3]
    %vm547 = vcmask 523264
    %s548 = scalar_lea.vmem [#allocation0], 50
    %549 = vst.msk [vmem:[%s548] ss:$8 sm:$0x3] %vm547, %v546
    %s550 = scalar_lea.vmem [#allocation1], 64
    %v551 = vld [vmem:[%s550] sm:$0x3]
    %vm552 = vcmask 523264
    %s553 = scalar_lea.vmem [#allocation0], 64
    %554 = vst.msk [vmem:[%s553] ss:$8 sm:$0x3] %vm552, %v551
    %s555 = scalar_lea.vmem [#allocation1], 72
    %v556 = vld [vmem:[%s555] sm:$0x3]
    %vm557 = vcmask 523264
    %s558 = scalar_lea.vmem [#allocation0], 66
    %559 = vst.msk [vmem:[%s558] ss:$8 sm:$0x3] %vm557, %v556
    %s560 = scalar_lea.vmem [#allocation1], 80
    %v561 = vld [vmem:[%s560] sm:$0x3]
    %vm562 = vcmask 523264
    %s563 = scalar_lea.vmem [#allocation0], 80
    %564 = vst.msk [vmem:[%s563] ss:$8 sm:$0x3] %vm562, %v561
    %s565 = scalar_lea.vmem [#allocation1], 88
    %v566 = vld [vmem:[%s565] sm:$0x3]
    %vm567 = vcmask 523264
    %s568 = scalar_lea.vmem [#allocation0], 82
    %569 = vst.msk [vmem:[%s568] ss:$8 sm:$0x3] %vm567, %v566
    %s570 = scalar_lea.vmem [#allocation1], 96
    %v571 = vld [vmem:[%s570] sm:$0x3]
    %vm572 = vcmask 523264
    %s573 = scalar_lea.vmem [#allocation0], 96
    %574 = vst.msk [vmem:[%s573] ss:$8 sm:$0x3] %vm572, %v571
    %s575 = scalar_lea.vmem [#allocation1], 104
    %v576 = vld [vmem:[%s575] sm:$0x3]
    %vm577 = vcmask 523264
    %s578 = scalar_lea.vmem [#allocation0], 98
    %579 = vst.msk [vmem:[%s578] ss:$8 sm:$0x3] %vm577, %v576
    %s580 = scalar_lea.vmem [#allocation1], 112
    %v581 = vld [vmem:[%s580] sm:$0x3]
    %vm582 = vcmask 523264
    %s583 = scalar_lea.vmem [#allocation0], 112
    %584 = vst.msk [vmem:[%s583] ss:$8 sm:$0x3] %vm582, %v581
    %s585 = scalar_lea.vmem [#allocation1], 120
    %v586 = vld [vmem:[%s585] sm:$0x3]
    %vm587 = vcmask 523264
    %s588 = scalar_lea.vmem [#allocation0], 114
    %589 = vst.msk [vmem:[%s588] ss:$8 sm:$0x3] %vm587, %v586
    %s590 = scalar_lea.vmem [#allocation1], 128
    %v591 = vld [vmem:[%s590] sm:$0x3]
    %vm592 = vcmask 523264
    %s593 = scalar_lea.vmem [#allocation0], 128
    %594 = vst.msk [vmem:[%s593] ss:$8 sm:$0x3] %vm592, %v591
    %s595 = scalar_lea.vmem [#allocation1], 136
    %v596 = vld [vmem:[%s595] sm:$0x3]
    %vm597 = vcmask 523264
    %s598 = scalar_lea.vmem [#allocation0], 130
    %599 = vst.msk [vmem:[%s598] ss:$8 sm:$0x3] %vm597, %v596
    %s600 = scalar_lea.vmem [#allocation1], 144
    %v601 = vld [vmem:[%s600] sm:$0x3]
    %vm602 = vcmask 523264
    %s603 = scalar_lea.vmem [#allocation0], 144
    %604 = vst.msk [vmem:[%s603] ss:$8 sm:$0x3] %vm602, %v601
    %s605 = scalar_lea.vmem [#allocation1], 152
    %v606 = vld [vmem:[%s605] sm:$0x3]
    %vm607 = vcmask 523264
    %s608 = scalar_lea.vmem [#allocation0], 146
    %609 = vst.msk [vmem:[%s608] ss:$8 sm:$0x3] %vm607, %v606
    %s610 = scalar_lea.vmem [#allocation1], 160
    %v611 = vld [vmem:[%s610] sm:$0x3]
    %vm612 = vcmask 523264
    %s613 = scalar_lea.vmem [#allocation0], 160
    %614 = vst.msk [vmem:[%s613] ss:$8 sm:$0x3] %vm612, %v611
    %s615 = scalar_lea.vmem [#allocation1], 168
    %v616 = vld [vmem:[%s615] sm:$0x3]
    %vm617 = vcmask 523264
    %s618 = scalar_lea.vmem [#allocation0], 162
    %619 = vst.msk [vmem:[%s618] ss:$8 sm:$0x3] %vm617, %v616
    %s620 = scalar_lea.vmem [#allocation1], 176
    %v621 = vld [vmem:[%s620] sm:$0x3]
    %vm622 = vcmask 523264
    %s623 = scalar_lea.vmem [#allocation0], 176
    %624 = vst.msk [vmem:[%s623] ss:$8 sm:$0x3] %vm622, %v621
    %s625 = scalar_lea.vmem [#allocation1], 184
    %v626 = vld [vmem:[%s625] sm:$0x3]
    %vm627 = vcmask 523264
    %s628 = scalar_lea.vmem [#allocation0], 178
    %629 = vst.msk [vmem:[%s628] ss:$8 sm:$0x3] %vm627, %v626
    %s630 = scalar_lea.vmem [#allocation1], 192
    %v631 = vld [vmem:[%s630] sm:$0x3]
    %vm632 = vcmask 523264
    %s633 = scalar_lea.vmem [#allocation0], 192
    %634 = vst.msk [vmem:[%s633] ss:$8 sm:$0x3] %vm632, %v631
    %s635 = scalar_lea.vmem [#allocation1], 200
    %v636 = vld [vmem:[%s635] sm:$0x3]
    %vm637 = vcmask 523264
    %s638 = scalar_lea.vmem [#allocation0], 194
    %639 = vst.msk [vmem:[%s638] ss:$8 sm:$0x3] %vm637, %v636
    %s640 = scalar_lea.vmem [#allocation1], 208
    %v641 = vld [vmem:[%s640] sm:$0x3]
    %vm642 = vcmask 523264
    %s643 = scalar_lea.vmem [#allocation0], 208
    %644 = vst.msk [vmem:[%s643] ss:$8 sm:$0x3] %vm642, %v641
    %s645 = scalar_lea.vmem [#allocation1], 216
    %v646 = vld [vmem:[%s645] sm:$0x3]
    %vm647 = vcmask 523264
    %s648 = scalar_lea.vmem [#allocation0], 210
    %649 = vst.msk [vmem:[%s648] ss:$8 sm:$0x3] %vm647, %v646
    %s650 = scalar_lea.vmem [#allocation1], 224
    %v651 = vld [vmem:[%s650] sm:$0x3]
    %vm652 = vcmask 523264
    %s653 = scalar_lea.vmem [#allocation0], 224
    %654 = vst.msk [vmem:[%s653] ss:$8 sm:$0x3] %vm652, %v651
    %s655 = scalar_lea.vmem [#allocation1], 232
    %v656 = vld [vmem:[%s655] sm:$0x3]
    %vm657 = vcmask 523264
    %s658 = scalar_lea.vmem [#allocation0], 226
    %659 = vst.msk [vmem:[%s658] ss:$8 sm:$0x3] %vm657, %v656
    %s660 = scalar_lea.vmem [#allocation1], 240
    %v661 = vld [vmem:[%s660] sm:$0x3]
    %vm662 = vcmask 523264
    %s663 = scalar_lea.vmem [#allocation0], 240
    %664 = vst.msk [vmem:[%s663] ss:$8 sm:$0x3] %vm662, %v661
    %s665 = scalar_lea.vmem [#allocation1], 248
    %v666 = vld [vmem:[%s665] sm:$0x3]
    %vm667 = vcmask 523264
    %s668 = scalar_lea.vmem [#allocation0], 242
    %669 = vst.msk [vmem:[%s668] ss:$8 sm:$0x3] %vm667, %v666
    %s670 = scalar_lea.vmem [#allocation1], 256
    %v671 = vld [vmem:[%s670] sm:$0x3]
    %vm672 = vcmask 523264
    %s673 = scalar_lea.vmem [#allocation0], 256
    %674 = vst.msk [vmem:[%s673] ss:$8 sm:$0x3] %vm672, %v671
    %s675 = scalar_lea.vmem [#allocation1], 264
    %v676 = vld [vmem:[%s675] sm:$0x3]
    %vm677 = vcmask 523264
    %s678 = scalar_lea.vmem [#allocation0], 258
    %679 = vst.msk [vmem:[%s678] ss:$8 sm:$0x3] %vm677, %v676
    %v680 = vld.sshfl [vmem:[#allocation1] sm:$0xff pattern:$0x99999180]
    %s681 = scalar_lea.vmem [#allocation1], 16
    %v682 = vld.sshfl [vmem:[%s681] sm:$0xff pattern:$0x91800000]
    %vm683 = vcmask 1047556
    %v684 = vsel %vm683, %v682, %v680
    %685 = vrot.lane.b32.xlu0 %v684, 64
    %v686 = vpop.permute.xlu0 %685
    %vm687 = vcmask 523264
    %s688 = scalar_lea.vmem [#allocation0], 1
    %689 = vst.msk [vmem:[%s688] ss:$2 sm:$0x3] %vm687, %v686
    %s690 = scalar_lea.vmem [#allocation0], 5
    %691 = vst.msk [vmem:[%s690] ss:$2 sm:$0xc] %vm687, %v686
    %s692 = scalar_lea.vmem [#allocation0], 9
    %693 = vst.msk [vmem:[%s692] ss:$2 sm:$0x30] %vm687, %v686
    %s694 = scalar_lea.vmem [#allocation0], 13
    %695 = vst.msk [vmem:[%s694] ss:$2 sm:$0xc0] %vm687, %v686
    %s696 = scalar_lea.vmem [#allocation1], 32
    %v697 = vld.sshfl [vmem:[%s696] sm:$0xff pattern:$0x99999180]
    %s698 = scalar_lea.vmem [#allocation1], 48
    %v699 = vld.sshfl [vmem:[%s698] sm:$0xff pattern:$0x91800000]
    %vm700 = vcmask 1047556
    %v701 = vsel %vm700, %v699, %v697
    %702 = vrot.lane.b32.xlu0 %v701, 64
    %v703 = vpop.permute.xlu0 %702
    %vm704 = vcmask 523264
    %s705 = scalar_lea.vmem [#allocation0], 33
    %706 = vst.msk [vmem:[%s705] ss:$2 sm:$0x3] %vm704, %v703
    %s707 = scalar_lea.vmem [#allocation0], 37
    %708 = vst.msk [vmem:[%s707] ss:$2 sm:$0xc] %vm704, %v703
    %s709 = scalar_lea.vmem [#allocation0], 41
    %710 = vst.msk [vmem:[%s709] ss:$2 sm:$0x30] %vm704, %v703
    %s711 = scalar_lea.vmem [#allocation0], 45
    %712 = vst.msk [vmem:[%s711] ss:$2 sm:$0xc0] %vm704, %v703
    %s713 = scalar_lea.vmem [#allocation1], 64
    %v714 = vld.sshfl [vmem:[%s713] sm:$0xff pattern:$0x99999180]
    %s715 = scalar_lea.vmem [#allocation1], 80
    %v716 = vld.sshfl [vmem:[%s715] sm:$0xff pattern:$0x91800000]
    %vm717 = vcmask 1047556
    %v718 = vsel %vm717, %v716, %v714
    %719 = vrot.lane.b32.xlu0 %v718, 64
    %v720 = vpop.permute.xlu0 %719
    %vm721 = vcmask 523264
    %s722 = scalar_lea.vmem [#allocation0], 65
    %723 = vst.msk [vmem:[%s722] ss:$2 sm:$0x3] %vm721, %v720
    %s724 = scalar_lea.vmem [#allocation0], 69
    %725 = vst.msk [vmem:[%s724] ss:$2 sm:$0xc] %vm721, %v720
    %s726 = scalar_lea.vmem [#allocation0], 73
    %727 = vst.msk [vmem:[%s726] ss:$2 sm:$0x30] %vm721, %v720
    %s728 = scalar_lea.vmem [#allocation0], 77
    %729 = vst.msk [vmem:[%s728] ss:$2 sm:$0xc0] %vm721, %v720
    %s730 = scalar_lea.vmem [#allocation1], 96
    %v731 = vld.sshfl [vmem:[%s730] sm:$0xff pattern:$0x99999180]
    %s732 = scalar_lea.vmem [#allocation1], 112
    %v733 = vld.sshfl [vmem:[%s732] sm:$0xff pattern:$0x91800000]
    %vm734 = vcmask 1047556
    %v735 = vsel %vm734, %v733, %v731
    %736 = vrot.lane.b32.xlu0 %v735, 64
    %v737 = vpop.permute.xlu0 %736
    %vm738 = vcmask 523264
    %s739 = scalar_lea.vmem [#allocation0], 97
    %740 = vst.msk [vmem:[%s739] ss:$2 sm:$0x3] %vm738, %v737
    %s741 = scalar_lea.vmem [#allocation0], 101
    %742 = vst.msk [vmem:[%s741] ss:$2 sm:$0xc] %vm738, %v737
    %s743 = scalar_lea.vmem [#allocation0], 105
    %744 = vst.msk [vmem:[%s743] ss:$2 sm:$0x30] %vm738, %v737
    %s745 = scalar_lea.vmem [#allocation0], 109
    %746 = vst.msk [vmem:[%s745] ss:$2 sm:$0xc0] %vm738, %v737
    %s747 = scalar_lea.vmem [#allocation1], 128
    %v748 = vld.sshfl [vmem:[%s747] sm:$0xff pattern:$0x99999180]
    %s749 = scalar_lea.vmem [#allocation1], 144
    %v750 = vld.sshfl [vmem:[%s749] sm:$0xff pattern:$0x91800000]
    %vm751 = vcmask 1047556
    %v752 = vsel %vm751, %v750, %v748
    %753 = vrot.lane.b32.xlu0 %v752, 64
    %v754 = vpop.permute.xlu0 %753
    %vm755 = vcmask 523264
    %s756 = scalar_lea.vmem [#allocation0], 129
    %757 = vst.msk [vmem:[%s756] ss:$2 sm:$0x3] %vm755, %v754
    %s758 = scalar_lea.vmem [#allocation0], 133
    %759 = vst.msk [vmem:[%s758] ss:$2 sm:$0xc] %vm755, %v754
    %s760 = scalar_lea.vmem [#allocation0], 137
    %761 = vst.msk [vmem:[%s760] ss:$2 sm:$0x30] %vm755, %v754
    %s762 = scalar_lea.vmem [#allocation0], 141
    %763 = vst.msk [vmem:[%s762] ss:$2 sm:$0xc0] %vm755, %v754
    %s764 = scalar_lea.vmem [#allocation1], 160
    %v765 = vld.sshfl [vmem:[%s764] sm:$0xff pattern:$0x99999180]
    %s766 = scalar_lea.vmem [#allocation1], 176
    %v767 = vld.sshfl [vmem:[%s766] sm:$0xff pattern:$0x91800000]
    %vm768 = vcmask 1047556
    %v769 = vsel %vm768, %v767, %v765
    %770 = vrot.lane.b32.xlu0 %v769, 64
    %v771 = vpop.permute.xlu0 %770
    %vm772 = vcmask 523264
    %s773 = scalar_lea.vmem [#allocation0], 161
    %774 = vst.msk [vmem:[%s773] ss:$2 sm:$0x3] %vm772, %v771
    %s775 = scalar_lea.vmem [#allocation0], 165
    %776 = vst.msk [vmem:[%s775] ss:$2 sm:$0xc] %vm772, %v771
    %s777 = scalar_lea.vmem [#allocation0], 169
    %778 = vst.msk [vmem:[%s777] ss:$2 sm:$0x30] %vm772, %v771
    %s779 = scalar_lea.vmem [#allocation0], 173
    %780 = vst.msk [vmem:[%s779] ss:$2 sm:$0xc0] %vm772, %v771
    %s781 = scalar_lea.vmem [#allocation1], 192
    %v782 = vld.sshfl [vmem:[%s781] sm:$0xff pattern:$0x99999180]
    %s783 = scalar_lea.vmem [#allocation1], 208
    %v784 = vld.sshfl [vmem:[%s783] sm:$0xff pattern:$0x91800000]
    %vm785 = vcmask 1047556
    %v786 = vsel %vm785, %v784, %v782
    %787 = vrot.lane.b32.xlu0 %v786, 64
    %v788 = vpop.permute.xlu0 %787
    %vm789 = vcmask 523264
    %s790 = scalar_lea.vmem [#allocation0], 193
    %791 = vst.msk [vmem:[%s790] ss:$2 sm:$0x3] %vm789, %v788
    %s792 = scalar_lea.vmem [#allocation0], 197
    %793 = vst.msk [vmem:[%s792] ss:$2 sm:$0xc] %vm789, %v788
    %s794 = scalar_lea.vmem [#allocation0], 201
    %795 = vst.msk [vmem:[%s794] ss:$2 sm:$0x30] %vm789, %v788
    %s796 = scalar_lea.vmem [#allocation0], 205
    %797 = vst.msk [vmem:[%s796] ss:$2 sm:$0xc0] %vm789, %v788
    %s798 = scalar_lea.vmem [#allocation1], 224
    %v799 = vld.sshfl [vmem:[%s798] sm:$0xff pattern:$0x99999180]
    %s800 = scalar_lea.vmem [#allocation1], 240
    %v801 = vld.sshfl [vmem:[%s800] sm:$0xff pattern:$0x91800000]
    %vm802 = vcmask 1047556
    %v803 = vsel %vm802, %v801, %v799
    %804 = vrot.lane.b32.xlu0 %v803, 64
    %v805 = vpop.permute.xlu0 %804
    %vm806 = vcmask 523264
    %s807 = scalar_lea.vmem [#allocation0], 225
    %808 = vst.msk [vmem:[%s807] ss:$2 sm:$0x3] %vm806, %v805
    %s809 = scalar_lea.vmem [#allocation0], 229
    %810 = vst.msk [vmem:[%s809] ss:$2 sm:$0xc] %vm806, %v805
    %s811 = scalar_lea.vmem [#allocation0], 233
    %812 = vst.msk [vmem:[%s811] ss:$2 sm:$0x30] %vm806, %v805
    %s813 = scalar_lea.vmem [#allocation0], 237
    %814 = vst.msk [vmem:[%s813] ss:$2 sm:$0xc0] %vm806, %v805
    %s815 = scalar_lea.vmem [#allocation1], 256
    %v816 = vld.sshfl [vmem:[%s815] sm:$0xff pattern:$0x99999180]
    %817 = vrot.lane.b32.xlu0 %v816, 64
    %v818 = vpop.permute.xlu0 %817
    %vm819 = vcmask 523264
    %s820 = scalar_lea.vmem [#allocation0], 257
    %821 = vst.msk [vmem:[%s820] ss:$2 sm:$0x3] %vm819, %v818
    %s822 = scalar_lea.vmem [#allocation0], 261
    %823 = vst.msk [vmem:[%s822] ss:$2 sm:$0xc] %vm819, %v818
    %s825 = ssub.s32 16, 1
    %v826 = vld [vmem:[#allocation0] sm:%s825]
    %v827 = vpack.c.bf16 0.0, %v826
    %s829 = ssub.s32 4, 1
    %830 = vst [vmem:[%s1] sm:%s829] %v827
    %s831 = scalar_lea.vmem [#allocation0], 8
    %v832 = vld [vmem:[%s831] sm:%s825]
    %v833 = vpack.c.bf16 0.0, %v832
    %s835 = ssub.s32 4, 1
    %s836 = scalar_lea.vmem %s1, 2
    %837 = vst [vmem:[%s836] sm:%s835] %v833
    %s838 = scalar_lea.vmem [#allocation0], 16
    %v839 = vld [vmem:[%s838] sm:%s825]
    %v840 = vpack.c.bf16 0.0, %v839
    %s842 = ssub.s32 4, 1
    %s843 = scalar_lea.vmem %s1, 4
    %844 = vst [vmem:[%s843] sm:%s842] %v840
    %s845 = scalar_lea.vmem [#allocation0], 24
    %v846 = vld [vmem:[%s845] sm:%s825]
    %v847 = vpack.c.bf16 0.0, %v846
    %s849 = ssub.s32 4, 1
    %s850 = scalar_lea.vmem %s1, 6
    %851 = vst [vmem:[%s850] sm:%s849] %v847
    %s852 = scalar_lea.vmem [#allocation0], 32
    %v853 = vld [vmem:[%s852] sm:%s825]
    %v854 = vpack.c.bf16 0.0, %v853
    %s856 = ssub.s32 4, 1
    %s857 = scalar_lea.vmem %s1, 8
    %858 = vst [vmem:[%s857] sm:%s856] %v854
    %s859 = scalar_lea.vmem [#allocation0], 40
    %v860 = vld [vmem:[%s859] sm:%s825]
    %v861 = vpack.c.bf16 0.0, %v860
    %s863 = ssub.s32 4, 1
    %s864 = scalar_lea.vmem %s1, 10
    %865 = vst [vmem:[%s864] sm:%s863] %v861
    %s866 = scalar_lea.vmem [#allocation0], 48
    %v867 = vld [vmem:[%s866] sm:%s825]
    %v868 = vpack.c.bf16 0.0, %v867
    %s870 = ssub.s32 4, 1
    %s871 = scalar_lea.vmem %s1, 12
    %872 = vst [vmem:[%s871] sm:%s870] %v868
    %s873 = scalar_lea.vmem [#allocation0], 56
    %v874 = vld [vmem:[%s873] sm:%s825]
    %v875 = vpack.c.bf16 0.0, %v874
    %s877 = ssub.s32 4, 1
    %s878 = scalar_lea.vmem %s1, 14
    %879 = vst [vmem:[%s878] sm:%s877] %v875
    %s880 = scalar_lea.vmem [#allocation0], 64
    %v881 = vld [vmem:[%s880] sm:%s825]
    %v882 = vpack.c.bf16 0.0, %v881
    %s884 = ssub.s32 4, 1
    %s885 = scalar_lea.vmem %s1, 16
    %886 = vst [vmem:[%s885] sm:%s884] %v882
    %s887 = scalar_lea.vmem [#allocation0], 72
    %v888 = vld [vmem:[%s887] sm:%s825]
    %v889 = vpack.c.bf16 0.0, %v888
    %s891 = ssub.s32 4, 1
    %s892 = scalar_lea.vmem %s1, 18
    %893 = vst [vmem:[%s892] sm:%s891] %v889
    %s894 = scalar_lea.vmem [#allocation0], 80
    %v895 = vld [vmem:[%s894] sm:%s825]
    %v896 = vpack.c.bf16 0.0, %v895
    %s898 = ssub.s32 4, 1
    %s899 = scalar_lea.vmem %s1, 20
    %900 = vst [vmem:[%s899] sm:%s898] %v896
    %s901 = scalar_lea.vmem [#allocation0], 88
    %v902 = vld [vmem:[%s901] sm:%s825]
    %v903 = vpack.c.bf16 0.0, %v902
    %s905 = ssub.s32 4, 1
    %s906 = scalar_lea.vmem %s1, 22
    %907 = vst [vmem:[%s906] sm:%s905] %v903
    %s908 = scalar_lea.vmem [#allocation0], 96
    %v909 = vld [vmem:[%s908] sm:%s825]
    %v910 = vpack.c.bf16 0.0, %v909
    %s912 = ssub.s32 4, 1
    %s913 = scalar_lea.vmem %s1, 24
    %914 = vst [vmem:[%s913] sm:%s912] %v910
    %s915 = scalar_lea.vmem [#allocation0], 104
    %v916 = vld [vmem:[%s915] sm:%s825]
    %v917 = vpack.c.bf16 0.0, %v916
    %s919 = ssub.s32 4, 1
    %s920 = scalar_lea.vmem %s1, 26
    %921 = vst [vmem:[%s920] sm:%s919] %v917
    %s922 = scalar_lea.vmem [#allocation0], 112
    %v923 = vld [vmem:[%s922] sm:%s825]
    %v924 = vpack.c.bf16 0.0, %v923
    %s926 = ssub.s32 4, 1
    %s927 = scalar_lea.vmem %s1, 28
    %928 = vst [vmem:[%s927] sm:%s926] %v924
    %s929 = scalar_lea.vmem [#allocation0], 120
    %v930 = vld [vmem:[%s929] sm:%s825]
    %v931 = vpack.c.bf16 0.0, %v930
    %s933 = ssub.s32 4, 1
    %s934 = scalar_lea.vmem %s1, 30
    %935 = vst [vmem:[%s934] sm:%s933] %v931
    %s936 = scalar_lea.vmem [#allocation0], 128
    %v937 = vld [vmem:[%s936] sm:%s825]
    %v938 = vpack.c.bf16 0.0, %v937
    %s940 = ssub.s32 4, 1
    %s941 = scalar_lea.vmem %s1, 32
    %942 = vst [vmem:[%s941] sm:%s940] %v938
    %s943 = scalar_lea.vmem [#allocation0], 136
    %v944 = vld [vmem:[%s943] sm:%s825]
    %v945 = vpack.c.bf16 0.0, %v944
    %s947 = ssub.s32 4, 1
    %s948 = scalar_lea.vmem %s1, 34
    %949 = vst [vmem:[%s948] sm:%s947] %v945
    %s950 = scalar_lea.vmem [#allocation0], 144
    %v951 = vld [vmem:[%s950] sm:%s825]
    %v952 = vpack.c.bf16 0.0, %v951
    %s954 = ssub.s32 4, 1
    %s955 = scalar_lea.vmem %s1, 36
    %956 = vst [vmem:[%s955] sm:%s954] %v952
    %s957 = scalar_lea.vmem [#allocation0], 152
    %v958 = vld [vmem:[%s957] sm:%s825]
    %v959 = vpack.c.bf16 0.0, %v958
    %s961 = ssub.s32 4, 1
    %s962 = scalar_lea.vmem %s1, 38
    %963 = vst [vmem:[%s962] sm:%s961] %v959
    %s964 = scalar_lea.vmem [#allocation0], 160
    %v965 = vld [vmem:[%s964] sm:%s825]
    %v966 = vpack.c.bf16 0.0, %v965
    %s968 = ssub.s32 4, 1
    %s969 = scalar_lea.vmem %s1, 40
    %970 = vst [vmem:[%s969] sm:%s968] %v966
    %s971 = scalar_lea.vmem [#allocation0], 168
    %v972 = vld [vmem:[%s971] sm:%s825]
    %v973 = vpack.c.bf16 0.0, %v972
    %s975 = ssub.s32 4, 1
    %s976 = scalar_lea.vmem %s1, 42
    %977 = vst [vmem:[%s976] sm:%s975] %v973
    %s978 = scalar_lea.vmem [#allocation0], 176
    %v979 = vld [vmem:[%s978] sm:%s825]
    %v980 = vpack.c.bf16 0.0, %v979
    %s982 = ssub.s32 4, 1
    %s983 = scalar_lea.vmem %s1, 44
    %984 = vst [vmem:[%s983] sm:%s982] %v980
    %s985 = scalar_lea.vmem [#allocation0], 184
    %v986 = vld [vmem:[%s985] sm:%s825]
    %v987 = vpack.c.bf16 0.0, %v986
    %s989 = ssub.s32 4, 1
    %s990 = scalar_lea.vmem %s1, 46
    %991 = vst [vmem:[%s990] sm:%s989] %v987
    %s992 = scalar_lea.vmem [#allocation0], 192
    %v993 = vld [vmem:[%s992] sm:%s825]
    %v994 = vpack.c.bf16 0.0, %v993
    %s996 = ssub.s32 4, 1
    %s997 = scalar_lea.vmem %s1, 48
    %998 = vst [vmem:[%s997] sm:%s996] %v994
    %s999 = scalar_lea.vmem [#allocation0], 200
    %v1000 = vld [vmem:[%s999] sm:%s825]
    %v1001 = vpack.c.bf16 0.0, %v1000
    %s1003 = ssub.s32 4, 1
    %s1004 = scalar_lea.vmem %s1, 50
    %1005 = vst [vmem:[%s1004] sm:%s1003] %v1001
    %s1006 = scalar_lea.vmem [#allocation0], 208
    %v1007 = vld [vmem:[%s1006] sm:%s825]
    %v1008 = vpack.c.bf16 0.0, %v1007
    %s1010 = ssub.s32 4, 1
    %s1011 = scalar_lea.vmem %s1, 52
    %1012 = vst [vmem:[%s1011] sm:%s1010] %v1008
    %s1013 = scalar_lea.vmem [#allocation0], 216
    %v1014 = vld [vmem:[%s1013] sm:%s825]
    %v1015 = vpack.c.bf16 0.0, %v1014
    %s1017 = ssub.s32 4, 1
    %s1018 = scalar_lea.vmem %s1, 54
    %1019 = vst [vmem:[%s1018] sm:%s1017] %v1015
    %s1020 = scalar_lea.vmem [#allocation0], 224
    %v1021 = vld [vmem:[%s1020] sm:%s825]
    %v1022 = vpack.c.bf16 0.0, %v1021
    %s1024 = ssub.s32 4, 1
    %s1025 = scalar_lea.vmem %s1, 56
    %1026 = vst [vmem:[%s1025] sm:%s1024] %v1022
    %s1027 = scalar_lea.vmem [#allocation0], 232
    %v1028 = vld [vmem:[%s1027] sm:%s825]
    %v1029 = vpack.c.bf16 0.0, %v1028
    %s1031 = ssub.s32 4, 1
    %s1032 = scalar_lea.vmem %s1, 58
    %1033 = vst [vmem:[%s1032] sm:%s1031] %v1029
    %s1034 = scalar_lea.vmem [#allocation0], 240
    %v1035 = vld [vmem:[%s1034] sm:%s825]
    %v1036 = vpack.c.bf16 0.0, %v1035
    %s1038 = ssub.s32 4, 1
    %s1039 = scalar_lea.vmem %s1, 60
    %1040 = vst [vmem:[%s1039] sm:%s1038] %v1036
    %s1041 = scalar_lea.vmem [#allocation0], 248
    %v1042 = vld [vmem:[%s1041] sm:%s825]
    %v1043 = vpack.c.bf16 0.0, %v1042
    %s1045 = ssub.s32 4, 1
    %s1046 = scalar_lea.vmem %s1, 62
    %1047 = vst [vmem:[%s1046] sm:%s1045] %v1043
    %s1048 = scalar_lea.vmem [#allocation0], 256
    %v1049 = vld [vmem:[%s1048] sm:%s825]
    %v1050 = vpack.c.bf16 0.0, %v1049
    %s1052 = ssub.s32 4, 1
    %s1053 = scalar_lea.vmem %s1, 64
    %1054 = vst [vmem:[%s1053] sm:%s1052] %v1050
    %s1055 = scalar_lea.vmem [#allocation0], 264
    %v1056 = vld [vmem:[%s1055] sm:%s825]
    %v1057 = vpack.c.bf16 0.0, %v1056
    %s1059 = ssub.s32 4, 1
    %s1060 = scalar_lea.vmem %s1, 66
    %1061 = vst [vmem:[%s1060] sm:%s1059] %v1057

// kernel: _lambda_.21
$region0: #{_lambda_.21}
  #allocation0 [shape = 'u32[]', space=smem, size = 0x4, offset = 0x4, fixed_abs, tag = 'smem constant byte address 0x4 - core index']
  #allocation1 [shape = 'u32[72,128]{1,0:T(1,128)}', space=vmem, size = 0x9000, scoped, tag = 'internal scratch']
  %s0 = inlined_call_operand.vmem [shape: bf16[8,17,64], index: 0, kind: input, shape index: {}]
  %s1 = inlined_call_operand.vmem [shape: bf16[8,17,64], index: 1, kind: input, shape index: {}]
  %s2 = inlined_call_operand.vmem [shape: bf16[8,17,64], index: 2, kind: input, shape index: {}]
  %s3 = inlined_call_operand.vmem [shape: bf16[8,17,64], index: 3, kind: output, shape index: {}]
  %s4 = sld [smem:[#allocation0]]
  $region45: #{_lambda_.21} parent=0
    _
  %s6 = ssub.s32 1, %s4
  %s7 = scalar_select 0, %s6, %s4
  loop: start=0, step=1, limit=10
  $region2: #{_lambda_.21} parent=0 // loop_pre_header
    _
  $region3: #{_lambda_.21} parent=0 // loop_header
    %s9 = sphi 0, %s13
    %p10 = scmp.ge.s32.totalorder %s9, 10
    %s19 = sphi 0, %s21
    %s22 = sphi 0, %s19
    %s23 = sphi 0, %s22
    %s39 = sphi 0, %s23
    %s45 = sphi 0, %s47
    %s48 = sphi 0, %s45
    %s49 = sphi 0, %s48
    %s65 = sphi 0, %s49
    %s71 = sphi 0, %s73
    %s74 = sphi 0, %s71
    %s75 = sphi 0, %s74
    %s91 = sphi 0, %s75
    %s97 = sphi 0, %s99
    %s100 = sphi 0, %s97
    %s101 = sphi 0, %s100
    %s117 = sphi 0, %s101
  $region4: #{_lambda_.21} parent=0 // loop_header_branch
    %12 = sbr.rel (%p10) target = $region8
  $region5: #{_lambda_.21} parent=0 // loop_body
    %s14 = ssub.s32 %s9, 1
    %s15 = ssub.s32 %s9, 2
    %s16 = sadd.s32 %s9, 1
    %s17 = ssub.s32 %s9, %s16
    %p18 = scmp.eq.s32.totalorder %s17, 0
    %s20 = sadd.s32 %s19, 1
    %s21 = scalar_select %p18, %s19, %s20
    %p24 = pneg %p18
    %p25 = scmp.eq.s32.totalorder %s9, 7
    %p26 = por %p24, %p25
    %p27 = scmp.ne.s32.totalorder %s19, %s22
    %p28 = scmp.eq.s32.totalorder %s9, 0
    %p29 = por %p27, %p28
    %p30 = scmp.ne.s32.totalorder %s19, %s22
    %p31 = scmp.eq.s32.totalorder %s14, 7
    %p32 = por %p30, %p31
    %p33 = scmp.ne.s32.totalorder %s22, %s23
    %p34 = scmp.eq.s32.totalorder %s14, 0
    %p35 = por %p33, %p34
    %p36 = scmp.ne.s32.totalorder %s22, %s23
    %p37 = scmp.eq.s32.totalorder %s15, 7
    %p38 = por %p36, %p37
    %p40 = scmp.ne.s32.totalorder %s23, %s39
    %p41 = scmp.eq.s32.totalorder %s15, 0
    %p42 = por %p40, %p41
    %s43 = ssub.s32 %s9, %s16
    %p44 = scmp.eq.s32.totalorder %s43, 0
    %s46 = sadd.s32 %s45, 1
    %s47 = scalar_select %p44, %s45, %s46
    %p50 = pneg %p44
    %p51 = scmp.eq.s32.totalorder %s9, 7
    %p52 = por %p50, %p51
    %p53 = scmp.ne.s32.totalorder %s45, %s48
    %p54 = scmp.eq.s32.totalorder %s9, 0
    %p55 = por %p53, %p54
    %p56 = scmp.ne.s32.totalorder %s45, %s48
    %p57 = scmp.eq.s32.totalorder %s14, 7
    %p58 = por %p56, %p57
    %p59 = scmp.ne.s32.totalorder %s48, %s49
    %p60 = scmp.eq.s32.totalorder %s14, 0
    %p61 = por %p59, %p60
    %p62 = scmp.ne.s32.totalorder %s48, %s49
    %p63 = scmp.eq.s32.totalorder %s15, 7
    %p64 = por %p62, %p63
    %p66 = scmp.ne.s32.totalorder %s49, %s65
    %p67 = scmp.eq.s32.totalorder %s15, 0
    %p68 = por %p66, %p67
    %s69 = ssub.s32 %s9, %s16
    %p70 = scmp.eq.s32.totalorder %s69, 0
    %s72 = sadd.s32 %s71, 1
    %s73 = scalar_select %p70, %s71, %s72
    %p76 = pneg %p70
    %p77 = scmp.eq.s32.totalorder %s9, 7
    %p78 = por %p76, %p77
    %p79 = scmp.ne.s32.totalorder %s71, %s74
    %p80 = scmp.eq.s32.totalorder %s9, 0
    %p81 = por %p79, %p80
    %p82 = scmp.ne.s32.totalorder %s71, %s74
    %p83 = scmp.eq.s32.totalorder %s14, 7
    %p84 = por %p82, %p83
    %p85 = scmp.ne.s32.totalorder %s74, %s75
    %p86 = scmp.eq.s32.totalorder %s14, 0
    %p87 = por %p85, %p86
    %p88 = scmp.ne.s32.totalorder %s74, %s75
    %p89 = scmp.eq.s32.totalorder %s15, 7
    %p90 = por %p88, %p89
    %p92 = scmp.ne.s32.totalorder %s75, %s91
    %p93 = scmp.eq.s32.totalorder %s15, 0
    %p94 = por %p92, %p93
    %s95 = ssub.s32 %s9, %s16
    %p96 = scmp.eq.s32.totalorder %s95, 0
    %s98 = sadd.s32 %s97, 1
    %s99 = scalar_select %p96, %s97, %s98
    %p102 = pneg %p96
    %p103 = scmp.eq.s32.totalorder %s9, 7
    %p104 = por %p102, %p103
    %p105 = scmp.ne.s32.totalorder %s97, %s100
    %p106 = scmp.eq.s32.totalorder %s9, 0
    %p107 = por %p105, %p106
    %p108 = scmp.ne.s32.totalorder %s97, %s100
    %p109 = scmp.eq.s32.totalorder %s14, 7
    %p110 = por %p108, %p109
    %p111 = scmp.ne.s32.totalorder %s100, %s101
    %p112 = scmp.eq.s32.totalorder %s14, 0
    %p113 = por %p111, %p112
    %p114 = scmp.ne.s32.totalorder %s100, %s101
    %p115 = scmp.eq.s32.totalorder %s15, 7
    %p116 = por %p114, %p115
    %p118 = scmp.ne.s32.totalorder %s101, %s117
    %p119 = scmp.eq.s32.totalorder %s15, 0
    %p120 = por %p118, %p119
    %p121 = scmp.le.s32.totalorder 1, %s9
    %p122 = scmp.lt.s32.totalorder %s9, 9
    %p123 = pnand %p121, %p122
    %p124 = pneg %p123
    // Predicated region
    $region9: #{_lambda_.21} parent=5 // pred_check
      _
    $region10: #{_lambda_.21} parent=5 // pred_check_branch
      %126 = sbr.rel (%p123) target = $region12
    $region11: #{_lambda_.21} parent=5 // pred_region
      %s127 = ssub.s32 %s9, 1
    $region12: #{_lambda_.21} parent=5 // pred_fallthru
      _
    %p128 = scmp.lt.s32.totalorder %s9, 8
    // Predicated region
    $region13: #{_lambda_.21} parent=5 // pred_check
      %p129 = pneg %p128
    $region14: #{_lambda_.21} parent=5 // pred_check_branch
      %131 = sbr.rel (%p129) target = $region16
    $region15: #{_lambda_.21} parent=5 // pred_region
      // Predicated region
      $region17: #{_lambda_.21} parent=15 // pred_check
        %p132 = pneg %p29
      $region18: #{_lambda_.21} parent=15 // pred_check_branch
        %134 = sbr.rel (%p132) target = $region20
      $region19: #{_lambda_.21} parent=15 // pred_region
        %p135 = scmp.lt.s32.totalorder %s9, 7
        %s136 = scalar_select %p135, %s9, 7
        %s137 = smul.addr %s136, 3
        %s138 = smul.addr %s137, 4
        %s139 = scalar_lea.vmem %s0, %s138
      $region20: #{_lambda_.21} parent=15 // pred_fallthru
        _
      // Predicated region
      $region21: #{_lambda_.21} parent=15 // pred_check
        %p140 = pneg %p55
      $region22: #{_lambda_.21} parent=15 // pred_check_branch
        %142 = sbr.rel (%p140) target = $region24
      $region23: #{_lambda_.21} parent=15 // pred_region
        %p143 = scmp.lt.s32.totalorder %s9, 7
        %s144 = scalar_select %p143, %s9, 7
        %s145 = smul.addr %s144, 3
        %s146 = smul.addr %s145, 4
        %s147 = scalar_lea.vmem %s1, %s146
      $region24: #{_lambda_.21} parent=15 // pred_fallthru
        _
      // Predicated region
      $region25: #{_lambda_.21} parent=15 // pred_check
        %p148 = pneg %p81
      $region26: #{_lambda_.21} parent=15 // pred_check_branch
        %150 = sbr.rel (%p148) target = $region28
      $region27: #{_lambda_.21} parent=15 // pred_region
        %p151 = scmp.lt.s32.totalorder %s9, 7
        %s152 = scalar_select %p151, %s9, 7
        %s153 = smul.addr %s152, 3
        %s154 = smul.addr %s153, 4
        %s155 = scalar_lea.vmem %s2, %s154
      $region28: #{_lambda_.21} parent=15 // pred_fallthru
        _
    $region16: #{_lambda_.21} parent=5 // pred_fallthru
      _
    %p156 = scmp.le.s32.totalorder 1, %s9
    %p157 = scmp.lt.s32.totalorder %s9, 9
    %p158 = pnand %p156, %p157
    %p159 = pneg %p158
    // Predicated region
    $region29: #{_lambda_.21} parent=5 // pred_check
      _
    $region30: #{_lambda_.21} parent=5 // pred_check_branch
      %161 = sbr.rel (%p158) target = $region32
    $region31: #{_lambda_.21} parent=5 // pred_region
      %s162 = ssub.s32 %s9, 1
      %p163 = scmp.lt.s32.totalorder %s14, 7
      %s164 = scalar_select %p163, %s14, 7
      %s165 = smul.addr %s164, 3
      %s166 = smul.addr %s165, 4
      %s167 = scalar_lea.vmem %s0, %s166
      %p168 = pneg %p35
      %p169 = pneg %p32
      %p170 = scmp.lt.s32.totalorder %s14, 7
      %s171 = scalar_select %p170, %s14, 7
      %s172 = smul.addr %s171, 3
      %s173 = smul.addr %s172, 4
      %s174 = scalar_lea.vmem %s1, %s173
      %p175 = pneg %p61
      %p176 = pneg %p58
      %p177 = scmp.lt.s32.totalorder %s14, 7
      %s178 = scalar_select %p177, %s14, 7
      %s179 = smul.addr %s178, 3
      %s180 = smul.addr %s179, 4
      %s181 = scalar_lea.vmem %s2, %s180
      %p182 = pneg %p87
      %p183 = pneg %p84
      %p184 = pneg %p113
      %p185 = pneg %p110
      %p186 = scmp.lt.s32.totalorder %s14, 7
      %s187 = scalar_select %p186, %s14, 7
      %s188 = smul.addr %s187, 3
      %s189 = smul.addr %s188, 4
      %s190 = scalar_lea.vmem %s3, %s189
      %p191 = scmp.lt.s32.totalorder %s14, 7
      %s192 = scalar_select %p191, %s14, 7
      %s193 = smul.addr %s192, 3
      %s194 = smul.addr %s193, 4
      %s195 = scalar_lea.vmem %s0, %s194
      %p196 = scmp.lt.s32.totalorder %s14, 7
      %s197 = scalar_select %p196, %s14, 7
      %s198 = smul.addr %s197, 3
      %s199 = smul.addr %s198, 4
      %s200 = scalar_lea.vmem %s1, %s199
      %p201 = scmp.lt.s32.totalorder %s14, 7
      %s202 = scalar_select %p201, %s14, 7
      %s203 = smul.addr %s202, 3
      %s204 = smul.addr %s203, 4
      %s205 = scalar_lea.vmem %s2, %s204
      %p206 = scmp.lt.s32.totalorder %s14, 7
      %s207 = scalar_select %p206, %s14, 7
      %s208 = smul.addr %s207, 3
      %s209 = smul.addr %s208, 4
      %s210 = scalar_lea.vmem %s3, %s209
      %v212 = vld [vmem:[%s195] sm:$0xf]
      %v213 = vld [vmem:[%s195 + $0x4] sm:$0xf]
      %v214 = vld [vmem:[%s195 + $0x8] sm:$0x1]
      %v215 = vld [vmem:[%s200] sm:$0xf]
      %v216 = vld [vmem:[%s200 + $0x4] sm:$0xf]
      %v217 = vld [vmem:[%s200 + $0x8] sm:$0x1]
      %v221 = vunpack.c.l.b16 %v212
      %v222 = vunpack.c.l.b16 %v213
      %v223 = vunpack.c.l.b16 %v214
      %v224 = vpack.c.b16 %v222, %v221
      %v225 = vpack.c.b16 %v223, %v223
      %v229 = vunpack.c.l.b16 %v215
      %v230 = vunpack.c.l.b16 %v216
      %v231 = vunpack.c.l.b16 %v217
      %v232 = vpack.c.b16 %v230, %v229
      %v233 = vpack.c.b16 %v231, %v231
      %vm234 = vcmask 523264
      %v236 = vsel %vm234, %v224, 0
      %v239 = vsel %vm234, %v225, 0
      %v242 = vsel %vm234, %v232, 0
      %v245 = vsel %vm234, %v233, 0
      %247 = vmatpush.bf16.xpose.msra.mxu0 0
      %248 = vmatpush.bf16.xpose.msra.mxu0 0
      %249 = vmatpush.bf16.xpose.msra.mxu0 0
      %250 = vmatpush.bf16.xpose.msra.mxu0 0
      %251 = vmatpush.bf16.xpose.msra.mxu0 0
      %252 = vmatpush.bf16.xpose.msra.mxu0 0
      %253 = vmatpush.bf16.xpose.msra.mxu0 %v245
      %254 = vmatpush.bf16.xpose.msra.mxu0 %v242
      %255 = vmatmul.bf16.gmra.mxu0 %v236
      %v256 = vpop.f32.mrf.mxu0
      %v257 = vadd.f32 0.0, %v256
      %v258 = vpop.f32.mrf.mxu0
      %v259 = vadd.f32 0.0, %v258
      %260 = vmatmul.bf16.gmra.mxu0 %v239
      %v261 = vpop.f32.mrf.mxu0
      %v262 = vadd.f32 0.0, %v261
      %v263 = vpop.f32.mrf.mxu0
      %264 = vdwg.mxu0
      %v265 = vmul.f32 %v257, 0.125
      %v266 = vmul.f32 %v259, 0.125
      %v267 = vmul.f32 %v262, 0.125
      %vm268 = vcmask 138240
      %v269 = vsel %vm268, %v265, -inf
      %270 = vmax.xlane.f32.xlu0 %v269
      %v271 = vpop.xlane.xlu0 %270
      %v272 = vsel %vm268, %v266, -inf
      %273 = vmax.xlane.f32.xlu0 %v272
      %v274 = vpop.xlane.xlu0 %273
      %vm275 = vcmask 131072
      %v276 = vsel %vm275, %v267, -inf
      %277 = vmax.xlane.f32.xlu0 %v276
      %v278 = vpop.xlane.xlu0 %277
      %v279 = vsub.f32 %v265, %v271
      %v280 = vsub.f32 %v266, %v274
      %v281 = vsub.f32 %v267, %v278
      %v282 = vmul.f32 %v279, 1.442695
      %v283 = vpow.pop %v282
      %v284 = vmul.f32 %v280, 1.442695
      %v285 = vpow.pop %v284
      %v286 = vmul.f32 %v281, 1.442695
      %v287 = vpow.pop %v286
      %v288 = vsel %vm268, %v283, 0.0
      %289 = vadd.xlane.f32.xlu0 %v288
      %v290 = vpop.xlane.xlu0 %289
      %v291 = vsel %vm268, %v285, 0.0
      %292 = vadd.xlane.f32.xlu0 %v291
      %v293 = vpop.xlane.xlu0 %292
      %v294 = vsel %vm275, %v287, 0.0
      %295 = vadd.xlane.f32.xlu0 %v294
      %v296 = vpop.xlane.xlu0 %295
      %v297 = vrcp.pop %v290
      %v298 = vmul.f32 %v290, %v297
      %v299 = vsub.f32 1.0, %v298
      %v300 = vmul.f32 %v297, %v299
      %v301 = vadd.f32 %v297, %v300
      %vm302 = vweird.f32 %v290
      %vm303 = vweird.f32 %v297
      %vm304 = vmor %vm302, %vm303
      %v305 = vsel %vm304, %v297, %v301
      %v306 = vand.u32 2147483647, %v290
      %vm307 = vcmp.eq.f32.partialorder %v306, 8.507059e+37
      %v308 = vand.u32 %v290, 2147483648
      %v309 = vor.u32 1.1754944e-38, %v308
      %v310 = vsel %vm307, %v309, %v305
      %v311 = vmul.f32 %v283, %v310
      %v312 = vrcp.pop %v293
      %v313 = vmul.f32 %v293, %v312
      %v314 = vsub.f32 1.0, %v313
      %v315 = vmul.f32 %v312, %v314
      %v316 = vadd.f32 %v312, %v315
      %vm317 = vweird.f32 %v293
      %vm318 = vweird.f32 %v312
      %vm319 = vmor %vm317, %vm318
      %v320 = vsel %vm319, %v312, %v316
      %v321 = vand.u32 2147483647, %v293
      %vm322 = vcmp.eq.f32.partialorder %v321, 8.507059e+37
      %v323 = vand.u32 %v293, 2147483648
      %v324 = vor.u32 1.1754944e-38, %v323
      %v325 = vsel %vm322, %v324, %v320
      %v326 = vmul.f32 %v285, %v325
      %v327 = vrcp.pop %v296
      %v328 = vmul.f32 %v296, %v327
      %v329 = vsub.f32 1.0, %v328
      %v330 = vmul.f32 %v327, %v329
      %v331 = vadd.f32 %v327, %v330
      %vm332 = vweird.f32 %v296
      %vm333 = vweird.f32 %v327
      %vm334 = vmor %vm332, %vm333
      %v335 = vsel %vm334, %v327, %v331
      %v336 = vand.u32 2147483647, %v296
      %vm337 = vcmp.eq.f32.partialorder %v336, 8.507059e+37
      %v338 = vand.u32 %v296, 2147483648
      %v339 = vor.u32 1.1754944e-38, %v338
      %v340 = vsel %vm337, %v339, %v335
      %v341 = vmul.f32 %v287, %v340
      %v342 = vpack.c.bf16 %v326, %v311
      %v343 = vpack.c.bf16 %v341, %v341
      %v344 = vld [vmem:[%s205] sm:$0xf]
      %v345 = vld [vmem:[%s205 + $0x4] sm:$0xf]
      %v346 = vld [vmem:[%s205 + $0x8] sm:$0x1]
      %v350 = vunpack.c.l.b16 %v344
      %v351 = vunpack.c.l.b16 %v345
      %v352 = vunpack.c.l.b16 %v346
      %v353 = vpack.c.b16 %v351, %v350
      %v354 = vpack.c.b16 %v352, %v352
      %v357 = vsel %vm268, %v342, 0
      %v360 = vsel %vm268, %v343, 0
      %vm362 = vcmask 1040384
      %v363 = vsel 0, 4294967295, 65535
      %v364 = vsel %vm362, %v363, 0
      %v366 = vand.u32 %v354, %v364
      %368 = vmatpush.bf16.msra.mxu0 0
      %369 = vmatpush.bf16.msra.mxu0 0
      %370 = vmatpush.bf16.msra.mxu0 0
      %371 = vmatpush.bf16.msra.mxu0 0
      %372 = vmatpush.bf16.msra.mxu0 0
      %373 = vmatpush.bf16.msra.mxu0 0
      %374 = vmatpush.bf16.msra.mxu0 %v366
      %375 = vmatpush.bf16.msra.mxu0 %v353
      %376 = vmatmul.bf16.gmra.mxu0 %v357
      %v377 = vpop.f32.mrf.mxu0
      %v378 = vadd.f32 0.0, %v377
      %v379 = vpop.f32.mrf.mxu0
      %v380 = vadd.f32 0.0, %v379
      %381 = vmatmul.bf16.gmra.mxu0 %v360
      %v382 = vpop.f32.mrf.mxu0
      %v383 = vadd.f32 0.0, %v382
      %v384 = vpop.f32.mrf.mxu0
      %385 = vdwg.mxu0
      %v386 = vpack.c.bf16 %v378, %v378
      %v387 = vpack.c.bf16 %v380, %v380
      %v388 = vpack.c.bf16 %v383, %v383
      %vm389 = vcmask 519168
      %390 = vst.msk [vmem:[%s210] sm:$0xf] %vm389, %v386
      %391 = vst.msk [vmem:[%s210 + $0x4] sm:$0xf] %vm389, %v387
      %vm392 = vcmask 516096
      %vm393 = vsmask.f32 256
      %vm394 = vmand %vm392, %vm393
      %v395 = vld [vmem:[%s210 + $0x8] sm:$0x1]
      %v396 = vsel %vm394, %v388, %v395
      %397 = vst [vmem:[%s210 + $0x8] sm:$0x1] %v396
      %p398 = scmp.lt.s32.totalorder %s14, 7
      %s399 = scalar_select %p398, %s14, 7
      %s400 = smul.addr %s399, 3
      %s401 = smul.addr %s400, 4
      %s402 = scalar_lea.vmem %s3, %s401
      // Predicated region
      $region33: #{_lambda_.21} parent=31 // pred_check
        %p403 = pneg %p110
      $region34: #{_lambda_.21} parent=31 // pred_check_branch
        %405 = sbr.rel (%p403) target = $region36
      $region35: #{_lambda_.21} parent=31 // pred_region
        _
      $region36: #{_lambda_.21} parent=31 // pred_fallthru
        _
    $region32: #{_lambda_.21} parent=5 // pred_fallthru
      _
    %p406 = scmp.le.s32.totalorder 2, %s9
    // Predicated region
    $region37: #{_lambda_.21} parent=5 // pred_check
      %p407 = pneg %p406
    $region38: #{_lambda_.21} parent=5 // pred_check_branch
      %409 = sbr.rel (%p407) target = $region40
    $region39: #{_lambda_.21} parent=5 // pred_region
      %s410 = ssub.s32 %s9, 2
      // Predicated region
      $region41: #{_lambda_.21} parent=39 // pred_check
        %p411 = pneg %p116
      $region42: #{_lambda_.21} parent=39 // pred_check_branch
        %413 = sbr.rel (%p411) target = $region44
      $region43: #{_lambda_.21} parent=39 // pred_region
        %p414 = scmp.lt.s32.totalorder %s15, 7
        %s415 = scalar_select %p414, %s15, 7
        %s416 = smul.addr %s415, 3
        %s417 = smul.addr %s416, 4
        %s418 = scalar_lea.vmem %s3, %s417
      $region44: #{_lambda_.21} parent=39 // pred_fallthru
        _
    $region40: #{_lambda_.21} parent=5 // pred_fallthru
      _
  $region6: #{_lambda_.21} parent=0 // loop_footer
    %s13 = sadd.s32 1, %s9
  $region7: #{_lambda_.21} parent=0 // loop_footer_branch
    %8 = sbr.rel target = $region3
  $region8: #{_lambda_.21} parent=0 // loop_exit
    _

// kernel: _lambda_.22
$region0: #{_lambda_.22}
  #allocation0 [shape = 'u32[]', space=smem, size = 0x4, offset = 0x4, fixed_abs, tag = 'smem constant byte address 0x4 - core index']
  #allocation1 [shape = 'u32[72,128]{1,0:T(1,128)}', space=vmem, size = 0x9000, scoped, tag = 'internal scratch']
  #allocation2 [shape = 'f32[34,256]{1,0:T(8,128)}', space=vmem, size = 0xa000, scoped, tag = 'scratch operand']
  %s0 = inlined_call_operand.vmem [shape: bf16[34,256], index: 0, kind: input, shape index: {}]
  %s1 = inlined_call_operand.vmem [shape: bf16[256,256], index: 1, kind: input, shape index: {}]
  %s2 = inlined_call_operand.vmem [shape: f32[1,256], index: 2, kind: input, shape index: {}]
  %s3 = inlined_call_operand.vmem [shape: bf16[34,256], index: 3, kind: input, shape index: {}]
  %s4 = inlined_call_operand.vmem [shape: bf16[34,256], index: 4, kind: output, shape index: {}]
  %s5 = sld [smem:[#allocation0]]
  $region34: #{_lambda_.22} parent=0
    _
  %s7 = ssub.s32 1, %s5
  %s8 = scalar_select 0, %s7, %s5
  // Predicated region
  $region2: #{_lambda_.22} parent=0 // pred_check
    _
  $region3: #{_lambda_.22} parent=0 // pred_check_branch
    %10 = sbr.rel (0) target = $region5
  $region4: #{_lambda_.22} parent=0 // pred_region
    _
  $region5: #{_lambda_.22} parent=0 // pred_fallthru
    _
  // Predicated region
  $region6: #{_lambda_.22} parent=0 // pred_check
    _
  $region7: #{_lambda_.22} parent=0 // pred_check_branch
    %12 = sbr.rel (0) target = $region9
  $region8: #{_lambda_.22} parent=0 // pred_region
    _
  $region9: #{_lambda_.22} parent=0 // pred_fallthru
    _
  // Predicated region
  $region10: #{_lambda_.22} parent=0 // pred_check
    _
  $region11: #{_lambda_.22} parent=0 // pred_check_branch
    %14 = sbr.rel (0) target = $region13
  $region12: #{_lambda_.22} parent=0 // pred_region
    _
  $region13: #{_lambda_.22} parent=0 // pred_fallthru
    _
  // Predicated region
  $region14: #{_lambda_.22} parent=0 // pred_check
    _
  $region15: #{_lambda_.22} parent=0 // pred_check_branch
    %16 = sbr.rel (0) target = $region17
  $region16: #{_lambda_.22} parent=0 // pred_region
    _
  $region17: #{_lambda_.22} parent=0 // pred_fallthru
    _
  %p17 = scmp.eq.s32.totalorder 0, 0
  // Predicated region
  $region18: #{_lambda_.22} parent=0 // pred_check
    %p18 = pneg %p17
  $region19: #{_lambda_.22} parent=0 // pred_check_branch
    %20 = sbr.rel (%p18) target = $region21
  $region20: #{_lambda_.22} parent=0 // pred_region
    %21 = vst [vmem:[#allocation2] sm:$0xff] 0.0
    %22 = vst [vmem:[#allocation2 + $0x8] sm:$0xff] 0.0
    %23 = vst [vmem:[#allocation2 + $0x10] sm:$0xff] 0.0
    %24 = vst [vmem:[#allocation2 + $0x18] sm:$0xff] 0.0
    %25 = vst [vmem:[#allocation2 + $0x20] sm:$0xff] 0.0
    %26 = vst [vmem:[#allocation2 + $0x28] sm:$0xff] 0.0
    %27 = vst [vmem:[#allocation2 + $0x30] sm:$0xff] 0.0
    %28 = vst [vmem:[#allocation2 + $0x38] sm:$0xff] 0.0
    %29 = vst [vmem:[#allocation2 + $0x40] sm:$0x3] 0.0
    %30 = vst [vmem:[#allocation2 + $0x48] sm:$0x3] 0.0
  $region21: #{_lambda_.22} parent=0 // pred_fallthru
    _
  %v31 = vld [vmem:[#allocation2] sm:$0xff]
  %v32 = vld [vmem:[#allocation2 + $0x8] sm:$0xff]
  %v33 = vld [vmem:[#allocation2 + $0x10] sm:$0xff]
  %v34 = vld [vmem:[#allocation2 + $0x18] sm:$0xff]
  %v35 = vld [vmem:[#allocation2 + $0x20] sm:$0xff]
  %v36 = vld [vmem:[#allocation2 + $0x28] sm:$0xff]
  %v37 = vld [vmem:[#allocation2 + $0x30] sm:$0xff]
  %v38 = vld [vmem:[#allocation2 + $0x38] sm:$0xff]
  %v39 = vld [vmem:[#allocation2 + $0x40] sm:$0x3]
  %v40 = vld [vmem:[#allocation2 + $0x48] sm:$0x3]
  %v41 = vld [vmem:[%s0] sm:$0xff]
  %v42 = vld [vmem:[%s0 + $0x8] sm:$0xff]
  %v43 = vld [vmem:[%s0 + $0x10] sm:$0xff]
  %v44 = vld [vmem:[%s0 + $0x18] sm:$0xff]
  %v45 = vld [vmem:[%s0 + $0x20] sm:$0x11]
  %v46 = vld [vmem:[%s1] sm:$0xff]
  %v47 = vld [vmem:[%s1 + $0x8] sm:$0xff]
  %v48 = vld [vmem:[%s1 + $0x10] sm:$0xff]
  %v49 = vld [vmem:[%s1 + $0x18] sm:$0xff]
  %v50 = vld [vmem:[%s1 + $0x20] sm:$0xff]
  %v51 = vld [vmem:[%s1 + $0x28] sm:$0xff]
  %v52 = vld [vmem:[%s1 + $0x30] sm:$0xff]
  %v53 = vld [vmem:[%s1 + $0x38] sm:$0xff]
  %v54 = vld [vmem:[%s1 + $0x40] sm:$0xff]
  %v55 = vld [vmem:[%s1 + $0x48] sm:$0xff]
  %v56 = vld [vmem:[%s1 + $0x50] sm:$0xff]
  %v57 = vld [vmem:[%s1 + $0x58] sm:$0xff]
  %v58 = vld [vmem:[%s1 + $0x60] sm:$0xff]
  %v59 = vld [vmem:[%s1 + $0x68] sm:$0xff]
  %v60 = vld [vmem:[%s1 + $0x70] sm:$0xff]
  %v61 = vld [vmem:[%s1 + $0x78] sm:$0xff]
  %v62 = vld [vmem:[%s1 + $0x80] sm:$0xff]
  %v63 = vld [vmem:[%s1 + $0x88] sm:$0xff]
  %v64 = vld [vmem:[%s1 + $0x90] sm:$0xff]
  %v65 = vld [vmem:[%s1 + $0x98] sm:$0xff]
  %v66 = vld [vmem:[%s1 + $0xa0] sm:$0xff]
  %v67 = vld [vmem:[%s1 + $0xa8] sm:$0xff]
  %v68 = vld [vmem:[%s1 + $0xb0] sm:$0xff]
  %v69 = vld [vmem:[%s1 + $0xb8] sm:$0xff]
  %v70 = vld [vmem:[%s1 + $0xc0] sm:$0xff]
  %v71 = vld [vmem:[%s1 + $0xc8] sm:$0xff]
  %v72 = vld [vmem:[%s1 + $0xd0] sm:$0xff]
  %v73 = vld [vmem:[%s1 + $0xd8] sm:$0xff]
  %v74 = vld [vmem:[%s1 + $0xe0] sm:$0xff]
  %v75 = vld [vmem:[%s1 + $0xe8] sm:$0xff]
  %v76 = vld [vmem:[%s1 + $0xf0] sm:$0xff]
  %v77 = vld [vmem:[%s1 + $0xf8] sm:$0xff]
  %v83 = vunpack.c.l.b16 %v41
  %v84 = vunpack.c.h.b16 %v41
  %v85 = vunpack.c.l.b16 %v42
  %v86 = vunpack.c.h.b16 %v42
  %v87 = vunpack.c.l.b16 %v43
  %v88 = vunpack.c.h.b16 %v43
  %v89 = vunpack.c.l.b16 %v44
  %v90 = vunpack.c.h.b16 %v44
  %v91 = vunpack.c.l.b16 %v45
  %v92 = vunpack.c.h.b16 %v45
  %v93 = vpack.c.b16 %v85, %v83
  %v94 = vpack.c.b16 %v86, %v84
  %v95 = vpack.c.b16 %v89, %v87
  %v96 = vpack.c.b16 %v90, %v88
  %v97 = vpack.c.b16 %v91, %v91
  %v98 = vpack.c.b16 %v92, %v92
  %v137 = vunpack.c.l.b16 %v46
  %v138 = vunpack.c.h.b16 %v46
  %v139 = vunpack.c.l.b16 %v47
  %v140 = vunpack.c.h.b16 %v47
  %v141 = vunpack.c.l.b16 %v48
  %v142 = vunpack.c.h.b16 %v48
  %v143 = vunpack.c.l.b16 %v49
  %v144 = vunpack.c.h.b16 %v49
  %v145 = vunpack.c.l.b16 %v50
  %v146 = vunpack.c.h.b16 %v50
  %v147 = vunpack.c.l.b16 %v51
  %v148 = vunpack.c.h.b16 %v51
  %v149 = vunpack.c.l.b16 %v52
  %v150 = vunpack.c.h.b16 %v52
  %v151 = vunpack.c.l.b16 %v53
  %v152 = vunpack.c.h.b16 %v53
  %v153 = vunpack.c.l.b16 %v54
  %v154 = vunpack.c.h.b16 %v54
  %v155 = vunpack.c.l.b16 %v55
  %v156 = vunpack.c.h.b16 %v55
  %v157 = vunpack.c.l.b16 %v56
  %v158 = vunpack.c.h.b16 %v56
  %v159 = vunpack.c.l.b16 %v57
  %v160 = vunpack.c.h.b16 %v57
  %v161 = vunpack.c.l.b16 %v58
  %v162 = vunpack.c.h.b16 %v58
  %v163 = vunpack.c.l.b16 %v59
  %v164 = vunpack.c.h.b16 %v59
  %v165 = vunpack.c.l.b16 %v60
  %v166 = vunpack.c.h.b16 %v60
  %v167 = vunpack.c.l.b16 %v61
  %v168 = vunpack.c.h.b16 %v61
  %v169 = vunpack.c.l.b16 %v62
  %v170 = vunpack.c.h.b16 %v62
  %v171 = vunpack.c.l.b16 %v63
  %v172 = vunpack.c.h.b16 %v63
  %v173 = vunpack.c.l.b16 %v64
  %v174 = vunpack.c.h.b16 %v64
  %v175 = vunpack.c.l.b16 %v65
  %v176 = vunpack.c.h.b16 %v65
  %v177 = vunpack.c.l.b16 %v66
  %v178 = vunpack.c.h.b16 %v66
  %v179 = vunpack.c.l.b16 %v67
  %v180 = vunpack.c.h.b16 %v67
  %v181 = vunpack.c.l.b16 %v68
  %v182 = vunpack.c.h.b16 %v68
  %v183 = vunpack.c.l.b16 %v69
  %v184 = vunpack.c.h.b16 %v69
  %v185 = vunpack.c.l.b16 %v70
  %v186 = vunpack.c.h.b16 %v70
  %v187 = vunpack.c.l.b16 %v71
  %v188 = vunpack.c.h.b16 %v71
  %v189 = vunpack.c.l.b16 %v72
  %v190 = vunpack.c.h.b16 %v72
  %v191 = vunpack.c.l.b16 %v73
  %v192 = vunpack.c.h.b16 %v73
  %v193 = vunpack.c.l.b16 %v74
  %v194 = vunpack.c.h.b16 %v74
  %v195 = vunpack.c.l.b16 %v75
  %v196 = vunpack.c.h.b16 %v75
  %v197 = vunpack.c.l.b16 %v76
  %v198 = vunpack.c.h.b16 %v76
  %v199 = vunpack.c.l.b16 %v77
  %v200 = vunpack.c.h.b16 %v77
  %v201 = vpack.c.b16 %v139, %v137
  %v202 = vpack.c.b16 %v140, %v138
  %v203 = vpack.c.b16 %v143, %v141
  %v204 = vpack.c.b16 %v144, %v142
  %v205 = vpack.c.b16 %v147, %v145
  %v206 = vpack.c.b16 %v148, %v146
  %v207 = vpack.c.b16 %v151, %v149
  %v208 = vpack.c.b16 %v152, %v150
  %v209 = vpack.c.b16 %v155, %v153
  %v210 = vpack.c.b16 %v156, %v154
  %v211 = vpack.c.b16 %v159, %v157
  %v212 = vpack.c.b16 %v160, %v158
  %v213 = vpack.c.b16 %v163, %v161
  %v214 = vpack.c.b16 %v164, %v162
  %v215 = vpack.c.b16 %v167, %v165
  %v216 = vpack.c.b16 %v168, %v166
  %v217 = vpack.c.b16 %v171, %v169
  %v218 = vpack.c.b16 %v172, %v170
  %v219 = vpack.c.b16 %v175, %v173
  %v220 = vpack.c.b16 %v176, %v174
  %v221 = vpack.c.b16 %v179, %v177
  %v222 = vpack.c.b16 %v180, %v178
  %v223 = vpack.c.b16 %v183, %v181
  %v224 = vpack.c.b16 %v184, %v182
  %v225 = vpack.c.b16 %v187, %v185
  %v226 = vpack.c.b16 %v188, %v186
  %v227 = vpack.c.b16 %v191, %v189
  %v228 = vpack.c.b16 %v192, %v190
  %v229 = vpack.c.b16 %v195, %v193
  %v230 = vpack.c.b16 %v196, %v194
  %v231 = vpack.c.b16 %v199, %v197
  %v232 = vpack.c.b16 %v200, %v198
  %265 = vmatpush.bf16.msra.mxu0 %v215
  %266 = vmatpush.bf16.msra.mxu0 %v213
  %267 = vmatpush.bf16.msra.mxu0 %v211
  %268 = vmatpush.bf16.msra.mxu0 %v209
  %269 = vmatpush.bf16.msra.mxu0 %v207
  %270 = vmatpush.bf16.msra.mxu0 %v205
  %271 = vmatpush.bf16.msra.mxu0 %v203
  %272 = vmatpush.bf16.msra.mxu0 %v201
  %273 = vmatmul.bf16.gmra.mxu0 %v93
  %v274 = vpop.f32.mrf.mxu0
  %v275 = vadd.f32 0.0, %v274
  %v276 = vpop.f32.mrf.mxu0
  %v277 = vadd.f32 0.0, %v276
  %278 = vmatmul.bf16.gmra.mxu0 %v95
  %v279 = vpop.f32.mrf.mxu0
  %v280 = vadd.f32 0.0, %v279
  %v281 = vpop.f32.mrf.mxu0
  %v282 = vadd.f32 0.0, %v281
  %283 = vmatmul.bf16.gmra.mxu0 %v97
  %v284 = vpop.f32.mrf.mxu0
  %v285 = vadd.f32 0.0, %v284
  %v286 = vpop.f32.mrf.mxu0
  %287 = vdwg.mxu0
  %288 = vmatpush.bf16.msra.mxu0 %v231
  %289 = vmatpush.bf16.msra.mxu0 %v229
  %290 = vmatpush.bf16.msra.mxu0 %v227
  %291 = vmatpush.bf16.msra.mxu0 %v225
  %292 = vmatpush.bf16.msra.mxu0 %v223
  %293 = vmatpush.bf16.msra.mxu0 %v221
  %294 = vmatpush.bf16.msra.mxu0 %v219
  %295 = vmatpush.bf16.msra.mxu0 %v217
  %296 = vmatmul.bf16.gmra.mxu0 %v94
  %v297 = vpop.f32.mrf.mxu0
  %v298 = vadd.f32 %v275, %v297
  %v299 = vpop.f32.mrf.mxu0
  %v300 = vadd.f32 %v277, %v299
  %301 = vmatmul.bf16.gmra.mxu0 %v96
  %v302 = vpop.f32.mrf.mxu0
  %v303 = vadd.f32 %v280, %v302
  %v304 = vpop.f32.mrf.mxu0
  %v305 = vadd.f32 %v282, %v304
  %306 = vmatmul.bf16.gmra.mxu0 %v98
  %v307 = vpop.f32.mrf.mxu0
  %v308 = vadd.f32 %v285, %v307
  %v309 = vpop.f32.mrf.mxu0
  %310 = vdwg.mxu0
  %311 = vmatpush.bf16.msra.mxu0 %v216
  %312 = vmatpush.bf16.msra.mxu0 %v214
  %313 = vmatpush.bf16.msra.mxu0 %v212
  %314 = vmatpush.bf16.msra.mxu0 %v210
  %315 = vmatpush.bf16.msra.mxu0 %v208
  %316 = vmatpush.bf16.msra.mxu0 %v206
  %317 = vmatpush.bf16.msra.mxu0 %v204
  %318 = vmatpush.bf16.msra.mxu0 %v202
  %319 = vmatmul.bf16.gmra.mxu0 %v93
  %v320 = vpop.f32.mrf.mxu0
  %v321 = vadd.f32 0.0, %v320
  %v322 = vpop.f32.mrf.mxu0
  %v323 = vadd.f32 0.0, %v322
  %324 = vmatmul.bf16.gmra.mxu0 %v95
  %v325 = vpop.f32.mrf.mxu0
  %v326 = vadd.f32 0.0, %v325
  %v327 = vpop.f32.mrf.mxu0
  %v328 = vadd.f32 0.0, %v327
  %329 = vmatmul.bf16.gmra.mxu0 %v97
  %v330 = vpop.f32.mrf.mxu0
  %v331 = vadd.f32 0.0, %v330
  %v332 = vpop.f32.mrf.mxu0
  %333 = vdwg.mxu0
  %334 = vmatpush.bf16.msra.mxu0 %v232
  %335 = vmatpush.bf16.msra.mxu0 %v230
  %336 = vmatpush.bf16.msra.mxu0 %v228
  %337 = vmatpush.bf16.msra.mxu0 %v226
  %338 = vmatpush.bf16.msra.mxu0 %v224
  %339 = vmatpush.bf16.msra.mxu0 %v222
  %340 = vmatpush.bf16.msra.mxu0 %v220
  %341 = vmatpush.bf16.msra.mxu0 %v218
  %342 = vmatmul.bf16.gmra.mxu0 %v94
  %v343 = vpop.f32.mrf.mxu0
  %v344 = vadd.f32 %v321, %v343
  %v345 = vpop.f32.mrf.mxu0
  %v346 = vadd.f32 %v323, %v345
  %347 = vmatmul.bf16.gmra.mxu0 %v96
  %v348 = vpop.f32.mrf.mxu0
  %v349 = vadd.f32 %v326, %v348
  %v350 = vpop.f32.mrf.mxu0
  %v351 = vadd.f32 %v328, %v350
  %352 = vmatmul.bf16.gmra.mxu0 %v98
  %v353 = vpop.f32.mrf.mxu0
  %v354 = vadd.f32 %v331, %v353
  %v355 = vpop.f32.mrf.mxu0
  %356 = vdwg.mxu0
  %v357 = vadd.f32 %v31, %v298
  %v358 = vadd.f32 %v32, %v344
  %v359 = vadd.f32 %v33, %v300
  %v360 = vadd.f32 %v34, %v346
  %v361 = vadd.f32 %v35, %v303
  %v362 = vadd.f32 %v36, %v349
  %v363 = vadd.f32 %v37, %v305
  %v364 = vadd.f32 %v38, %v351
  %v365 = vadd.f32 %v39, %v308
  %v366 = vadd.f32 %v40, %v354
  %367 = vst [vmem:[#allocation2] sm:$0xff] %v357
  %368 = vst [vmem:[#allocation2 + $0x8] sm:$0xff] %v358
  %369 = vst [vmem:[#allocation2 + $0x10] sm:$0xff] %v359
  %370 = vst [vmem:[#allocation2 + $0x18] sm:$0xff] %v360
  %371 = vst [vmem:[#allocation2 + $0x20] sm:$0xff] %v361
  %372 = vst [vmem:[#allocation2 + $0x28] sm:$0xff] %v362
  %373 = vst [vmem:[#allocation2 + $0x30] sm:$0xff] %v363
  %374 = vst [vmem:[#allocation2 + $0x38] sm:$0xff] %v364
  %375 = vst [vmem:[#allocation2 + $0x40] sm:$0x3] %v365
  %376 = vst [vmem:[#allocation2 + $0x48] sm:$0x3] %v366
  // Predicated region
  $region22: #{_lambda_.22} parent=0 // pred_check
    %p377 = pneg %p17
  $region23: #{_lambda_.22} parent=0 // pred_check_branch
    %379 = sbr.rel (%p377) target = $region25
  $region24: #{_lambda_.22} parent=0 // pred_region
    %v380 = vld [vmem:[#allocation2] sm:$0xff]
    %v381 = vld [vmem:[#allocation2 + $0x8] sm:$0xff]
    %v382 = vld [vmem:[#allocation2 + $0x10] sm:$0xff]
    %v383 = vld [vmem:[#allocation2 + $0x18] sm:$0xff]
    %v384 = vld [vmem:[#allocation2 + $0x20] sm:$0xff]
    %v385 = vld [vmem:[#allocation2 + $0x28] sm:$0xff]
    %v386 = vld [vmem:[#allocation2 + $0x30] sm:$0xff]
    %v387 = vld [vmem:[#allocation2 + $0x38] sm:$0xff]
    %v388 = vld [vmem:[#allocation2 + $0x40] sm:$0x3]
    %v389 = vld [vmem:[#allocation2 + $0x48] sm:$0x3]
    %v390 = vld [vmem:[%s2] sm:$0x3]
    %v392 = vperm.slane %v390, 0
    %v393 = vperm.slane %v390, 1
    %v396 = vadd.f32 %v380, %v392
    %v397 = vadd.f32 %v381, %v393
    %v398 = vadd.f32 %v382, %v392
    %v399 = vadd.f32 %v383, %v393
    %v400 = vadd.f32 %v384, %v392
    %v401 = vadd.f32 %v385, %v393
    %v402 = vadd.f32 %v386, %v392
    %v403 = vadd.f32 %v387, %v393
    %v404 = vadd.f32 %v388, %v392
    %v405 = vadd.f32 %v389, %v393
    %v406 = vld [vmem:[%s3] sm:$0xff]
    %v407 = vld [vmem:[%s3 + $0x8] sm:$0xff]
    %v408 = vld [vmem:[%s3 + $0x10] sm:$0xff]
    %v409 = vld [vmem:[%s3 + $0x18] sm:$0xff]
    %v410 = vld [vmem:[%s3 + $0x20] sm:$0x11]
    %v411 = vunpack.c.l.bf16 %v406
    %v412 = vunpack.c.h.bf16 %v406
    %v413 = vunpack.c.l.bf16 %v407
    %v414 = vunpack.c.h.bf16 %v407
    %v415 = vunpack.c.l.bf16 %v408
    %v416 = vunpack.c.h.bf16 %v408
    %v417 = vunpack.c.l.bf16 %v409
    %v418 = vunpack.c.h.bf16 %v409
    %v419 = vunpack.c.l.bf16 %v410
    %v420 = vunpack.c.h.bf16 %v410
    %v421 = vadd.f32 %v396, %v411
    %v422 = vadd.f32 %v397, %v412
    %v423 = vadd.f32 %v398, %v413
    %v424 = vadd.f32 %v399, %v414
    %v425 = vadd.f32 %v400, %v415
    %v426 = vadd.f32 %v401, %v416
    %v427 = vadd.f32 %v402, %v417
    %v428 = vadd.f32 %v403, %v418
    %v429 = vadd.f32 %v404, %v419
    %v430 = vadd.f32 %v405, %v420
    %v431 = vpack.c.bf16 %v422, %v421
    %v432 = vpack.c.bf16 %v424, %v423
    %v433 = vpack.c.bf16 %v426, %v425
    %v434 = vpack.c.bf16 %v428, %v427
    %v435 = vpack.c.bf16 %v430, %v429
    %436 = vst [vmem:[%s4] sm:$0xff] %v431
    %437 = vst [vmem:[%s4 + $0x8] sm:$0xff] %v432
    %438 = vst [vmem:[%s4 + $0x10] sm:$0xff] %v433
    %439 = vst [vmem:[%s4 + $0x18] sm:$0xff] %v434
    %440 = vst [vmem:[%s4 + $0x20] sm:$0x11] %v435
  $region25: #{_lambda_.22} parent=0 // pred_fallthru
    _
  // Predicated region
  $region26: #{_lambda_.22} parent=0 // pred_check
    _
  $region27: #{_lambda_.22} parent=0 // pred_check_branch
    %442 = sbr.rel (0) target = $region29
  $region28: #{_lambda_.22} parent=0 // pred_region
    _
  $region29: #{_lambda_.22} parent=0 // pred_fallthru
    _
  // Predicated region
  $region30: #{_lambda_.22} parent=0 // pred_check
    _
  $region31: #{_lambda_.22} parent=0 // pred_check_branch
    %444 = sbr.rel (0) target = $region33
  $region32: #{_lambda_.22} parent=0 // pred_region
    _
  $region33: #{_lambda_.22} parent=0 // pred_fallthru
    _

// kernel: _lambda_.24
$region0: #{_lambda_.24}
  #allocation0 [shape = 'u32[]', space=smem, size = 0x4, offset = 0x4, fixed_abs, tag = 'smem constant byte address 0x4 - core index']
  #allocation1 [shape = 'u32[72,128]{1,0:T(1,128)}', space=vmem, size = 0x9000, scoped, tag = 'internal scratch']
  #allocation2 [shape = 'f32[34,256]{1,0:T(8,128)}', space=vmem, size = 0xa000, scoped, tag = 'scratch operand']
  %s0 = inlined_call_operand.vmem [shape: bf16[34,256], index: 0, kind: input, shape index: {}]
  %s1 = inlined_call_operand.vmem [shape: bf16[256,1024], index: 1, kind: input, shape index: {}]
  %s2 = inlined_call_operand.vmem [shape: f32[1,1024], index: 2, kind: input, shape index: {}]
  %s3 = inlined_call_operand.vmem [shape: bf16[34,1024], index: 3, kind: output, shape index: {}]
  %s4 = sld [smem:[#allocation0]]
  $region125: #{_lambda_.24} parent=0
    _
  %s6 = ssub.s32 1, %s4
  %s7 = scalar_select 0, %s6, %s4
  $region1: #{_lambda_.24} parent=0
    #allocation3 [shape = 'u8[262144]{0}', space=vmem, size = 0x40000, scoped, tag = 'input window, operand 1']
    #allocation4 [shape = 'u8[40960]{0}', space=vmem, size = 0xa000, scoped, tag = 'output window, operand 0']
    loop: start=0, step=1, limit=6
    $region2: #{_lambda_.24} parent=1 // loop_pre_header
      _
    $region3: #{_lambda_.24} parent=1 // loop_header
      %s9 = sphi 0, %s13
      %p10 = scmp.ge.s32.totalorder %s9, 6
      %s16 = sphi 0, %s35
      %s17 = sphi 0, %s31
      %s18 = sphi 0, %s27
      %s19 = sphi 0, %s16
      %s20 = sphi 0, %s17
      %s21 = sphi 0, %s18
      %s22 = sphi 0, %s19
      %s23 = sphi 0, %s20
      %s24 = sphi 0, %s21
      %s40 = sphi 0, %s42
      %s43 = sphi 0, %s40
      %s44 = sphi 0, %s43
      %s60 = sphi 0, %s44
      %s68 = sphi 0, %s70
      %s71 = sphi 0, %s68
      %s72 = sphi 0, %s71
      %s88 = sphi 0, %s72
      %s94 = sphi 0, %s96
      %s97 = sphi 0, %s94
      %s98 = sphi 0, %s97
      %s114 = sphi 0, %s98
      %s122 = sphi 0, %s124
      %s125 = sphi 0, %s122
      %s126 = sphi 0, %s125
      %s142 = sphi 0, %s126
    $region4: #{_lambda_.24} parent=1 // loop_header_branch
      %12 = sbr.rel (%p10) target = $region8
    $region5: #{_lambda_.24} parent=1 // loop_body
      %s14 = ssub.s32 %s9, 1
      %s15 = ssub.s32 %s9, 2
      %s25 = sadd.s32 1, %s18
      %p26 = scmp.ge.s32.totalorder %s25, 1
      %s27 = scalar_select %p26, 0, %s25
      %s28 = sadd.s32 1, %s17
      %s29 = scalar_select %p26, %s28, %s17
      %p30 = scmp.ge.s32.totalorder %s29, 4
      %s31 = scalar_select %p30, 0, %s29
      %s32 = sadd.s32 1, %s16
      %s33 = scalar_select %p30, %s32, %s16
      %p34 = scmp.ge.s32.totalorder %s33, 1
      %s35 = scalar_select %p34, 0, %s33
      %s36 = ssub.s32 %s16, %s35
      %s37 = ssub.s32 %s18, %s27
      %s38 = sor.u32 %s36, %s37
      %p39 = scmp.eq.s32.totalorder %s38, 0
      %s41 = sadd.s32 %s40, 1
      %s42 = scalar_select %p39, %s40, %s41
      %p45 = pneg %p39
      %p46 = scmp.eq.s32.totalorder %s9, 3
      %p47 = por %p45, %p46
      %p48 = scmp.ne.s32.totalorder %s40, %s43
      %p49 = scmp.eq.s32.totalorder %s9, 0
      %p50 = por %p48, %p49
      %p51 = scmp.ne.s32.totalorder %s40, %s43
      %p52 = scmp.eq.s32.totalorder %s14, 3
      %p53 = por %p51, %p52
      %p54 = scmp.ne.s32.totalorder %s43, %s44
      %p55 = scmp.eq.s32.totalorder %s14, 0
      %p56 = por %p54, %p55
      %p57 = scmp.ne.s32.totalorder %s43, %s44
      %p58 = scmp.eq.s32.totalorder %s15, 3
      %p59 = por %p57, %p58
      %p61 = scmp.ne.s32.totalorder %s44, %s60
      %p62 = scmp.eq.s32.totalorder %s15, 0
      %p63 = por %p61, %p62
      %s64 = ssub.s32 %s18, %s27
      %s65 = ssub.s32 %s17, %s31
      %s66 = sor.u32 %s64, %s65
      %p67 = scmp.eq.s32.totalorder %s66, 0
      %s69 = sadd.s32 %s68, 1
      %s70 = scalar_select %p67, %s68, %s69
      %p73 = pneg %p67
      %p74 = scmp.eq.s32.totalorder %s9, 3
      %p75 = por %p73, %p74
      %p76 = scmp.ne.s32.totalorder %s68, %s71
      %p77 = scmp.eq.s32.totalorder %s9, 0
      %p78 = por %p76, %p77
      %p79 = scmp.ne.s32.totalorder %s68, %s71
      %p80 = scmp.eq.s32.totalorder %s14, 3
      %p81 = por %p79, %p80
      %p82 = scmp.ne.s32.totalorder %s71, %s72
      %p83 = scmp.eq.s32.totalorder %s14, 0
      %p84 = por %p82, %p83
      %p85 = scmp.ne.s32.totalorder %s71, %s72
      %p86 = scmp.eq.s32.totalorder %s15, 3
      %p87 = por %p85, %p86
      %p89 = scmp.ne.s32.totalorder %s72, %s88
      %p90 = scmp.eq.s32.totalorder %s15, 0
      %p91 = por %p89, %p90
      %s92 = ssub.s32 %s17, %s31
      %p93 = scmp.eq.s32.totalorder %s92, 0
      %s95 = sadd.s32 %s94, 1
      %s96 = scalar_select %p93, %s94, %s95
      %p99 = pneg %p93
      %p100 = scmp.eq.s32.totalorder %s9, 3
      %p101 = por %p99, %p100
      %p102 = scmp.ne.s32.totalorder %s94, %s97
      %p103 = scmp.eq.s32.totalorder %s9, 0
      %p104 = por %p102, %p103
      %p105 = scmp.ne.s32.totalorder %s94, %s97
      %p106 = scmp.eq.s32.totalorder %s14, 3
      %p107 = por %p105, %p106
      %p108 = scmp.ne.s32.totalorder %s97, %s98
      %p109 = scmp.eq.s32.totalorder %s14, 0
      %p110 = por %p108, %p109
      %p111 = scmp.ne.s32.totalorder %s97, %s98
      %p112 = scmp.eq.s32.totalorder %s15, 3
      %p113 = por %p111, %p112
      %p115 = scmp.ne.s32.totalorder %s98, %s114
      %p116 = scmp.eq.s32.totalorder %s15, 0
      %p117 = por %p115, %p116
      %s118 = ssub.s32 %s16, %s35
      %s119 = ssub.s32 %s17, %s31
      %s120 = sor.u32 %s118, %s119
      %p121 = scmp.eq.s32.totalorder %s120, 0
      %s123 = sadd.s32 %s122, 1
      %s124 = scalar_select %p121, %s122, %s123
      %p127 = pneg %p121
      %p128 = scmp.eq.s32.totalorder %s9, 3
      %p129 = por %p127, %p128
      %p130 = scmp.ne.s32.totalorder %s122, %s125
      %p131 = scmp.eq.s32.totalorder %s9, 0
      %p132 = por %p130, %p131
      %p133 = scmp.ne.s32.totalorder %s122, %s125
      %p134 = scmp.eq.s32.totalorder %s14, 3
      %p135 = por %p133, %p134
      %p136 = scmp.ne.s32.totalorder %s125, %s126
      %p137 = scmp.eq.s32.totalorder %s14, 0
      %p138 = por %p136, %p137
      %p139 = scmp.ne.s32.totalorder %s125, %s126
      %p140 = scmp.eq.s32.totalorder %s15, 3
      %p141 = por %p139, %p140
      %p143 = scmp.ne.s32.totalorder %s126, %s142
      %p144 = scmp.eq.s32.totalorder %s15, 0
      %p145 = por %p143, %p144
      %p146 = scmp.le.s32.totalorder 1, %s9
      %p147 = scmp.lt.s32.totalorder %s9, 5
      %p148 = pnand %p146, %p147
      %p149 = pneg %p148
      // Predicated region
      $region9: #{_lambda_.24} parent=5 // pred_check
        _
      $region10: #{_lambda_.24} parent=5 // pred_check_branch
        %151 = sbr.rel (%p148) target = $region12
      $region11: #{_lambda_.24} parent=5 // pred_region
        %s152 = ssub.s32 %s9, 1
        // Predicated region
        $region13: #{_lambda_.24} parent=11 // pred_check
          %p153 = pneg %p56
        $region14: #{_lambda_.24} parent=11 // pred_check_branch
          %155 = sbr.rel (%p153) target = $region16
        $region15: #{_lambda_.24} parent=11 // pred_region
          %s156 = smul.u32 5, %s19
          %s157 = smul.u32 2, %s21
          %p158 = scmp.lt.s32.totalorder %s156, 4
          %s159 = scalar_select %p158, %s156, 4
          %p160 = scmp.lt.s32.totalorder %s157, 1
          %s161 = scalar_select %p160, %s157, 1
          %s162 = smul.addr %s159, 2
          %s163 = sadd.s32 %s161, %s162
          %s164 = smul.addr %s163, 4
          %s165 = scalar_lea.vmem %s0, %s164
          %s166 = smul.u32 5, %s19
          %s167 = smul.u32 2, %s21
        $region16: #{_lambda_.24} parent=11 // pred_fallthru
          _
      $region12: #{_lambda_.24} parent=5 // pred_fallthru
        _
      %p168 = scmp.lt.s32.totalorder %s9, 4
      // Predicated region
      $region17: #{_lambda_.24} parent=5 // pred_check
        %p169 = pneg %p168
      $region18: #{_lambda_.24} parent=5 // pred_check_branch
        %171 = sbr.rel (%p169) target = $region20
      $region19: #{_lambda_.24} parent=5 // pred_region
        // Predicated region
        $region21: #{_lambda_.24} parent=19 // pred_check
          %p172 = pneg %p78
        $region22: #{_lambda_.24} parent=19 // pred_check_branch
          %174 = sbr.rel (%p172) target = $region24
        $region23: #{_lambda_.24} parent=19 // pred_region
          %s175 = sand.u32 %s68, 1
          %s176 = sand.u32 %s68, 1
          %s177 = smul.addr %s176, 256
          %s178 = scalar_lea.vmem [#allocation3], %s177
          %s179 = smul.u32 32, %s18
          %s180 = smul.u32 2, %s17
          %s181 = smul.addr %s179, 8
          %s182 = sadd.s32 %s180, %s181
          %s183 = smul.addr %s182, 4
          %s184 = scalar_lea.vmem %s1, %s183
          // Predicated region
          $region25: #{_lambda_.24} parent=23 // pred_check
            _
          $region26: #{_lambda_.24} parent=23 // pred_check_branch
            %186 = sbr.rel (0) target = $region28
          $region27: #{_lambda_.24} parent=23 // pred_region
            // Predicated region
            $region29: #{_lambda_.24} parent=27 // pred_check
              _
            $region30: #{_lambda_.24} parent=27 // pred_check_branch
              %188 = sbr.rel (0) target = $region32
            $region31: #{_lambda_.24} parent=27 // pred_region
              // Predicated region
              $region44: #{_lambda_.24} parent=31 // pred_check
                _
              $region45: #{_lambda_.24} parent=31 // pred_check_branch
                %266 = sbr.rel (0) target = $region47
              $region46: #{_lambda_.24} parent=31 // pred_region
                loop: start=0, step=1, limit=1
                $region48: #{_lambda_.24} parent=46 // loop_pre_header
                  _
                $region49: #{_lambda_.24} parent=46 // loop_header
                  %s268 = sphi 0, %s272
                  %p269 = scmp.ge.s32.totalorder %s268, 1
                  %s273 = sphi %s184, %s184
                  %s274 = sphi %s178, %s178
                $region50: #{_lambda_.24} parent=46 // loop_header_branch
                  %271 = sbr.rel (%p269) target = $region54
                $region51: #{_lambda_.24} parent=46 // loop_body
                  %v275 = vld [vmem:[%s273] sm:$0xff]
                  %276 = vst [vmem:[%s274] sm:$0xff] %v275
                  %v277 = vld [vmem:[%s273 + $0x20] sm:$0xff]
                  %278 = vst [vmem:[%s274 + $0x8] sm:$0xff] %v277
                  %v279 = vld [vmem:[%s273 + $0x40] sm:$0xff]
                  %280 = vst [vmem:[%s274 + $0x10] sm:$0xff] %v279
                  %v281 = vld [vmem:[%s273 + $0x60] sm:$0xff]
                  %282 = vst [vmem:[%s274 + $0x18] sm:$0xff] %v281
                  %v283 = vld [vmem:[%s273 + $0x80] sm:$0xff]
                  %284 = vst [vmem:[%s274 + $0x20] sm:$0xff] %v283
                  %v285 = vld [vmem:[%s273 + $0xa0] sm:$0xff]
                  %286 = vst [vmem:[%s274 + $0x28] sm:$0xff] %v285
                  %v287 = vld [vmem:[%s273 + $0xc0] sm:$0xff]
                  %288 = vst [vmem:[%s274 + $0x30] sm:$0xff] %v287
                  %v289 = vld [vmem:[%s273 + $0xe0] sm:$0xff]
                  %290 = vst [vmem:[%s274 + $0x38] sm:$0xff] %v289
                  %v291 = vld [vmem:[%s273 + $0x100] sm:$0xff]
                  %292 = vst [vmem:[%s274 + $0x40] sm:$0xff] %v291
                  %v293 = vld [vmem:[%s273 + $0x120] sm:$0xff]
                  %294 = vst [vmem:[%s274 + $0x48] sm:$0xff] %v293
                  %v295 = vld [vmem:[%s273 + $0x140] sm:$0xff]
                  %296 = vst [vmem:[%s274 + $0x50] sm:$0xff] %v295
                  %v297 = vld [vmem:[%s273 + $0x160] sm:$0xff]
                  %298 = vst [vmem:[%s274 + $0x58] sm:$0xff] %v297
                  %v299 = vld [vmem:[%s273 + $0x180] sm:$0xff]
                  %300 = vst [vmem:[%s274 + $0x60] sm:$0xff] %v299
                  %v301 = vld [vmem:[%s273 + $0x1a0] sm:$0xff]
                  %302 = vst [vmem:[%s274 + $0x68] sm:$0xff] %v301
                  %v303 = vld [vmem:[%s273 + $0x1c0] sm:$0xff]
                  %304 = vst [vmem:[%s274 + $0x70] sm:$0xff] %v303
                  %v305 = vld [vmem:[%s273 + $0x1e0] sm:$0xff]
                  %306 = vst [vmem:[%s274 + $0x78] sm:$0xff] %v305
                  %v307 = vld [vmem:[%s273 + $0x200] sm:$0xff]
                  %308 = vst [vmem:[%s274 + $0x80] sm:$0xff] %v307
                  %v309 = vld [vmem:[%s273 + $0x220] sm:$0xff]
                  %310 = vst [vmem:[%s274 + $0x88] sm:$0xff] %v309
                  %v311 = vld [vmem:[%s273 + $0x240] sm:$0xff]
                  %312 = vst [vmem:[%s274 + $0x90] sm:$0xff] %v311
                  %v313 = vld [vmem:[%s273 + $0x260] sm:$0xff]
                  %314 = vst [vmem:[%s274 + $0x98] sm:$0xff] %v313
                  %v315 = vld [vmem:[%s273 + $0x280] sm:$0xff]
                  %316 = vst [vmem:[%s274 + $0xa0] sm:$0xff] %v315
                  %v317 = vld [vmem:[%s273 + $0x2a0] sm:$0xff]
                  %318 = vst [vmem:[%s274 + $0xa8] sm:$0xff] %v317
                  %v319 = vld [vmem:[%s273 + $0x2c0] sm:$0xff]
                  %320 = vst [vmem:[%s274 + $0xb0] sm:$0xff] %v319
                  %v321 = vld [vmem:[%s273 + $0x2e0] sm:$0xff]
                  %322 = vst [vmem:[%s274 + $0xb8] sm:$0xff] %v321
                  %v323 = vld [vmem:[%s273 + $0x300] sm:$0xff]
                  %324 = vst [vmem:[%s274 + $0xc0] sm:$0xff] %v323
                  %v325 = vld [vmem:[%s273 + $0x320] sm:$0xff]
                  %326 = vst [vmem:[%s274 + $0xc8] sm:$0xff] %v325
                  %v327 = vld [vmem:[%s273 + $0x340] sm:$0xff]
                  %328 = vst [vmem:[%s274 + $0xd0] sm:$0xff] %v327
                  %v329 = vld [vmem:[%s273 + $0x360] sm:$0xff]
                  %330 = vst [vmem:[%s274 + $0xd8] sm:$0xff] %v329
                  %v331 = vld [vmem:[%s273 + $0x380] sm:$0xff]
                  %332 = vst [vmem:[%s274 + $0xe0] sm:$0xff] %v331
                  %v333 = vld [vmem:[%s273 + $0x3a0] sm:$0xff]
                  %334 = vst [vmem:[%s274 + $0xe8] sm:$0xff] %v333
                  %v335 = vld [vmem:[%s273 + $0x3c0] sm:$0xff]
                  %336 = vst [vmem:[%s274 + $0xf0] sm:$0xff] %v335
                  %v337 = vld [vmem:[%s273 + $0x3e0] sm:$0xff]
                  %338 = vst [vmem:[%s274 + $0xf8] sm:$0xff] %v337
                $region52: #{_lambda_.24} parent=46 // loop_footer
                  %s272 = sadd.s32 1, %s268
                $region53: #{_lambda_.24} parent=46 // loop_footer_branch
                  %267 = sbr.rel target = $region49
                $region54: #{_lambda_.24} parent=46 // loop_exit
                  _
              $region47: #{_lambda_.24} parent=31 // pred_fallthru
                _
              // Predicated region
              $region55: #{_lambda_.24} parent=31 // pred_check
                _
              $region56: #{_lambda_.24} parent=31 // pred_check_branch
                %340 = sbr.rel target = $region58
              $region57: #{_lambda_.24} parent=31 // pred_region
                _
              $region58: #{_lambda_.24} parent=31 // pred_fallthru
                _
            $region32: #{_lambda_.24} parent=27 // pred_fallthru
              _
            // Predicated region
            $region33: #{_lambda_.24} parent=27 // pred_check
              _
            $region34: #{_lambda_.24} parent=27 // pred_check_branch
              %190 = sbr.rel target = $region36
            $region35: #{_lambda_.24} parent=27 // pred_region
              %s192 = ssub.s32 256, 1
              loop: start=0, step=1, limit=1
              $region37: #{_lambda_.24} parent=35 // loop_pre_header
                _
              $region38: #{_lambda_.24} parent=35 // loop_header
                %s194 = sphi 0, %s198
                %p195 = scmp.ge.s32.totalorder %s194, 1
                %s199 = sphi %s184, %s184
                %s200 = sphi %s178, %s178
              $region39: #{_lambda_.24} parent=35 // loop_header_branch
                %197 = sbr.rel (%p195) target = $region43
              $region40: #{_lambda_.24} parent=35 // loop_body
                %v201 = vld [vmem:[%s199] sm:%s192]
                %202 = vst [vmem:[%s200] sm:%s192] %v201
                %v203 = vld [vmem:[%s199 + $0x20] sm:%s192]
                %204 = vst [vmem:[%s200 + $0x8] sm:%s192] %v203
                %v205 = vld [vmem:[%s199 + $0x40] sm:%s192]
                %206 = vst [vmem:[%s200 + $0x10] sm:%s192] %v205
                %v207 = vld [vmem:[%s199 + $0x60] sm:%s192]
                %208 = vst [vmem:[%s200 + $0x18] sm:%s192] %v207
                %v209 = vld [vmem:[%s199 + $0x80] sm:%s192]
                %210 = vst [vmem:[%s200 + $0x20] sm:%s192] %v209
                %v211 = vld [vmem:[%s199 + $0xa0] sm:%s192]
                %212 = vst [vmem:[%s200 + $0x28] sm:%s192] %v211
                %v213 = vld [vmem:[%s199 + $0xc0] sm:%s192]
                %214 = vst [vmem:[%s200 + $0x30] sm:%s192] %v213
                %v215 = vld [vmem:[%s199 + $0xe0] sm:%s192]
                %216 = vst [vmem:[%s200 + $0x38] sm:%s192] %v215
                %v217 = vld [vmem:[%s199 + $0x100] sm:%s192]
                %218 = vst [vmem:[%s200 + $0x40] sm:%s192] %v217
                %v219 = vld [vmem:[%s199 + $0x120] sm:%s192]
                %220 = vst [vmem:[%s200 + $0x48] sm:%s192] %v219
                %v221 = vld [vmem:[%s199 + $0x140] sm:%s192]
                %222 = vst [vmem:[%s200 + $0x50] sm:%s192] %v221
                %v223 = vld [vmem:[%s199 + $0x160] sm:%s192]
                %224 = vst [vmem:[%s200 + $0x58] sm:%s192] %v223
                %v225 = vld [vmem:[%s199 + $0x180] sm:%s192]
                %226 = vst [vmem:[%s200 + $0x60] sm:%s192] %v225
                %v227 = vld [vmem:[%s199 + $0x1a0] sm:%s192]
                %228 = vst [vmem:[%s200 + $0x68] sm:%s192] %v227
                %v229 = vld [vmem:[%s199 + $0x1c0] sm:%s192]
                %230 = vst [vmem:[%s200 + $0x70] sm:%s192] %v229
                %v231 = vld [vmem:[%s199 + $0x1e0] sm:%s192]
                %232 = vst [vmem:[%s200 + $0x78] sm:%s192] %v231
                %v233 = vld [vmem:[%s199 + $0x200] sm:%s192]
                %234 = vst [vmem:[%s200 + $0x80] sm:%s192] %v233
                %v235 = vld [vmem:[%s199 + $0x220] sm:%s192]
                %236 = vst [vmem:[%s200 + $0x88] sm:%s192] %v235
                %v237 = vld [vmem:[%s199 + $0x240] sm:%s192]
                %238 = vst [vmem:[%s200 + $0x90] sm:%s192] %v237
                %v239 = vld [vmem:[%s199 + $0x260] sm:%s192]
                %240 = vst [vmem:[%s200 + $0x98] sm:%s192] %v239
                %v241 = vld [vmem:[%s199 + $0x280] sm:%s192]
                %242 = vst [vmem:[%s200 + $0xa0] sm:%s192] %v241
                %v243 = vld [vmem:[%s199 + $0x2a0] sm:%s192]
                %244 = vst [vmem:[%s200 + $0xa8] sm:%s192] %v243
                %v245 = vld [vmem:[%s199 + $0x2c0] sm:%s192]
                %246 = vst [vmem:[%s200 + $0xb0] sm:%s192] %v245
                %v247 = vld [vmem:[%s199 + $0x2e0] sm:%s192]
                %248 = vst [vmem:[%s200 + $0xb8] sm:%s192] %v247
                %v249 = vld [vmem:[%s199 + $0x300] sm:%s192]
                %250 = vst [vmem:[%s200 + $0xc0] sm:%s192] %v249
                %v251 = vld [vmem:[%s199 + $0x320] sm:%s192]
                %252 = vst [vmem:[%s200 + $0xc8] sm:%s192] %v251
                %v253 = vld [vmem:[%s199 + $0x340] sm:%s192]
                %254 = vst [vmem:[%s200 + $0xd0] sm:%s192] %v253
                %v255 = vld [vmem:[%s199 + $0x360] sm:%s192]
                %256 = vst [vmem:[%s200 + $0xd8] sm:%s192] %v255
                %v257 = vld [vmem:[%s199 + $0x380] sm:%s192]
                %258 = vst [vmem:[%s200 + $0xe0] sm:%s192] %v257
                %v259 = vld [vmem:[%s199 + $0x3a0] sm:%s192]
                %260 = vst [vmem:[%s200 + $0xe8] sm:%s192] %v259
                %v261 = vld [vmem:[%s199 + $0x3c0] sm:%s192]
                %262 = vst [vmem:[%s200 + $0xf0] sm:%s192] %v261
                %v263 = vld [vmem:[%s199 + $0x3e0] sm:%s192]
                %264 = vst [vmem:[%s200 + $0xf8] sm:%s192] %v263
              $region41: #{_lambda_.24} parent=35 // loop_footer
                %s198 = sadd.s32 1, %s194
              $region42: #{_lambda_.24} parent=35 // loop_footer_branch
                %193 = sbr.rel target = $region38
              $region43: #{_lambda_.24} parent=35 // loop_exit
                _
            $region36: #{_lambda_.24} parent=27 // pred_fallthru
              _
          $region28: #{_lambda_.24} parent=23 // pred_fallthru
            _
          %341 = vnop
        $region24: #{_lambda_.24} parent=19 // pred_fallthru
          _
        // Predicated region
        $region59: #{_lambda_.24} parent=19 // pred_check
          %p342 = pneg %p104
        $region60: #{_lambda_.24} parent=19 // pred_check_branch
          %344 = sbr.rel (%p342) target = $region62
        $region61: #{_lambda_.24} parent=19 // pred_region
          %s345 = smul.u32 2, %s17
          %p346 = scmp.lt.s32.totalorder %s345, 7
          %s347 = scalar_select %p346, %s345, 7
          %s348 = scalar_lea.vmem %s2, %s347
          %s349 = smul.u32 2, %s17
        $region62: #{_lambda_.24} parent=19 // pred_fallthru
          _
      $region20: #{_lambda_.24} parent=5 // pred_fallthru
        _
      %p350 = scmp.le.s32.totalorder 1, %s9
      %p351 = scmp.lt.s32.totalorder %s9, 5
      %p352 = pnand %p350, %p351
      %p353 = pneg %p352
      // Predicated region
      $region63: #{_lambda_.24} parent=5 // pred_check
        _
      $region64: #{_lambda_.24} parent=5 // pred_check_branch
        %355 = sbr.rel (%p352) target = $region66
      $region65: #{_lambda_.24} parent=5 // pred_region
        %s356 = ssub.s32 %s9, 1
        %s357 = sand.u32 %s71, 1
        %s358 = sand.u32 %s71, 1
        %s359 = smul.addr %s358, 256
        %s360 = scalar_lea.vmem [#allocation3], %s359
        // Predicated region
        $region67: #{_lambda_.24} parent=65 // pred_check
          %p361 = pneg %p84
        $region68: #{_lambda_.24} parent=65 // pred_check_branch
          %363 = sbr.rel (%p361) target = $region70
        $region69: #{_lambda_.24} parent=65 // pred_region
          _
        $region70: #{_lambda_.24} parent=65 // pred_fallthru
          _
        %s364 = smul.u32 5, %s19
        %s365 = smul.u32 2, %s21
        %p366 = scmp.lt.s32.totalorder %s364, 4
        %s367 = scalar_select %p366, %s364, 4
        %p368 = scmp.lt.s32.totalorder %s365, 1
        %s369 = scalar_select %p368, %s365, 1
        %s370 = smul.addr %s367, 2
        %s371 = sadd.s32 %s369, %s370
        %s372 = smul.addr %s371, 4
        %s373 = scalar_lea.vmem %s0, %s372
        %p374 = pneg %p56
        %p375 = pneg %p53
        %s376 = sand.u32 %s71, 1
        %s377 = sand.u32 %s71, 1
        %s378 = smul.addr %s377, 256
        %s379 = scalar_lea.vmem [#allocation3], %s378
        %p380 = pneg %p84
        %p381 = pneg %p81
        %s382 = smul.u32 2, %s20
        %p383 = scmp.lt.s32.totalorder %s382, 7
        %s384 = scalar_select %p383, %s382, 7
        %s385 = scalar_lea.vmem %s2, %s384
        %p386 = pneg %p110
        %p387 = pneg %p107
        %p388 = pneg %p138
        %p389 = pneg %p135
        %s390 = sand.u32 %s125, 1
        %s391 = sand.u32 %s125, 1
        %s392 = smul.addr %s391, 40
        %s393 = scalar_lea.vmem [#allocation4], %s392
        %s394 = smul.u32 5, %s19
        %s395 = smul.u32 2, %s21
        %p396 = scmp.lt.s32.totalorder %s394, 4
        %s397 = scalar_select %p396, %s394, 4
        %p398 = scmp.lt.s32.totalorder %s395, 1
        %s399 = scalar_select %p398, %s395, 1
        %s400 = smul.addr %s397, 2
        %s401 = sadd.s32 %s399, %s400
        %s402 = smul.addr %s401, 4
        %s403 = scalar_lea.vmem %s0, %s402
        %s404 = smul.u32 5, %s19
        %s405 = smul.u32 2, %s21
        %s406 = smul.u32 32, %s21
        %s407 = smul.u32 2, %s20
        %s408 = smul.u32 2, %s20
        %p409 = scmp.lt.s32.totalorder %s408, 7
        %s410 = scalar_select %p409, %s408, 7
        %s411 = scalar_lea.vmem %s2, %s410
        %s412 = smul.u32 2, %s20
        %s413 = smul.u32 5, %s19
        %s414 = smul.u32 2, %s20
        %p415 = scmp.eq.s32.totalorder %s21, 0
        // Predicated region
        $region71: #{_lambda_.24} parent=65 // pred_check
          %p416 = pneg %p415
        $region72: #{_lambda_.24} parent=65 // pred_check_branch
          %418 = sbr.rel (%p416) target = $region74
        $region73: #{_lambda_.24} parent=65 // pred_region
          %419 = vst [vmem:[#allocation2] sm:$0xff] 0.0
          %420 = vst [vmem:[#allocation2 + $0x8] sm:$0xff] 0.0
          %421 = vst [vmem:[#allocation2 + $0x10] sm:$0xff] 0.0
          %422 = vst [vmem:[#allocation2 + $0x18] sm:$0xff] 0.0
          %423 = vst [vmem:[#allocation2 + $0x20] sm:$0xff] 0.0
          %424 = vst [vmem:[#allocation2 + $0x28] sm:$0xff] 0.0
          %425 = vst [vmem:[#allocation2 + $0x30] sm:$0xff] 0.0
          %426 = vst [vmem:[#allocation2 + $0x38] sm:$0xff] 0.0
          %427 = vst [vmem:[#allocation2 + $0x40] sm:$0x3] 0.0
          %428 = vst [vmem:[#allocation2 + $0x48] sm:$0x3] 0.0
        $region74: #{_lambda_.24} parent=65 // pred_fallthru
          _
        %v429 = vld [vmem:[#allocation2] sm:$0xff]
        %v430 = vld [vmem:[#allocation2 + $0x8] sm:$0xff]
        %v431 = vld [vmem:[#allocation2 + $0x10] sm:$0xff]
        %v432 = vld [vmem:[#allocation2 + $0x18] sm:$0xff]
        %v433 = vld [vmem:[#allocation2 + $0x20] sm:$0xff]
        %v434 = vld [vmem:[#allocation2 + $0x28] sm:$0xff]
        %v435 = vld [vmem:[#allocation2 + $0x30] sm:$0xff]
        %v436 = vld [vmem:[#allocation2 + $0x38] sm:$0xff]
        %v437 = vld [vmem:[#allocation2 + $0x40] sm:$0x3]
        %v438 = vld [vmem:[#allocation2 + $0x48] sm:$0x3]
        %v439 = vld [vmem:[%s403] sm:$0xff]
        %v440 = vld [vmem:[%s403 + $0x8] sm:$0xff]
        %v441 = vld [vmem:[%s403 + $0x10] sm:$0xff]
        %v442 = vld [vmem:[%s403 + $0x18] sm:$0xff]
        %v443 = vld [vmem:[%s403 + $0x20] sm:$0x11]
        %v444 = vld [vmem:[%s360] sm:$0xff]
        %v445 = vld [vmem:[%s360 + $0x8] sm:$0xff]
        %v446 = vld [vmem:[%s360 + $0x10] sm:$0xff]
        %v447 = vld [vmem:[%s360 + $0x18] sm:$0xff]
        %v448 = vld [vmem:[%s360 + $0x20] sm:$0xff]
        %v449 = vld [vmem:[%s360 + $0x28] sm:$0xff]
        %v450 = vld [vmem:[%s360 + $0x30] sm:$0xff]
        %v451 = vld [vmem:[%s360 + $0x38] sm:$0xff]
        %v452 = vld [vmem:[%s360 + $0x40] sm:$0xff]
        %v453 = vld [vmem:[%s360 + $0x48] sm:$0xff]
        %v454 = vld [vmem:[%s360 + $0x50] sm:$0xff]
        %v455 = vld [vmem:[%s360 + $0x58] sm:$0xff]
        %v456 = vld [vmem:[%s360 + $0x60] sm:$0xff]
        %v457 = vld [vmem:[%s360 + $0x68] sm:$0xff]
        %v458 = vld [vmem:[%s360 + $0x70] sm:$0xff]
        %v459 = vld [vmem:[%s360 + $0x78] sm:$0xff]
        %v460 = vld [vmem:[%s360 + $0x80] sm:$0xff]
        %v461 = vld [vmem:[%s360 + $0x88] sm:$0xff]
        %v462 = vld [vmem:[%s360 + $0x90] sm:$0xff]
        %v463 = vld [vmem:[%s360 + $0x98] sm:$0xff]
        %v464 = vld [vmem:[%s360 + $0xa0] sm:$0xff]
        %v465 = vld [vmem:[%s360 + $0xa8] sm:$0xff]
        %v466 = vld [vmem:[%s360 + $0xb0] sm:$0xff]
        %v467 = vld [vmem:[%s360 + $0xb8] sm:$0xff]
        %v468 = vld [vmem:[%s360 + $0xc0] sm:$0xff]
        %v469 = vld [vmem:[%s360 + $0xc8] sm:$0xff]
        %v470 = vld [vmem:[%s360 + $0xd0] sm:$0xff]
        %v471 = vld [vmem:[%s360 + $0xd8] sm:$0xff]
        %v472 = vld [vmem:[%s360 + $0xe0] sm:$0xff]
        %v473 = vld [vmem:[%s360 + $0xe8] sm:$0xff]
        %v474 = vld [vmem:[%s360 + $0xf0] sm:$0xff]
        %v475 = vld [vmem:[%s360 + $0xf8] sm:$0xff]
        %v481 = vunpack.c.l.b16 %v439
        %v482 = vunpack.c.h.b16 %v439
        %v483 = vunpack.c.l.b16 %v440
        %v484 = vunpack.c.h.b16 %v440
        %v485 = vunpack.c.l.b16 %v441
        %v486 = vunpack.c.h.b16 %v441
        %v487 = vunpack.c.l.b16 %v442
        %v488 = vunpack.c.h.b16 %v442
        %v489 = vunpack.c.l.b16 %v443
        %v490 = vunpack.c.h.b16 %v443
        %v491 = vpack.c.b16 %v483, %v481
        %v492 = vpack.c.b16 %v484, %v482
        %v493 = vpack.c.b16 %v487, %v485
        %v494 = vpack.c.b16 %v488, %v486
        %v495 = vpack.c.b16 %v489, %v489
        %v496 = vpack.c.b16 %v490, %v490
        %v535 = vunpack.c.l.b16 %v444
        %v536 = vunpack.c.h.b16 %v444
        %v537 = vunpack.c.l.b16 %v445
        %v538 = vunpack.c.h.b16 %v445
        %v539 = vunpack.c.l.b16 %v446
        %v540 = vunpack.c.h.b16 %v446
        %v541 = vunpack.c.l.b16 %v447
        %v542 = vunpack.c.h.b16 %v447
        %v543 = vunpack.c.l.b16 %v448
        %v544 = vunpack.c.h.b16 %v448
        %v545 = vunpack.c.l.b16 %v449
        %v546 = vunpack.c.h.b16 %v449
        %v547 = vunpack.c.l.b16 %v450
        %v548 = vunpack.c.h.b16 %v450
        %v549 = vunpack.c.l.b16 %v451
        %v550 = vunpack.c.h.b16 %v451
        %v551 = vunpack.c.l.b16 %v452
        %v552 = vunpack.c.h.b16 %v452
        %v553 = vunpack.c.l.b16 %v453
        %v554 = vunpack.c.h.b16 %v453
        %v555 = vunpack.c.l.b16 %v454
        %v556 = vunpack.c.h.b16 %v454
        %v557 = vunpack.c.l.b16 %v455
        %v558 = vunpack.c.h.b16 %v455
        %v559 = vunpack.c.l.b16 %v456
        %v560 = vunpack.c.h.b16 %v456
        %v561 = vunpack.c.l.b16 %v457
        %v562 = vunpack.c.h.b16 %v457
        %v563 = vunpack.c.l.b16 %v458
        %v564 = vunpack.c.h.b16 %v458
        %v565 = vunpack.c.l.b16 %v459
        %v566 = vunpack.c.h.b16 %v459
        %v567 = vunpack.c.l.b16 %v460
        %v568 = vunpack.c.h.b16 %v460
        %v569 = vunpack.c.l.b16 %v461
        %v570 = vunpack.c.h.b16 %v461
        %v571 = vunpack.c.l.b16 %v462
        %v572 = vunpack.c.h.b16 %v462
        %v573 = vunpack.c.l.b16 %v463
        %v574 = vunpack.c.h.b16 %v463
        %v575 = vunpack.c.l.b16 %v464
        %v576 = vunpack.c.h.b16 %v464
        %v577 = vunpack.c.l.b16 %v465
        %v578 = vunpack.c.h.b16 %v465
        %v579 = vunpack.c.l.b16 %v466
        %v580 = vunpack.c.h.b16 %v466
        %v581 = vunpack.c.l.b16 %v467
        %v582 = vunpack.c.h.b16 %v467
        %v583 = vunpack.c.l.b16 %v468
        %v584 = vunpack.c.h.b16 %v468
        %v585 = vunpack.c.l.b16 %v469
        %v586 = vunpack.c.h.b16 %v469
        %v587 = vunpack.c.l.b16 %v470
        %v588 = vunpack.c.h.b16 %v470
        %v589 = vunpack.c.l.b16 %v471
        %v590 = vunpack.c.h.b16 %v471
        %v591 = vunpack.c.l.b16 %v472
        %v592 = vunpack.c.h.b16 %v472
        %v593 = vunpack.c.l.b16 %v473
        %v594 = vunpack.c.h.b16 %v473
        %v595 = vunpack.c.l.b16 %v474
        %v596 = vunpack.c.h.b16 %v474
        %v597 = vunpack.c.l.b16 %v475
        %v598 = vunpack.c.h.b16 %v475
        %v599 = vpack.c.b16 %v537, %v535
        %v600 = vpack.c.b16 %v538, %v536
        %v601 = vpack.c.b16 %v541, %v539
        %v602 = vpack.c.b16 %v542, %v540
        %v603 = vpack.c.b16 %v545, %v543
        %v604 = vpack.c.b16 %v546, %v544
        %v605 = vpack.c.b16 %v549, %v547
        %v606 = vpack.c.b16 %v550, %v548
        %v607 = vpack.c.b16 %v553, %v551
        %v608 = vpack.c.b16 %v554, %v552
        %v609 = vpack.c.b16 %v557, %v555
        %v610 = vpack.c.b16 %v558, %v556
        %v611 = vpack.c.b16 %v561, %v559
        %v612 = vpack.c.b16 %v562, %v560
        %v613 = vpack.c.b16 %v565, %v563
        %v614 = vpack.c.b16 %v566, %v564
        %v615 = vpack.c.b16 %v569, %v567
        %v616 = vpack.c.b16 %v570, %v568
        %v617 = vpack.c.b16 %v573, %v571
        %v618 = vpack.c.b16 %v574, %v572
        %v619 = vpack.c.b16 %v577, %v575
        %v620 = vpack.c.b16 %v578, %v576
        %v621 = vpack.c.b16 %v581, %v579
        %v622 = vpack.c.b16 %v582, %v580
        %v623 = vpack.c.b16 %v585, %v583
        %v624 = vpack.c.b16 %v586, %v584
        %v625 = vpack.c.b16 %v589, %v587
        %v626 = vpack.c.b16 %v590, %v588
        %v627 = vpack.c.b16 %v593, %v591
        %v628 = vpack.c.b16 %v594, %v592
        %v629 = vpack.c.b16 %v597, %v595
        %v630 = vpack.c.b16 %v598, %v596
        %663 = vmatpush.bf16.msra.mxu0 %v613
        %664 = vmatpush.bf16.msra.mxu0 %v611
        %665 = vmatpush.bf16.msra.mxu0 %v609
        %666 = vmatpush.bf16.msra.mxu0 %v607
        %667 = vmatpush.bf16.msra.mxu0 %v605
        %668 = vmatpush.bf16.msra.mxu0 %v603
        %669 = vmatpush.bf16.msra.mxu0 %v601
        %670 = vmatpush.bf16.msra.mxu0 %v599
        %671 = vmatmul.bf16.gmra.mxu0 %v491
        %v672 = vpop.f32.mrf.mxu0
        %v673 = vadd.f32 0.0, %v672
        %v674 = vpop.f32.mrf.mxu0
        %v675 = vadd.f32 0.0, %v674
        %676 = vmatmul.bf16.gmra.mxu0 %v493
        %v677 = vpop.f32.mrf.mxu0
        %v678 = vadd.f32 0.0, %v677
        %v679 = vpop.f32.mrf.mxu0
        %v680 = vadd.f32 0.0, %v679
        %681 = vmatmul.bf16.gmra.mxu0 %v495
        %v682 = vpop.f32.mrf.mxu0
        %v683 = vadd.f32 0.0, %v682
        %v684 = vpop.f32.mrf.mxu0
        %685 = vdwg.mxu0
        %686 = vmatpush.bf16.msra.mxu0 %v629
        %687 = vmatpush.bf16.msra.mxu0 %v627
        %688 = vmatpush.bf16.msra.mxu0 %v625
        %689 = vmatpush.bf16.msra.mxu0 %v623
        %690 = vmatpush.bf16.msra.mxu0 %v621
        %691 = vmatpush.bf16.msra.mxu0 %v619
        %692 = vmatpush.bf16.msra.mxu0 %v617
        %693 = vmatpush.bf16.msra.mxu0 %v615
        %694 = vmatmul.bf16.gmra.mxu0 %v492
        %v695 = vpop.f32.mrf.mxu0
        %v696 = vadd.f32 %v673, %v695
        %v697 = vpop.f32.mrf.mxu0
        %v698 = vadd.f32 %v675, %v697
        %699 = vmatmul.bf16.gmra.mxu0 %v494
        %v700 = vpop.f32.mrf.mxu0
        %v701 = vadd.f32 %v678, %v700
        %v702 = vpop.f32.mrf.mxu0
        %v703 = vadd.f32 %v680, %v702
        %704 = vmatmul.bf16.gmra.mxu0 %v496
        %v705 = vpop.f32.mrf.mxu0
        %v706 = vadd.f32 %v683, %v705
        %v707 = vpop.f32.mrf.mxu0
        %708 = vdwg.mxu0
        %709 = vmatpush.bf16.msra.mxu0 %v614
        %710 = vmatpush.bf16.msra.mxu0 %v612
        %711 = vmatpush.bf16.msra.mxu0 %v610
        %712 = vmatpush.bf16.msra.mxu0 %v608
        %713 = vmatpush.bf16.msra.mxu0 %v606
        %714 = vmatpush.bf16.msra.mxu0 %v604
        %715 = vmatpush.bf16.msra.mxu0 %v602
        %716 = vmatpush.bf16.msra.mxu0 %v600
        %717 = vmatmul.bf16.gmra.mxu0 %v491
        %v718 = vpop.f32.mrf.mxu0
        %v719 = vadd.f32 0.0, %v718
        %v720 = vpop.f32.mrf.mxu0
        %v721 = vadd.f32 0.0, %v720
        %722 = vmatmul.bf16.gmra.mxu0 %v493
        %v723 = vpop.f32.mrf.mxu0
        %v724 = vadd.f32 0.0, %v723
        %v725 = vpop.f32.mrf.mxu0
        %v726 = vadd.f32 0.0, %v725
        %727 = vmatmul.bf16.gmra.mxu0 %v495
        %v728 = vpop.f32.mrf.mxu0
        %v729 = vadd.f32 0.0, %v728
        %v730 = vpop.f32.mrf.mxu0
        %731 = vdwg.mxu0
        %732 = vmatpush.bf16.msra.mxu0 %v630
        %733 = vmatpush.bf16.msra.mxu0 %v628
        %734 = vmatpush.bf16.msra.mxu0 %v626
        %735 = vmatpush.bf16.msra.mxu0 %v624
        %736 = vmatpush.bf16.msra.mxu0 %v622
        %737 = vmatpush.bf16.msra.mxu0 %v620
        %738 = vmatpush.bf16.msra.mxu0 %v618
        %739 = vmatpush.bf16.msra.mxu0 %v616
        %740 = vmatmul.bf16.gmra.mxu0 %v492
        %v741 = vpop.f32.mrf.mxu0
        %v742 = vadd.f32 %v719, %v741
        %v743 = vpop.f32.mrf.mxu0
        %v744 = vadd.f32 %v721, %v743
        %745 = vmatmul.bf16.gmra.mxu0 %v494
        %v746 = vpop.f32.mrf.mxu0
        %v747 = vadd.f32 %v724, %v746
        %v748 = vpop.f32.mrf.mxu0
        %v749 = vadd.f32 %v726, %v748
        %750 = vmatmul.bf16.gmra.mxu0 %v496
        %v751 = vpop.f32.mrf.mxu0
        %v752 = vadd.f32 %v729, %v751
        %v753 = vpop.f32.mrf.mxu0
        %754 = vdwg.mxu0
        %v755 = vadd.f32 %v429, %v696
        %v756 = vadd.f32 %v430, %v742
        %v757 = vadd.f32 %v431, %v698
        %v758 = vadd.f32 %v432, %v744
        %v759 = vadd.f32 %v433, %v701
        %v760 = vadd.f32 %v434, %v747
        %v761 = vadd.f32 %v435, %v703
        %v762 = vadd.f32 %v436, %v749
        %v763 = vadd.f32 %v437, %v706
        %v764 = vadd.f32 %v438, %v752
        %765 = vst [vmem:[#allocation2] sm:$0xff] %v755
        %766 = vst [vmem:[#allocation2 + $0x8] sm:$0xff] %v756
        %767 = vst [vmem:[#allocation2 + $0x10] sm:$0xff] %v757
        %768 = vst [vmem:[#allocation2 + $0x18] sm:$0xff] %v758
        %769 = vst [vmem:[#allocation2 + $0x20] sm:$0xff] %v759
        %770 = vst [vmem:[#allocation2 + $0x28] sm:$0xff] %v760
        %771 = vst [vmem:[#allocation2 + $0x30] sm:$0xff] %v761
        %772 = vst [vmem:[#allocation2 + $0x38] sm:$0xff] %v762
        %773 = vst [vmem:[#allocation2 + $0x40] sm:$0x3] %v763
        %774 = vst [vmem:[#allocation2 + $0x48] sm:$0x3] %v764
        // Predicated region
        $region75: #{_lambda_.24} parent=65 // pred_check
          %p775 = pneg %p415
        $region76: #{_lambda_.24} parent=65 // pred_check_branch
          %777 = sbr.rel (%p775) target = $region78
        $region77: #{_lambda_.24} parent=65 // pred_region
          %v778 = vld [vmem:[#allocation2] sm:$0xff]
          %v779 = vld [vmem:[#allocation2 + $0x8] sm:$0xff]
          %v780 = vld [vmem:[#allocation2 + $0x10] sm:$0xff]
          %v781 = vld [vmem:[#allocation2 + $0x18] sm:$0xff]
          %v782 = vld [vmem:[#allocation2 + $0x20] sm:$0xff]
          %v783 = vld [vmem:[#allocation2 + $0x28] sm:$0xff]
          %v784 = vld [vmem:[#allocation2 + $0x30] sm:$0xff]
          %v785 = vld [vmem:[#allocation2 + $0x38] sm:$0xff]
          %v786 = vld [vmem:[#allocation2 + $0x40] sm:$0x3]
          %v787 = vld [vmem:[#allocation2 + $0x48] sm:$0x3]
          %v788 = vld [vmem:[%s411] sm:$0x3]
          %v790 = vperm.slane %v788, 0
          %v791 = vperm.slane %v788, 1
          %v794 = vadd.f32 %v778, %v790
          %v795 = vadd.f32 %v779, %v791
          %v796 = vadd.f32 %v780, %v790
          %v797 = vadd.f32 %v781, %v791
          %v798 = vadd.f32 %v782, %v790
          %v799 = vadd.f32 %v783, %v791
          %v800 = vadd.f32 %v784, %v790
          %v801 = vadd.f32 %v785, %v791
          %v802 = vadd.f32 %v786, %v790
          %v803 = vadd.f32 %v787, %v791
          %v804 = vmul.f32 %v794, 0.5
          %v805 = vmul.f32 %v795, 0.5
          %v806 = vmul.f32 %v796, 0.5
          %v807 = vmul.f32 %v797, 0.5
          %v808 = vmul.f32 %v798, 0.5
          %v809 = vmul.f32 %v799, 0.5
          %v810 = vmul.f32 %v800, 0.5
          %v811 = vmul.f32 %v801, 0.5
          %v812 = vmul.f32 %v802, 0.5
          %v813 = vmul.f32 %v803, 0.5
          %v814 = vmul.f32 %v794, 0.044715
          %v815 = vmul.f32 %v795, 0.044715
          %v816 = vmul.f32 %v796, 0.044715
          %v817 = vmul.f32 %v797, 0.044715
          %v818 = vmul.f32 %v798, 0.044715
          %v819 = vmul.f32 %v799, 0.044715
          %v820 = vmul.f32 %v800, 0.044715
          %v821 = vmul.f32 %v801, 0.044715
          %v822 = vmul.f32 %v802, 0.044715
          %v823 = vmul.f32 %v803, 0.044715
          %v824 = vmul.f32 %v814, %v794
          %v825 = vmul.f32 %v815, %v795
          %v826 = vmul.f32 %v816, %v796
          %v827 = vmul.f32 %v817, %v797
          %v828 = vmul.f32 %v818, %v798
          %v829 = vmul.f32 %v819, %v799
          %v830 = vmul.f32 %v820, %v800
          %v831 = vmul.f32 %v821, %v801
          %v832 = vmul.f32 %v822, %v802
          %v833 = vmul.f32 %v823, %v803
          %v834 = vmul.f32 %v824, %v794
          %v835 = vmul.f32 %v825, %v795
          %v836 = vmul.f32 %v826, %v796
          %v837 = vmul.f32 %v827, %v797
          %v838 = vmul.f32 %v828, %v798
          %v839 = vmul.f32 %v829, %v799
          %v840 = vmul.f32 %v830, %v800
          %v841 = vmul.f32 %v831, %v801
          %v842 = vmul.f32 %v832, %v802
          %v843 = vmul.f32 %v833, %v803
          %v844 = vadd.f32 %v794, %v834
          %v845 = vadd.f32 %v795, %v835
          %v846 = vadd.f32 %v796, %v836
          %v847 = vadd.f32 %v797, %v837
          %v848 = vadd.f32 %v798, %v838
          %v849 = vadd.f32 %v799, %v839
          %v850 = vadd.f32 %v800, %v840
          %v851 = vadd.f32 %v801, %v841
          %v852 = vadd.f32 %v802, %v842
          %v853 = vadd.f32 %v803, %v843
          %v854 = vmul.f32 %v844, 0.7978846
          %v855 = vmul.f32 %v845, 0.7978846
          %v856 = vmul.f32 %v846, 0.7978846
          %v857 = vmul.f32 %v847, 0.7978846
          %v858 = vmul.f32 %v848, 0.7978846
          %v859 = vmul.f32 %v849, 0.7978846
          %v860 = vmul.f32 %v850, 0.7978846
          %v861 = vmul.f32 %v851, 0.7978846
          %v862 = vmul.f32 %v852, 0.7978846
          %v863 = vmul.f32 %v853, 0.7978846
          %v864 = vtanh.pop %v854
          %v865 = vtanh.pop %v855
          %v866 = vtanh.pop %v856
          %v867 = vtanh.pop %v857
          %v868 = vtanh.pop %v858
          %v869 = vtanh.pop %v859
          %v870 = vtanh.pop %v860
          %v871 = vtanh.pop %v861
          %v872 = vtanh.pop %v862
          %v873 = vtanh.pop %v863
          %v874 = vadd.f32 %v864, 1.0
          %v875 = vadd.f32 %v865, 1.0
          %v876 = vadd.f32 %v866, 1.0
          %v877 = vadd.f32 %v867, 1.0
          %v878 = vadd.f32 %v868, 1.0
          %v879 = vadd.f32 %v869, 1.0
          %v880 = vadd.f32 %v870, 1.0
          %v881 = vadd.f32 %v871, 1.0
          %v882 = vadd.f32 %v872, 1.0
          %v883 = vadd.f32 %v873, 1.0
          %v884 = vmul.f32 %v804, %v874
          %v885 = vmul.f32 %v805, %v875
          %v886 = vmul.f32 %v806, %v876
          %v887 = vmul.f32 %v807, %v877
          %v888 = vmul.f32 %v808, %v878
          %v889 = vmul.f32 %v809, %v879
          %v890 = vmul.f32 %v810, %v880
          %v891 = vmul.f32 %v811, %v881
          %v892 = vmul.f32 %v812, %v882
          %v893 = vmul.f32 %v813, %v883
          %v894 = vpack.c.bf16 %v885, %v884
          %v895 = vpack.c.bf16 %v887, %v886
          %v896 = vpack.c.bf16 %v889, %v888
          %v897 = vpack.c.bf16 %v891, %v890
          %v898 = vpack.c.bf16 %v893, %v892
          %899 = vst [vmem:[%s393] sm:$0xff] %v894
          %900 = vst [vmem:[%s393 + $0x8] sm:$0xff] %v895
          %901 = vst [vmem:[%s393 + $0x10] sm:$0xff] %v896
          %902 = vst [vmem:[%s393 + $0x18] sm:$0xff] %v897
          %903 = vst [vmem:[%s393 + $0x20] sm:$0x11] %v898
        $region78: #{_lambda_.24} parent=65 // pred_fallthru
          _
        %s904 = sand.u32 %s125, 1
        %s905 = sand.u32 %s125, 1
        %s906 = smul.addr %s905, 40
        %s907 = scalar_lea.vmem [#allocation4], %s906
        // Predicated region
        $region79: #{_lambda_.24} parent=65 // pred_check
          %p908 = pneg %p135
        $region80: #{_lambda_.24} parent=65 // pred_check_branch
          %910 = sbr.rel (%p908) target = $region82
        $region81: #{_lambda_.24} parent=65 // pred_region
          %s911 = smul.u32 5, %s19
          %s912 = smul.u32 2, %s20
          %s913 = smul.addr %s911, 8
          %s914 = sadd.s32 %s912, %s913
          %s915 = smul.addr %s914, 4
          %s916 = scalar_lea.vmem %s3, %s915
          // Predicated region
          $region83: #{_lambda_.24} parent=81 // pred_check
            _
          $region84: #{_lambda_.24} parent=81 // pred_check_branch
            %918 = sbr.rel (0) target = $region86
          $region85: #{_lambda_.24} parent=81 // pred_region
            // Predicated region
            $region87: #{_lambda_.24} parent=85 // pred_check
              _
            $region88: #{_lambda_.24} parent=85 // pred_check_branch
              %920 = sbr.rel (0) target = $region90
            $region89: #{_lambda_.24} parent=85 // pred_region
              // Predicated region
              $region102: #{_lambda_.24} parent=89 // pred_check
                _
              $region103: #{_lambda_.24} parent=89 // pred_check_branch
                %944 = sbr.rel (0) target = $region105
              $region104: #{_lambda_.24} parent=89 // pred_region
                loop: start=0, step=1, limit=1
                $region106: #{_lambda_.24} parent=104 // loop_pre_header
                  _
                $region107: #{_lambda_.24} parent=104 // loop_header
                  %s946 = sphi 0, %s950
                  %p947 = scmp.ge.s32.totalorder %s946, 1
                  %s951 = sphi %s907, %s907
                  %s952 = sphi %s916, %s916
                $region108: #{_lambda_.24} parent=104 // loop_header_branch
                  %949 = sbr.rel (%p947) target = $region112
                $region109: #{_lambda_.24} parent=104 // loop_body
                  %v953 = vld [vmem:[%s951] sm:$0xff]
                  %954 = vst [vmem:[%s952] sm:$0xff] %v953
                  %v955 = vld [vmem:[%s951 + $0x8] sm:$0xff]
                  %956 = vst [vmem:[%s952 + $0x20] sm:$0xff] %v955
                  %v957 = vld [vmem:[%s951 + $0x10] sm:$0xff]
                  %958 = vst [vmem:[%s952 + $0x40] sm:$0xff] %v957
                  %v959 = vld [vmem:[%s951 + $0x18] sm:$0xff]
                  %960 = vst [vmem:[%s952 + $0x60] sm:$0xff] %v959
                  %v961 = vld [vmem:[%s951 + $0x20] sm:$0xff]
                  %962 = vst [vmem:[%s952 + $0x80] sm:$0xff] %v961
                $region110: #{_lambda_.24} parent=104 // loop_footer
                  %s950 = sadd.s32 1, %s946
                $region111: #{_lambda_.24} parent=104 // loop_footer_branch
                  %945 = sbr.rel target = $region107
                $region112: #{_lambda_.24} parent=104 // loop_exit
                  _
              $region105: #{_lambda_.24} parent=89 // pred_fallthru
                _
              // Predicated region
              $region113: #{_lambda_.24} parent=89 // pred_check
                _
              $region114: #{_lambda_.24} parent=89 // pred_check_branch
                %964 = sbr.rel target = $region116
              $region115: #{_lambda_.24} parent=89 // pred_region
                _
              $region116: #{_lambda_.24} parent=89 // pred_fallthru
                _
            $region90: #{_lambda_.24} parent=85 // pred_fallthru
              _
            // Predicated region
            $region91: #{_lambda_.24} parent=85 // pred_check
              _
            $region92: #{_lambda_.24} parent=85 // pred_check_branch
              %922 = sbr.rel target = $region94
            $region93: #{_lambda_.24} parent=85 // pred_region
              %s924 = ssub.s32 256, 1
              loop: start=0, step=1, limit=1
              $region95: #{_lambda_.24} parent=93 // loop_pre_header
                _
              $region96: #{_lambda_.24} parent=93 // loop_header
                %s926 = sphi 0, %s930
                %p927 = scmp.ge.s32.totalorder %s926, 1
                %s931 = sphi %s907, %s907
                %s932 = sphi %s916, %s916
              $region97: #{_lambda_.24} parent=93 // loop_header_branch
                %929 = sbr.rel (%p927) target = $region101
              $region98: #{_lambda_.24} parent=93 // loop_body
                %v933 = vld [vmem:[%s931] sm:%s924]
                %934 = vst [vmem:[%s932] sm:%s924] %v933
                %v935 = vld [vmem:[%s931 + $0x8] sm:%s924]
                %936 = vst [vmem:[%s932 + $0x20] sm:%s924] %v935
                %v937 = vld [vmem:[%s931 + $0x10] sm:%s924]
                %938 = vst [vmem:[%s932 + $0x40] sm:%s924] %v937
                %v939 = vld [vmem:[%s931 + $0x18] sm:%s924]
                %940 = vst [vmem:[%s932 + $0x60] sm:%s924] %v939
                %v941 = vld [vmem:[%s931 + $0x20] sm:%s924]
                %942 = vst [vmem:[%s932 + $0x80] sm:%s924] %v941
              $region99: #{_lambda_.24} parent=93 // loop_footer
                %s930 = sadd.s32 1, %s926
              $region100: #{_lambda_.24} parent=93 // loop_footer_branch
                %925 = sbr.rel target = $region96
              $region101: #{_lambda_.24} parent=93 // loop_exit
                _
            $region94: #{_lambda_.24} parent=85 // pred_fallthru
              _
          $region86: #{_lambda_.24} parent=81 // pred_fallthru
            _
          %965 = vnop
        $region82: #{_lambda_.24} parent=65 // pred_fallthru
          _
      $region66: #{_lambda_.24} parent=5 // pred_fallthru
        _
      %p966 = scmp.le.s32.totalorder 2, %s9
      // Predicated region
      $region117: #{_lambda_.24} parent=5 // pred_check
        %p967 = pneg %p966
      $region118: #{_lambda_.24} parent=5 // pred_check_branch
        %969 = sbr.rel (%p967) target = $region120
      $region119: #{_lambda_.24} parent=5 // pred_region
        %s970 = ssub.s32 %s9, 2
        // Predicated region
        $region121: #{_lambda_.24} parent=119 // pred_check
          %p971 = pneg %p141
        $region122: #{_lambda_.24} parent=119 // pred_check_branch
          %973 = sbr.rel (%p971) target = $region124
        $region123: #{_lambda_.24} parent=119 // pred_region
          %s974 = sand.u32 %s126, 1
          %s975 = sand.u32 %s126, 1
          %s976 = smul.addr %s975, 40
          %s977 = scalar_lea.vmem [#allocation4], %s976
        $region124: #{_lambda_.24} parent=119 // pred_fallthru
          _
      $region120: #{_lambda_.24} parent=5 // pred_fallthru
        _
    $region6: #{_lambda_.24} parent=1 // loop_footer
      %s13 = sadd.s32 1, %s9
    $region7: #{_lambda_.24} parent=1 // loop_footer_branch
      %8 = sbr.rel target = $region3
    $region8: #{_lambda_.24} parent=1 // loop_exit
      _

// kernel: _lambda_.25
$region0: #{_lambda_.25}
  #allocation0 [shape = 'u32[]', space=smem, size = 0x4, offset = 0x4, fixed_abs, tag = 'smem constant byte address 0x4 - core index']
  #allocation1 [shape = 'u32[72,128]{1,0:T(1,128)}', space=vmem, size = 0x9000, scoped, tag = 'internal scratch']
  #allocation2 [shape = 'f32[34,256]{1,0:T(8,128)}', space=vmem, size = 0xa000, scoped, tag = 'scratch operand']
  %s0 = inlined_call_operand.vmem [shape: bf16[34,1024], index: 0, kind: input, shape index: {}]
  %s1 = inlined_call_operand.vmem [shape: bf16[1024,256], index: 1, kind: input, shape index: {}]
  %s2 = inlined_call_operand.vmem [shape: f32[1,256], index: 2, kind: input, shape index: {}]
  %s3 = inlined_call_operand.vmem [shape: bf16[34,256], index: 3, kind: input, shape index: {}]
  %s4 = inlined_call_operand.vmem [shape: bf16[34,256], index: 4, kind: output, shape index: {}]
  %s5 = sld [smem:[#allocation0]]
  $region80: #{_lambda_.25} parent=0
    _
  %s7 = ssub.s32 1, %s5
  %s8 = scalar_select 0, %s7, %s5
  $region1: #{_lambda_.25} parent=0
    #allocation3 [shape = 'u8[81920]{0}', space=vmem, size = 0x14000, scoped, tag = 'input window, operand 0']
    loop: start=0, step=1, limit=4
    $region2: #{_lambda_.25} parent=1 // loop_pre_header
      _
    $region3: #{_lambda_.25} parent=1 // loop_header
      %s10 = sphi 0, %s14
      %p11 = scmp.ge.s32.totalorder %s10, 4
      %s17 = sphi 0, %s36
      %s18 = sphi 0, %s32
      %s19 = sphi 0, %s28
      %s20 = sphi 0, %s17
      %s21 = sphi 0, %s18
      %s22 = sphi 0, %s19
      %s23 = sphi 0, %s20
      %s24 = sphi 0, %s21
      %s25 = sphi 0, %s22
      %s41 = sphi 0, %s43
      %s44 = sphi 0, %s41
      %s45 = sphi 0, %s44
      %s61 = sphi 0, %s45
      %s69 = sphi 0, %s71
      %s72 = sphi 0, %s69
      %s73 = sphi 0, %s72
      %s89 = sphi 0, %s73
      %s95 = sphi 0, %s97
      %s98 = sphi 0, %s95
      %s99 = sphi 0, %s98
      %s115 = sphi 0, %s99
      %s123 = sphi 0, %s125
      %s126 = sphi 0, %s123
      %s127 = sphi 0, %s126
      %s143 = sphi 0, %s127
      %s151 = sphi 0, %s153
      %s154 = sphi 0, %s151
      %s155 = sphi 0, %s154
      %s171 = sphi 0, %s155
    $region4: #{_lambda_.25} parent=1 // loop_header_branch
      %13 = sbr.rel (%p11) target = $region8
    $region5: #{_lambda_.25} parent=1 // loop_body
      %s15 = ssub.s32 %s10, 1
      %s16 = ssub.s32 %s10, 2
      %s26 = sadd.s32 1, %s19
      %p27 = scmp.ge.s32.totalorder %s26, 2
      %s28 = scalar_select %p27, 0, %s26
      %s29 = sadd.s32 1, %s18
      %s30 = scalar_select %p27, %s29, %s18
      %p31 = scmp.ge.s32.totalorder %s30, 1
      %s32 = scalar_select %p31, 0, %s30
      %s33 = sadd.s32 1, %s17
      %s34 = scalar_select %p31, %s33, %s17
      %p35 = scmp.ge.s32.totalorder %s34, 1
      %s36 = scalar_select %p35, 0, %s34
      %s37 = ssub.s32 %s17, %s36
      %s38 = ssub.s32 %s19, %s28
      %s39 = sor.u32 %s37, %s38
      %p40 = scmp.eq.s32.totalorder %s39, 0
      %s42 = sadd.s32 %s41, 1
      %s43 = scalar_select %p40, %s41, %s42
      %p46 = pneg %p40
      %p47 = scmp.eq.s32.totalorder %s10, 1
      %p48 = por %p46, %p47
      %p49 = scmp.ne.s32.totalorder %s41, %s44
      %p50 = scmp.eq.s32.totalorder %s10, 0
      %p51 = por %p49, %p50
      %p52 = scmp.ne.s32.totalorder %s41, %s44
      %p53 = scmp.eq.s32.totalorder %s15, 1
      %p54 = por %p52, %p53
      %p55 = scmp.ne.s32.totalorder %s44, %s45
      %p56 = scmp.eq.s32.totalorder %s15, 0
      %p57 = por %p55, %p56
      %p58 = scmp.ne.s32.totalorder %s44, %s45
      %p59 = scmp.eq.s32.totalorder %s16, 1
      %p60 = por %p58, %p59
      %p62 = scmp.ne.s32.totalorder %s45, %s61
      %p63 = scmp.eq.s32.totalorder %s16, 0
      %p64 = por %p62, %p63
      %s65 = ssub.s32 %s19, %s28
      %s66 = ssub.s32 %s18, %s32
      %s67 = sor.u32 %s65, %s66
      %p68 = scmp.eq.s32.totalorder %s67, 0
      %s70 = sadd.s32 %s69, 1
      %s71 = scalar_select %p68, %s69, %s70
      %p74 = pneg %p68
      %p75 = scmp.eq.s32.totalorder %s10, 1
      %p76 = por %p74, %p75
      %p77 = scmp.ne.s32.totalorder %s69, %s72
      %p78 = scmp.eq.s32.totalorder %s10, 0
      %p79 = por %p77, %p78
      %p80 = scmp.ne.s32.totalorder %s69, %s72
      %p81 = scmp.eq.s32.totalorder %s15, 1
      %p82 = por %p80, %p81
      %p83 = scmp.ne.s32.totalorder %s72, %s73
      %p84 = scmp.eq.s32.totalorder %s15, 0
      %p85 = por %p83, %p84
      %p86 = scmp.ne.s32.totalorder %s72, %s73
      %p87 = scmp.eq.s32.totalorder %s16, 1
      %p88 = por %p86, %p87
      %p90 = scmp.ne.s32.totalorder %s73, %s89
      %p91 = scmp.eq.s32.totalorder %s16, 0
      %p92 = por %p90, %p91
      %s93 = ssub.s32 %s18, %s32
      %p94 = scmp.eq.s32.totalorder %s93, 0
      %s96 = sadd.s32 %s95, 1
      %s97 = scalar_select %p94, %s95, %s96
      %p100 = pneg %p94
      %p101 = scmp.eq.s32.totalorder %s10, 1
      %p102 = por %p100, %p101
      %p103 = scmp.ne.s32.totalorder %s95, %s98
      %p104 = scmp.eq.s32.totalorder %s10, 0
      %p105 = por %p103, %p104
      %p106 = scmp.ne.s32.totalorder %s95, %s98
      %p107 = scmp.eq.s32.totalorder %s15, 1
      %p108 = por %p106, %p107
      %p109 = scmp.ne.s32.totalorder %s98, %s99
      %p110 = scmp.eq.s32.totalorder %s15, 0
      %p111 = por %p109, %p110
      %p112 = scmp.ne.s32.totalorder %s98, %s99
      %p113 = scmp.eq.s32.totalorder %s16, 1
      %p114 = por %p112, %p113
      %p116 = scmp.ne.s32.totalorder %s99, %s115
      %p117 = scmp.eq.s32.totalorder %s16, 0
      %p118 = por %p116, %p117
      %s119 = ssub.s32 %s17, %s36
      %s120 = ssub.s32 %s18, %s32
      %s121 = sor.u32 %s119, %s120
      %p122 = scmp.eq.s32.totalorder %s121, 0
      %s124 = sadd.s32 %s123, 1
      %s125 = scalar_select %p122, %s123, %s124
      %p128 = pneg %p122
      %p129 = scmp.eq.s32.totalorder %s10, 1
      %p130 = por %p128, %p129
      %p131 = scmp.ne.s32.totalorder %s123, %s126
      %p132 = scmp.eq.s32.totalorder %s10, 0
      %p133 = por %p131, %p132
      %p134 = scmp.ne.s32.totalorder %s123, %s126
      %p135 = scmp.eq.s32.totalorder %s15, 1
      %p136 = por %p134, %p135
      %p137 = scmp.ne.s32.totalorder %s126, %s127
      %p138 = scmp.eq.s32.totalorder %s15, 0
      %p139 = por %p137, %p138
      %p140 = scmp.ne.s32.totalorder %s126, %s127
      %p141 = scmp.eq.s32.totalorder %s16, 1
      %p142 = por %p140, %p141
      %p144 = scmp.ne.s32.totalorder %s127, %s143
      %p145 = scmp.eq.s32.totalorder %s16, 0
      %p146 = por %p144, %p145
      %s147 = ssub.s32 %s17, %s36
      %s148 = ssub.s32 %s18, %s32
      %s149 = sor.u32 %s147, %s148
      %p150 = scmp.eq.s32.totalorder %s149, 0
      %s152 = sadd.s32 %s151, 1
      %s153 = scalar_select %p150, %s151, %s152
      %p156 = pneg %p150
      %p157 = scmp.eq.s32.totalorder %s10, 1
      %p158 = por %p156, %p157
      %p159 = scmp.ne.s32.totalorder %s151, %s154
      %p160 = scmp.eq.s32.totalorder %s10, 0
      %p161 = por %p159, %p160
      %p162 = scmp.ne.s32.totalorder %s151, %s154
      %p163 = scmp.eq.s32.totalorder %s15, 1
      %p164 = por %p162, %p163
      %p165 = scmp.ne.s32.totalorder %s154, %s155
      %p166 = scmp.eq.s32.totalorder %s15, 0
      %p167 = por %p165, %p166
      %p168 = scmp.ne.s32.totalorder %s154, %s155
      %p169 = scmp.eq.s32.totalorder %s16, 1
      %p170 = por %p168, %p169
      %p172 = scmp.ne.s32.totalorder %s155, %s171
      %p173 = scmp.eq.s32.totalorder %s16, 0
      %p174 = por %p172, %p173
      %p175 = scmp.le.s32.totalorder 1, %s10
      %p176 = scmp.lt.s32.totalorder %s10, 3
      %p177 = pnand %p175, %p176
      %p178 = pneg %p177
      // Predicated region
      $region9: #{_lambda_.25} parent=5 // pred_check
        _
      $region10: #{_lambda_.25} parent=5 // pred_check_branch
        %180 = sbr.rel (%p177) target = $region12
      $region11: #{_lambda_.25} parent=5 // pred_region
        %s181 = ssub.s32 %s10, 1
        // Predicated region
        $region13: #{_lambda_.25} parent=11 // pred_check
          %p182 = pneg %p111
        $region14: #{_lambda_.25} parent=11 // pred_check_branch
          %184 = sbr.rel (%p182) target = $region16
        $region15: #{_lambda_.25} parent=11 // pred_region
          %s185 = smul.u32 2, %s21
          %p186 = scmp.lt.s32.totalorder %s185, 1
          %s187 = scalar_select %p186, %s185, 1
          %s188 = scalar_lea.vmem %s2, %s187
          %s189 = smul.u32 2, %s21
        $region16: #{_lambda_.25} parent=11 // pred_fallthru
          _
        // Predicated region
        $region17: #{_lambda_.25} parent=11 // pred_check
          %p190 = pneg %p139
        $region18: #{_lambda_.25} parent=11 // pred_check_branch
          %192 = sbr.rel (%p190) target = $region20
        $region19: #{_lambda_.25} parent=11 // pred_region
          %s193 = smul.u32 5, %s20
          %s194 = smul.u32 2, %s21
          %p195 = scmp.lt.s32.totalorder %s193, 4
          %s196 = scalar_select %p195, %s193, 4
          %p197 = scmp.lt.s32.totalorder %s194, 1
          %s198 = scalar_select %p197, %s194, 1
          %s199 = smul.addr %s196, 2
          %s200 = sadd.s32 %s198, %s199
          %s201 = smul.addr %s200, 4
          %s202 = scalar_lea.vmem %s3, %s201
          %s203 = smul.u32 5, %s20
          %s204 = smul.u32 2, %s21
        $region20: #{_lambda_.25} parent=11 // pred_fallthru
          _
      $region12: #{_lambda_.25} parent=5 // pred_fallthru
        _
      %p205 = scmp.lt.s32.totalorder %s10, 2
      // Predicated region
      $region21: #{_lambda_.25} parent=5 // pred_check
        %p206 = pneg %p205
      $region22: #{_lambda_.25} parent=5 // pred_check_branch
        %208 = sbr.rel (%p206) target = $region24
      $region23: #{_lambda_.25} parent=5 // pred_region
        // Predicated region
        $region25: #{_lambda_.25} parent=23 // pred_check
          %p209 = pneg %p51
        $region26: #{_lambda_.25} parent=23 // pred_check_branch
          %211 = sbr.rel (%p209) target = $region28
        $region27: #{_lambda_.25} parent=23 // pred_region
          %s212 = sand.u32 %s41, 1
          %s213 = sand.u32 %s41, 1
          %s214 = smul.addr %s213, 80
          %s215 = scalar_lea.vmem [#allocation3], %s214
          %s216 = smul.u32 5, %s17
          %s217 = smul.u32 4, %s19
          %s218 = smul.addr %s216, 8
          %s219 = sadd.s32 %s217, %s218
          %s220 = smul.addr %s219, 4
          %s221 = scalar_lea.vmem %s0, %s220
          // Predicated region
          $region29: #{_lambda_.25} parent=27 // pred_check
            _
          $region30: #{_lambda_.25} parent=27 // pred_check_branch
            %223 = sbr.rel (0) target = $region32
          $region31: #{_lambda_.25} parent=27 // pred_region
            // Predicated region
            $region33: #{_lambda_.25} parent=31 // pred_check
              _
            $region34: #{_lambda_.25} parent=31 // pred_check_branch
              %225 = sbr.rel (0) target = $region36
            $region35: #{_lambda_.25} parent=31 // pred_region
              loop: start=0, step=1, limit=1
              $region37: #{_lambda_.25} parent=35 // loop_pre_header
                _
              $region38: #{_lambda_.25} parent=35 // loop_header
                %s227 = sphi 0, %s231
                %p228 = scmp.ge.s32.totalorder %s227, 1
                %s232 = sphi %s221, %s221
                %s233 = sphi %s215, %s215
              $region39: #{_lambda_.25} parent=35 // loop_header_branch
                %230 = sbr.rel (%p228) target = $region43
              $region40: #{_lambda_.25} parent=35 // loop_body
                %v234 = vld [vmem:[%s232] sm:$0xff]
                %235 = vst [vmem:[%s233] sm:$0xff] %v234
                %v236 = vld [vmem:[%s232 + $0x8] sm:$0xff]
                %237 = vst [vmem:[%s233 + $0x8] sm:$0xff] %v236
                %v238 = vld [vmem:[%s232 + $0x20] sm:$0xff]
                %239 = vst [vmem:[%s233 + $0x10] sm:$0xff] %v238
                %v240 = vld [vmem:[%s232 + $0x28] sm:$0xff]
                %241 = vst [vmem:[%s233 + $0x18] sm:$0xff] %v240
                %v242 = vld [vmem:[%s232 + $0x40] sm:$0xff]
                %243 = vst [vmem:[%s233 + $0x20] sm:$0xff] %v242
                %v244 = vld [vmem:[%s232 + $0x48] sm:$0xff]
                %245 = vst [vmem:[%s233 + $0x28] sm:$0xff] %v244
                %v246 = vld [vmem:[%s232 + $0x60] sm:$0xff]
                %247 = vst [vmem:[%s233 + $0x30] sm:$0xff] %v246
                %v248 = vld [vmem:[%s232 + $0x68] sm:$0xff]
                %249 = vst [vmem:[%s233 + $0x38] sm:$0xff] %v248
                %v250 = vld [vmem:[%s232 + $0x80] sm:$0xff]
                %251 = vst [vmem:[%s233 + $0x40] sm:$0xff] %v250
                %v252 = vld [vmem:[%s232 + $0x88] sm:$0xff]
                %253 = vst [vmem:[%s233 + $0x48] sm:$0xff] %v252
              $region41: #{_lambda_.25} parent=35 // loop_footer
                %s231 = sadd.s32 1, %s227
              $region42: #{_lambda_.25} parent=35 // loop_footer_branch
                %226 = sbr.rel target = $region38
              $region43: #{_lambda_.25} parent=35 // loop_exit
                _
            $region36: #{_lambda_.25} parent=31 // pred_fallthru
              _
            // Predicated region
            $region44: #{_lambda_.25} parent=31 // pred_check
              _
            $region45: #{_lambda_.25} parent=31 // pred_check_branch
              %255 = sbr.rel target = $region47
            $region46: #{_lambda_.25} parent=31 // pred_region
              _
            $region47: #{_lambda_.25} parent=31 // pred_fallthru
              _
          $region32: #{_lambda_.25} parent=27 // pred_fallthru
            _
          %256 = vnop
        $region28: #{_lambda_.25} parent=23 // pred_fallthru
          _
        // Predicated region
        $region48: #{_lambda_.25} parent=23 // pred_check
          %p257 = pneg %p79
        $region49: #{_lambda_.25} parent=23 // pred_check_branch
          %259 = sbr.rel (%p257) target = $region51
        $region50: #{_lambda_.25} parent=23 // pred_region
          %s260 = smul.u32 64, %s19
          %s261 = smul.u32 2, %s18
          %p262 = scmp.lt.s32.totalorder %s260, 127
          %s263 = scalar_select %p262, %s260, 127
          %p264 = scmp.lt.s32.totalorder %s261, 1
          %s265 = scalar_select %p264, %s261, 1
          %s266 = smul.addr %s263, 2
          %s267 = sadd.s32 %s265, %s266
          %s268 = smul.addr %s267, 4
          %s269 = scalar_lea.vmem %s1, %s268
          %s270 = smul.u32 64, %s19
          %s271 = smul.u32 2, %s18
        $region51: #{_lambda_.25} parent=23 // pred_fallthru
          _
      $region24: #{_lambda_.25} parent=5 // pred_fallthru
        _
      %p272 = scmp.le.s32.totalorder 1, %s10
      %p273 = scmp.lt.s32.totalorder %s10, 3
      %p274 = pnand %p272, %p273
      %p275 = pneg %p274
      // Predicated region
      $region52: #{_lambda_.25} parent=5 // pred_check
        _
      $region53: #{_lambda_.25} parent=5 // pred_check_branch
        %277 = sbr.rel (%p274) target = $region55
      $region54: #{_lambda_.25} parent=5 // pred_region
        %s278 = ssub.s32 %s10, 1
        %s279 = sand.u32 %s44, 1
        %s280 = sand.u32 %s44, 1
        %s281 = smul.addr %s280, 80
        %s282 = scalar_lea.vmem [#allocation3], %s281
        // Predicated region
        $region56: #{_lambda_.25} parent=54 // pred_check
          %p283 = pneg %p57
        $region57: #{_lambda_.25} parent=54 // pred_check_branch
          %285 = sbr.rel (%p283) target = $region59
        $region58: #{_lambda_.25} parent=54 // pred_region
          _
        $region59: #{_lambda_.25} parent=54 // pred_fallthru
          _
        %s286 = sand.u32 %s44, 1
        %s287 = sand.u32 %s44, 1
        %s288 = smul.addr %s287, 80
        %s289 = scalar_lea.vmem [#allocation3], %s288
        %p290 = pneg %p57
        %p291 = pneg %p54
        %s292 = smul.u32 64, %s22
        %s293 = smul.u32 2, %s21
        %p294 = scmp.lt.s32.totalorder %s292, 127
        %s295 = scalar_select %p294, %s292, 127
        %p296 = scmp.lt.s32.totalorder %s293, 1
        %s297 = scalar_select %p296, %s293, 1
        %s298 = smul.addr %s295, 2
        %s299 = sadd.s32 %s297, %s298
        %s300 = smul.addr %s299, 4
        %s301 = scalar_lea.vmem %s1, %s300
        %p302 = pneg %p85
        %p303 = pneg %p82
        %s304 = smul.u32 2, %s21
        %p305 = scmp.lt.s32.totalorder %s304, 1
        %s306 = scalar_select %p305, %s304, 1
        %s307 = scalar_lea.vmem %s2, %s306
        %p308 = pneg %p111
        %p309 = pneg %p108
        %s310 = smul.u32 5, %s20
        %s311 = smul.u32 2, %s21
        %p312 = scmp.lt.s32.totalorder %s310, 4
        %s313 = scalar_select %p312, %s310, 4
        %p314 = scmp.lt.s32.totalorder %s311, 1
        %s315 = scalar_select %p314, %s311, 1
        %s316 = smul.addr %s313, 2
        %s317 = sadd.s32 %s315, %s316
        %s318 = smul.addr %s317, 4
        %s319 = scalar_lea.vmem %s3, %s318
        %p320 = pneg %p139
        %p321 = pneg %p136
        %p322 = pneg %p167
        %p323 = pneg %p164
        %s324 = smul.u32 5, %s20
        %s325 = smul.u32 2, %s21
        %p326 = scmp.lt.s32.totalorder %s324, 4
        %s327 = scalar_select %p326, %s324, 4
        %p328 = scmp.lt.s32.totalorder %s325, 1
        %s329 = scalar_select %p328, %s325, 1
        %s330 = smul.addr %s327, 2
        %s331 = sadd.s32 %s329, %s330
        %s332 = smul.addr %s331, 4
        %s333 = scalar_lea.vmem %s4, %s332
        %s334 = smul.u32 5, %s20
        %s335 = smul.u32 4, %s22
        %s336 = smul.u32 64, %s22
        %s337 = smul.u32 2, %s21
        %p338 = scmp.lt.s32.totalorder %s336, 127
        %s339 = scalar_select %p338, %s336, 127
        %p340 = scmp.lt.s32.totalorder %s337, 1
        %s341 = scalar_select %p340, %s337, 1
        %s342 = smul.addr %s339, 2
        %s343 = sadd.s32 %s341, %s342
        %s344 = smul.addr %s343, 4
        %s345 = scalar_lea.vmem %s1, %s344
        %s346 = smul.u32 64, %s22
        %s347 = smul.u32 2, %s21
        %s348 = smul.u32 2, %s21
        %p349 = scmp.lt.s32.totalorder %s348, 1
        %s350 = scalar_select %p349, %s348, 1
        %s351 = scalar_lea.vmem %s2, %s350
        %s352 = smul.u32 2, %s21
        %s353 = smul.u32 5, %s20
        %s354 = smul.u32 2, %s21
        %p355 = scmp.lt.s32.totalorder %s353, 4
        %s356 = scalar_select %p355, %s353, 4
        %p357 = scmp.lt.s32.totalorder %s354, 1
        %s358 = scalar_select %p357, %s354, 1
        %s359 = smul.addr %s356, 2
        %s360 = sadd.s32 %s358, %s359
        %s361 = smul.addr %s360, 4
        %s362 = scalar_lea.vmem %s3, %s361
        %s363 = smul.u32 5, %s20
        %s364 = smul.u32 2, %s21
        %s365 = smul.u32 5, %s20
        %s366 = smul.u32 2, %s21
        %p367 = scmp.lt.s32.totalorder %s365, 4
        %s368 = scalar_select %p367, %s365, 4
        %p369 = scmp.lt.s32.totalorder %s366, 1
        %s370 = scalar_select %p369, %s366, 1
        %s371 = smul.addr %s368, 2
        %s372 = sadd.s32 %s370, %s371
        %s373 = smul.addr %s372, 4
        %s374 = scalar_lea.vmem %s4, %s373
        %s375 = smul.u32 5, %s20
        %s376 = smul.u32 2, %s21
        %p377 = scmp.eq.s32.totalorder %s22, 0
        // Predicated region
        $region60: #{_lambda_.25} parent=54 // pred_check
          %p378 = pneg %p377
        $region61: #{_lambda_.25} parent=54 // pred_check_branch
          %380 = sbr.rel (%p378) target = $region63
        $region62: #{_lambda_.25} parent=54 // pred_region
          %381 = vst [vmem:[#allocation2] sm:$0xff] 0.0
          %382 = vst [vmem:[#allocation2 + $0x8] sm:$0xff] 0.0
          %383 = vst [vmem:[#allocation2 + $0x10] sm:$0xff] 0.0
          %384 = vst [vmem:[#allocation2 + $0x18] sm:$0xff] 0.0
          %385 = vst [vmem:[#allocation2 + $0x20] sm:$0xff] 0.0
          %386 = vst [vmem:[#allocation2 + $0x28] sm:$0xff] 0.0
          %387 = vst [vmem:[#allocation2 + $0x30] sm:$0xff] 0.0
          %388 = vst [vmem:[#allocation2 + $0x38] sm:$0xff] 0.0
          %389 = vst [vmem:[#allocation2 + $0x40] sm:$0x3] 0.0
          %390 = vst [vmem:[#allocation2 + $0x48] sm:$0x3] 0.0
        $region63: #{_lambda_.25} parent=54 // pred_fallthru
          _
        %v391 = vld [vmem:[#allocation2] sm:$0xff]
        %v392 = vld [vmem:[#allocation2 + $0x8] sm:$0xff]
        %v393 = vld [vmem:[#allocation2 + $0x10] sm:$0xff]
        %v394 = vld [vmem:[#allocation2 + $0x18] sm:$0xff]
        %v395 = vld [vmem:[#allocation2 + $0x20] sm:$0xff]
        %v396 = vld [vmem:[#allocation2 + $0x28] sm:$0xff]
        %v397 = vld [vmem:[#allocation2 + $0x30] sm:$0xff]
        %v398 = vld [vmem:[#allocation2 + $0x38] sm:$0xff]
        %v399 = vld [vmem:[#allocation2 + $0x40] sm:$0x3]
        %v400 = vld [vmem:[#allocation2 + $0x48] sm:$0x3]
        %v401 = vld [vmem:[%s282] sm:$0xff]
        %v402 = vld [vmem:[%s282 + $0x8] sm:$0xff]
        %v403 = vld [vmem:[%s282 + $0x10] sm:$0xff]
        %v404 = vld [vmem:[%s282 + $0x18] sm:$0xff]
        %v405 = vld [vmem:[%s282 + $0x20] sm:$0xff]
        %v406 = vld [vmem:[%s282 + $0x28] sm:$0xff]
        %v407 = vld [vmem:[%s282 + $0x30] sm:$0xff]
        %v408 = vld [vmem:[%s282 + $0x38] sm:$0xff]
        %v409 = vld [vmem:[%s282 + $0x40] sm:$0x11]
        %v410 = vld [vmem:[%s282 + $0x48] sm:$0x11]
        %v411 = vld [vmem:[%s345] sm:$0xff]
        %v412 = vld [vmem:[%s345 + $0x8] sm:$0xff]
        %v413 = vld [vmem:[%s345 + $0x10] sm:$0xff]
        %v414 = vld [vmem:[%s345 + $0x18] sm:$0xff]
        %v415 = vld [vmem:[%s345 + $0x20] sm:$0xff]
        %v416 = vld [vmem:[%s345 + $0x28] sm:$0xff]
        %v417 = vld [vmem:[%s345 + $0x30] sm:$0xff]
        %v418 = vld [vmem:[%s345 + $0x38] sm:$0xff]
        %v419 = vld [vmem:[%s345 + $0x40] sm:$0xff]
        %v420 = vld [vmem:[%s345 + $0x48] sm:$0xff]
        %v421 = vld [vmem:[%s345 + $0x50] sm:$0xff]
        %v422 = vld [vmem:[%s345 + $0x58] sm:$0xff]
        %v423 = vld [vmem:[%s345 + $0x60] sm:$0xff]
        %v424 = vld [vmem:[%s345 + $0x68] sm:$0xff]
        %v425 = vld [vmem:[%s345 + $0x70] sm:$0xff]
        %v426 = vld [vmem:[%s345 + $0x78] sm:$0xff]
        %v427 = vld [vmem:[%s345 + $0x80] sm:$0xff]
        %v428 = vld [vmem:[%s345 + $0x88] sm:$0xff]
        %v429 = vld [vmem:[%s345 + $0x90] sm:$0xff]
        %v430 = vld [vmem:[%s345 + $0x98] sm:$0xff]
        %v431 = vld [vmem:[%s345 + $0xa0] sm:$0xff]
        %v432 = vld [vmem:[%s345 + $0xa8] sm:$0xff]
        %v433 = vld [vmem:[%s345 + $0xb0] sm:$0xff]
        %v434 = vld [vmem:[%s345 + $0xb8] sm:$0xff]
        %v435 = vld [vmem:[%s345 + $0xc0] sm:$0xff]
        %v436 = vld [vmem:[%s345 + $0xc8] sm:$0xff]
        %v437 = vld [vmem:[%s345 + $0xd0] sm:$0xff]
        %v438 = vld [vmem:[%s345 + $0xd8] sm:$0xff]
        %v439 = vld [vmem:[%s345 + $0xe0] sm:$0xff]
        %v440 = vld [vmem:[%s345 + $0xe8] sm:$0xff]
        %v441 = vld [vmem:[%s345 + $0xf0] sm:$0xff]
        %v442 = vld [vmem:[%s345 + $0xf8] sm:$0xff]
        %v443 = vld [vmem:[%s345 + $0x100] sm:$0xff]
        %v444 = vld [vmem:[%s345 + $0x108] sm:$0xff]
        %v445 = vld [vmem:[%s345 + $0x110] sm:$0xff]
        %v446 = vld [vmem:[%s345 + $0x118] sm:$0xff]
        %v447 = vld [vmem:[%s345 + $0x120] sm:$0xff]
        %v448 = vld [vmem:[%s345 + $0x128] sm:$0xff]
        %v449 = vld [vmem:[%s345 + $0x130] sm:$0xff]
        %v450 = vld [vmem:[%s345 + $0x138] sm:$0xff]
        %v451 = vld [vmem:[%s345 + $0x140] sm:$0xff]
        %v452 = vld [vmem:[%s345 + $0x148] sm:$0xff]
        %v453 = vld [vmem:[%s345 + $0x150] sm:$0xff]
        %v454 = vld [vmem:[%s345 + $0x158] sm:$0xff]
        %v455 = vld [vmem:[%s345 + $0x160] sm:$0xff]
        %v456 = vld [vmem:[%s345 + $0x168] sm:$0xff]
        %v457 = vld [vmem:[%s345 + $0x170] sm:$0xff]
        %v458 = vld [vmem:[%s345 + $0x178] sm:$0xff]
        %v459 = vld [vmem:[%s345 + $0x180] sm:$0xff]
        %v460 = vld [vmem:[%s345 + $0x188] sm:$0xff]
        %v461 = vld [vmem:[%s345 + $0x190] sm:$0xff]
        %v462 = vld [vmem:[%s345 + $0x198] sm:$0xff]
        %v463 = vld [vmem:[%s345 + $0x1a0] sm:$0xff]
        %v464 = vld [vmem:[%s345 + $0x1a8] sm:$0xff]
        %v465 = vld [vmem:[%s345 + $0x1b0] sm:$0xff]
        %v466 = vld [vmem:[%s345 + $0x1b8] sm:$0xff]
        %v467 = vld [vmem:[%s345 + $0x1c0] sm:$0xff]
        %v468 = vld [vmem:[%s345 + $0x1c8] sm:$0xff]
        %v469 = vld [vmem:[%s345 + $0x1d0] sm:$0xff]
        %v470 = vld [vmem:[%s345 + $0x1d8] sm:$0xff]
        %v471 = vld [vmem:[%s345 + $0x1e0] sm:$0xff]
        %v472 = vld [vmem:[%s345 + $0x1e8] sm:$0xff]
        %v473 = vld [vmem:[%s345 + $0x1f0] sm:$0xff]
        %v474 = vld [vmem:[%s345 + $0x1f8] sm:$0xff]
        %v485 = vunpack.c.l.b16 %v401
        %v486 = vunpack.c.h.b16 %v401
        %v487 = vunpack.c.l.b16 %v402
        %v488 = vunpack.c.h.b16 %v402
        %v489 = vunpack.c.l.b16 %v403
        %v490 = vunpack.c.h.b16 %v403
        %v491 = vunpack.c.l.b16 %v404
        %v492 = vunpack.c.h.b16 %v404
        %v493 = vunpack.c.l.b16 %v405
        %v494 = vunpack.c.h.b16 %v405
        %v495 = vunpack.c.l.b16 %v406
        %v496 = vunpack.c.h.b16 %v406
        %v497 = vunpack.c.l.b16 %v407
        %v498 = vunpack.c.h.b16 %v407
        %v499 = vunpack.c.l.b16 %v408
        %v500 = vunpack.c.h.b16 %v408
        %v501 = vunpack.c.l.b16 %v409
        %v502 = vunpack.c.h.b16 %v409
        %v503 = vunpack.c.l.b16 %v410
        %v504 = vunpack.c.h.b16 %v410
        %v505 = vpack.c.b16 %v489, %v485
        %v506 = vpack.c.b16 %v490, %v486
        %v507 = vpack.c.b16 %v491, %v487
        %v508 = vpack.c.b16 %v492, %v488
        %v509 = vpack.c.b16 %v497, %v493
        %v510 = vpack.c.b16 %v498, %v494
        %v511 = vpack.c.b16 %v499, %v495
        %v512 = vpack.c.b16 %v500, %v496
        %v513 = vpack.c.b16 %v501, %v501
        %v514 = vpack.c.b16 %v502, %v502
        %v515 = vpack.c.b16 %v503, %v503
        %v516 = vpack.c.b16 %v504, %v504
        %v593 = vunpack.c.l.b16 %v411
        %v594 = vunpack.c.h.b16 %v411
        %v595 = vunpack.c.l.b16 %v412
        %v596 = vunpack.c.h.b16 %v412
        %v597 = vunpack.c.l.b16 %v413
        %v598 = vunpack.c.h.b16 %v413
        %v599 = vunpack.c.l.b16 %v414
        %v600 = vunpack.c.h.b16 %v414
        %v601 = vunpack.c.l.b16 %v415
        %v602 = vunpack.c.h.b16 %v415
        %v603 = vunpack.c.l.b16 %v416
        %v604 = vunpack.c.h.b16 %v416
        %v605 = vunpack.c.l.b16 %v417
        %v606 = vunpack.c.h.b16 %v417
        %v607 = vunpack.c.l.b16 %v418
        %v608 = vunpack.c.h.b16 %v418
        %v609 = vunpack.c.l.b16 %v419
        %v610 = vunpack.c.h.b16 %v419
        %v611 = vunpack.c.l.b16 %v420
        %v612 = vunpack.c.h.b16 %v420
        %v613 = vunpack.c.l.b16 %v421
        %v614 = vunpack.c.h.b16 %v421
        %v615 = vunpack.c.l.b16 %v422
        %v616 = vunpack.c.h.b16 %v422
        %v617 = vunpack.c.l.b16 %v423
        %v618 = vunpack.c.h.b16 %v423
        %v619 = vunpack.c.l.b16 %v424
        %v620 = vunpack.c.h.b16 %v424
        %v621 = vunpack.c.l.b16 %v425
        %v622 = vunpack.c.h.b16 %v425
        %v623 = vunpack.c.l.b16 %v426
        %v624 = vunpack.c.h.b16 %v426
        %v625 = vunpack.c.l.b16 %v427
        %v626 = vunpack.c.h.b16 %v427
        %v627 = vunpack.c.l.b16 %v428
        %v628 = vunpack.c.h.b16 %v428
        %v629 = vunpack.c.l.b16 %v429
        %v630 = vunpack.c.h.b16 %v429
        %v631 = vunpack.c.l.b16 %v430
        %v632 = vunpack.c.h.b16 %v430
        %v633 = vunpack.c.l.b16 %v431
        %v634 = vunpack.c.h.b16 %v431
        %v635 = vunpack.c.l.b16 %v432
        %v636 = vunpack.c.h.b16 %v432
        %v637 = vunpack.c.l.b16 %v433
        %v638 = vunpack.c.h.b16 %v433
        %v639 = vunpack.c.l.b16 %v434
        %v640 = vunpack.c.h.b16 %v434
        %v641 = vunpack.c.l.b16 %v435
        %v642 = vunpack.c.h.b16 %v435
        %v643 = vunpack.c.l.b16 %v436
        %v644 = vunpack.c.h.b16 %v436
        %v645 = vunpack.c.l.b16 %v437
        %v646 = vunpack.c.h.b16 %v437
        %v647 = vunpack.c.l.b16 %v438
        %v648 = vunpack.c.h.b16 %v438
        %v649 = vunpack.c.l.b16 %v439
        %v650 = vunpack.c.h.b16 %v439
        %v651 = vunpack.c.l.b16 %v440
        %v652 = vunpack.c.h.b16 %v440
        %v653 = vunpack.c.l.b16 %v441
        %v654 = vunpack.c.h.b16 %v441
        %v655 = vunpack.c.l.b16 %v442
        %v656 = vunpack.c.h.b16 %v442
        %v657 = vunpack.c.l.b16 %v443
        %v658 = vunpack.c.h.b16 %v443
        %v659 = vunpack.c.l.b16 %v444
        %v660 = vunpack.c.h.b16 %v444
        %v661 = vunpack.c.l.b16 %v445
        %v662 = vunpack.c.h.b16 %v445
        %v663 = vunpack.c.l.b16 %v446
        %v664 = vunpack.c.h.b16 %v446
        %v665 = vunpack.c.l.b16 %v447
        %v666 = vunpack.c.h.b16 %v447
        %v667 = vunpack.c.l.b16 %v448
        %v668 = vunpack.c.h.b16 %v448
        %v669 = vunpack.c.l.b16 %v449
        %v670 = vunpack.c.h.b16 %v449
        %v671 = vunpack.c.l.b16 %v450
        %v672 = vunpack.c.h.b16 %v450
        %v673 = vunpack.c.l.b16 %v451
        %v674 = vunpack.c.h.b16 %v451
        %v675 = vunpack.c.l.b16 %v452
        %v676 = vunpack.c.h.b16 %v452
        %v677 = vunpack.c.l.b16 %v453
        %v678 = vunpack.c.h.b16 %v453
        %v679 = vunpack.c.l.b16 %v454
        %v680 = vunpack.c.h.b16 %v454
        %v681 = vunpack.c.l.b16 %v455
        %v682 = vunpack.c.h.b16 %v455
        %v683 = vunpack.c.l.b16 %v456
        %v684 = vunpack.c.h.b16 %v456
        %v685 = vunpack.c.l.b16 %v457
        %v686 = vunpack.c.h.b16 %v457
        %v687 = vunpack.c.l.b16 %v458
        %v688 = vunpack.c.h.b16 %v458
        %v689 = vunpack.c.l.b16 %v459
        %v690 = vunpack.c.h.b16 %v459
        %v691 = vunpack.c.l.b16 %v460
        %v692 = vunpack.c.h.b16 %v460
        %v693 = vunpack.c.l.b16 %v461
        %v694 = vunpack.c.h.b16 %v461
        %v695 = vunpack.c.l.b16 %v462
        %v696 = vunpack.c.h.b16 %v462
        %v697 = vunpack.c.l.b16 %v463
        %v698 = vunpack.c.h.b16 %v463
        %v699 = vunpack.c.l.b16 %v464
        %v700 = vunpack.c.h.b16 %v464
        %v701 = vunpack.c.l.b16 %v465
        %v702 = vunpack.c.h.b16 %v465
        %v703 = vunpack.c.l.b16 %v466
        %v704 = vunpack.c.h.b16 %v466
        %v705 = vunpack.c.l.b16 %v467
        %v706 = vunpack.c.h.b16 %v467
        %v707 = vunpack.c.l.b16 %v468
        %v708 = vunpack.c.h.b16 %v468
        %v709 = vunpack.c.l.b16 %v469
        %v710 = vunpack.c.h.b16 %v469
        %v711 = vunpack.c.l.b16 %v470
        %v712 = vunpack.c.h.b16 %v470
        %v713 = vunpack.c.l.b16 %v471
        %v714 = vunpack.c.h.b16 %v471
        %v715 = vunpack.c.l.b16 %v472
        %v716 = vunpack.c.h.b16 %v472
        %v717 = vunpack.c.l.b16 %v473
        %v718 = vunpack.c.h.b16 %v473
        %v719 = vunpack.c.l.b16 %v474
        %v720 = vunpack.c.h.b16 %v474
        %v721 = vpack.c.b16 %v595, %v593
        %v722 = vpack.c.b16 %v596, %v594
        %v723 = vpack.c.b16 %v599, %v597
        %v724 = vpack.c.b16 %v600, %v598
        %v725 = vpack.c.b16 %v603, %v601
        %v726 = vpack.c.b16 %v604, %v602
        %v727 = vpack.c.b16 %v607, %v605
        %v728 = vpack.c.b16 %v608, %v606
        %v729 = vpack.c.b16 %v611, %v609
        %v730 = vpack.c.b16 %v612, %v610
        %v731 = vpack.c.b16 %v615, %v613
        %v732 = vpack.c.b16 %v616, %v614
        %v733 = vpack.c.b16 %v619, %v617
        %v734 = vpack.c.b16 %v620, %v618
        %v735 = vpack.c.b16 %v623, %v621
        %v736 = vpack.c.b16 %v624, %v622
        %v737 = vpack.c.b16 %v627, %v625
        %v738 = vpack.c.b16 %v628, %v626
        %v739 = vpack.c.b16 %v631, %v629
        %v740 = vpack.c.b16 %v632, %v630
        %v741 = vpack.c.b16 %v635, %v633
        %v742 = vpack.c.b16 %v636, %v634
        %v743 = vpack.c.b16 %v639, %v637
        %v744 = vpack.c.b16 %v640, %v638
        %v745 = vpack.c.b16 %v643, %v641
        %v746 = vpack.c.b16 %v644, %v642
        %v747 = vpack.c.b16 %v647, %v645
        %v748 = vpack.c.b16 %v648, %v646
        %v749 = vpack.c.b16 %v651, %v649
        %v750 = vpack.c.b16 %v652, %v650
        %v751 = vpack.c.b16 %v655, %v653
        %v752 = vpack.c.b16 %v656, %v654
        %v753 = vpack.c.b16 %v659, %v657
        %v754 = vpack.c.b16 %v660, %v658
        %v755 = vpack.c.b16 %v663, %v661
        %v756 = vpack.c.b16 %v664, %v662
        %v757 = vpack.c.b16 %v667, %v665
        %v758 = vpack.c.b16 %v668, %v666
        %v759 = vpack.c.b16 %v671, %v669
        %v760 = vpack.c.b16 %v672, %v670
        %v761 = vpack.c.b16 %v675, %v673
        %v762 = vpack.c.b16 %v676, %v674
        %v763 = vpack.c.b16 %v679, %v677
        %v764 = vpack.c.b16 %v680, %v678
        %v765 = vpack.c.b16 %v683, %v681
        %v766 = vpack.c.b16 %v684, %v682
        %v767 = vpack.c.b16 %v687, %v685
        %v768 = vpack.c.b16 %v688, %v686
        %v769 = vpack.c.b16 %v691, %v689
        %v770 = vpack.c.b16 %v692, %v690
        %v771 = vpack.c.b16 %v695, %v693
        %v772 = vpack.c.b16 %v696, %v694
        %v773 = vpack.c.b16 %v699, %v697
        %v774 = vpack.c.b16 %v700, %v698
        %v775 = vpack.c.b16 %v703, %v701
        %v776 = vpack.c.b16 %v704, %v702
        %v777 = vpack.c.b16 %v707, %v705
        %v778 = vpack.c.b16 %v708, %v706
        %v779 = vpack.c.b16 %v711, %v709
        %v780 = vpack.c.b16 %v712, %v710
        %v781 = vpack.c.b16 %v715, %v713
        %v782 = vpack.c.b16 %v716, %v714
        %v783 = vpack.c.b16 %v719, %v717
        %v784 = vpack.c.b16 %v720, %v718
        %849 = vmatpush.bf16.msra.mxu0 %v735
        %850 = vmatpush.bf16.msra.mxu0 %v733
        %851 = vmatpush.bf16.msra.mxu0 %v731
        %852 = vmatpush.bf16.msra.mxu0 %v729
        %853 = vmatpush.bf16.msra.mxu0 %v727
        %854 = vmatpush.bf16.msra.mxu0 %v725
        %855 = vmatpush.bf16.msra.mxu0 %v723
        %856 = vmatpush.bf16.msra.mxu0 %v721
        %857 = vmatmul.bf16.gmra.mxu0 %v505
        %v858 = vpop.f32.mrf.mxu0
        %v859 = vadd.f32 0.0, %v858
        %v860 = vpop.f32.mrf.mxu0
        %v861 = vadd.f32 0.0, %v860
        %862 = vmatmul.bf16.gmra.mxu0 %v509
        %v863 = vpop.f32.mrf.mxu0
        %v864 = vadd.f32 0.0, %v863
        %v865 = vpop.f32.mrf.mxu0
        %v866 = vadd.f32 0.0, %v865
        %867 = vmatmul.bf16.gmra.mxu0 %v513
        %v868 = vpop.f32.mrf.mxu0
        %v869 = vadd.f32 0.0, %v868
        %v870 = vpop.f32.mrf.mxu0
        %871 = vdwg.mxu0
        %872 = vmatpush.bf16.msra.mxu0 %v751
        %873 = vmatpush.bf16.msra.mxu0 %v749
        %874 = vmatpush.bf16.msra.mxu0 %v747
        %875 = vmatpush.bf16.msra.mxu0 %v745
        %876 = vmatpush.bf16.msra.mxu0 %v743
        %877 = vmatpush.bf16.msra.mxu0 %v741
        %878 = vmatpush.bf16.msra.mxu0 %v739
        %879 = vmatpush.bf16.msra.mxu0 %v737
        %880 = vmatmul.bf16.gmra.mxu0 %v506
        %v881 = vpop.f32.mrf.mxu0
        %v882 = vadd.f32 %v859, %v881
        %v883 = vpop.f32.mrf.mxu0
        %v884 = vadd.f32 %v861, %v883
        %885 = vmatmul.bf16.gmra.mxu0 %v510
        %v886 = vpop.f32.mrf.mxu0
        %v887 = vadd.f32 %v864, %v886
        %v888 = vpop.f32.mrf.mxu0
        %v889 = vadd.f32 %v866, %v888
        %890 = vmatmul.bf16.gmra.mxu0 %v514
        %v891 = vpop.f32.mrf.mxu0
        %v892 = vadd.f32 %v869, %v891
        %v893 = vpop.f32.mrf.mxu0
        %894 = vdwg.mxu0
        %895 = vmatpush.bf16.msra.mxu0 %v767
        %896 = vmatpush.bf16.msra.mxu0 %v765
        %897 = vmatpush.bf16.msra.mxu0 %v763
        %898 = vmatpush.bf16.msra.mxu0 %v761
        %899 = vmatpush.bf16.msra.mxu0 %v759
        %900 = vmatpush.bf16.msra.mxu0 %v757
        %901 = vmatpush.bf16.msra.mxu0 %v755
        %902 = vmatpush.bf16.msra.mxu0 %v753
        %903 = vmatmul.bf16.gmra.mxu0 %v507
        %v904 = vpop.f32.mrf.mxu0
        %v905 = vadd.f32 %v882, %v904
        %v906 = vpop.f32.mrf.mxu0
        %v907 = vadd.f32 %v884, %v906
        %908 = vmatmul.bf16.gmra.mxu0 %v511
        %v909 = vpop.f32.mrf.mxu0
        %v910 = vadd.f32 %v887, %v909
        %v911 = vpop.f32.mrf.mxu0
        %v912 = vadd.f32 %v889, %v911
        %913 = vmatmul.bf16.gmra.mxu0 %v515
        %v914 = vpop.f32.mrf.mxu0
        %v915 = vadd.f32 %v892, %v914
        %v916 = vpop.f32.mrf.mxu0
        %917 = vdwg.mxu0
        %918 = vmatpush.bf16.msra.mxu0 %v783
        %919 = vmatpush.bf16.msra.mxu0 %v781
        %920 = vmatpush.bf16.msra.mxu0 %v779
        %921 = vmatpush.bf16.msra.mxu0 %v777
        %922 = vmatpush.bf16.msra.mxu0 %v775
        %923 = vmatpush.bf16.msra.mxu0 %v773
        %924 = vmatpush.bf16.msra.mxu0 %v771
        %925 = vmatpush.bf16.msra.mxu0 %v769
        %926 = vmatmul.bf16.gmra.mxu0 %v508
        %v927 = vpop.f32.mrf.mxu0
        %v928 = vadd.f32 %v905, %v927
        %v929 = vpop.f32.mrf.mxu0
        %v930 = vadd.f32 %v907, %v929
        %931 = vmatmul.bf16.gmra.mxu0 %v512
        %v932 = vpop.f32.mrf.mxu0
        %v933 = vadd.f32 %v910, %v932
        %v934 = vpop.f32.mrf.mxu0
        %v935 = vadd.f32 %v912, %v934
        %936 = vmatmul.bf16.gmra.mxu0 %v516
        %v937 = vpop.f32.mrf.mxu0
        %v938 = vadd.f32 %v915, %v937
        %v939 = vpop.f32.mrf.mxu0
        %940 = vdwg.mxu0
        %941 = vmatpush.bf16.msra.mxu0 %v736
        %942 = vmatpush.bf16.msra.mxu0 %v734
        %943 = vmatpush.bf16.msra.mxu0 %v732
        %944 = vmatpush.bf16.msra.mxu0 %v730
        %945 = vmatpush.bf16.msra.mxu0 %v728
        %946 = vmatpush.bf16.msra.mxu0 %v726
        %947 = vmatpush.bf16.msra.mxu0 %v724
        %948 = vmatpush.bf16.msra.mxu0 %v722
        %949 = vmatmul.bf16.gmra.mxu0 %v505
        %v950 = vpop.f32.mrf.mxu0
        %v951 = vadd.f32 0.0, %v950
        %v952 = vpop.f32.mrf.mxu0
        %v953 = vadd.f32 0.0, %v952
        %954 = vmatmul.bf16.gmra.mxu0 %v509
        %v955 = vpop.f32.mrf.mxu0
        %v956 = vadd.f32 0.0, %v955
        %v957 = vpop.f32.mrf.mxu0
        %v958 = vadd.f32 0.0, %v957
        %959 = vmatmul.bf16.gmra.mxu0 %v513
        %v960 = vpop.f32.mrf.mxu0
        %v961 = vadd.f32 0.0, %v960
        %v962 = vpop.f32.mrf.mxu0
        %963 = vdwg.mxu0
        %964 = vmatpush.bf16.msra.mxu0 %v752
        %965 = vmatpush.bf16.msra.mxu0 %v750
        %966 = vmatpush.bf16.msra.mxu0 %v748
        %967 = vmatpush.bf16.msra.mxu0 %v746
        %968 = vmatpush.bf16.msra.mxu0 %v744
        %969 = vmatpush.bf16.msra.mxu0 %v742
        %970 = vmatpush.bf16.msra.mxu0 %v740
        %971 = vmatpush.bf16.msra.mxu0 %v738
        %972 = vmatmul.bf16.gmra.mxu0 %v506
        %v973 = vpop.f32.mrf.mxu0
        %v974 = vadd.f32 %v951, %v973
        %v975 = vpop.f32.mrf.mxu0
        %v976 = vadd.f32 %v953, %v975
        %977 = vmatmul.bf16.gmra.mxu0 %v510
        %v978 = vpop.f32.mrf.mxu0
        %v979 = vadd.f32 %v956, %v978
        %v980 = vpop.f32.mrf.mxu0
        %v981 = vadd.f32 %v958, %v980
        %982 = vmatmul.bf16.gmra.mxu0 %v514
        %v983 = vpop.f32.mrf.mxu0
        %v984 = vadd.f32 %v961, %v983
        %v985 = vpop.f32.mrf.mxu0
        %986 = vdwg.mxu0
        %987 = vmatpush.bf16.msra.mxu0 %v768
        %988 = vmatpush.bf16.msra.mxu0 %v766
        %989 = vmatpush.bf16.msra.mxu0 %v764
        %990 = vmatpush.bf16.msra.mxu0 %v762
        %991 = vmatpush.bf16.msra.mxu0 %v760
        %992 = vmatpush.bf16.msra.mxu0 %v758
        %993 = vmatpush.bf16.msra.mxu0 %v756
        %994 = vmatpush.bf16.msra.mxu0 %v754
        %995 = vmatmul.bf16.gmra.mxu0 %v507
        %v996 = vpop.f32.mrf.mxu0
        %v997 = vadd.f32 %v974, %v996
        %v998 = vpop.f32.mrf.mxu0
        %v999 = vadd.f32 %v976, %v998
        %1000 = vmatmul.bf16.gmra.mxu0 %v511
        %v1001 = vpop.f32.mrf.mxu0
        %v1002 = vadd.f32 %v979, %v1001
        %v1003 = vpop.f32.mrf.mxu0
        %v1004 = vadd.f32 %v981, %v1003
        %1005 = vmatmul.bf16.gmra.mxu0 %v515
        %v1006 = vpop.f32.mrf.mxu0
        %v1007 = vadd.f32 %v984, %v1006
        %v1008 = vpop.f32.mrf.mxu0
        %1009 = vdwg.mxu0
        %1010 = vmatpush.bf16.msra.mxu0 %v784
        %1011 = vmatpush.bf16.msra.mxu0 %v782
        %1012 = vmatpush.bf16.msra.mxu0 %v780
        %1013 = vmatpush.bf16.msra.mxu0 %v778
        %1014 = vmatpush.bf16.msra.mxu0 %v776
        %1015 = vmatpush.bf16.msra.mxu0 %v774
        %1016 = vmatpush.bf16.msra.mxu0 %v772
        %1017 = vmatpush.bf16.msra.mxu0 %v770
        %1018 = vmatmul.bf16.gmra.mxu0 %v508
        %v1019 = vpop.f32.mrf.mxu0
        %v1020 = vadd.f32 %v997, %v1019
        %v1021 = vpop.f32.mrf.mxu0
        %v1022 = vadd.f32 %v999, %v1021
        %1023 = vmatmul.bf16.gmra.mxu0 %v512
        %v1024 = vpop.f32.mrf.mxu0
        %v1025 = vadd.f32 %v1002, %v1024
        %v1026 = vpop.f32.mrf.mxu0
        %v1027 = vadd.f32 %v1004, %v1026
        %1028 = vmatmul.bf16.gmra.mxu0 %v516
        %v1029 = vpop.f32.mrf.mxu0
        %v1030 = vadd.f32 %v1007, %v1029
        %v1031 = vpop.f32.mrf.mxu0
        %1032 = vdwg.mxu0
        %v1033 = vadd.f32 %v391, %v928
        %v1034 = vadd.f32 %v392, %v1020
        %v1035 = vadd.f32 %v393, %v930
        %v1036 = vadd.f32 %v394, %v1022
        %v1037 = vadd.f32 %v395, %v933
        %v1038 = vadd.f32 %v396, %v1025
        %v1039 = vadd.f32 %v397, %v935
        %v1040 = vadd.f32 %v398, %v1027
        %v1041 = vadd.f32 %v399, %v938
        %v1042 = vadd.f32 %v400, %v1030
        %1043 = vst [vmem:[#allocation2] sm:$0xff] %v1033
        %1044 = vst [vmem:[#allocation2 + $0x8] sm:$0xff] %v1034
        %1045 = vst [vmem:[#allocation2 + $0x10] sm:$0xff] %v1035
        %1046 = vst [vmem:[#allocation2 + $0x18] sm:$0xff] %v1036
        %1047 = vst [vmem:[#allocation2 + $0x20] sm:$0xff] %v1037
        %1048 = vst [vmem:[#allocation2 + $0x28] sm:$0xff] %v1038
        %1049 = vst [vmem:[#allocation2 + $0x30] sm:$0xff] %v1039
        %1050 = vst [vmem:[#allocation2 + $0x38] sm:$0xff] %v1040
        %1051 = vst [vmem:[#allocation2 + $0x40] sm:$0x3] %v1041
        %1052 = vst [vmem:[#allocation2 + $0x48] sm:$0x3] %v1042
        %p1053 = scmp.eq.s32.totalorder %s22, 1
        // Predicated region
        $region64: #{_lambda_.25} parent=54 // pred_check
          %p1054 = pneg %p1053
        $region65: #{_lambda_.25} parent=54 // pred_check_branch
          %1056 = sbr.rel (%p1054) target = $region67
        $region66: #{_lambda_.25} parent=54 // pred_region
          %v1057 = vld [vmem:[#allocation2] sm:$0xff]
          %v1058 = vld [vmem:[#allocation2 + $0x8] sm:$0xff]
          %v1059 = vld [vmem:[#allocation2 + $0x10] sm:$0xff]
          %v1060 = vld [vmem:[#allocation2 + $0x18] sm:$0xff]
          %v1061 = vld [vmem:[#allocation2 + $0x20] sm:$0xff]
          %v1062 = vld [vmem:[#allocation2 + $0x28] sm:$0xff]
          %v1063 = vld [vmem:[#allocation2 + $0x30] sm:$0xff]
          %v1064 = vld [vmem:[#allocation2 + $0x38] sm:$0xff]
          %v1065 = vld [vmem:[#allocation2 + $0x40] sm:$0x3]
          %v1066 = vld [vmem:[#allocation2 + $0x48] sm:$0x3]
          %v1067 = vld [vmem:[%s351] sm:$0x3]
          %v1069 = vperm.slane %v1067, 0
          %v1070 = vperm.slane %v1067, 1
          %v1073 = vadd.f32 %v1057, %v1069
          %v1074 = vadd.f32 %v1058, %v1070
          %v1075 = vadd.f32 %v1059, %v1069
          %v1076 = vadd.f32 %v1060, %v1070
          %v1077 = vadd.f32 %v1061, %v1069
          %v1078 = vadd.f32 %v1062, %v1070
          %v1079 = vadd.f32 %v1063, %v1069
          %v1080 = vadd.f32 %v1064, %v1070
          %v1081 = vadd.f32 %v1065, %v1069
          %v1082 = vadd.f32 %v1066, %v1070
          %v1083 = vld [vmem:[%s362] sm:$0xff]
          %v1084 = vld [vmem:[%s362 + $0x8] sm:$0xff]
          %v1085 = vld [vmem:[%s362 + $0x10] sm:$0xff]
          %v1086 = vld [vmem:[%s362 + $0x18] sm:$0xff]
          %v1087 = vld [vmem:[%s362 + $0x20] sm:$0x11]
          %v1088 = vunpack.c.l.bf16 %v1083
          %v1089 = vunpack.c.h.bf16 %v1083
          %v1090 = vunpack.c.l.bf16 %v1084
          %v1091 = vunpack.c.h.bf16 %v1084
          %v1092 = vunpack.c.l.bf16 %v1085
          %v1093 = vunpack.c.h.bf16 %v1085
          %v1094 = vunpack.c.l.bf16 %v1086
          %v1095 = vunpack.c.h.bf16 %v1086
          %v1096 = vunpack.c.l.bf16 %v1087
          %v1097 = vunpack.c.h.bf16 %v1087
          %v1098 = vadd.f32 %v1073, %v1088
          %v1099 = vadd.f32 %v1074, %v1089
          %v1100 = vadd.f32 %v1075, %v1090
          %v1101 = vadd.f32 %v1076, %v1091
          %v1102 = vadd.f32 %v1077, %v1092
          %v1103 = vadd.f32 %v1078, %v1093
          %v1104 = vadd.f32 %v1079, %v1094
          %v1105 = vadd.f32 %v1080, %v1095
          %v1106 = vadd.f32 %v1081, %v1096
          %v1107 = vadd.f32 %v1082, %v1097
          %v1108 = vpack.c.bf16 %v1099, %v1098
          %v1109 = vpack.c.bf16 %v1101, %v1100
          %v1110 = vpack.c.bf16 %v1103, %v1102
          %v1111 = vpack.c.bf16 %v1105, %v1104
          %v1112 = vpack.c.bf16 %v1107, %v1106
          %1113 = vst [vmem:[%s374] sm:$0xff] %v1108
          %1114 = vst [vmem:[%s374 + $0x8] sm:$0xff] %v1109
          %1115 = vst [vmem:[%s374 + $0x10] sm:$0xff] %v1110
          %1116 = vst [vmem:[%s374 + $0x18] sm:$0xff] %v1111
          %1117 = vst [vmem:[%s374 + $0x20] sm:$0x11] %v1112
        $region67: #{_lambda_.25} parent=54 // pred_fallthru
          _
        %s1118 = smul.u32 5, %s20
        %s1119 = smul.u32 2, %s21
        %p1120 = scmp.lt.s32.totalorder %s1118, 4
        %s1121 = scalar_select %p1120, %s1118, 4
        %p1122 = scmp.lt.s32.totalorder %s1119, 1
        %s1123 = scalar_select %p1122, %s1119, 1
        %s1124 = smul.addr %s1121, 2
        %s1125 = sadd.s32 %s1123, %s1124
        %s1126 = smul.addr %s1125, 4
        %s1127 = scalar_lea.vmem %s4, %s1126
        // Predicated region
        $region68: #{_lambda_.25} parent=54 // pred_check
          %p1128 = pneg %p164
        $region69: #{_lambda_.25} parent=54 // pred_check_branch
          %1130 = sbr.rel (%p1128) target = $region71
        $region70: #{_lambda_.25} parent=54 // pred_region
          %s1131 = smul.u32 5, %s20
          %s1132 = smul.u32 2, %s21
        $region71: #{_lambda_.25} parent=54 // pred_fallthru
          _
        // Predicated region
        $region72: #{_lambda_.25} parent=54 // pred_check
          %p1133 = pneg %p164
        $region73: #{_lambda_.25} parent=54 // pred_check_branch
          %1135 = sbr.rel (%p1133) target = $region75
        $region74: #{_lambda_.25} parent=54 // pred_region
          %s1136 = smul.u32 5, %s20
          %s1137 = smul.u32 2, %s21
          %p1138 = scmp.lt.s32.totalorder %s1136, 4
          %s1139 = scalar_select %p1138, %s1136, 4
          %p1140 = scmp.lt.s32.totalorder %s1137, 1
          %s1141 = scalar_select %p1140, %s1137, 1
          %s1142 = smul.addr %s1139, 2
          %s1143 = sadd.s32 %s1141, %s1142
          %s1144 = smul.addr %s1143, 4
          %s1145 = scalar_lea.vmem %s4, %s1144
        $region75: #{_lambda_.25} parent=54 // pred_fallthru
          _
      $region55: #{_lambda_.25} parent=5 // pred_fallthru
        _
      %p1146 = scmp.le.s32.totalorder 2, %s10
      // Predicated region
      $region76: #{_lambda_.25} parent=5 // pred_check
        %p1147 = pneg %p1146
      $region77: #{_lambda_.25} parent=5 // pred_check_branch
        %1149 = sbr.rel (%p1147) target = $region79
      $region78: #{_lambda_.25} parent=5 // pred_region
        %s1150 = ssub.s32 %s10, 2
      $region79: #{_lambda_.25} parent=5 // pred_fallthru
        _
    $region6: #{_lambda_.25} parent=1 // loop_footer
      %s14 = sadd.s32 1, %s10
    $region7: #{_lambda_.25} parent=1 // loop_footer_branch
      %9 = sbr.rel target = $region3
    $region8: #{_lambda_.25} parent=1 // loop_exit
      _

// kernel: _lambda_.34
$region0: #{_lambda_.34}
  #allocation0 [shape = 'u32[]', space=smem, size = 0x4, offset = 0x4, fixed_abs, tag = 'smem constant byte address 0x4 - core index']
  #allocation1 [shape = 'u32[72,128]{1,0:T(1,128)}', space=vmem, size = 0x9000, scoped, tag = 'internal scratch']
  #allocation2 [shape = 'f32[2,256]{1,0:T(2,128)}', space=vmem, size = 0x800, scoped, tag = 'scratch operand']
  %s0 = inlined_call_operand.vmem [shape: bf16[2,256], index: 0, kind: input, shape index: {}]
  %s1 = inlined_call_operand.vmem [shape: bf16[256,256], index: 1, kind: input, shape index: {}]
  %s2 = inlined_call_operand.vmem [shape: f32[1,256], index: 2, kind: input, shape index: {}]
  %s3 = inlined_call_operand.vmem [shape: bf16[2,256], index: 3, kind: output, shape index: {}]
  %s4 = sld [smem:[#allocation0]]
  $region30: #{_lambda_.34} parent=0
    _
  %s6 = ssub.s32 1, %s4
  %s7 = scalar_select 0, %s6, %s4
  // Predicated region
  $region2: #{_lambda_.34} parent=0 // pred_check
    _
  $region3: #{_lambda_.34} parent=0 // pred_check_branch
    %9 = sbr.rel (0) target = $region5
  $region4: #{_lambda_.34} parent=0 // pred_region
    _
  $region5: #{_lambda_.34} parent=0 // pred_fallthru
    _
  // Predicated region
  $region6: #{_lambda_.34} parent=0 // pred_check
    _
  $region7: #{_lambda_.34} parent=0 // pred_check_branch
    %11 = sbr.rel (0) target = $region9
  $region8: #{_lambda_.34} parent=0 // pred_region
    _
  $region9: #{_lambda_.34} parent=0 // pred_fallthru
    _
  // Predicated region
  $region10: #{_lambda_.34} parent=0 // pred_check
    _
  $region11: #{_lambda_.34} parent=0 // pred_check_branch
    %13 = sbr.rel (0) target = $region13
  $region12: #{_lambda_.34} parent=0 // pred_region
    _
  $region13: #{_lambda_.34} parent=0 // pred_fallthru
    _
  %p14 = scmp.eq.s32.totalorder 0, 0
  // Predicated region
  $region14: #{_lambda_.34} parent=0 // pred_check
    %p15 = pneg %p14
  $region15: #{_lambda_.34} parent=0 // pred_check_branch
    %17 = sbr.rel (%p15) target = $region17
  $region16: #{_lambda_.34} parent=0 // pred_region
    %18 = vst [vmem:[#allocation2] sm:$0xf] 0.0
  $region17: #{_lambda_.34} parent=0 // pred_fallthru
    _
  %v19 = vld [vmem:[#allocation2] sm:$0xf]
  %v20 = vld [vmem:[%s0] sm:$0x3]
  %v21 = vld [vmem:[%s1] sm:$0xff]
  %v22 = vld [vmem:[%s1 + $0x8] sm:$0xff]
  %v23 = vld [vmem:[%s1 + $0x10] sm:$0xff]
  %v24 = vld [vmem:[%s1 + $0x18] sm:$0xff]
  %v25 = vld [vmem:[%s1 + $0x20] sm:$0xff]
  %v26 = vld [vmem:[%s1 + $0x28] sm:$0xff]
  %v27 = vld [vmem:[%s1 + $0x30] sm:$0xff]
  %v28 = vld [vmem:[%s1 + $0x38] sm:$0xff]
  %v29 = vld [vmem:[%s1 + $0x40] sm:$0xff]
  %v30 = vld [vmem:[%s1 + $0x48] sm:$0xff]
  %v31 = vld [vmem:[%s1 + $0x50] sm:$0xff]
  %v32 = vld [vmem:[%s1 + $0x58] sm:$0xff]
  %v33 = vld [vmem:[%s1 + $0x60] sm:$0xff]
  %v34 = vld [vmem:[%s1 + $0x68] sm:$0xff]
  %v35 = vld [vmem:[%s1 + $0x70] sm:$0xff]
  %v36 = vld [vmem:[%s1 + $0x78] sm:$0xff]
  %v37 = vld [vmem:[%s1 + $0x80] sm:$0xff]
  %v38 = vld [vmem:[%s1 + $0x88] sm:$0xff]
  %v39 = vld [vmem:[%s1 + $0x90] sm:$0xff]
  %v40 = vld [vmem:[%s1 + $0x98] sm:$0xff]
  %v41 = vld [vmem:[%s1 + $0xa0] sm:$0xff]
  %v42 = vld [vmem:[%s1 + $0xa8] sm:$0xff]
  %v43 = vld [vmem:[%s1 + $0xb0] sm:$0xff]
  %v44 = vld [vmem:[%s1 + $0xb8] sm:$0xff]
  %v45 = vld [vmem:[%s1 + $0xc0] sm:$0xff]
  %v46 = vld [vmem:[%s1 + $0xc8] sm:$0xff]
  %v47 = vld [vmem:[%s1 + $0xd0] sm:$0xff]
  %v48 = vld [vmem:[%s1 + $0xd8] sm:$0xff]
  %v49 = vld [vmem:[%s1 + $0xe0] sm:$0xff]
  %v50 = vld [vmem:[%s1 + $0xe8] sm:$0xff]
  %v51 = vld [vmem:[%s1 + $0xf0] sm:$0xff]
  %v52 = vld [vmem:[%s1 + $0xf8] sm:$0xff]
  %54 = vst [vmem:[#allocation1] ss:$9 sm:$0xff] %v20
  %v55 = vld [vmem:[#allocation1] sm:$0xff]
  %v56 = vld [vmem:[#allocation1 + $0x9] sm:$0xff]
  %v91 = vunpack.c.l.b16 %v21
  %v92 = vunpack.c.h.b16 %v21
  %v93 = vunpack.c.l.b16 %v22
  %v94 = vunpack.c.h.b16 %v22
  %v95 = vunpack.c.l.b16 %v23
  %v96 = vunpack.c.h.b16 %v23
  %v97 = vunpack.c.l.b16 %v24
  %v98 = vunpack.c.h.b16 %v24
  %v99 = vunpack.c.l.b16 %v25
  %v100 = vunpack.c.h.b16 %v25
  %v101 = vunpack.c.l.b16 %v26
  %v102 = vunpack.c.h.b16 %v26
  %v103 = vunpack.c.l.b16 %v27
  %v104 = vunpack.c.h.b16 %v27
  %v105 = vunpack.c.l.b16 %v28
  %v106 = vunpack.c.h.b16 %v28
  %v107 = vunpack.c.l.b16 %v29
  %v108 = vunpack.c.h.b16 %v29
  %v109 = vunpack.c.l.b16 %v30
  %v110 = vunpack.c.h.b16 %v30
  %v111 = vunpack.c.l.b16 %v31
  %v112 = vunpack.c.h.b16 %v31
  %v113 = vunpack.c.l.b16 %v32
  %v114 = vunpack.c.h.b16 %v32
  %v115 = vunpack.c.l.b16 %v33
  %v116 = vunpack.c.h.b16 %v33
  %v117 = vunpack.c.l.b16 %v34
  %v118 = vunpack.c.h.b16 %v34
  %v119 = vunpack.c.l.b16 %v35
  %v120 = vunpack.c.h.b16 %v35
  %v121 = vunpack.c.l.b16 %v36
  %v122 = vunpack.c.h.b16 %v36
  %v123 = vunpack.c.l.b16 %v37
  %v124 = vunpack.c.h.b16 %v37
  %v125 = vunpack.c.l.b16 %v38
  %v126 = vunpack.c.h.b16 %v38
  %v127 = vunpack.c.l.b16 %v39
  %v128 = vunpack.c.h.b16 %v39
  %v129 = vunpack.c.l.b16 %v40
  %v130 = vunpack.c.h.b16 %v40
  %v131 = vunpack.c.l.b16 %v41
  %v132 = vunpack.c.h.b16 %v41
  %v133 = vunpack.c.l.b16 %v42
  %v134 = vunpack.c.h.b16 %v42
  %v135 = vunpack.c.l.b16 %v43
  %v136 = vunpack.c.h.b16 %v43
  %v137 = vunpack.c.l.b16 %v44
  %v138 = vunpack.c.h.b16 %v44
  %v139 = vunpack.c.l.b16 %v45
  %v140 = vunpack.c.h.b16 %v45
  %v141 = vunpack.c.l.b16 %v46
  %v142 = vunpack.c.h.b16 %v46
  %v143 = vunpack.c.l.b16 %v47
  %v144 = vunpack.c.h.b16 %v47
  %v145 = vunpack.c.l.b16 %v48
  %v146 = vunpack.c.h.b16 %v48
  %v147 = vunpack.c.l.b16 %v49
  %v148 = vunpack.c.h.b16 %v49
  %v149 = vunpack.c.l.b16 %v50
  %v150 = vunpack.c.h.b16 %v50
  %v151 = vunpack.c.l.b16 %v51
  %v152 = vunpack.c.h.b16 %v51
  %v153 = vunpack.c.l.b16 %v52
  %v154 = vunpack.c.h.b16 %v52
  %v155 = vpack.c.b16 %v93, %v91
  %v156 = vpack.c.b16 %v94, %v92
  %v157 = vpack.c.b16 %v97, %v95
  %v158 = vpack.c.b16 %v98, %v96
  %v159 = vpack.c.b16 %v101, %v99
  %v160 = vpack.c.b16 %v102, %v100
  %v161 = vpack.c.b16 %v105, %v103
  %v162 = vpack.c.b16 %v106, %v104
  %v163 = vpack.c.b16 %v109, %v107
  %v164 = vpack.c.b16 %v110, %v108
  %v165 = vpack.c.b16 %v113, %v111
  %v166 = vpack.c.b16 %v114, %v112
  %v167 = vpack.c.b16 %v117, %v115
  %v168 = vpack.c.b16 %v118, %v116
  %v169 = vpack.c.b16 %v121, %v119
  %v170 = vpack.c.b16 %v122, %v120
  %v171 = vpack.c.b16 %v125, %v123
  %v172 = vpack.c.b16 %v126, %v124
  %v173 = vpack.c.b16 %v129, %v127
  %v174 = vpack.c.b16 %v130, %v128
  %v175 = vpack.c.b16 %v133, %v131
  %v176 = vpack.c.b16 %v134, %v132
  %v177 = vpack.c.b16 %v137, %v135
  %v178 = vpack.c.b16 %v138, %v136
  %v179 = vpack.c.b16 %v141, %v139
  %v180 = vpack.c.b16 %v142, %v140
  %v181 = vpack.c.b16 %v145, %v143
  %v182 = vpack.c.b16 %v146, %v144
  %v183 = vpack.c.b16 %v149, %v147
  %v184 = vpack.c.b16 %v150, %v148
  %v185 = vpack.c.b16 %v153, %v151
  %v186 = vpack.c.b16 %v154, %v152
  %219 = vmatpush.bf16.msra.mxu0 %v169
  %220 = vmatpush.bf16.msra.mxu0 %v167
  %221 = vmatpush.bf16.msra.mxu0 %v165
  %222 = vmatpush.bf16.msra.mxu0 %v163
  %223 = vmatpush.bf16.msra.mxu0 %v161
  %224 = vmatpush.bf16.msra.mxu0 %v159
  %225 = vmatpush.bf16.msra.mxu0 %v157
  %226 = vmatpush.bf16.msra.mxu0 %v155
  %227 = vmatmul.bf16.gmra.mxu0 %v55
  %v228 = vpop.f32.mrf.mxu0
  %v229 = vadd.f32 0.0, %v228
  %v230 = vpop.f32.mrf.mxu0
  %231 = vdwg.mxu0
  %232 = vmatpush.bf16.msra.mxu0 %v185
  %233 = vmatpush.bf16.msra.mxu0 %v183
  %234 = vmatpush.bf16.msra.mxu0 %v181
  %235 = vmatpush.bf16.msra.mxu0 %v179
  %236 = vmatpush.bf16.msra.mxu0 %v177
  %237 = vmatpush.bf16.msra.mxu0 %v175
  %238 = vmatpush.bf16.msra.mxu0 %v173
  %239 = vmatpush.bf16.msra.mxu0 %v171
  %240 = vmatmul.bf16.gmra.mxu0 %v56
  %v241 = vpop.f32.mrf.mxu0
  %v242 = vadd.f32 %v229, %v241
  %v243 = vpop.f32.mrf.mxu0
  %244 = vdwg.mxu0
  %245 = vmatpush.bf16.msra.mxu0 %v170
  %246 = vmatpush.bf16.msra.mxu0 %v168
  %247 = vmatpush.bf16.msra.mxu0 %v166
  %248 = vmatpush.bf16.msra.mxu0 %v164
  %249 = vmatpush.bf16.msra.mxu0 %v162
  %250 = vmatpush.bf16.msra.mxu0 %v160
  %251 = vmatpush.bf16.msra.mxu0 %v158
  %252 = vmatpush.bf16.msra.mxu0 %v156
  %253 = vmatmul.bf16.gmra.mxu0 %v55
  %v254 = vpop.f32.mrf.mxu0
  %v255 = vadd.f32 0.0, %v254
  %v256 = vpop.f32.mrf.mxu0
  %257 = vdwg.mxu0
  %258 = vmatpush.bf16.msra.mxu0 %v186
  %259 = vmatpush.bf16.msra.mxu0 %v184
  %260 = vmatpush.bf16.msra.mxu0 %v182
  %261 = vmatpush.bf16.msra.mxu0 %v180
  %262 = vmatpush.bf16.msra.mxu0 %v178
  %263 = vmatpush.bf16.msra.mxu0 %v176
  %264 = vmatpush.bf16.msra.mxu0 %v174
  %265 = vmatpush.bf16.msra.mxu0 %v172
  %266 = vmatmul.bf16.gmra.mxu0 %v56
  %v267 = vpop.f32.mrf.mxu0
  %v268 = vadd.f32 %v255, %v267
  %v269 = vpop.f32.mrf.mxu0
  %270 = vdwg.mxu0
  %v273 = vrot.slane %v268, 6
  %vm274 = vcmask 1041408
  %v275 = vsel %vm274, %v242, %v273
  %v277 = vadd.f32 %v19, %v275
  %278 = vst [vmem:[#allocation2] sm:$0xf] %v277
  // Predicated region
  $region18: #{_lambda_.34} parent=0 // pred_check
    %p279 = pneg %p14
  $region19: #{_lambda_.34} parent=0 // pred_check_branch
    %281 = sbr.rel (%p279) target = $region21
  $region20: #{_lambda_.34} parent=0 // pred_region
    %v282 = vld [vmem:[#allocation2] sm:$0xf]
    %v283 = vld [vmem:[%s2] sm:$0x3]
    %v285 = vperm.slane %v283, 0
    %v286 = vperm.slane %v283, 1
    %v287 = vrot.slane %v286, 6
    %v288 = vsel %vm274, %v285, %v287
    %v290 = vadd.f32 %v282, %v288
    %v291 = vmax.f32 %v290, 0.0
    %293 = vst [vmem:[#allocation1] ss:$4 sm:$0xff] %v291
    %v294 = vld.sshfl [vmem:[#allocation1] sm:$0xff pattern:$0x73625140]
    %v295 = vld.sshfl [vmem:[#allocation1 + $0x8] sm:$0xff pattern:$0x73625140]
    %v298 = vpack.c.bf16 %v295, %v294
    %v300 = vrot.slane %v298, 3
    %vm301 = vcmask 1040384
    %v304 = vsel %vm301, %v298, %v300
    %306 = vst [vmem:[%s3] sm:$0x3] %v304
  $region21: #{_lambda_.34} parent=0 // pred_fallthru
    _
  // Predicated region
  $region22: #{_lambda_.34} parent=0 // pred_check
    _
  $region23: #{_lambda_.34} parent=0 // pred_check_branch
    %308 = sbr.rel (0) target = $region25
  $region24: #{_lambda_.34} parent=0 // pred_region
    _
  $region25: #{_lambda_.34} parent=0 // pred_fallthru
    _
  // Predicated region
  $region26: #{_lambda_.34} parent=0 // pred_check
    _
  $region27: #{_lambda_.34} parent=0 // pred_check_branch
    %310 = sbr.rel (0) target = $region29
  $region28: #{_lambda_.34} parent=0 // pred_region
    _
  $region29: #{_lambda_.34} parent=0 // pred_fallthru
    _

// kernel: _lambda_.35
$region0: #{_lambda_.35}
  #allocation0 [shape = 'u32[]', space=smem, size = 0x4, offset = 0x4, fixed_abs, tag = 'smem constant byte address 0x4 - core index']
  #allocation1 [shape = 'u32[72,128]{1,0:T(1,128)}', space=vmem, size = 0x9000, scoped, tag = 'internal scratch']
  %s0 = inlined_call_operand.vmem [shape: bf16[2,256], index: 0, kind: input, shape index: {}]
  %s1 = inlined_call_operand.vmem [shape: bf16[256,128], index: 1, kind: input, shape index: {}]
  %s2 = inlined_call_operand.vmem [shape: f32[1,128], index: 2, kind: input, shape index: {}]
  %s3 = inlined_call_operand.hbm [shape: f32[2,128], index: 3, kind: output, shape index: {}]
  %s4 = sld [smem:[#allocation0]]
  $region22: #{_lambda_.35} parent=0
    _
  %s6 = ssub.s32 1, %s4
  %s7 = scalar_select 0, %s6, %s4
  $region1: #{_lambda_.35} parent=0
    #allocation2 [shape = 'u8[1024]{0}', space=vmem, size = 0x400, scoped, tag = 'output window, operand 0, single buffered']
    #allocation3 [shape = 's32[1]{0}', space=sflag, size = 0x4, scoped, tag = 'scoped memory for _lambda_.35']
    %8 = vsyncpa [#allocation3], 0
    // Predicated region
    $region2: #{_lambda_.35} parent=1 // pred_check
      _
    $region3: #{_lambda_.35} parent=1 // pred_check_branch
      %10 = sbr.rel (0) target = $region5
    $region4: #{_lambda_.35} parent=1 // pred_region
      _
    $region5: #{_lambda_.35} parent=1 // pred_fallthru
      _
    // Predicated region
    $region6: #{_lambda_.35} parent=1 // pred_check
      _
    $region7: #{_lambda_.35} parent=1 // pred_check_branch
      %12 = sbr.rel (0) target = $region9
    $region8: #{_lambda_.35} parent=1 // pred_region
      _
    $region9: #{_lambda_.35} parent=1 // pred_fallthru
      _
    // Predicated region
    $region10: #{_lambda_.35} parent=1 // pred_check
      _
    $region11: #{_lambda_.35} parent=1 // pred_check_branch
      %14 = sbr.rel (0) target = $region13
    $region12: #{_lambda_.35} parent=1 // pred_region
      _
    $region13: #{_lambda_.35} parent=1 // pred_fallthru
      _
    %v15 = vld [vmem:[%s0] sm:$0x3]
    %v16 = vld [vmem:[%s1] sm:$0xf]
    %v17 = vld [vmem:[%s1 + $0x4] sm:$0xf]
    %v18 = vld [vmem:[%s1 + $0x8] sm:$0xf]
    %v19 = vld [vmem:[%s1 + $0xc] sm:$0xf]
    %v20 = vld [vmem:[%s1 + $0x10] sm:$0xf]
    %v21 = vld [vmem:[%s1 + $0x14] sm:$0xf]
    %v22 = vld [vmem:[%s1 + $0x18] sm:$0xf]
    %v23 = vld [vmem:[%s1 + $0x1c] sm:$0xf]
    %v24 = vld [vmem:[%s1 + $0x20] sm:$0xf]
    %v25 = vld [vmem:[%s1 + $0x24] sm:$0xf]
    %v26 = vld [vmem:[%s1 + $0x28] sm:$0xf]
    %v27 = vld [vmem:[%s1 + $0x2c] sm:$0xf]
    %v28 = vld [vmem:[%s1 + $0x30] sm:$0xf]
    %v29 = vld [vmem:[%s1 + $0x34] sm:$0xf]
    %v30 = vld [vmem:[%s1 + $0x38] sm:$0xf]
    %v31 = vld [vmem:[%s1 + $0x3c] sm:$0xf]
    %v32 = vld [vmem:[%s1 + $0x40] sm:$0xf]
    %v33 = vld [vmem:[%s1 + $0x44] sm:$0xf]
    %v34 = vld [vmem:[%s1 + $0x48] sm:$0xf]
    %v35 = vld [vmem:[%s1 + $0x4c] sm:$0xf]
    %v36 = vld [vmem:[%s1 + $0x50] sm:$0xf]
    %v37 = vld [vmem:[%s1 + $0x54] sm:$0xf]
    %v38 = vld [vmem:[%s1 + $0x58] sm:$0xf]
    %v39 = vld [vmem:[%s1 + $0x5c] sm:$0xf]
    %v40 = vld [vmem:[%s1 + $0x60] sm:$0xf]
    %v41 = vld [vmem:[%s1 + $0x64] sm:$0xf]
    %v42 = vld [vmem:[%s1 + $0x68] sm:$0xf]
    %v43 = vld [vmem:[%s1 + $0x6c] sm:$0xf]
    %v44 = vld [vmem:[%s1 + $0x70] sm:$0xf]
    %v45 = vld [vmem:[%s1 + $0x74] sm:$0xf]
    %v46 = vld [vmem:[%s1 + $0x78] sm:$0xf]
    %v47 = vld [vmem:[%s1 + $0x7c] sm:$0xf]
    %v48 = vld [vmem:[%s2] sm:$0x1]
    %v50 = vperm.slane %v48, 0
    %53 = vst [vmem:[#allocation1] ss:$9 sm:$0xff] %v15
    %v54 = vld [vmem:[#allocation1] sm:$0xff]
    %v55 = vld [vmem:[#allocation1 + $0x9] sm:$0xff]
    %v90 = vunpack.c.l.b16 %v16
    %v91 = vunpack.c.l.b16 %v17
    %v92 = vunpack.c.l.b16 %v18
    %v93 = vunpack.c.l.b16 %v19
    %v94 = vunpack.c.l.b16 %v20
    %v95 = vunpack.c.l.b16 %v21
    %v96 = vunpack.c.l.b16 %v22
    %v97 = vunpack.c.l.b16 %v23
    %v98 = vunpack.c.l.b16 %v24
    %v99 = vunpack.c.l.b16 %v25
    %v100 = vunpack.c.l.b16 %v26
    %v101 = vunpack.c.l.b16 %v27
    %v102 = vunpack.c.l.b16 %v28
    %v103 = vunpack.c.l.b16 %v29
    %v104 = vunpack.c.l.b16 %v30
    %v105 = vunpack.c.l.b16 %v31
    %v106 = vunpack.c.l.b16 %v32
    %v107 = vunpack.c.l.b16 %v33
    %v108 = vunpack.c.l.b16 %v34
    %v109 = vunpack.c.l.b16 %v35
    %v110 = vunpack.c.l.b16 %v36
    %v111 = vunpack.c.l.b16 %v37
    %v112 = vunpack.c.l.b16 %v38
    %v113 = vunpack.c.l.b16 %v39
    %v114 = vunpack.c.l.b16 %v40
    %v115 = vunpack.c.l.b16 %v41
    %v116 = vunpack.c.l.b16 %v42
    %v117 = vunpack.c.l.b16 %v43
    %v118 = vunpack.c.l.b16 %v44
    %v119 = vunpack.c.l.b16 %v45
    %v120 = vunpack.c.l.b16 %v46
    %v121 = vunpack.c.l.b16 %v47
    %v122 = vpack.c.b16 %v91, %v90
    %v123 = vpack.c.b16 %v93, %v92
    %v124 = vpack.c.b16 %v95, %v94
    %v125 = vpack.c.b16 %v97, %v96
    %v126 = vpack.c.b16 %v99, %v98
    %v127 = vpack.c.b16 %v101, %v100
    %v128 = vpack.c.b16 %v103, %v102
    %v129 = vpack.c.b16 %v105, %v104
    %v130 = vpack.c.b16 %v107, %v106
    %v131 = vpack.c.b16 %v109, %v108
    %v132 = vpack.c.b16 %v111, %v110
    %v133 = vpack.c.b16 %v113, %v112
    %v134 = vpack.c.b16 %v115, %v114
    %v135 = vpack.c.b16 %v117, %v116
    %v136 = vpack.c.b16 %v119, %v118
    %v137 = vpack.c.b16 %v121, %v120
    %154 = vmatpush.bf16.msra.mxu0 %v129
    %155 = vmatpush.bf16.msra.mxu0 %v128
    %156 = vmatpush.bf16.msra.mxu0 %v127
    %157 = vmatpush.bf16.msra.mxu0 %v126
    %158 = vmatpush.bf16.msra.mxu0 %v125
    %159 = vmatpush.bf16.msra.mxu0 %v124
    %160 = vmatpush.bf16.msra.mxu0 %v123
    %161 = vmatpush.bf16.msra.mxu0 %v122
    %162 = vmatmul.bf16.gmra.mxu0 %v54
    %v163 = vpop.f32.mrf.mxu0
    %v164 = vadd.f32 %v50, %v163
    %v165 = vpop.f32.mrf.mxu0
    %166 = vdwg.mxu0
    %167 = vmatpush.bf16.msra.mxu0 %v137
    %168 = vmatpush.bf16.msra.mxu0 %v136
    %169 = vmatpush.bf16.msra.mxu0 %v135
    %170 = vmatpush.bf16.msra.mxu0 %v134
    %171 = vmatpush.bf16.msra.mxu0 %v133
    %172 = vmatpush.bf16.msra.mxu0 %v132
    %173 = vmatpush.bf16.msra.mxu0 %v131
    %174 = vmatpush.bf16.msra.mxu0 %v130
    %175 = vmatmul.bf16.gmra.mxu0 %v55
    %v176 = vpop.f32.mrf.mxu0
    %v177 = vadd.f32 %v164, %v176
    %v178 = vpop.f32.mrf.mxu0
    %179 = vdwg.mxu0
    %v180 = vmul.f32 %v177, %v177
    %vm181 = vcmask 1041408
    %v182 = vsel %vm181, %v180, 0.0
    %183 = vadd.xlane.f32.xlu0 %v182
    %v184 = vpop.xlane.xlu0 %183
    %v185 = vrsqrt.pop %v184
    %v186 = vmul.f32 %v185, %v184
    %v187 = vmul.f32 %v186, %v185
    %v188 = vmul.f32 0.5, %v187
    %v189 = vsub.f32 1.5, %v188
    %v190 = vmul.f32 %v185, %v189
    %v191 = vmul.f32 %v184, %v190
    %vm192 = vcmp.eq.f32.partialorder %v184, inf
    %v193 = vsel %vm192, %v184, %v191
    %vm194 = vcmp.eq.f32.partialorder %v184, 0.0
    %v195 = vand.u32 %v184, 2147483648
    %v196 = vsel %vm194, %v195, %v193
    %v197 = vmax.f32 %v196, 1e-12
    %v198 = vrcp.pop %v197
    %v199 = vmul.f32 %v197, %v198
    %v200 = vsub.f32 1.0, %v199
    %v201 = vmul.f32 %v198, %v200
    %v202 = vadd.f32 %v198, %v201
    %vm203 = vweird.f32 %v197
    %vm204 = vweird.f32 %v198
    %vm205 = vmor %vm203, %vm204
    %v206 = vsel %vm205, %v198, %v202
    %v207 = vand.u32 2147483647, %v197
    %vm208 = vcmp.eq.f32.partialorder %v207, 8.507059e+37
    %v209 = vand.u32 %v197, 2147483648
    %v210 = vor.u32 1.1754944e-38, %v209
    %v211 = vsel %vm208, %v210, %v206
    %v212 = vmul.f32 %v177, %v211
    %213 = vst [vmem:[#allocation2] sm:$0x3] %v212
    // Predicated region
    $region14: #{_lambda_.35} parent=1 // pred_check
      _
    $region15: #{_lambda_.35} parent=1 // pred_check_branch
      %215 = sbr.rel (0) target = $region17
    $region16: #{_lambda_.35} parent=1 // pred_region
      %217 = vsyncadd [#allocation3], 0
      %s219 = sshll.u32 [#allocation2], 4
      %s220 = int_to_ptr.vmem [resolvable:$true] %s219
      %s221 = sshll.u32 %s3, 4
      %s222 = int_to_ptr.hbm [resolvable:$true] %s221
      %224 = dma.vmem_to_hbm [thread:$0]  %s220, 32, %s222, [#allocation3]
    $region17: #{_lambda_.35} parent=1 // pred_fallthru
      _
    // Predicated region
    $region18: #{_lambda_.35} parent=1 // pred_check
      _
    $region19: #{_lambda_.35} parent=1 // pred_check_branch
      %226 = sbr.rel (0) target = $region21
    $region20: #{_lambda_.35} parent=1 // pred_region
      %228 = dma.done [#allocation3], 32
    $region21: #{_lambda_.35} parent=1 // pred_fallthru
      _
    %229 = vsyncpa [#allocation3], 1

</llo_original>
